<compile_context>
chip_gen: v7x
topology: tpu7x:2x2x1
jax: 0.10.0
libtpu: 0.0.40
codegen_flags: <defaults>
</compile_context>

<pallas_src>
import functools
import math

import jax
import jax.numpy as jnp
from jax import lax
from jax.experimental import pallas as pl
from jax.experimental.pallas import tpu as pltpu


# --------------------------------------------------------------------------
# Fused Pallas kernel (whole network, one batch element per grid step)
# --------------------------------------------------------------------------
def _gate(x, dim):
    # GatedActivation: chunk channels in two halves, tanh(x) * sigmoid(y)
    return jnp.tanh(x[:, :dim]) * jax.nn.sigmoid(x[:, dim:])


def _pixelcnn_kernel(*refs, layer_cfg, H, W, dim):
    """GatedPixelCNN forward for one batch element in j-major layout.

    Flat row m = j*H + i (image column j varies slowest), channels on lanes.
    Column shifts -> leading-axis ops (free); row shifts -> sublane roll of
    the conv matmul outputs; masked convs -> im2col matmuls with deep K.
    """
    f32 = jnp.float32
    M = H * W
    d2 = 2 * dim

    x_ref = refs[0]
    o_ref = refs[-1]
    weights = [r[...] for r in refs[1:-1]]
    it = iter(weights)

    # -------- input_conv: 1x1 -> ReLU -> 1x1 -------------------------------
    w1 = next(it); b1 = next(it); w2 = next(it); b2 = next(it)
    x = x_ref[0].astype(f32)                                       # (M, Cin)
    h = jnp.maximum(jnp.dot(x, w1, preferred_element_type=f32) + b1, 0.0)
    xo = jnp.dot(h, w2, preferred_element_type=f32) + b2           # (M, dim)
    x_v = xo
    x_h = xo

    # image-row index (sublane axis of the (W, H, C) view), used to zero the
    # rows that wrap around after a sublane roll.
    row_idx = lax.broadcasted_iota(jnp.int32, (1, H, 1), 1)

    # -------- gated masked conv layers --------------------------------------
    for cfg in layer_cfg:
        kwv = cfg["kernel"]
        p = kwv // 2
        kh_eff = cfg["kh_eff"]        # vertical row taps (mask 'A' pre-sliced)
        kwh_eff = cfg["kwh_eff"]      # horizontal column taps

        wv = next(it); bv = next(it)      # (kh_eff, kwv*dim, 2dim), (1, 2dim)
        wh = next(it); bh = next(it)      # (kwh_eff*dim, 2dim),    (1, 2dim)
        wv2h = next(it); bv2h = next(it)  # (2dim, 2dim),           (1, 2dim)
        wr = next(it); br = next(it)      # (dim, dim),             (1, dim)

        xv3 = x_v.reshape(W, H, dim)
        xh3 = x_h.reshape(W, H, dim)
        zpad = jnp.zeros((p, H, dim), f32)

        # ---- vertical stack: im2col over the kwv column taps (leading-axis
        # pad + free slices), one deep-K matmul per row tap; the row offset
        # (dr <= 0) is realized as a sublane roll + mask of the matmul output.
        xv_wide = jnp.concatenate([zpad, xv3, zpad], axis=0)   # (W+2p, H, dim)
        vpatch = jnp.concatenate(
            [xv_wide[c:c + W] for c in range(kwv)], axis=-1
        ).reshape(M, kwv * dim)                                # (M, kwv*dim)
        h_vert = jnp.zeros((M, d2), f32) + bv
        for rr in range(kh_eff):
            dr = rr - p                                        # <= 0 (causal)
            z = jnp.dot(vpatch, wv[rr], preferred_element_type=f32)  # (M, 2dim)
            if dr != 0:
                s = -dr
                z3 = pltpu.roll(z.reshape(W, H, d2), shift=s, axis=1)
                z = jnp.where(row_idx >= s, z3, 0.0).reshape(M, d2)
            h_vert = h_vert + z

        # ---- horizontal stack: columns j-p..j-1 (mask 'A') / j-p..j ('B'),
        # single matmul with K = kwh_eff*dim.
        xh_wide = jnp.concatenate([zpad, xh3], axis=0)         # (W+p, H, dim)
        hpatch = jnp.concatenate(
            [xh_wide[c:c + W] for c in range(kwh_eff)], axis=-1
        ).reshape(M, kwh_eff * dim)
        h_horiz = jnp.dot(hpatch, wh, preferred_element_type=f32) + bh

        # ---- 1x1 vertical -> horizontal, gates, residual 1x1
        v2h = jnp.dot(h_vert, wv2h, preferred_element_type=f32) + bv2h
        out_v = _gate(h_vert, dim)
        gate_h = _gate(v2h + h_horiz, dim)
        out_h = jnp.dot(gate_h, wr, preferred_element_type=f32) + br
        if cfg["residual"]:
            out_h = out_h + x_h

        x_v = out_v
        x_h = out_h

    # -------- output_conv: 1x1 -> ReLU -> 1x1, computed transposed so the
    # single HBM store is lane-dense: (out_dim, H*W).
    ow1 = next(it); ob1 = next(it); ow2_t = next(it); ob2_t = next(it)
    hh = jnp.maximum(jnp.dot(x_h, ow1, preferred_element_type=f32) + ob1, 0.0)
    out_t = lax.dot_general(ow2_t, hh, (((1,), (1,)), ((), ())),
                            preferred_element_type=f32) + ob2_t  # (out_dim, M)
    o_ref[0] = out_t.astype(o_ref.dtype)


# --------------------------------------------------------------------------
# Wrapper
# --------------------------------------------------------------------------
def _const_spec(shape):
    zeros = (0,) * len(shape)
    return pl.BlockSpec(shape, lambda n: zeros)


def gated_pixelcnn_forward(params, x_nchw):
    N, cin, H, W = x_nchw.shape
    assert H == W, "reference output slicing assumes square feature maps"
    dim = params["dim"]
    out_dim = params["output_dim"]
    M = H * W

    # j-major flattening: xj[n, j*H + i, c] = x[n, c, i, j]
    xj = jnp.transpose(x_nchw, (0, 3, 2, 1)).reshape(N, M, cin).astype(jnp.float32)

    inputs = [xj,
              params["in_w1"], params["in_b1"], params["in_w2"], params["in_b2"]]
    layer_cfg = []
    for lp in params["layers"]:
        layer_cfg.append(dict(kernel=lp["kernel"],
                              kh_eff=lp["wv"].shape[0],
                              kwh_eff=lp["wh"].shape[0] // dim,
                              residual=lp["residual"]))
        inputs += [lp["wv"], lp["bv"], lp["wh"], lp["bh"],
                   lp["wv2h"], lp["bv2h"], lp["wr"], lp["br"]]
    inputs += [params["out_w1"], params["out_b1"],
               params["out_w2_t"], params["out_b2_t"]]

    in_specs = [pl.BlockSpec((1, M, cin), lambda n: (n, 0, 0))]
    in_specs += [_const_spec(a.shape) for a in inputs[1:]]

    kern = functools.partial(_pixelcnn_kernel, layer_cfg=tuple(layer_cfg),
                             H=H, W=W, dim=dim)
    out_t = pl.pallas_call(
        kern,
        out_shape=jax.ShapeDtypeStruct((N, out_dim, M), jnp.float32),
        grid=(N,),
        in_specs=in_specs,
        out_specs=pl.BlockSpec((1, out_dim, M), lambda n: (n, 0, 0)),
        compiler_params=pltpu.CompilerParams(
            dimension_semantics=("parallel",)),
    )(*inputs)

    # (N, out_dim, W*H) j-major -> (N, out_dim, W, H) -> NCHW (N, out_dim, H, W)
    return jnp.swapaxes(out_t.reshape(N, out_dim, W, H), 2, 3)


# --------------------------------------------------------------------------
# Parameter construction (deterministic, synthetic)
# --------------------------------------------------------------------------
def _xavier_uniform(key, shape, fan_in, fan_out):
    bound = math.sqrt(6.0 / (fan_in + fan_out))
    return jax.random.uniform(key, shape, jnp.float32, -bound, bound)


def init_gated_pixelcnn_params(key, input_dim=4, output_dim=4, dim=32,
                               n_layers=3, output_projection_size=64,
                               last_layer_bias=0.0):
    keys = iter(jax.random.split(key, 8 + 8 * n_layers))
    d2 = 2 * dim
    params = {
        "dim": dim,
        "output_dim": output_dim,
        # input_conv: Conv2d(input_dim, dim, 1) -> ReLU -> Conv2d(dim, dim, 1)
        "in_w1": _xavier_uniform(next(keys), (input_dim, dim), input_dim, dim),
        "in_b1": jnp.zeros((1, dim), jnp.float32),
        "in_w2": _xavier_uniform(next(keys), (dim, dim), dim, dim),
        "in_b2": jnp.zeros((1, dim), jnp.float32),
        # output_conv: Conv2d(dim, proj, 1) -> ReLU -> Conv2d(proj, out, 1)
        # (last 1x1 conv stored transposed for a lane-dense transposed store)
        "out_w1": _xavier_uniform(next(keys), (dim, output_projection_size),
                                  dim, output_projection_size),
        "out_b1": jnp.zeros((1, output_projection_size), jnp.float32),
        "out_w2_t": _xavier_uniform(next(keys),
                                    (output_dim, output_projection_size),
                                    output_projection_size, output_dim),
        "out_b2_t": jnp.full((output_dim, 1), last_layer_bias, jnp.float32),
        "layers": [],
    }
    for i in range(n_layers):
        kernel = 7 if i == 0 else 3
        p = kernel // 2
        mask_a = (i == 0)
        kh, kwv, kwh = p + 1, kernel, p + 1
        kh_eff = kh - 1 if mask_a else kh      # make_causal zeros the last row
        kwh_eff = kwh - 1 if mask_a else kwh   # ... and the last column
        wv = _xavier_uniform(next(keys), (kh_eff, kwv, dim, d2),
                             dim * kh * kwv, d2 * kh * kwv)
        wh = _xavier_uniform(next(keys), (kwh_eff, dim, d2),
                             dim * kwh, d2 * kwh)
        lp = {
            "kernel": kernel,
            "mask": "A" if mask_a else "B",
            "residual": i > 0,
            # causal (zeroed) taps sliced out; im2col-flat: lane = tap*dim + cin
            "wv": wv.reshape(kh_eff, kwv * dim, d2),
            "bv": jnp.zeros((1, d2), jnp.float32),
            "wh": wh.reshape(kwh_eff * dim, d2),
            "bh": jnp.zeros((1, d2), jnp.float32),
            "wv2h": _xavier_uniform(next(keys), (d2, d2), d2, d2),
            "bv2h": jnp.zeros((1, d2), jnp.float32),
            "wr": _xavier_uniform(next(keys), (dim, dim), dim, dim),
            "br": jnp.zeros((1, dim), jnp.float32),
        }
        params["layers"].append(lp)
    return params


if __name__ == "__main__":
    key = jax.random.PRNGKey(0)
    pkey, xkey = jax.random.split(key)
    N, C, H, W = 2, 4, 16, 16
    params = init_gated_pixelcnn_params(pkey, input_dim=C, output_dim=C,
                                        dim=32, n_layers=3,
                                        output_projection_size=64)
    x = jax.random.normal(xkey, (N, C, H, W), jnp.float32)

    fwd = jax.jit(functools.partial(gated_pixelcnn_forward, params))
    out = jax.block_until_ready(fwd(x))

    assert out.shape == (N, C, H, W)
    assert bool(jnp.all(jnp.isfinite(out)))
    print("KERNEL_OK")
</pallas_src>

<mosaic_0001>
module attributes {stable_mosaic.version = 11 : i64} {
  func.func @_pixelcnn_kernel(%arg0: i32, %arg1: memref<1x256x4xf32, #tpu.memory_space<vmem>>, %arg2: memref<4x32xf32, #tpu.memory_space<vmem>>, %arg3: memref<1x32xf32, #tpu.memory_space<vmem>>, %arg4: memref<32x32xf32, #tpu.memory_space<vmem>>, %arg5: memref<1x32xf32, #tpu.memory_space<vmem>>, %arg6: memref<3x224x64xf32, #tpu.memory_space<vmem>>, %arg7: memref<1x64xf32, #tpu.memory_space<vmem>>, %arg8: memref<96x64xf32, #tpu.memory_space<vmem>>, %arg9: memref<1x64xf32, #tpu.memory_space<vmem>>, %arg10: memref<64x64xf32, #tpu.memory_space<vmem>>, %arg11: memref<1x64xf32, #tpu.memory_space<vmem>>, %arg12: memref<32x32xf32, #tpu.memory_space<vmem>>, %arg13: memref<1x32xf32, #tpu.memory_space<vmem>>, %arg14: memref<2x96x64xf32, #tpu.memory_space<vmem>>, %arg15: memref<1x64xf32, #tpu.memory_space<vmem>>, %arg16: memref<64x64xf32, #tpu.memory_space<vmem>>, %arg17: memref<1x64xf32, #tpu.memory_space<vmem>>, %arg18: memref<64x64xf32, #tpu.memory_space<vmem>>, %arg19: memref<1x64xf32, #tpu.memory_space<vmem>>, %arg20: memref<32x32xf32, #tpu.memory_space<vmem>>, %arg21: memref<1x32xf32, #tpu.memory_space<vmem>>, %arg22: memref<2x96x64xf32, #tpu.memory_space<vmem>>, %arg23: memref<1x64xf32, #tpu.memory_space<vmem>>, %arg24: memref<64x64xf32, #tpu.memory_space<vmem>>, %arg25: memref<1x64xf32, #tpu.memory_space<vmem>>, %arg26: memref<64x64xf32, #tpu.memory_space<vmem>>, %arg27: memref<1x64xf32, #tpu.memory_space<vmem>>, %arg28: memref<32x32xf32, #tpu.memory_space<vmem>>, %arg29: memref<1x32xf32, #tpu.memory_space<vmem>>, %arg30: memref<32x64xf32, #tpu.memory_space<vmem>>, %arg31: memref<1x64xf32, #tpu.memory_space<vmem>>, %arg32: memref<4x64xf32, #tpu.memory_space<vmem>>, %arg33: memref<4x1xf32, #tpu.memory_space<vmem>>, %arg34: memref<1x4x256xf32, #tpu.memory_space<vmem>>) attributes {dimension_semantics = [#tpu.dimension_semantics<parallel>], iteration_bounds = array<i64: 2>, scalar_prefetch = 0 : i64, scratch_operands = 0 : i64, tpu.core_type = #tpu.core_type<tc>, window_params = [{transform_indices = @transform_0, window_bounds = array<i64: 1, 256, 4>}, {pipeline_mode = #tpu.pipeline_mode<synchronous>, transform_indices = @transform_1, window_bounds = array<i64: 4, 32>}, {pipeline_mode = #tpu.pipeline_mode<synchronous>, transform_indices = @transform_2, window_bounds = array<i64: 1, 32>}, {pipeline_mode = #tpu.pipeline_mode<synchronous>, transform_indices = @transform_3, window_bounds = array<i64: 32, 32>}, {pipeline_mode = #tpu.pipeline_mode<synchronous>, transform_indices = @transform_4, window_bounds = array<i64: 1, 32>}, {pipeline_mode = #tpu.pipeline_mode<synchronous>, transform_indices = @transform_5, window_bounds = array<i64: 3, 224, 64>}, {pipeline_mode = #tpu.pipeline_mode<synchronous>, transform_indices = @transform_6, window_bounds = array<i64: 1, 64>}, {pipeline_mode = #tpu.pipeline_mode<synchronous>, transform_indices = @transform_7, window_bounds = array<i64: 96, 64>}, {pipeline_mode = #tpu.pipeline_mode<synchronous>, transform_indices = @transform_8, window_bounds = array<i64: 1, 64>}, {pipeline_mode = #tpu.pipeline_mode<synchronous>, transform_indices = @transform_9, window_bounds = array<i64: 64, 64>}, {pipeline_mode = #tpu.pipeline_mode<synchronous>, transform_indices = @transform_10, window_bounds = array<i64: 1, 64>}, {pipeline_mode = #tpu.pipeline_mode<synchronous>, transform_indices = @transform_11, window_bounds = array<i64: 32, 32>}, {pipeline_mode = #tpu.pipeline_mode<synchronous>, transform_indices = @transform_12, window_bounds = array<i64: 1, 32>}, {pipeline_mode = #tpu.pipeline_mode<synchronous>, transform_indices = @transform_13, window_bounds = array<i64: 2, 96, 64>}, {pipeline_mode = #tpu.pipeline_mode<synchronous>, transform_indices = @transform_14, window_bounds = array<i64: 1, 64>}, {pipeline_mode = #tpu.pipeline_mode<synchronous>, transform_indices = @transform_15, window_bounds = array<i64: 64, 64>}, {pipeline_mode = #tpu.pipeline_mode<synchronous>, transform_indices = @transform_16, window_bounds = array<i64: 1, 64>}, {pipeline_mode = #tpu.pipeline_mode<synchronous>, transform_indices = @transform_17, window_bounds = array<i64: 64, 64>}, {pipeline_mode = #tpu.pipeline_mode<synchronous>, transform_indices = @transform_18, window_bounds = array<i64: 1, 64>}, {pipeline_mode = #tpu.pipeline_mode<synchronous>, transform_indices = @transform_19, window_bounds = array<i64: 32, 32>}, {pipeline_mode = #tpu.pipeline_mode<synchronous>, transform_indices = @transform_20, window_bounds = array<i64: 1, 32>}, {pipeline_mode = #tpu.pipeline_mode<synchronous>, transform_indices = @transform_21, window_bounds = array<i64: 2, 96, 64>}, {pipeline_mode = #tpu.pipeline_mode<synchronous>, transform_indices = @transform_22, window_bounds = array<i64: 1, 64>}, {pipeline_mode = #tpu.pipeline_mode<synchronous>, transform_indices = @transform_23, window_bounds = array<i64: 64, 64>}, {pipeline_mode = #tpu.pipeline_mode<synchronous>, transform_indices = @transform_24, window_bounds = array<i64: 1, 64>}, {pipeline_mode = #tpu.pipeline_mode<synchronous>, transform_indices = @transform_25, window_bounds = array<i64: 64, 64>}, {pipeline_mode = #tpu.pipeline_mode<synchronous>, transform_indices = @transform_26, window_bounds = array<i64: 1, 64>}, {pipeline_mode = #tpu.pipeline_mode<synchronous>, transform_indices = @transform_27, window_bounds = array<i64: 32, 32>}, {pipeline_mode = #tpu.pipeline_mode<synchronous>, transform_indices = @transform_28, window_bounds = array<i64: 1, 32>}, {pipeline_mode = #tpu.pipeline_mode<synchronous>, transform_indices = @transform_29, window_bounds = array<i64: 32, 64>}, {pipeline_mode = #tpu.pipeline_mode<synchronous>, transform_indices = @transform_30, window_bounds = array<i64: 1, 64>}, {pipeline_mode = #tpu.pipeline_mode<synchronous>, transform_indices = @transform_31, window_bounds = array<i64: 4, 64>}, {pipeline_mode = #tpu.pipeline_mode<synchronous>, transform_indices = @transform_32, window_bounds = array<i64: 4, 1>}, {transform_indices = @transform_33, window_bounds = array<i64: 1, 4, 256>}]} {
    %c0 = arith.constant 0 : index
    %c0_0 = arith.constant 0 : index
    %0 = vector.load %arg2[%c0, %c0_0] : memref<4x32xf32, #tpu.memory_space<vmem>>, vector<4x32xf32>
    %c0_1 = arith.constant 0 : index
    %c0_2 = arith.constant 0 : index
    %1 = vector.load %arg3[%c0_1, %c0_2] : memref<1x32xf32, #tpu.memory_space<vmem>>, vector<1x32xf32>
    %c0_3 = arith.constant 0 : index
    %c0_4 = arith.constant 0 : index
    %2 = vector.load %arg4[%c0_3, %c0_4] : memref<32x32xf32, #tpu.memory_space<vmem>>, vector<32x32xf32>
    %c0_5 = arith.constant 0 : index
    %c0_6 = arith.constant 0 : index
    %3 = vector.load %arg5[%c0_5, %c0_6] : memref<1x32xf32, #tpu.memory_space<vmem>>, vector<1x32xf32>
    %c0_7 = arith.constant 0 : index
    %c0_8 = arith.constant 0 : index
    %c0_9 = arith.constant 0 : index
    %4 = vector.load %arg6[%c0_7, %c0_8, %c0_9] : memref<3x224x64xf32, #tpu.memory_space<vmem>>, vector<3x224x64xf32>
    %c0_10 = arith.constant 0 : index
    %c0_11 = arith.constant 0 : index
    %5 = vector.load %arg7[%c0_10, %c0_11] : memref<1x64xf32, #tpu.memory_space<vmem>>, vector<1x64xf32>
    %c0_12 = arith.constant 0 : index
    %c0_13 = arith.constant 0 : index
    %6 = vector.load %arg8[%c0_12, %c0_13] : memref<96x64xf32, #tpu.memory_space<vmem>>, vector<96x64xf32>
    %c0_14 = arith.constant 0 : index
    %c0_15 = arith.constant 0 : index
    %7 = vector.load %arg9[%c0_14, %c0_15] : memref<1x64xf32, #tpu.memory_space<vmem>>, vector<1x64xf32>
    %c0_16 = arith.constant 0 : index
    %c0_17 = arith.constant 0 : index
    %8 = vector.load %arg10[%c0_16, %c0_17] : memref<64x64xf32, #tpu.memory_space<vmem>>, vector<64x64xf32>
    %c0_18 = arith.constant 0 : index
    %c0_19 = arith.constant 0 : index
    %9 = vector.load %arg11[%c0_18, %c0_19] : memref<1x64xf32, #tpu.memory_space<vmem>>, vector<1x64xf32>
    %c0_20 = arith.constant 0 : index
    %c0_21 = arith.constant 0 : index
    %10 = vector.load %arg12[%c0_20, %c0_21] : memref<32x32xf32, #tpu.memory_space<vmem>>, vector<32x32xf32>
    %c0_22 = arith.constant 0 : index
    %c0_23 = arith.constant 0 : index
    %11 = vector.load %arg13[%c0_22, %c0_23] : memref<1x32xf32, #tpu.memory_space<vmem>>, vector<1x32xf32>
    %c0_24 = arith.constant 0 : index
    %c0_25 = arith.constant 0 : index
    %c0_26 = arith.constant 0 : index
    %12 = vector.load %arg14[%c0_24, %c0_25, %c0_26] : memref<2x96x64xf32, #tpu.memory_space<vmem>>, vector<2x96x64xf32>
    %c0_27 = arith.constant 0 : index
    %c0_28 = arith.constant 0 : index
    %13 = vector.load %arg15[%c0_27, %c0_28] : memref<1x64xf32, #tpu.memory_space<vmem>>, vector<1x64xf32>
    %c0_29 = arith.constant 0 : index
    %c0_30 = arith.constant 0 : index
    %14 = vector.load %arg16[%c0_29, %c0_30] : memref<64x64xf32, #tpu.memory_space<vmem>>, vector<64x64xf32>
    %c0_31 = arith.constant 0 : index
    %c0_32 = arith.constant 0 : index
    %15 = vector.load %arg17[%c0_31, %c0_32] : memref<1x64xf32, #tpu.memory_space<vmem>>, vector<1x64xf32>
    %c0_33 = arith.constant 0 : index
    %c0_34 = arith.constant 0 : index
    %16 = vector.load %arg18[%c0_33, %c0_34] : memref<64x64xf32, #tpu.memory_space<vmem>>, vector<64x64xf32>
    %c0_35 = arith.constant 0 : index
    %c0_36 = arith.constant 0 : index
    %17 = vector.load %arg19[%c0_35, %c0_36] : memref<1x64xf32, #tpu.memory_space<vmem>>, vector<1x64xf32>
    %c0_37 = arith.constant 0 : index
    %c0_38 = arith.constant 0 : index
    %18 = vector.load %arg20[%c0_37, %c0_38] : memref<32x32xf32, #tpu.memory_space<vmem>>, vector<32x32xf32>
    %c0_39 = arith.constant 0 : index
    %c0_40 = arith.constant 0 : index
    %19 = vector.load %arg21[%c0_39, %c0_40] : memref<1x32xf32, #tpu.memory_space<vmem>>, vector<1x32xf32>
    %c0_41 = arith.constant 0 : index
    %c0_42 = arith.constant 0 : index
    %c0_43 = arith.constant 0 : index
    %20 = vector.load %arg22[%c0_41, %c0_42, %c0_43] : memref<2x96x64xf32, #tpu.memory_space<vmem>>, vector<2x96x64xf32>
    %c0_44 = arith.constant 0 : index
    %c0_45 = arith.constant 0 : index
    %21 = vector.load %arg23[%c0_44, %c0_45] : memref<1x64xf32, #tpu.memory_space<vmem>>, vector<1x64xf32>
    %c0_46 = arith.constant 0 : index
    %c0_47 = arith.constant 0 : index
    %22 = vector.load %arg24[%c0_46, %c0_47] : memref<64x64xf32, #tpu.memory_space<vmem>>, vector<64x64xf32>
    %c0_48 = arith.constant 0 : index
    %c0_49 = arith.constant 0 : index
    %23 = vector.load %arg25[%c0_48, %c0_49] : memref<1x64xf32, #tpu.memory_space<vmem>>, vector<1x64xf32>
    %c0_50 = arith.constant 0 : index
    %c0_51 = arith.constant 0 : index
    %24 = vector.load %arg26[%c0_50, %c0_51] : memref<64x64xf32, #tpu.memory_space<vmem>>, vector<64x64xf32>
    %c0_52 = arith.constant 0 : index
    %c0_53 = arith.constant 0 : index
    %25 = vector.load %arg27[%c0_52, %c0_53] : memref<1x64xf32, #tpu.memory_space<vmem>>, vector<1x64xf32>
    %c0_54 = arith.constant 0 : index
    %c0_55 = arith.constant 0 : index
    %26 = vector.load %arg28[%c0_54, %c0_55] : memref<32x32xf32, #tpu.memory_space<vmem>>, vector<32x32xf32>
    %c0_56 = arith.constant 0 : index
    %c0_57 = arith.constant 0 : index
    %27 = vector.load %arg29[%c0_56, %c0_57] : memref<1x32xf32, #tpu.memory_space<vmem>>, vector<1x32xf32>
    %c0_58 = arith.constant 0 : index
    %c0_59 = arith.constant 0 : index
    %28 = vector.load %arg30[%c0_58, %c0_59] : memref<32x64xf32, #tpu.memory_space<vmem>>, vector<32x64xf32>
    %c0_60 = arith.constant 0 : index
    %c0_61 = arith.constant 0 : index
    %29 = vector.load %arg31[%c0_60, %c0_61] : memref<1x64xf32, #tpu.memory_space<vmem>>, vector<1x64xf32>
    %c0_62 = arith.constant 0 : index
    %c0_63 = arith.constant 0 : index
    %30 = vector.load %arg32[%c0_62, %c0_63] : memref<4x64xf32, #tpu.memory_space<vmem>>, vector<4x64xf32>
    %c0_64 = arith.constant 0 : index
    %c0_65 = arith.constant 0 : index
    %31 = vector.load %arg33[%c0_64, %c0_65] : memref<4x1xf32, #tpu.memory_space<vmem>>, vector<4x1xf32>
    %c0_66 = arith.constant 0 : index
    %c0_67 = arith.constant 0 : index
    %c0_68 = arith.constant 0 : index
    %32 = vector.load %arg1[%c0_66, %c0_67, %c0_68] : memref<1x256x4xf32, #tpu.memory_space<vmem>>, vector<1x256x4xf32>
    %33 = vector.shape_cast %32 : vector<1x256x4xf32> to vector<256x4xf32>
    %cst = arith.constant dense<0.000000e+00> : vector<256x32xf32>
    %34 = tpu.matmul %33, %0, %cst {dimension_numbers = #tpu.dot_dimension_numbers<[1], [0], [0], [1], [0, 0, 1, 1], [], []>} : vector<256x4xf32>, vector<4x32xf32>, vector<256x32xf32> -> vector<256x32xf32>
    %35 = vector.broadcast %1 : vector<1x32xf32> to vector<256x32xf32>
    %36 = arith.addf %34, %35 : vector<256x32xf32>
    %cst_69 = arith.constant 0.000000e+00 : f32
    %37 = vector.broadcast %cst_69 : f32 to vector<256x32xf32>
    %38 = arith.maximumf %36, %37 : vector<256x32xf32>
    %cst_70 = arith.constant dense<0.000000e+00> : vector<256x32xf32>
    %39 = tpu.matmul %38, %2, %cst_70 {dimension_numbers = #tpu.dot_dimension_numbers<[1], [0], [0], [1], [0, 0, 1, 1], [], []>} : vector<256x32xf32>, vector<32x32xf32>, vector<256x32xf32> -> vector<256x32xf32>
    %40 = vector.broadcast %3 : vector<1x32xf32> to vector<256x32xf32>
    %41 = arith.addf %39, %40 : vector<256x32xf32>
    %42 = tpu.iota {dimensions = array<i32: 1>} : vector<1x16x1xi32>
    %43 = vector.shape_cast %41 : vector<256x32xf32> to vector<16x16x32xf32>
    %44 = vector.shape_cast %41 : vector<256x32xf32> to vector<16x16x32xf32>
    %cst_71 = arith.constant 0.000000e+00 : f32
    %45 = vector.broadcast %cst_71 : f32 to vector<3x16x32xf32>
    %46 = tpu.concatenate %45, %43, %45 in 0 : vector<3x16x32xf32>, vector<16x16x32xf32>, vector<3x16x32xf32> -> vector<22x16x32xf32>
    %47 = vector.extract_strided_slice %46 {offsets = [0, 0, 0], sizes = [16, 16, 32], strides = [1, 1, 1]} : vector<22x16x32xf32> to vector<16x16x32xf32>
    %48 = vector.extract_strided_slice %46 {offsets = [1, 0, 0], sizes = [16, 16, 32], strides = [1, 1, 1]} : vector<22x16x32xf32> to vector<16x16x32xf32>
    %49 = vector.extract_strided_slice %46 {offsets = [2, 0, 0], sizes = [16, 16, 32], strides = [1, 1, 1]} : vector<22x16x32xf32> to vector<16x16x32xf32>
    %50 = vector.extract_strided_slice %46 {offsets = [3, 0, 0], sizes = [16, 16, 32], strides = [1, 1, 1]} : vector<22x16x32xf32> to vector<16x16x32xf32>
    %51 = vector.extract_strided_slice %46 {offsets = [4, 0, 0], sizes = [16, 16, 32], strides = [1, 1, 1]} : vector<22x16x32xf32> to vector<16x16x32xf32>
    %52 = vector.extract_strided_slice %46 {offsets = [5, 0, 0], sizes = [16, 16, 32], strides = [1, 1, 1]} : vector<22x16x32xf32> to vector<16x16x32xf32>
    %53 = vector.extract_strided_slice %46 {offsets = [6, 0, 0], sizes = [16, 16, 32], strides = [1, 1, 1]} : vector<22x16x32xf32> to vector<16x16x32xf32>
    %54 = tpu.concatenate %47, %48, %49, %50, %51, %52, %53 in 2 : vector<16x16x32xf32>, vector<16x16x32xf32>, vector<16x16x32xf32>, vector<16x16x32xf32>, vector<16x16x32xf32>, vector<16x16x32xf32>, vector<16x16x32xf32> -> vector<16x16x224xf32>
    %55 = vector.shape_cast %54 : vector<16x16x224xf32> to vector<256x224xf32>
    %cst_72 = arith.constant 0.000000e+00 : f32
    %56 = vector.broadcast %cst_72 : f32 to vector<256x64xf32>
    %57 = vector.broadcast %5 : vector<1x64xf32> to vector<256x64xf32>
    %58 = arith.addf %56, %57 : vector<256x64xf32>
    %59 = vector.extract_strided_slice %4 {offsets = [0, 0, 0], sizes = [1, 224, 64], strides = [1, 1, 1]} : vector<3x224x64xf32> to vector<1x224x64xf32>
    %60 = vector.shape_cast %59 : vector<1x224x64xf32> to vector<224x64xf32>
    %cst_73 = arith.constant dense<0.000000e+00> : vector<256x64xf32>
    %61 = tpu.matmul %55, %60, %cst_73 {dimension_numbers = #tpu.dot_dimension_numbers<[1], [0], [0], [1], [0, 0, 1, 1], [], []>} : vector<256x224xf32>, vector<224x64xf32>, vector<256x64xf32> -> vector<256x64xf32>
    %62 = vector.shape_cast %61 : vector<256x64xf32> to vector<16x16x64xf32>
    %c3_i32 = arith.constant 3 : i32
    %63 = tpu.dynamic_rotate %62 by %c3_i32 dim 1 : vector<16x16x64xf32>, i32 -> vector<16x16x64xf32>
    %c3_i32_74 = arith.constant 3 : i32
    %64 = vector.broadcast %c3_i32_74 : i32 to vector<1x16x1xi32>
    %65 = arith.cmpi sge, %42, %64 : vector<1x16x1xi32>
    %cst_75 = arith.constant 0.000000e+00 : f32
    %66 = vector.shape_cast %65 : vector<1x16x1xi1> to vector<1x16x1xi1>
    %67 = vector.broadcast %66 : vector<1x16x1xi1> to vector<16x16x64xi1>
    %68 = vector.broadcast %cst_75 : f32 to vector<16x16x64xf32>
    %69 = arith.select %67, %63, %68 : vector<16x16x64xi1>, vector<16x16x64xf32>
    %70 = vector.shape_cast %69 : vector<16x16x64xf32> to vector<256x64xf32>
    %71 = arith.addf %58, %70 : vector<256x64xf32>
    %72 = vector.extract_strided_slice %4 {offsets = [1, 0, 0], sizes = [1, 224, 64], strides = [1, 1, 1]} : vector<3x224x64xf32> to vector<1x224x64xf32>
    %73 = vector.shape_cast %72 : vector<1x224x64xf32> to vector<224x64xf32>
    %cst_76 = arith.constant dense<0.000000e+00> : vector<256x64xf32>
    %74 = tpu.matmul %55, %73, %cst_76 {dimension_numbers = #tpu.dot_dimension_numbers<[1], [0], [0], [1], [0, 0, 1, 1], [], []>} : vector<256x224xf32>, vector<224x64xf32>, vector<256x64xf32> -> vector<256x64xf32>
    %75 = vector.shape_cast %74 : vector<256x64xf32> to vector<16x16x64xf32>
    %c2_i32 = arith.constant 2 : i32
    %76 = tpu.dynamic_rotate %75 by %c2_i32 dim 1 : vector<16x16x64xf32>, i32 -> vector<16x16x64xf32>
    %c2_i32_77 = arith.constant 2 : i32
    %77 = vector.broadcast %c2_i32_77 : i32 to vector<1x16x1xi32>
    %78 = arith.cmpi sge, %42, %77 : vector<1x16x1xi32>
    %cst_78 = arith.constant 0.000000e+00 : f32
    %79 = vector.shape_cast %78 : vector<1x16x1xi1> to vector<1x16x1xi1>
    %80 = vector.broadcast %79 : vector<1x16x1xi1> to vector<16x16x64xi1>
    %81 = vector.broadcast %cst_78 : f32 to vector<16x16x64xf32>
    %82 = arith.select %80, %76, %81 : vector<16x16x64xi1>, vector<16x16x64xf32>
    %83 = vector.shape_cast %82 : vector<16x16x64xf32> to vector<256x64xf32>
    %84 = arith.addf %71, %83 : vector<256x64xf32>
    %85 = vector.extract_strided_slice %4 {offsets = [2, 0, 0], sizes = [1, 224, 64], strides = [1, 1, 1]} : vector<3x224x64xf32> to vector<1x224x64xf32>
    %86 = vector.shape_cast %85 : vector<1x224x64xf32> to vector<224x64xf32>
    %cst_79 = arith.constant dense<0.000000e+00> : vector<256x64xf32>
    %87 = tpu.matmul %55, %86, %cst_79 {dimension_numbers = #tpu.dot_dimension_numbers<[1], [0], [0], [1], [0, 0, 1, 1], [], []>} : vector<256x224xf32>, vector<224x64xf32>, vector<256x64xf32> -> vector<256x64xf32>
    %88 = vector.shape_cast %87 : vector<256x64xf32> to vector<16x16x64xf32>
    %c1_i32 = arith.constant 1 : i32
    %89 = tpu.dynamic_rotate %88 by %c1_i32 dim 1 : vector<16x16x64xf32>, i32 -> vector<16x16x64xf32>
    %c1_i32_80 = arith.constant 1 : i32
    %90 = vector.broadcast %c1_i32_80 : i32 to vector<1x16x1xi32>
    %91 = arith.cmpi sge, %42, %90 : vector<1x16x1xi32>
    %cst_81 = arith.constant 0.000000e+00 : f32
    %92 = vector.shape_cast %91 : vector<1x16x1xi1> to vector<1x16x1xi1>
    %93 = vector.broadcast %92 : vector<1x16x1xi1> to vector<16x16x64xi1>
    %94 = vector.broadcast %cst_81 : f32 to vector<16x16x64xf32>
    %95 = arith.select %93, %89, %94 : vector<16x16x64xi1>, vector<16x16x64xf32>
    %96 = vector.shape_cast %95 : vector<16x16x64xf32> to vector<256x64xf32>
    %97 = arith.addf %84, %96 : vector<256x64xf32>
    %98 = tpu.concatenate %45, %44 in 0 : vector<3x16x32xf32>, vector<16x16x32xf32> -> vector<19x16x32xf32>
    %99 = vector.extract_strided_slice %98 {offsets = [0, 0, 0], sizes = [16, 16, 32], strides = [1, 1, 1]} : vector<19x16x32xf32> to vector<16x16x32xf32>
    %100 = vector.extract_strided_slice %98 {offsets = [1, 0, 0], sizes = [16, 16, 32], strides = [1, 1, 1]} : vector<19x16x32xf32> to vector<16x16x32xf32>
    %101 = vector.extract_strided_slice %98 {offsets = [2, 0, 0], sizes = [16, 16, 32], strides = [1, 1, 1]} : vector<19x16x32xf32> to vector<16x16x32xf32>
    %102 = tpu.concatenate %99, %100, %101 in 2 : vector<16x16x32xf32>, vector<16x16x32xf32>, vector<16x16x32xf32> -> vector<16x16x96xf32>
    %103 = vector.shape_cast %102 : vector<16x16x96xf32> to vector<256x96xf32>
    %cst_82 = arith.constant dense<0.000000e+00> : vector<256x64xf32>
    %104 = tpu.matmul %103, %6, %cst_82 {dimension_numbers = #tpu.dot_dimension_numbers<[1], [0], [0], [1], [0, 0, 1, 1], [], []>} : vector<256x96xf32>, vector<96x64xf32>, vector<256x64xf32> -> vector<256x64xf32>
    %105 = vector.broadcast %7 : vector<1x64xf32> to vector<256x64xf32>
    %106 = arith.addf %104, %105 : vector<256x64xf32>
    %cst_83 = arith.constant dense<0.000000e+00> : vector<256x64xf32>
    %107 = tpu.matmul %97, %8, %cst_83 {dimension_numbers = #tpu.dot_dimension_numbers<[1], [0], [0], [1], [0, 0, 1, 1], [], []>} : vector<256x64xf32>, vector<64x64xf32>, vector<256x64xf32> -> vector<256x64xf32>
    %108 = vector.broadcast %9 : vector<1x64xf32> to vector<256x64xf32>
    %109 = arith.addf %107, %108 : vector<256x64xf32>
    %110 = vector.extract_strided_slice %97 {offsets = [0, 0], sizes = [256, 32], strides = [1, 1]} : vector<256x64xf32> to vector<256x32xf32>
    %111 = math.tanh %110 : vector<256x32xf32>
    %112 = vector.extract_strided_slice %97 {offsets = [0, 32], sizes = [256, 32], strides = [1, 1]} : vector<256x64xf32> to vector<256x32xf32>
    %113 = arith.negf %112 : vector<256x32xf32>
    %114 = math.exp %113 : vector<256x32xf32>
    %cst_84 = arith.constant 1.000000e+00 : f32
    %115 = vector.broadcast %cst_84 : f32 to vector<256x32xf32>
    %116 = arith.addf %115, %114 : vector<256x32xf32>
    %117 = arith.divf %115, %116 : vector<256x32xf32>
    %118 = arith.mulf %111, %117 : vector<256x32xf32>
    %119 = arith.addf %109, %106 : vector<256x64xf32>
    %120 = vector.extract_strided_slice %119 {offsets = [0, 0], sizes = [256, 32], strides = [1, 1]} : vector<256x64xf32> to vector<256x32xf32>
    %121 = math.tanh %120 : vector<256x32xf32>
    %122 = vector.extract_strided_slice %119 {offsets = [0, 32], sizes = [256, 32], strides = [1, 1]} : vector<256x64xf32> to vector<256x32xf32>
    %123 = arith.negf %122 : vector<256x32xf32>
    %124 = math.exp %123 : vector<256x32xf32>
    %cst_85 = arith.constant 1.000000e+00 : f32
    %125 = vector.broadcast %cst_85 : f32 to vector<256x32xf32>
    %126 = arith.addf %125, %124 : vector<256x32xf32>
    %127 = arith.divf %125, %126 : vector<256x32xf32>
    %128 = arith.mulf %121, %127 : vector<256x32xf32>
    %cst_86 = arith.constant dense<0.000000e+00> : vector<256x32xf32>
    %129 = tpu.matmul %128, %10, %cst_86 {dimension_numbers = #tpu.dot_dimension_numbers<[1], [0], [0], [1], [0, 0, 1, 1], [], []>} : vector<256x32xf32>, vector<32x32xf32>, vector<256x32xf32> -> vector<256x32xf32>
    %130 = vector.broadcast %11 : vector<1x32xf32> to vector<256x32xf32>
    %131 = arith.addf %129, %130 : vector<256x32xf32>
    %132 = vector.shape_cast %118 : vector<256x32xf32> to vector<16x16x32xf32>
    %133 = vector.shape_cast %131 : vector<256x32xf32> to vector<16x16x32xf32>
    %cst_87 = arith.constant 0.000000e+00 : f32
    %134 = vector.broadcast %cst_87 : f32 to vector<1x16x32xf32>
    %135 = tpu.concatenate %134, %132, %134 in 0 : vector<1x16x32xf32>, vector<16x16x32xf32>, vector<1x16x32xf32> -> vector<18x16x32xf32>
    %136 = vector.extract_strided_slice %135 {offsets = [0, 0, 0], sizes = [16, 16, 32], strides = [1, 1, 1]} : vector<18x16x32xf32> to vector<16x16x32xf32>
    %137 = vector.extract_strided_slice %135 {offsets = [1, 0, 0], sizes = [16, 16, 32], strides = [1, 1, 1]} : vector<18x16x32xf32> to vector<16x16x32xf32>
    %138 = vector.extract_strided_slice %135 {offsets = [2, 0, 0], sizes = [16, 16, 32], strides = [1, 1, 1]} : vector<18x16x32xf32> to vector<16x16x32xf32>
    %139 = tpu.concatenate %136, %137, %138 in 2 : vector<16x16x32xf32>, vector<16x16x32xf32>, vector<16x16x32xf32> -> vector<16x16x96xf32>
    %140 = vector.shape_cast %139 : vector<16x16x96xf32> to vector<256x96xf32>
    %cst_88 = arith.constant 0.000000e+00 : f32
    %141 = vector.broadcast %cst_88 : f32 to vector<256x64xf32>
    %142 = vector.broadcast %13 : vector<1x64xf32> to vector<256x64xf32>
    %143 = arith.addf %141, %142 : vector<256x64xf32>
    %144 = vector.extract_strided_slice %12 {offsets = [0, 0, 0], sizes = [1, 96, 64], strides = [1, 1, 1]} : vector<2x96x64xf32> to vector<1x96x64xf32>
    %145 = vector.shape_cast %144 : vector<1x96x64xf32> to vector<96x64xf32>
    %cst_89 = arith.constant dense<0.000000e+00> : vector<256x64xf32>
    %146 = tpu.matmul %140, %145, %cst_89 {dimension_numbers = #tpu.dot_dimension_numbers<[1], [0], [0], [1], [0, 0, 1, 1], [], []>} : vector<256x96xf32>, vector<96x64xf32>, vector<256x64xf32> -> vector<256x64xf32>
    %147 = vector.shape_cast %146 : vector<256x64xf32> to vector<16x16x64xf32>
    %c1_i32_90 = arith.constant 1 : i32
    %148 = tpu.dynamic_rotate %147 by %c1_i32_90 dim 1 : vector<16x16x64xf32>, i32 -> vector<16x16x64xf32>
    %c1_i32_91 = arith.constant 1 : i32
    %149 = vector.broadcast %c1_i32_91 : i32 to vector<1x16x1xi32>
    %150 = arith.cmpi sge, %42, %149 : vector<1x16x1xi32>
    %cst_92 = arith.constant 0.000000e+00 : f32
    %151 = vector.shape_cast %150 : vector<1x16x1xi1> to vector<1x16x1xi1>
    %152 = vector.broadcast %151 : vector<1x16x1xi1> to vector<16x16x64xi1>
    %153 = vector.broadcast %cst_92 : f32 to vector<16x16x64xf32>
    %154 = arith.select %152, %148, %153 : vector<16x16x64xi1>, vector<16x16x64xf32>
    %155 = vector.shape_cast %154 : vector<16x16x64xf32> to vector<256x64xf32>
    %156 = arith.addf %143, %155 : vector<256x64xf32>
    %157 = vector.extract_strided_slice %12 {offsets = [1, 0, 0], sizes = [1, 96, 64], strides = [1, 1, 1]} : vector<2x96x64xf32> to vector<1x96x64xf32>
    %158 = vector.shape_cast %157 : vector<1x96x64xf32> to vector<96x64xf32>
    %cst_93 = arith.constant dense<0.000000e+00> : vector<256x64xf32>
    %159 = tpu.matmul %140, %158, %cst_93 {dimension_numbers = #tpu.dot_dimension_numbers<[1], [0], [0], [1], [0, 0, 1, 1], [], []>} : vector<256x96xf32>, vector<96x64xf32>, vector<256x64xf32> -> vector<256x64xf32>
    %160 = arith.addf %156, %159 : vector<256x64xf32>
    %161 = tpu.concatenate %134, %133 in 0 : vector<1x16x32xf32>, vector<16x16x32xf32> -> vector<17x16x32xf32>
    %162 = vector.extract_strided_slice %161 {offsets = [0, 0, 0], sizes = [16, 16, 32], strides = [1, 1, 1]} : vector<17x16x32xf32> to vector<16x16x32xf32>
    %163 = vector.extract_strided_slice %161 {offsets = [1, 0, 0], sizes = [16, 16, 32], strides = [1, 1, 1]} : vector<17x16x32xf32> to vector<16x16x32xf32>
    %164 = tpu.concatenate %162, %163 in 2 : vector<16x16x32xf32>, vector<16x16x32xf32> -> vector<16x16x64xf32>
    %165 = vector.shape_cast %164 : vector<16x16x64xf32> to vector<256x64xf32>
    %cst_94 = arith.constant dense<0.000000e+00> : vector<256x64xf32>
    %166 = tpu.matmul %165, %14, %cst_94 {dimension_numbers = #tpu.dot_dimension_numbers<[1], [0], [0], [1], [0, 0, 1, 1], [], []>} : vector<256x64xf32>, vector<64x64xf32>, vector<256x64xf32> -> vector<256x64xf32>
    %167 = vector.broadcast %15 : vector<1x64xf32> to vector<256x64xf32>
    %168 = arith.addf %166, %167 : vector<256x64xf32>
    %cst_95 = arith.constant dense<0.000000e+00> : vector<256x64xf32>
    %169 = tpu.matmul %160, %16, %cst_95 {dimension_numbers = #tpu.dot_dimension_numbers<[1], [0], [0], [1], [0, 0, 1, 1], [], []>} : vector<256x64xf32>, vector<64x64xf32>, vector<256x64xf32> -> vector<256x64xf32>
    %170 = vector.broadcast %17 : vector<1x64xf32> to vector<256x64xf32>
    %171 = arith.addf %169, %170 : vector<256x64xf32>
    %172 = vector.extract_strided_slice %160 {offsets = [0, 0], sizes = [256, 32], strides = [1, 1]} : vector<256x64xf32> to vector<256x32xf32>
    %173 = math.tanh %172 : vector<256x32xf32>
    %174 = vector.extract_strided_slice %160 {offsets = [0, 32], sizes = [256, 32], strides = [1, 1]} : vector<256x64xf32> to vector<256x32xf32>
    %175 = arith.negf %174 : vector<256x32xf32>
    %176 = math.exp %175 : vector<256x32xf32>
    %cst_96 = arith.constant 1.000000e+00 : f32
    %177 = vector.broadcast %cst_96 : f32 to vector<256x32xf32>
    %178 = arith.addf %177, %176 : vector<256x32xf32>
    %179 = arith.divf %177, %178 : vector<256x32xf32>
    %180 = arith.mulf %173, %179 : vector<256x32xf32>
    %181 = arith.addf %171, %168 : vector<256x64xf32>
    %182 = vector.extract_strided_slice %181 {offsets = [0, 0], sizes = [256, 32], strides = [1, 1]} : vector<256x64xf32> to vector<256x32xf32>
    %183 = math.tanh %182 : vector<256x32xf32>
    %184 = vector.extract_strided_slice %181 {offsets = [0, 32], sizes = [256, 32], strides = [1, 1]} : vector<256x64xf32> to vector<256x32xf32>
    %185 = arith.negf %184 : vector<256x32xf32>
    %186 = math.exp %185 : vector<256x32xf32>
    %cst_97 = arith.constant 1.000000e+00 : f32
    %187 = vector.broadcast %cst_97 : f32 to vector<256x32xf32>
    %188 = arith.addf %187, %186 : vector<256x32xf32>
    %189 = arith.divf %187, %188 : vector<256x32xf32>
    %190 = arith.mulf %183, %189 : vector<256x32xf32>
    %cst_98 = arith.constant dense<0.000000e+00> : vector<256x32xf32>
    %191 = tpu.matmul %190, %18, %cst_98 {dimension_numbers = #tpu.dot_dimension_numbers<[1], [0], [0], [1], [0, 0, 1, 1], [], []>} : vector<256x32xf32>, vector<32x32xf32>, vector<256x32xf32> -> vector<256x32xf32>
    %192 = vector.broadcast %19 : vector<1x32xf32> to vector<256x32xf32>
    %193 = arith.addf %191, %192 : vector<256x32xf32>
    %194 = arith.addf %193, %131 : vector<256x32xf32>
    %195 = vector.shape_cast %180 : vector<256x32xf32> to vector<16x16x32xf32>
    %196 = vector.shape_cast %194 : vector<256x32xf32> to vector<16x16x32xf32>
    %cst_99 = arith.constant 0.000000e+00 : f32
    %197 = vector.broadcast %cst_99 : f32 to vector<1x16x32xf32>
    %198 = tpu.concatenate %197, %195, %197 in 0 : vector<1x16x32xf32>, vector<16x16x32xf32>, vector<1x16x32xf32> -> vector<18x16x32xf32>
    %199 = vector.extract_strided_slice %198 {offsets = [0, 0, 0], sizes = [16, 16, 32], strides = [1, 1, 1]} : vector<18x16x32xf32> to vector<16x16x32xf32>
    %200 = vector.extract_strided_slice %198 {offsets = [1, 0, 0], sizes = [16, 16, 32], strides = [1, 1, 1]} : vector<18x16x32xf32> to vector<16x16x32xf32>
    %201 = vector.extract_strided_slice %198 {offsets = [2, 0, 0], sizes = [16, 16, 32], strides = [1, 1, 1]} : vector<18x16x32xf32> to vector<16x16x32xf32>
    %202 = tpu.concatenate %199, %200, %201 in 2 : vector<16x16x32xf32>, vector<16x16x32xf32>, vector<16x16x32xf32> -> vector<16x16x96xf32>
    %203 = vector.shape_cast %202 : vector<16x16x96xf32> to vector<256x96xf32>
    %cst_100 = arith.constant 0.000000e+00 : f32
    %204 = vector.broadcast %cst_100 : f32 to vector<256x64xf32>
    %205 = vector.broadcast %21 : vector<1x64xf32> to vector<256x64xf32>
    %206 = arith.addf %204, %205 : vector<256x64xf32>
    %207 = vector.extract_strided_slice %20 {offsets = [0, 0, 0], sizes = [1, 96, 64], strides = [1, 1, 1]} : vector<2x96x64xf32> to vector<1x96x64xf32>
    %208 = vector.shape_cast %207 : vector<1x96x64xf32> to vector<96x64xf32>
    %cst_101 = arith.constant dense<0.000000e+00> : vector<256x64xf32>
    %209 = tpu.matmul %203, %208, %cst_101 {dimension_numbers = #tpu.dot_dimension_numbers<[1], [0], [0], [1], [0, 0, 1, 1], [], []>} : vector<256x96xf32>, vector<96x64xf32>, vector<256x64xf32> -> vector<256x64xf32>
    %210 = vector.shape_cast %209 : vector<256x64xf32> to vector<16x16x64xf32>
    %c1_i32_102 = arith.constant 1 : i32
    %211 = tpu.dynamic_rotate %210 by %c1_i32_102 dim 1 : vector<16x16x64xf32>, i32 -> vector<16x16x64xf32>
    %c1_i32_103 = arith.constant 1 : i32
    %212 = vector.broadcast %c1_i32_103 : i32 to vector<1x16x1xi32>
    %213 = arith.cmpi sge, %42, %212 : vector<1x16x1xi32>
    %cst_104 = arith.constant 0.000000e+00 : f32
    %214 = vector.shape_cast %213 : vector<1x16x1xi1> to vector<1x16x1xi1>
    %215 = vector.broadcast %214 : vector<1x16x1xi1> to vector<16x16x64xi1>
    %216 = vector.broadcast %cst_104 : f32 to vector<16x16x64xf32>
    %217 = arith.select %215, %211, %216 : vector<16x16x64xi1>, vector<16x16x64xf32>
    %218 = vector.shape_cast %217 : vector<16x16x64xf32> to vector<256x64xf32>
    %219 = arith.addf %206, %218 : vector<256x64xf32>
    %220 = vector.extract_strided_slice %20 {offsets = [1, 0, 0], sizes = [1, 96, 64], strides = [1, 1, 1]} : vector<2x96x64xf32> to vector<1x96x64xf32>
    %221 = vector.shape_cast %220 : vector<1x96x64xf32> to vector<96x64xf32>
    %cst_105 = arith.constant dense<0.000000e+00> : vector<256x64xf32>
    %222 = tpu.matmul %203, %221, %cst_105 {dimension_numbers = #tpu.dot_dimension_numbers<[1], [0], [0], [1], [0, 0, 1, 1], [], []>} : vector<256x96xf32>, vector<96x64xf32>, vector<256x64xf32> -> vector<256x64xf32>
    %223 = arith.addf %219, %222 : vector<256x64xf32>
    %224 = tpu.concatenate %197, %196 in 0 : vector<1x16x32xf32>, vector<16x16x32xf32> -> vector<17x16x32xf32>
    %225 = vector.extract_strided_slice %224 {offsets = [0, 0, 0], sizes = [16, 16, 32], strides = [1, 1, 1]} : vector<17x16x32xf32> to vector<16x16x32xf32>
    %226 = vector.extract_strided_slice %224 {offsets = [1, 0, 0], sizes = [16, 16, 32], strides = [1, 1, 1]} : vector<17x16x32xf32> to vector<16x16x32xf32>
    %227 = tpu.concatenate %225, %226 in 2 : vector<16x16x32xf32>, vector<16x16x32xf32> -> vector<16x16x64xf32>
    %228 = vector.shape_cast %227 : vector<16x16x64xf32> to vector<256x64xf32>
    %cst_106 = arith.constant dense<0.000000e+00> : vector<256x64xf32>
    %229 = tpu.matmul %228, %22, %cst_106 {dimension_numbers = #tpu.dot_dimension_numbers<[1], [0], [0], [1], [0, 0, 1, 1], [], []>} : vector<256x64xf32>, vector<64x64xf32>, vector<256x64xf32> -> vector<256x64xf32>
    %230 = vector.broadcast %23 : vector<1x64xf32> to vector<256x64xf32>
    %231 = arith.addf %229, %230 : vector<256x64xf32>
    %cst_107 = arith.constant dense<0.000000e+00> : vector<256x64xf32>
    %232 = tpu.matmul %223, %24, %cst_107 {dimension_numbers = #tpu.dot_dimension_numbers<[1], [0], [0], [1], [0, 0, 1, 1], [], []>} : vector<256x64xf32>, vector<64x64xf32>, vector<256x64xf32> -> vector<256x64xf32>
    %233 = vector.broadcast %25 : vector<1x64xf32> to vector<256x64xf32>
    %234 = arith.addf %232, %233 : vector<256x64xf32>
    %235 = arith.addf %234, %231 : vector<256x64xf32>
    %236 = vector.extract_strided_slice %235 {offsets = [0, 0], sizes = [256, 32], strides = [1, 1]} : vector<256x64xf32> to vector<256x32xf32>
    %237 = math.tanh %236 : vector<256x32xf32>
    %238 = vector.extract_strided_slice %235 {offsets = [0, 32], sizes = [256, 32], strides = [1, 1]} : vector<256x64xf32> to vector<256x32xf32>
    %239 = arith.negf %238 : vector<256x32xf32>
    %240 = math.exp %239 : vector<256x32xf32>
    %cst_108 = arith.constant 1.000000e+00 : f32
    %241 = vector.broadcast %cst_108 : f32 to vector<256x32xf32>
    %242 = arith.addf %241, %240 : vector<256x32xf32>
    %243 = arith.divf %241, %242 : vector<256x32xf32>
    %244 = arith.mulf %237, %243 : vector<256x32xf32>
    %cst_109 = arith.constant dense<0.000000e+00> : vector<256x32xf32>
    %245 = tpu.matmul %244, %26, %cst_109 {dimension_numbers = #tpu.dot_dimension_numbers<[1], [0], [0], [1], [0, 0, 1, 1], [], []>} : vector<256x32xf32>, vector<32x32xf32>, vector<256x32xf32> -> vector<256x32xf32>
    %246 = vector.broadcast %27 : vector<1x32xf32> to vector<256x32xf32>
    %247 = arith.addf %245, %246 : vector<256x32xf32>
    %248 = arith.addf %247, %194 : vector<256x32xf32>
    %cst_110 = arith.constant dense<0.000000e+00> : vector<256x64xf32>
    %249 = tpu.matmul %248, %28, %cst_110 {dimension_numbers = #tpu.dot_dimension_numbers<[1], [0], [0], [1], [0, 0, 1, 1], [], []>} : vector<256x32xf32>, vector<32x64xf32>, vector<256x64xf32> -> vector<256x64xf32>
    %250 = vector.broadcast %29 : vector<1x64xf32> to vector<256x64xf32>
    %251 = arith.addf %249, %250 : vector<256x64xf32>
    %cst_111 = arith.constant 0.000000e+00 : f32
    %252 = vector.broadcast %cst_111 : f32 to vector<256x64xf32>
    %253 = arith.maximumf %251, %252 : vector<256x64xf32>
    %cst_112 = arith.constant dense<0.000000e+00> : vector<4x256xf32>
    %254 = tpu.matmul %30, %253, %cst_112 {dimension_numbers = #tpu.dot_dimension_numbers<[1], [1], [0], [0], [0, 0, 1, 0], [], []>} : vector<4x64xf32>, vector<256x64xf32>, vector<4x256xf32> -> vector<4x256xf32>
    %255 = vector.broadcast %31 : vector<4x1xf32> to vector<4x256xf32>
    %256 = arith.addf %254, %255 : vector<4x256xf32>
    %c0_113 = arith.constant 0 : index
    %c0_114 = arith.constant 0 : index
    %c0_115 = arith.constant 0 : index
    %257 = vector.load %arg34[%c0_113, %c0_114, %c0_115] : memref<1x4x256xf32, #tpu.memory_space<vmem>>, vector<1x4x256xf32>
    %258 = vector.shape_cast %257 : vector<1x4x256xf32> to vector<4x256xf32>
    %259 = vector.shape_cast %256 : vector<4x256xf32> to vector<1x4x256xf32>
    tpu.vector_store %arg34[%c0_113, %c0_114, %c0_115], %259 {strides = array<i32>} : memref<1x4x256xf32, #tpu.memory_space<vmem>>, vector<1x4x256xf32>,
    return
  }
  func.func @transform_0(%arg0: i32) -> (i32, i32, i32) {
    %c0_i32 = arith.constant 0 : i32
    %c0_i32_0 = arith.constant 0 : i32
    %c0_i32_1 = arith.constant 0 : i32
    return %arg0, %c0_i32, %c0_i32_0 : i32, i32, i32
  }
  func.func @transform_1(%arg0: i32) -> (i32, i32) {
    %c0_i32 = arith.constant 0 : i32
    %c0_i32_0 = arith.constant 0 : i32
    %c0_i32_1 = arith.constant 0 : i32
    return %c0_i32, %c0_i32_0 : i32, i32
  }
  func.func @transform_2(%arg0: i32) -> (i32, i32) {
    %c0_i32 = arith.constant 0 : i32
    %c0_i32_0 = arith.constant 0 : i32
    %c0_i32_1 = arith.constant 0 : i32
    return %c0_i32, %c0_i32_0 : i32, i32
  }
  func.func @transform_3(%arg0: i32) -> (i32, i32) {
    %c0_i32 = arith.constant 0 : i32
    %c0_i32_0 = arith.constant 0 : i32
    %c0_i32_1 = arith.constant 0 : i32
    return %c0_i32, %c0_i32_0 : i32, i32
  }
  func.func @transform_4(%arg0: i32) -> (i32, i32) {
    %c0_i32 = arith.constant 0 : i32
    %c0_i32_0 = arith.constant 0 : i32
    %c0_i32_1 = arith.constant 0 : i32
    return %c0_i32, %c0_i32_0 : i32, i32
  }
  func.func @transform_5(%arg0: i32) -> (i32, i32, i32) {
    %c0_i32 = arith.constant 0 : i32
    %c0_i32_0 = arith.constant 0 : i32
    %c0_i32_1 = arith.constant 0 : i32
    %c0_i32_2 = arith.constant 0 : i32
    return %c0_i32, %c0_i32_0, %c0_i32_1 : i32, i32, i32
  }
  func.func @transform_6(%arg0: i32) -> (i32, i32) {
    %c0_i32 = arith.constant 0 : i32
    %c0_i32_0 = arith.constant 0 : i32
    %c0_i32_1 = arith.constant 0 : i32
    return %c0_i32, %c0_i32_0 : i32, i32
  }
  func.func @transform_7(%arg0: i32) -> (i32, i32) {
    %c0_i32 = arith.constant 0 : i32
    %c0_i32_0 = arith.constant 0 : i32
    %c0_i32_1 = arith.constant 0 : i32
    return %c0_i32, %c0_i32_0 : i32, i32
  }
  func.func @transform_8(%arg0: i32) -> (i32, i32) {
    %c0_i32 = arith.constant 0 : i32
    %c0_i32_0 = arith.constant 0 : i32
    %c0_i32_1 = arith.constant 0 : i32
    return %c0_i32, %c0_i32_0 : i32, i32
  }
  func.func @transform_9(%arg0: i32) -> (i32, i32) {
    %c0_i32 = arith.constant 0 : i32
    %c0_i32_0 = arith.constant 0 : i32
    %c0_i32_1 = arith.constant 0 : i32
    return %c0_i32, %c0_i32_0 : i32, i32
  }
  func.func @transform_10(%arg0: i32) -> (i32, i32) {
    %c0_i32 = arith.constant 0 : i32
    %c0_i32_0 = arith.constant 0 : i32
    %c0_i32_1 = arith.constant 0 : i32
    return %c0_i32, %c0_i32_0 : i32, i32
  }
  func.func @transform_11(%arg0: i32) -> (i32, i32) {
    %c0_i32 = arith.constant 0 : i32
    %c0_i32_0 = arith.constant 0 : i32
    %c0_i32_1 = arith.constant 0 : i32
    return %c0_i32, %c0_i32_0 : i32, i32
  }
  func.func @transform_12(%arg0: i32) -> (i32, i32) {
    %c0_i32 = arith.constant 0 : i32
    %c0_i32_0 = arith.constant 0 : i32
    %c0_i32_1 = arith.constant 0 : i32
    return %c0_i32, %c0_i32_0 : i32, i32
  }
  func.func @transform_13(%arg0: i32) -> (i32, i32, i32) {
    %c0_i32 = arith.constant 0 : i32
    %c0_i32_0 = arith.constant 0 : i32
    %c0_i32_1 = arith.constant 0 : i32
    %c0_i32_2 = arith.constant 0 : i32
    return %c0_i32, %c0_i32_0, %c0_i32_1 : i32, i32, i32
  }
  func.func @transform_14(%arg0: i32) -> (i32, i32) {
    %c0_i32 = arith.constant 0 : i32
    %c0_i32_0 = arith.constant 0 : i32
    %c0_i32_1 = arith.constant 0 : i32
    return %c0_i32, %c0_i32_0 : i32, i32
  }
  func.func @transform_15(%arg0: i32) -> (i32, i32) {
    %c0_i32 = arith.constant 0 : i32
    %c0_i32_0 = arith.constant 0 : i32
    %c0_i32_1 = arith.constant 0 : i32
    return %c0_i32, %c0_i32_0 : i32, i32
  }
  func.func @transform_16(%arg0: i32) -> (i32, i32) {
    %c0_i32 = arith.constant 0 : i32
    %c0_i32_0 = arith.constant 0 : i32
    %c0_i32_1 = arith.constant 0 : i32
    return %c0_i32, %c0_i32_0 : i32, i32
  }
  func.func @transform_17(%arg0: i32) -> (i32, i32) {
    %c0_i32 = arith.constant 0 : i32
    %c0_i32_0 = arith.constant 0 : i32
    %c0_i32_1 = arith.constant 0 : i32
    return %c0_i32, %c0_i32_0 : i32, i32
  }
  func.func @transform_18(%arg0: i32) -> (i32, i32) {
    %c0_i32 = arith.constant 0 : i32
    %c0_i32_0 = arith.constant 0 : i32
    %c0_i32_1 = arith.constant 0 : i32
    return %c0_i32, %c0_i32_0 : i32, i32
  }
  func.func @transform_19(%arg0: i32) -> (i32, i32) {
    %c0_i32 = arith.constant 0 : i32
    %c0_i32_0 = arith.constant 0 : i32
    %c0_i32_1 = arith.constant 0 : i32
    return %c0_i32, %c0_i32_0 : i32, i32
  }
  func.func @transform_20(%arg0: i32) -> (i32, i32) {
    %c0_i32 = arith.constant 0 : i32
    %c0_i32_0 = arith.constant 0 : i32
    %c0_i32_1 = arith.constant 0 : i32
    return %c0_i32, %c0_i32_0 : i32, i32
  }
  func.func @transform_21(%arg0: i32) -> (i32, i32, i32) {
    %c0_i32 = arith.constant 0 : i32
    %c0_i32_0 = arith.constant 0 : i32
    %c0_i32_1 = arith.constant 0 : i32
    %c0_i32_2 = arith.constant 0 : i32
    return %c0_i32, %c0_i32_0, %c0_i32_1 : i32, i32, i32
  }
  func.func @transform_22(%arg0: i32) -> (i32, i32) {
    %c0_i32 = arith.constant 0 : i32
    %c0_i32_0 = arith.constant 0 : i32
    %c0_i32_1 = arith.constant 0 : i32
    return %c0_i32, %c0_i32_0 : i32, i32
  }
  func.func @transform_23(%arg0: i32) -> (i32, i32) {
    %c0_i32 = arith.constant 0 : i32
    %c0_i32_0 = arith.constant 0 : i32
    %c0_i32_1 = arith.constant 0 : i32
    return %c0_i32, %c0_i32_0 : i32, i32
  }
  func.func @transform_24(%arg0: i32) -> (i32, i32) {
    %c0_i32 = arith.constant 0 : i32
    %c0_i32_0 = arith.constant 0 : i32
    %c0_i32_1 = arith.constant 0 : i32
    return %c0_i32, %c0_i32_0 : i32, i32
  }
  func.func @transform_25(%arg0: i32) -> (i32, i32) {
    %c0_i32 = arith.constant 0 : i32
    %c0_i32_0 = arith.constant 0 : i32
    %c0_i32_1 = arith.constant 0 : i32
    return %c0_i32, %c0_i32_0 : i32, i32
  }
  func.func @transform_26(%arg0: i32) -> (i32, i32) {
    %c0_i32 = arith.constant 0 : i32
    %c0_i32_0 = arith.constant 0 : i32
    %c0_i32_1 = arith.constant 0 : i32
    return %c0_i32, %c0_i32_0 : i32, i32
  }
  func.func @transform_27(%arg0: i32) -> (i32, i32) {
    %c0_i32 = arith.constant 0 : i32
    %c0_i32_0 = arith.constant 0 : i32
    %c0_i32_1 = arith.constant 0 : i32
    return %c0_i32, %c0_i32_0 : i32, i32
  }
  func.func @transform_28(%arg0: i32) -> (i32, i32) {
    %c0_i32 = arith.constant 0 : i32
    %c0_i32_0 = arith.constant 0 : i32
    %c0_i32_1 = arith.constant 0 : i32
    return %c0_i32, %c0_i32_0 : i32, i32
  }
  func.func @transform_29(%arg0: i32) -> (i32, i32) {
    %c0_i32 = arith.constant 0 : i32
    %c0_i32_0 = arith.constant 0 : i32
    %c0_i32_1 = arith.constant 0 : i32
    return %c0_i32, %c0_i32_0 : i32, i32
  }
  func.func @transform_30(%arg0: i32) -> (i32, i32) {
    %c0_i32 = arith.constant 0 : i32
    %c0_i32_0 = arith.constant 0 : i32
    %c0_i32_1 = arith.constant 0 : i32
    return %c0_i32, %c0_i32_0 : i32, i32
  }
  func.func @transform_31(%arg0: i32) -> (i32, i32) {
    %c0_i32 = arith.constant 0 : i32
    %c0_i32_0 = arith.constant 0 : i32
    %c0_i32_1 = arith.constant 0 : i32
    return %c0_i32, %c0_i32_0 : i32, i32
  }
  func.func @transform_32(%arg0: i32) -> (i32, i32) {
    %c0_i32 = arith.constant 0 : i32
    %c0_i32_0 = arith.constant 0 : i32
    %c0_i32_1 = arith.constant 0 : i32
    return %c0_i32, %c0_i32_0 : i32, i32
  }
  func.func @transform_33(%arg0: i32) -> (i32, i32, i32) {
    %c0_i32 = arith.constant 0 : i32
    %c0_i32_0 = arith.constant 0 : i32
    %c0_i32_1 = arith.constant 0 : i32
    return %arg0, %c0_i32, %c0_i32_0 : i32, i32, i32
  }
}

</mosaic_0001>

<llo_original>
// kernel: gated_pixelcnn_forward.1
$region0: #{gated_pixelcnn_forward.1}
  #allocation0 [shape = 'u32[]', space=smem, size = 0x4, offset = 0x4, fixed_abs, tag = 'smem constant byte address 0x4 - core index']
  #allocation1 [shape = 'u32[144,128]{1,0:T(1,128)}', space=vmem, size = 0x12000, scoped, tag = 'internal scratch']
  %s0 = inlined_call_operand.smem [shape: u32[34], index: -1, kind: input, shape index: {}]
  %s1 = sld [smem:[%s0]]
  %s2 = scalar_lea.smem %s0, 1
  %s3 = sld [smem:[%s2]]
  %s4 = scalar_lea.smem %s0, 2
  %s5 = sld [smem:[%s4]]
  %s6 = scalar_lea.smem %s0, 3
  %s7 = sld [smem:[%s6]]
  %s8 = scalar_lea.smem %s0, 4
  %s9 = sld [smem:[%s8]]
  %s10 = scalar_lea.smem %s0, 5
  %s11 = sld [smem:[%s10]]
  %s12 = scalar_lea.smem %s0, 6
  %s13 = sld [smem:[%s12]]
  %s14 = scalar_lea.smem %s0, 7
  %s15 = sld [smem:[%s14]]
  %s16 = scalar_lea.smem %s0, 8
  %s17 = sld [smem:[%s16]]
  %s18 = scalar_lea.smem %s0, 9
  %s19 = sld [smem:[%s18]]
  %s20 = scalar_lea.smem %s0, 10
  %s21 = sld [smem:[%s20]]
  %s22 = scalar_lea.smem %s0, 11
  %s23 = sld [smem:[%s22]]
  %s24 = scalar_lea.smem %s0, 12
  %s25 = sld [smem:[%s24]]
  %s26 = scalar_lea.smem %s0, 13
  %s27 = sld [smem:[%s26]]
  %s28 = scalar_lea.smem %s0, 14
  %s29 = sld [smem:[%s28]]
  %s30 = scalar_lea.smem %s0, 15
  %s31 = sld [smem:[%s30]]
  %s32 = scalar_lea.smem %s0, 16
  %s33 = sld [smem:[%s32]]
  %s34 = scalar_lea.smem %s0, 17
  %s35 = sld [smem:[%s34]]
  %s36 = scalar_lea.smem %s0, 18
  %s37 = sld [smem:[%s36]]
  %s38 = scalar_lea.smem %s0, 19
  %s39 = sld [smem:[%s38]]
  %s40 = scalar_lea.smem %s0, 20
  %s41 = sld [smem:[%s40]]
  %s42 = scalar_lea.smem %s0, 21
  %s43 = sld [smem:[%s42]]
  %s44 = scalar_lea.smem %s0, 22
  %s45 = sld [smem:[%s44]]
  %s46 = scalar_lea.smem %s0, 23
  %s47 = sld [smem:[%s46]]
  %s48 = scalar_lea.smem %s0, 24
  %s49 = sld [smem:[%s48]]
  %s50 = scalar_lea.smem %s0, 25
  %s51 = sld [smem:[%s50]]
  %s52 = scalar_lea.smem %s0, 26
  %s53 = sld [smem:[%s52]]
  %s54 = scalar_lea.smem %s0, 27
  %s55 = sld [smem:[%s54]]
  %s56 = scalar_lea.smem %s0, 28
  %s57 = sld [smem:[%s56]]
  %s58 = scalar_lea.smem %s0, 29
  %s59 = sld [smem:[%s58]]
  %s60 = scalar_lea.smem %s0, 30
  %s61 = sld [smem:[%s60]]
  %s62 = scalar_lea.smem %s0, 31
  %s63 = sld [smem:[%s62]]
  %s64 = scalar_lea.smem %s0, 32
  %s65 = sld [smem:[%s64]]
  %s66 = scalar_lea.smem %s0, 33
  %s67 = sld [smem:[%s66]]
  %s68 = sld [smem:[#allocation0]]
  $region217: #{gated_pixelcnn_forward.1} parent=0
    _
  %s70 = ssub.s32 1, %s68
  %s71 = scalar_select 0, %s70, %s68
  $region1: #{gated_pixelcnn_forward.1} parent=0
    #allocation2 [shape = 'u8[2048]{0}', space=vmem, size = 0x800, scoped, tag = 'input window, operand 1, single buffered']
    #allocation3 [shape = 's32[2]{0}', space=sflag, size = 0x8, scoped, tag = 'scoped memory for gated_pixelcnn_forward.1']
    #allocation4 [shape = 'u8[16384]{0}', space=vmem, size = 0x4000, scoped, tag = 'input window, operand 3, single buffered']
    #allocation5 [shape = 's32[1]{0}', space=sflag, size = 0x4, scoped, tag = 'scoped memory for gated_pixelcnn_forward.1']
    #allocation6 [shape = 'u8[49152]{0}', space=vmem, size = 0xc000, scoped, tag = 'input window, operand 7, single buffered']
    #allocation7 [shape = 'u8[32768]{0}', space=vmem, size = 0x8000, scoped, tag = 'input window, operand 9, single buffered']
    #allocation8 [shape = 's32[1]{0}', space=sflag, size = 0x4, scoped, tag = 'scoped memory for gated_pixelcnn_forward.1']
    #allocation9 [shape = 'u8[16384]{0}', space=vmem, size = 0x4000, scoped, tag = 'input window, operand 11, single buffered']
    #allocation10 [shape = 'u8[98304]{0}', space=vmem, size = 0x18000, scoped, tag = 'input window, operand 13, single buffered']
    #allocation11 [shape = 's32[1]{0}', space=sflag, size = 0x4, scoped, tag = 'scoped memory for gated_pixelcnn_forward.1']
    #allocation12 [shape = 'u8[32768]{0}', space=vmem, size = 0x8000, scoped, tag = 'input window, operand 15, single buffered']
    #allocation13 [shape = 'u8[32768]{0}', space=vmem, size = 0x8000, scoped, tag = 'input window, operand 17, single buffered']
    #allocation14 [shape = 's32[1]{0}', space=sflag, size = 0x4, scoped, tag = 'scoped memory for gated_pixelcnn_forward.1']
    #allocation15 [shape = 'u8[16384]{0}', space=vmem, size = 0x4000, scoped, tag = 'input window, operand 19, single buffered']
    #allocation16 [shape = 'u8[98304]{0}', space=vmem, size = 0x18000, scoped, tag = 'input window, operand 21, single buffered']
    #allocation17 [shape = 's32[1]{0}', space=sflag, size = 0x4, scoped, tag = 'scoped memory for gated_pixelcnn_forward.1']
    #allocation18 [shape = 'u8[32768]{0}', space=vmem, size = 0x8000, scoped, tag = 'input window, operand 23, single buffered']
    #allocation19 [shape = 'u8[32768]{0}', space=vmem, size = 0x8000, scoped, tag = 'input window, operand 25, single buffered']
    #allocation20 [shape = 's32[1]{0}', space=sflag, size = 0x4, scoped, tag = 'scoped memory for gated_pixelcnn_forward.1']
    #allocation21 [shape = 'u8[16384]{0}', space=vmem, size = 0x4000, scoped, tag = 'input window, operand 27, single buffered']
    %72 = vsyncpa [#allocation3], 0
    %73 = vsyncpa [#allocation5], 0
    %74 = vsyncpa [#allocation8], 0
    %75 = vsyncpa [#allocation11], 0
    %76 = vsyncpa [#allocation14], 0
    %77 = vsyncpa [#allocation17], 0
    %78 = vsyncpa [#allocation20], 0
    loop: start=0, step=1, limit=4
    $region2: #{gated_pixelcnn_forward.1} parent=1 // loop_pre_header
      _
    $region3: #{gated_pixelcnn_forward.1} parent=1 // loop_header
      %s80 = sphi 0, %s84
      %p81 = scmp.ge.s32.totalorder %s80, 4
      %s90 = sphi 0, %s92
      %s93 = sphi 0, %s90
      %s94 = sphi 0, %s93
      %s110 = sphi 0, %s94
      %s114 = sphi 0, %s114
      %s116 = sphi 0, %s114
      %s117 = sphi 0, %s116
      %s131 = sphi 0, %s117
      %s135 = sphi 0, %s135
      %s137 = sphi 0, %s135
      %s138 = sphi 0, %s137
      %s152 = sphi 0, %s138
      %s156 = sphi 0, %s156
      %s158 = sphi 0, %s156
      %s159 = sphi 0, %s158
      %s173 = sphi 0, %s159
      %s177 = sphi 0, %s177
      %s179 = sphi 0, %s177
      %s180 = sphi 0, %s179
      %s194 = sphi 0, %s180
      %s198 = sphi 0, %s198
      %s200 = sphi 0, %s198
      %s201 = sphi 0, %s200
      %s215 = sphi 0, %s201
      %s219 = sphi 0, %s219
      %s221 = sphi 0, %s219
      %s222 = sphi 0, %s221
      %s236 = sphi 0, %s222
      %s240 = sphi 0, %s240
      %s242 = sphi 0, %s240
      %s243 = sphi 0, %s242
      %s257 = sphi 0, %s243
      %s261 = sphi 0, %s261
      %s263 = sphi 0, %s261
      %s264 = sphi 0, %s263
      %s278 = sphi 0, %s264
      %s282 = sphi 0, %s282
      %s284 = sphi 0, %s282
      %s285 = sphi 0, %s284
      %s299 = sphi 0, %s285
      %s303 = sphi 0, %s303
      %s305 = sphi 0, %s303
      %s306 = sphi 0, %s305
      %s320 = sphi 0, %s306
      %s324 = sphi 0, %s324
      %s326 = sphi 0, %s324
      %s327 = sphi 0, %s326
      %s341 = sphi 0, %s327
      %s345 = sphi 0, %s345
      %s347 = sphi 0, %s345
      %s348 = sphi 0, %s347
      %s362 = sphi 0, %s348
      %s366 = sphi 0, %s366
      %s368 = sphi 0, %s366
      %s369 = sphi 0, %s368
      %s383 = sphi 0, %s369
      %s387 = sphi 0, %s387
      %s389 = sphi 0, %s387
      %s390 = sphi 0, %s389
      %s404 = sphi 0, %s390
      %s408 = sphi 0, %s408
      %s410 = sphi 0, %s408
      %s411 = sphi 0, %s410
      %s425 = sphi 0, %s411
      %s429 = sphi 0, %s429
      %s431 = sphi 0, %s429
      %s432 = sphi 0, %s431
      %s446 = sphi 0, %s432
      %s450 = sphi 0, %s450
      %s452 = sphi 0, %s450
      %s453 = sphi 0, %s452
      %s467 = sphi 0, %s453
      %s471 = sphi 0, %s471
      %s473 = sphi 0, %s471
      %s474 = sphi 0, %s473
      %s488 = sphi 0, %s474
      %s492 = sphi 0, %s492
      %s494 = sphi 0, %s492
      %s495 = sphi 0, %s494
      %s509 = sphi 0, %s495
      %s513 = sphi 0, %s513
      %s515 = sphi 0, %s513
      %s516 = sphi 0, %s515
      %s530 = sphi 0, %s516
      %s534 = sphi 0, %s534
      %s536 = sphi 0, %s534
      %s537 = sphi 0, %s536
      %s551 = sphi 0, %s537
      %s555 = sphi 0, %s555
      %s557 = sphi 0, %s555
      %s558 = sphi 0, %s557
      %s572 = sphi 0, %s558
      %s576 = sphi 0, %s576
      %s578 = sphi 0, %s576
      %s579 = sphi 0, %s578
      %s593 = sphi 0, %s579
      %s597 = sphi 0, %s597
      %s599 = sphi 0, %s597
      %s600 = sphi 0, %s599
      %s614 = sphi 0, %s600
      %s618 = sphi 0, %s618
      %s620 = sphi 0, %s618
      %s621 = sphi 0, %s620
      %s635 = sphi 0, %s621
      %s639 = sphi 0, %s639
      %s641 = sphi 0, %s639
      %s642 = sphi 0, %s641
      %s656 = sphi 0, %s642
      %s660 = sphi 0, %s660
      %s662 = sphi 0, %s660
      %s663 = sphi 0, %s662
      %s677 = sphi 0, %s663
      %s681 = sphi 0, %s681
      %s683 = sphi 0, %s681
      %s684 = sphi 0, %s683
      %s698 = sphi 0, %s684
      %s702 = sphi 0, %s702
      %s704 = sphi 0, %s702
      %s705 = sphi 0, %s704
      %s719 = sphi 0, %s705
      %s723 = sphi 0, %s723
      %s725 = sphi 0, %s723
      %s726 = sphi 0, %s725
      %s740 = sphi 0, %s726
      %s744 = sphi 0, %s744
      %s746 = sphi 0, %s744
      %s747 = sphi 0, %s746
      %s761 = sphi 0, %s747
      %s765 = sphi 0, %s765
      %s767 = sphi 0, %s765
      %s768 = sphi 0, %s767
      %s782 = sphi 0, %s768
      %s788 = sphi 0, %s790
      %s791 = sphi 0, %s788
      %s792 = sphi 0, %s791
      %s808 = sphi 0, %s792
    $region4: #{gated_pixelcnn_forward.1} parent=1 // loop_header_branch
      %83 = sbr.rel (%p81) target = $region8
    $region5: #{gated_pixelcnn_forward.1} parent=1 // loop_body
      %s85 = ssub.s32 %s80, 1
      %s86 = ssub.s32 %s80, 2
      %s87 = sadd.s32 %s80, 1
      %s88 = ssub.s32 %s80, %s87
      %p89 = scmp.eq.s32.totalorder %s88, 0
      %s91 = sadd.s32 %s90, 1
      %s92 = scalar_select %p89, %s90, %s91
      %p95 = pneg %p89
      %p96 = scmp.eq.s32.totalorder %s80, 1
      %p97 = por %p95, %p96
      %p98 = scmp.ne.s32.totalorder %s90, %s93
      %p99 = scmp.eq.s32.totalorder %s80, 0
      %p100 = por %p98, %p99
      %p101 = scmp.ne.s32.totalorder %s90, %s93
      %p102 = scmp.eq.s32.totalorder %s85, 1
      %p103 = por %p101, %p102
      %p104 = scmp.ne.s32.totalorder %s93, %s94
      %p105 = scmp.eq.s32.totalorder %s85, 0
      %p106 = por %p104, %p105
      %p107 = scmp.ne.s32.totalorder %s93, %s94
      %p108 = scmp.eq.s32.totalorder %s86, 1
      %p109 = por %p107, %p108
      %p111 = scmp.ne.s32.totalorder %s94, %s110
      %p112 = scmp.eq.s32.totalorder %s86, 0
      %p113 = por %p111, %p112
      %s115 = sadd.s32 %s114, 1
      %p118 = scmp.eq.s32.totalorder %s80, 1
      %p119 = scmp.ne.s32.totalorder %s114, %s116
      %p120 = scmp.eq.s32.totalorder %s80, 0
      %p121 = por %p119, %p120
      %p122 = scmp.ne.s32.totalorder %s114, %s116
      %p123 = scmp.eq.s32.totalorder %s85, 1
      %p124 = por %p122, %p123
      %p125 = scmp.ne.s32.totalorder %s116, %s117
      %p126 = scmp.eq.s32.totalorder %s85, 0
      %p127 = por %p125, %p126
      %p128 = scmp.ne.s32.totalorder %s116, %s117
      %p129 = scmp.eq.s32.totalorder %s86, 1
      %p130 = por %p128, %p129
      %p132 = scmp.ne.s32.totalorder %s117, %s131
      %p133 = scmp.eq.s32.totalorder %s86, 0
      %p134 = por %p132, %p133
      %s136 = sadd.s32 %s135, 1
      %p139 = scmp.eq.s32.totalorder %s80, 1
      %p140 = scmp.ne.s32.totalorder %s135, %s137
      %p141 = scmp.eq.s32.totalorder %s80, 0
      %p142 = por %p140, %p141
      %p143 = scmp.ne.s32.totalorder %s135, %s137
      %p144 = scmp.eq.s32.totalorder %s85, 1
      %p145 = por %p143, %p144
      %p146 = scmp.ne.s32.totalorder %s137, %s138
      %p147 = scmp.eq.s32.totalorder %s85, 0
      %p148 = por %p146, %p147
      %p149 = scmp.ne.s32.totalorder %s137, %s138
      %p150 = scmp.eq.s32.totalorder %s86, 1
      %p151 = por %p149, %p150
      %p153 = scmp.ne.s32.totalorder %s138, %s152
      %p154 = scmp.eq.s32.totalorder %s86, 0
      %p155 = por %p153, %p154
      %s157 = sadd.s32 %s156, 1
      %p160 = scmp.eq.s32.totalorder %s80, 1
      %p161 = scmp.ne.s32.totalorder %s156, %s158
      %p162 = scmp.eq.s32.totalorder %s80, 0
      %p163 = por %p161, %p162
      %p164 = scmp.ne.s32.totalorder %s156, %s158
      %p165 = scmp.eq.s32.totalorder %s85, 1
      %p166 = por %p164, %p165
      %p167 = scmp.ne.s32.totalorder %s158, %s159
      %p168 = scmp.eq.s32.totalorder %s85, 0
      %p169 = por %p167, %p168
      %p170 = scmp.ne.s32.totalorder %s158, %s159
      %p171 = scmp.eq.s32.totalorder %s86, 1
      %p172 = por %p170, %p171
      %p174 = scmp.ne.s32.totalorder %s159, %s173
      %p175 = scmp.eq.s32.totalorder %s86, 0
      %p176 = por %p174, %p175
      %s178 = sadd.s32 %s177, 1
      %p181 = scmp.eq.s32.totalorder %s80, 1
      %p182 = scmp.ne.s32.totalorder %s177, %s179
      %p183 = scmp.eq.s32.totalorder %s80, 0
      %p184 = por %p182, %p183
      %p185 = scmp.ne.s32.totalorder %s177, %s179
      %p186 = scmp.eq.s32.totalorder %s85, 1
      %p187 = por %p185, %p186
      %p188 = scmp.ne.s32.totalorder %s179, %s180
      %p189 = scmp.eq.s32.totalorder %s85, 0
      %p190 = por %p188, %p189
      %p191 = scmp.ne.s32.totalorder %s179, %s180
      %p192 = scmp.eq.s32.totalorder %s86, 1
      %p193 = por %p191, %p192
      %p195 = scmp.ne.s32.totalorder %s180, %s194
      %p196 = scmp.eq.s32.totalorder %s86, 0
      %p197 = por %p195, %p196
      %s199 = sadd.s32 %s198, 1
      %p202 = scmp.eq.s32.totalorder %s80, 1
      %p203 = scmp.ne.s32.totalorder %s198, %s200
      %p204 = scmp.eq.s32.totalorder %s80, 0
      %p205 = por %p203, %p204
      %p206 = scmp.ne.s32.totalorder %s198, %s200
      %p207 = scmp.eq.s32.totalorder %s85, 1
      %p208 = por %p206, %p207
      %p209 = scmp.ne.s32.totalorder %s200, %s201
      %p210 = scmp.eq.s32.totalorder %s85, 0
      %p211 = por %p209, %p210
      %p212 = scmp.ne.s32.totalorder %s200, %s201
      %p213 = scmp.eq.s32.totalorder %s86, 1
      %p214 = por %p212, %p213
      %p216 = scmp.ne.s32.totalorder %s201, %s215
      %p217 = scmp.eq.s32.totalorder %s86, 0
      %p218 = por %p216, %p217
      %s220 = sadd.s32 %s219, 1
      %p223 = scmp.eq.s32.totalorder %s80, 1
      %p224 = scmp.ne.s32.totalorder %s219, %s221
      %p225 = scmp.eq.s32.totalorder %s80, 0
      %p226 = por %p224, %p225
      %p227 = scmp.ne.s32.totalorder %s219, %s221
      %p228 = scmp.eq.s32.totalorder %s85, 1
      %p229 = por %p227, %p228
      %p230 = scmp.ne.s32.totalorder %s221, %s222
      %p231 = scmp.eq.s32.totalorder %s85, 0
      %p232 = por %p230, %p231
      %p233 = scmp.ne.s32.totalorder %s221, %s222
      %p234 = scmp.eq.s32.totalorder %s86, 1
      %p235 = por %p233, %p234
      %p237 = scmp.ne.s32.totalorder %s222, %s236
      %p238 = scmp.eq.s32.totalorder %s86, 0
      %p239 = por %p237, %p238
      %s241 = sadd.s32 %s240, 1
      %p244 = scmp.eq.s32.totalorder %s80, 1
      %p245 = scmp.ne.s32.totalorder %s240, %s242
      %p246 = scmp.eq.s32.totalorder %s80, 0
      %p247 = por %p245, %p246
      %p248 = scmp.ne.s32.totalorder %s240, %s242
      %p249 = scmp.eq.s32.totalorder %s85, 1
      %p250 = por %p248, %p249
      %p251 = scmp.ne.s32.totalorder %s242, %s243
      %p252 = scmp.eq.s32.totalorder %s85, 0
      %p253 = por %p251, %p252
      %p254 = scmp.ne.s32.totalorder %s242, %s243
      %p255 = scmp.eq.s32.totalorder %s86, 1
      %p256 = por %p254, %p255
      %p258 = scmp.ne.s32.totalorder %s243, %s257
      %p259 = scmp.eq.s32.totalorder %s86, 0
      %p260 = por %p258, %p259
      %s262 = sadd.s32 %s261, 1
      %p265 = scmp.eq.s32.totalorder %s80, 1
      %p266 = scmp.ne.s32.totalorder %s261, %s263
      %p267 = scmp.eq.s32.totalorder %s80, 0
      %p268 = por %p266, %p267
      %p269 = scmp.ne.s32.totalorder %s261, %s263
      %p270 = scmp.eq.s32.totalorder %s85, 1
      %p271 = por %p269, %p270
      %p272 = scmp.ne.s32.totalorder %s263, %s264
      %p273 = scmp.eq.s32.totalorder %s85, 0
      %p274 = por %p272, %p273
      %p275 = scmp.ne.s32.totalorder %s263, %s264
      %p276 = scmp.eq.s32.totalorder %s86, 1
      %p277 = por %p275, %p276
      %p279 = scmp.ne.s32.totalorder %s264, %s278
      %p280 = scmp.eq.s32.totalorder %s86, 0
      %p281 = por %p279, %p280
      %s283 = sadd.s32 %s282, 1
      %p286 = scmp.eq.s32.totalorder %s80, 1
      %p287 = scmp.ne.s32.totalorder %s282, %s284
      %p288 = scmp.eq.s32.totalorder %s80, 0
      %p289 = por %p287, %p288
      %p290 = scmp.ne.s32.totalorder %s282, %s284
      %p291 = scmp.eq.s32.totalorder %s85, 1
      %p292 = por %p290, %p291
      %p293 = scmp.ne.s32.totalorder %s284, %s285
      %p294 = scmp.eq.s32.totalorder %s85, 0
      %p295 = por %p293, %p294
      %p296 = scmp.ne.s32.totalorder %s284, %s285
      %p297 = scmp.eq.s32.totalorder %s86, 1
      %p298 = por %p296, %p297
      %p300 = scmp.ne.s32.totalorder %s285, %s299
      %p301 = scmp.eq.s32.totalorder %s86, 0
      %p302 = por %p300, %p301
      %s304 = sadd.s32 %s303, 1
      %p307 = scmp.eq.s32.totalorder %s80, 1
      %p308 = scmp.ne.s32.totalorder %s303, %s305
      %p309 = scmp.eq.s32.totalorder %s80, 0
      %p310 = por %p308, %p309
      %p311 = scmp.ne.s32.totalorder %s303, %s305
      %p312 = scmp.eq.s32.totalorder %s85, 1
      %p313 = por %p311, %p312
      %p314 = scmp.ne.s32.totalorder %s305, %s306
      %p315 = scmp.eq.s32.totalorder %s85, 0
      %p316 = por %p314, %p315
      %p317 = scmp.ne.s32.totalorder %s305, %s306
      %p318 = scmp.eq.s32.totalorder %s86, 1
      %p319 = por %p317, %p318
      %p321 = scmp.ne.s32.totalorder %s306, %s320
      %p322 = scmp.eq.s32.totalorder %s86, 0
      %p323 = por %p321, %p322
      %s325 = sadd.s32 %s324, 1
      %p328 = scmp.eq.s32.totalorder %s80, 1
      %p329 = scmp.ne.s32.totalorder %s324, %s326
      %p330 = scmp.eq.s32.totalorder %s80, 0
      %p331 = por %p329, %p330
      %p332 = scmp.ne.s32.totalorder %s324, %s326
      %p333 = scmp.eq.s32.totalorder %s85, 1
      %p334 = por %p332, %p333
      %p335 = scmp.ne.s32.totalorder %s326, %s327
      %p336 = scmp.eq.s32.totalorder %s85, 0
      %p337 = por %p335, %p336
      %p338 = scmp.ne.s32.totalorder %s326, %s327
      %p339 = scmp.eq.s32.totalorder %s86, 1
      %p340 = por %p338, %p339
      %p342 = scmp.ne.s32.totalorder %s327, %s341
      %p343 = scmp.eq.s32.totalorder %s86, 0
      %p344 = por %p342, %p343
      %s346 = sadd.s32 %s345, 1
      %p349 = scmp.eq.s32.totalorder %s80, 1
      %p350 = scmp.ne.s32.totalorder %s345, %s347
      %p351 = scmp.eq.s32.totalorder %s80, 0
      %p352 = por %p350, %p351
      %p353 = scmp.ne.s32.totalorder %s345, %s347
      %p354 = scmp.eq.s32.totalorder %s85, 1
      %p355 = por %p353, %p354
      %p356 = scmp.ne.s32.totalorder %s347, %s348
      %p357 = scmp.eq.s32.totalorder %s85, 0
      %p358 = por %p356, %p357
      %p359 = scmp.ne.s32.totalorder %s347, %s348
      %p360 = scmp.eq.s32.totalorder %s86, 1
      %p361 = por %p359, %p360
      %p363 = scmp.ne.s32.totalorder %s348, %s362
      %p364 = scmp.eq.s32.totalorder %s86, 0
      %p365 = por %p363, %p364
      %s367 = sadd.s32 %s366, 1
      %p370 = scmp.eq.s32.totalorder %s80, 1
      %p371 = scmp.ne.s32.totalorder %s366, %s368
      %p372 = scmp.eq.s32.totalorder %s80, 0
      %p373 = por %p371, %p372
      %p374 = scmp.ne.s32.totalorder %s366, %s368
      %p375 = scmp.eq.s32.totalorder %s85, 1
      %p376 = por %p374, %p375
      %p377 = scmp.ne.s32.totalorder %s368, %s369
      %p378 = scmp.eq.s32.totalorder %s85, 0
      %p379 = por %p377, %p378
      %p380 = scmp.ne.s32.totalorder %s368, %s369
      %p381 = scmp.eq.s32.totalorder %s86, 1
      %p382 = por %p380, %p381
      %p384 = scmp.ne.s32.totalorder %s369, %s383
      %p385 = scmp.eq.s32.totalorder %s86, 0
      %p386 = por %p384, %p385
      %s388 = sadd.s32 %s387, 1
      %p391 = scmp.eq.s32.totalorder %s80, 1
      %p392 = scmp.ne.s32.totalorder %s387, %s389
      %p393 = scmp.eq.s32.totalorder %s80, 0
      %p394 = por %p392, %p393
      %p395 = scmp.ne.s32.totalorder %s387, %s389
      %p396 = scmp.eq.s32.totalorder %s85, 1
      %p397 = por %p395, %p396
      %p398 = scmp.ne.s32.totalorder %s389, %s390
      %p399 = scmp.eq.s32.totalorder %s85, 0
      %p400 = por %p398, %p399
      %p401 = scmp.ne.s32.totalorder %s389, %s390
      %p402 = scmp.eq.s32.totalorder %s86, 1
      %p403 = por %p401, %p402
      %p405 = scmp.ne.s32.totalorder %s390, %s404
      %p406 = scmp.eq.s32.totalorder %s86, 0
      %p407 = por %p405, %p406
      %s409 = sadd.s32 %s408, 1
      %p412 = scmp.eq.s32.totalorder %s80, 1
      %p413 = scmp.ne.s32.totalorder %s408, %s410
      %p414 = scmp.eq.s32.totalorder %s80, 0
      %p415 = por %p413, %p414
      %p416 = scmp.ne.s32.totalorder %s408, %s410
      %p417 = scmp.eq.s32.totalorder %s85, 1
      %p418 = por %p416, %p417
      %p419 = scmp.ne.s32.totalorder %s410, %s411
      %p420 = scmp.eq.s32.totalorder %s85, 0
      %p421 = por %p419, %p420
      %p422 = scmp.ne.s32.totalorder %s410, %s411
      %p423 = scmp.eq.s32.totalorder %s86, 1
      %p424 = por %p422, %p423
      %p426 = scmp.ne.s32.totalorder %s411, %s425
      %p427 = scmp.eq.s32.totalorder %s86, 0
      %p428 = por %p426, %p427
      %s430 = sadd.s32 %s429, 1
      %p433 = scmp.eq.s32.totalorder %s80, 1
      %p434 = scmp.ne.s32.totalorder %s429, %s431
      %p435 = scmp.eq.s32.totalorder %s80, 0
      %p436 = por %p434, %p435
      %p437 = scmp.ne.s32.totalorder %s429, %s431
      %p438 = scmp.eq.s32.totalorder %s85, 1
      %p439 = por %p437, %p438
      %p440 = scmp.ne.s32.totalorder %s431, %s432
      %p441 = scmp.eq.s32.totalorder %s85, 0
      %p442 = por %p440, %p441
      %p443 = scmp.ne.s32.totalorder %s431, %s432
      %p444 = scmp.eq.s32.totalorder %s86, 1
      %p445 = por %p443, %p444
      %p447 = scmp.ne.s32.totalorder %s432, %s446
      %p448 = scmp.eq.s32.totalorder %s86, 0
      %p449 = por %p447, %p448
      %s451 = sadd.s32 %s450, 1
      %p454 = scmp.eq.s32.totalorder %s80, 1
      %p455 = scmp.ne.s32.totalorder %s450, %s452
      %p456 = scmp.eq.s32.totalorder %s80, 0
      %p457 = por %p455, %p456
      %p458 = scmp.ne.s32.totalorder %s450, %s452
      %p459 = scmp.eq.s32.totalorder %s85, 1
      %p460 = por %p458, %p459
      %p461 = scmp.ne.s32.totalorder %s452, %s453
      %p462 = scmp.eq.s32.totalorder %s85, 0
      %p463 = por %p461, %p462
      %p464 = scmp.ne.s32.totalorder %s452, %s453
      %p465 = scmp.eq.s32.totalorder %s86, 1
      %p466 = por %p464, %p465
      %p468 = scmp.ne.s32.totalorder %s453, %s467
      %p469 = scmp.eq.s32.totalorder %s86, 0
      %p470 = por %p468, %p469
      %s472 = sadd.s32 %s471, 1
      %p475 = scmp.eq.s32.totalorder %s80, 1
      %p476 = scmp.ne.s32.totalorder %s471, %s473
      %p477 = scmp.eq.s32.totalorder %s80, 0
      %p478 = por %p476, %p477
      %p479 = scmp.ne.s32.totalorder %s471, %s473
      %p480 = scmp.eq.s32.totalorder %s85, 1
      %p481 = por %p479, %p480
      %p482 = scmp.ne.s32.totalorder %s473, %s474
      %p483 = scmp.eq.s32.totalorder %s85, 0
      %p484 = por %p482, %p483
      %p485 = scmp.ne.s32.totalorder %s473, %s474
      %p486 = scmp.eq.s32.totalorder %s86, 1
      %p487 = por %p485, %p486
      %p489 = scmp.ne.s32.totalorder %s474, %s488
      %p490 = scmp.eq.s32.totalorder %s86, 0
      %p491 = por %p489, %p490
      %s493 = sadd.s32 %s492, 1
      %p496 = scmp.eq.s32.totalorder %s80, 1
      %p497 = scmp.ne.s32.totalorder %s492, %s494
      %p498 = scmp.eq.s32.totalorder %s80, 0
      %p499 = por %p497, %p498
      %p500 = scmp.ne.s32.totalorder %s492, %s494
      %p501 = scmp.eq.s32.totalorder %s85, 1
      %p502 = por %p500, %p501
      %p503 = scmp.ne.s32.totalorder %s494, %s495
      %p504 = scmp.eq.s32.totalorder %s85, 0
      %p505 = por %p503, %p504
      %p506 = scmp.ne.s32.totalorder %s494, %s495
      %p507 = scmp.eq.s32.totalorder %s86, 1
      %p508 = por %p506, %p507
      %p510 = scmp.ne.s32.totalorder %s495, %s509
      %p511 = scmp.eq.s32.totalorder %s86, 0
      %p512 = por %p510, %p511
      %s514 = sadd.s32 %s513, 1
      %p517 = scmp.eq.s32.totalorder %s80, 1
      %p518 = scmp.ne.s32.totalorder %s513, %s515
      %p519 = scmp.eq.s32.totalorder %s80, 0
      %p520 = por %p518, %p519
      %p521 = scmp.ne.s32.totalorder %s513, %s515
      %p522 = scmp.eq.s32.totalorder %s85, 1
      %p523 = por %p521, %p522
      %p524 = scmp.ne.s32.totalorder %s515, %s516
      %p525 = scmp.eq.s32.totalorder %s85, 0
      %p526 = por %p524, %p525
      %p527 = scmp.ne.s32.totalorder %s515, %s516
      %p528 = scmp.eq.s32.totalorder %s86, 1
      %p529 = por %p527, %p528
      %p531 = scmp.ne.s32.totalorder %s516, %s530
      %p532 = scmp.eq.s32.totalorder %s86, 0
      %p533 = por %p531, %p532
      %s535 = sadd.s32 %s534, 1
      %p538 = scmp.eq.s32.totalorder %s80, 1
      %p539 = scmp.ne.s32.totalorder %s534, %s536
      %p540 = scmp.eq.s32.totalorder %s80, 0
      %p541 = por %p539, %p540
      %p542 = scmp.ne.s32.totalorder %s534, %s536
      %p543 = scmp.eq.s32.totalorder %s85, 1
      %p544 = por %p542, %p543
      %p545 = scmp.ne.s32.totalorder %s536, %s537
      %p546 = scmp.eq.s32.totalorder %s85, 0
      %p547 = por %p545, %p546
      %p548 = scmp.ne.s32.totalorder %s536, %s537
      %p549 = scmp.eq.s32.totalorder %s86, 1
      %p550 = por %p548, %p549
      %p552 = scmp.ne.s32.totalorder %s537, %s551
      %p553 = scmp.eq.s32.totalorder %s86, 0
      %p554 = por %p552, %p553
      %s556 = sadd.s32 %s555, 1
      %p559 = scmp.eq.s32.totalorder %s80, 1
      %p560 = scmp.ne.s32.totalorder %s555, %s557
      %p561 = scmp.eq.s32.totalorder %s80, 0
      %p562 = por %p560, %p561
      %p563 = scmp.ne.s32.totalorder %s555, %s557
      %p564 = scmp.eq.s32.totalorder %s85, 1
      %p565 = por %p563, %p564
      %p566 = scmp.ne.s32.totalorder %s557, %s558
      %p567 = scmp.eq.s32.totalorder %s85, 0
      %p568 = por %p566, %p567
      %p569 = scmp.ne.s32.totalorder %s557, %s558
      %p570 = scmp.eq.s32.totalorder %s86, 1
      %p571 = por %p569, %p570
      %p573 = scmp.ne.s32.totalorder %s558, %s572
      %p574 = scmp.eq.s32.totalorder %s86, 0
      %p575 = por %p573, %p574
      %s577 = sadd.s32 %s576, 1
      %p580 = scmp.eq.s32.totalorder %s80, 1
      %p581 = scmp.ne.s32.totalorder %s576, %s578
      %p582 = scmp.eq.s32.totalorder %s80, 0
      %p583 = por %p581, %p582
      %p584 = scmp.ne.s32.totalorder %s576, %s578
      %p585 = scmp.eq.s32.totalorder %s85, 1
      %p586 = por %p584, %p585
      %p587 = scmp.ne.s32.totalorder %s578, %s579
      %p588 = scmp.eq.s32.totalorder %s85, 0
      %p589 = por %p587, %p588
      %p590 = scmp.ne.s32.totalorder %s578, %s579
      %p591 = scmp.eq.s32.totalorder %s86, 1
      %p592 = por %p590, %p591
      %p594 = scmp.ne.s32.totalorder %s579, %s593
      %p595 = scmp.eq.s32.totalorder %s86, 0
      %p596 = por %p594, %p595
      %s598 = sadd.s32 %s597, 1
      %p601 = scmp.eq.s32.totalorder %s80, 1
      %p602 = scmp.ne.s32.totalorder %s597, %s599
      %p603 = scmp.eq.s32.totalorder %s80, 0
      %p604 = por %p602, %p603
      %p605 = scmp.ne.s32.totalorder %s597, %s599
      %p606 = scmp.eq.s32.totalorder %s85, 1
      %p607 = por %p605, %p606
      %p608 = scmp.ne.s32.totalorder %s599, %s600
      %p609 = scmp.eq.s32.totalorder %s85, 0
      %p610 = por %p608, %p609
      %p611 = scmp.ne.s32.totalorder %s599, %s600
      %p612 = scmp.eq.s32.totalorder %s86, 1
      %p613 = por %p611, %p612
      %p615 = scmp.ne.s32.totalorder %s600, %s614
      %p616 = scmp.eq.s32.totalorder %s86, 0
      %p617 = por %p615, %p616
      %s619 = sadd.s32 %s618, 1
      %p622 = scmp.eq.s32.totalorder %s80, 1
      %p623 = scmp.ne.s32.totalorder %s618, %s620
      %p624 = scmp.eq.s32.totalorder %s80, 0
      %p625 = por %p623, %p624
      %p626 = scmp.ne.s32.totalorder %s618, %s620
      %p627 = scmp.eq.s32.totalorder %s85, 1
      %p628 = por %p626, %p627
      %p629 = scmp.ne.s32.totalorder %s620, %s621
      %p630 = scmp.eq.s32.totalorder %s85, 0
      %p631 = por %p629, %p630
      %p632 = scmp.ne.s32.totalorder %s620, %s621
      %p633 = scmp.eq.s32.totalorder %s86, 1
      %p634 = por %p632, %p633
      %p636 = scmp.ne.s32.totalorder %s621, %s635
      %p637 = scmp.eq.s32.totalorder %s86, 0
      %p638 = por %p636, %p637
      %s640 = sadd.s32 %s639, 1
      %p643 = scmp.eq.s32.totalorder %s80, 1
      %p644 = scmp.ne.s32.totalorder %s639, %s641
      %p645 = scmp.eq.s32.totalorder %s80, 0
      %p646 = por %p644, %p645
      %p647 = scmp.ne.s32.totalorder %s639, %s641
      %p648 = scmp.eq.s32.totalorder %s85, 1
      %p649 = por %p647, %p648
      %p650 = scmp.ne.s32.totalorder %s641, %s642
      %p651 = scmp.eq.s32.totalorder %s85, 0
      %p652 = por %p650, %p651
      %p653 = scmp.ne.s32.totalorder %s641, %s642
      %p654 = scmp.eq.s32.totalorder %s86, 1
      %p655 = por %p653, %p654
      %p657 = scmp.ne.s32.totalorder %s642, %s656
      %p658 = scmp.eq.s32.totalorder %s86, 0
      %p659 = por %p657, %p658
      %s661 = sadd.s32 %s660, 1
      %p664 = scmp.eq.s32.totalorder %s80, 1
      %p665 = scmp.ne.s32.totalorder %s660, %s662
      %p666 = scmp.eq.s32.totalorder %s80, 0
      %p667 = por %p665, %p666
      %p668 = scmp.ne.s32.totalorder %s660, %s662
      %p669 = scmp.eq.s32.totalorder %s85, 1
      %p670 = por %p668, %p669
      %p671 = scmp.ne.s32.totalorder %s662, %s663
      %p672 = scmp.eq.s32.totalorder %s85, 0
      %p673 = por %p671, %p672
      %p674 = scmp.ne.s32.totalorder %s662, %s663
      %p675 = scmp.eq.s32.totalorder %s86, 1
      %p676 = por %p674, %p675
      %p678 = scmp.ne.s32.totalorder %s663, %s677
      %p679 = scmp.eq.s32.totalorder %s86, 0
      %p680 = por %p678, %p679
      %s682 = sadd.s32 %s681, 1
      %p685 = scmp.eq.s32.totalorder %s80, 1
      %p686 = scmp.ne.s32.totalorder %s681, %s683
      %p687 = scmp.eq.s32.totalorder %s80, 0
      %p688 = por %p686, %p687
      %p689 = scmp.ne.s32.totalorder %s681, %s683
      %p690 = scmp.eq.s32.totalorder %s85, 1
      %p691 = por %p689, %p690
      %p692 = scmp.ne.s32.totalorder %s683, %s684
      %p693 = scmp.eq.s32.totalorder %s85, 0
      %p694 = por %p692, %p693
      %p695 = scmp.ne.s32.totalorder %s683, %s684
      %p696 = scmp.eq.s32.totalorder %s86, 1
      %p697 = por %p695, %p696
      %p699 = scmp.ne.s32.totalorder %s684, %s698
      %p700 = scmp.eq.s32.totalorder %s86, 0
      %p701 = por %p699, %p700
      %s703 = sadd.s32 %s702, 1
      %p706 = scmp.eq.s32.totalorder %s80, 1
      %p707 = scmp.ne.s32.totalorder %s702, %s704
      %p708 = scmp.eq.s32.totalorder %s80, 0
      %p709 = por %p707, %p708
      %p710 = scmp.ne.s32.totalorder %s702, %s704
      %p711 = scmp.eq.s32.totalorder %s85, 1
      %p712 = por %p710, %p711
      %p713 = scmp.ne.s32.totalorder %s704, %s705
      %p714 = scmp.eq.s32.totalorder %s85, 0
      %p715 = por %p713, %p714
      %p716 = scmp.ne.s32.totalorder %s704, %s705
      %p717 = scmp.eq.s32.totalorder %s86, 1
      %p718 = por %p716, %p717
      %p720 = scmp.ne.s32.totalorder %s705, %s719
      %p721 = scmp.eq.s32.totalorder %s86, 0
      %p722 = por %p720, %p721
      %s724 = sadd.s32 %s723, 1
      %p727 = scmp.eq.s32.totalorder %s80, 1
      %p728 = scmp.ne.s32.totalorder %s723, %s725
      %p729 = scmp.eq.s32.totalorder %s80, 0
      %p730 = por %p728, %p729
      %p731 = scmp.ne.s32.totalorder %s723, %s725
      %p732 = scmp.eq.s32.totalorder %s85, 1
      %p733 = por %p731, %p732
      %p734 = scmp.ne.s32.totalorder %s725, %s726
      %p735 = scmp.eq.s32.totalorder %s85, 0
      %p736 = por %p734, %p735
      %p737 = scmp.ne.s32.totalorder %s725, %s726
      %p738 = scmp.eq.s32.totalorder %s86, 1
      %p739 = por %p737, %p738
      %p741 = scmp.ne.s32.totalorder %s726, %s740
      %p742 = scmp.eq.s32.totalorder %s86, 0
      %p743 = por %p741, %p742
      %s745 = sadd.s32 %s744, 1
      %p748 = scmp.eq.s32.totalorder %s80, 1
      %p749 = scmp.ne.s32.totalorder %s744, %s746
      %p750 = scmp.eq.s32.totalorder %s80, 0
      %p751 = por %p749, %p750
      %p752 = scmp.ne.s32.totalorder %s744, %s746
      %p753 = scmp.eq.s32.totalorder %s85, 1
      %p754 = por %p752, %p753
      %p755 = scmp.ne.s32.totalorder %s746, %s747
      %p756 = scmp.eq.s32.totalorder %s85, 0
      %p757 = por %p755, %p756
      %p758 = scmp.ne.s32.totalorder %s746, %s747
      %p759 = scmp.eq.s32.totalorder %s86, 1
      %p760 = por %p758, %p759
      %p762 = scmp.ne.s32.totalorder %s747, %s761
      %p763 = scmp.eq.s32.totalorder %s86, 0
      %p764 = por %p762, %p763
      %s766 = sadd.s32 %s765, 1
      %p769 = scmp.eq.s32.totalorder %s80, 1
      %p770 = scmp.ne.s32.totalorder %s765, %s767
      %p771 = scmp.eq.s32.totalorder %s80, 0
      %p772 = por %p770, %p771
      %p773 = scmp.ne.s32.totalorder %s765, %s767
      %p774 = scmp.eq.s32.totalorder %s85, 1
      %p775 = por %p773, %p774
      %p776 = scmp.ne.s32.totalorder %s767, %s768
      %p777 = scmp.eq.s32.totalorder %s85, 0
      %p778 = por %p776, %p777
      %p779 = scmp.ne.s32.totalorder %s767, %s768
      %p780 = scmp.eq.s32.totalorder %s86, 1
      %p781 = por %p779, %p780
      %p783 = scmp.ne.s32.totalorder %s768, %s782
      %p784 = scmp.eq.s32.totalorder %s86, 0
      %p785 = por %p783, %p784
      %s786 = ssub.s32 %s80, %s87
      %p787 = scmp.eq.s32.totalorder %s786, 0
      %s789 = sadd.s32 %s788, 1
      %s790 = scalar_select %p787, %s788, %s789
      %p793 = pneg %p787
      %p794 = scmp.eq.s32.totalorder %s80, 1
      %p795 = por %p793, %p794
      %p796 = scmp.ne.s32.totalorder %s788, %s791
      %p797 = scmp.eq.s32.totalorder %s80, 0
      %p798 = por %p796, %p797
      %p799 = scmp.ne.s32.totalorder %s788, %s791
      %p800 = scmp.eq.s32.totalorder %s85, 1
      %p801 = por %p799, %p800
      %p802 = scmp.ne.s32.totalorder %s791, %s792
      %p803 = scmp.eq.s32.totalorder %s85, 0
      %p804 = por %p802, %p803
      %p805 = scmp.ne.s32.totalorder %s791, %s792
      %p806 = scmp.eq.s32.totalorder %s86, 1
      %p807 = por %p805, %p806
      %p809 = scmp.ne.s32.totalorder %s792, %s808
      %p810 = scmp.eq.s32.totalorder %s86, 0
      %p811 = por %p809, %p810
      %p812 = scmp.le.s32.totalorder 1, %s80
      %p813 = scmp.lt.s32.totalorder %s80, 3
      %p814 = pnand %p812, %p813
      %p815 = pneg %p814
      // Predicated region
      $region9: #{gated_pixelcnn_forward.1} parent=5 // pred_check
        _
      $region10: #{gated_pixelcnn_forward.1} parent=5 // pred_check_branch
        %817 = sbr.rel (%p814) target = $region12
      $region11: #{gated_pixelcnn_forward.1} parent=5 // pred_region
        %s818 = ssub.s32 %s80, 1
        // Predicated region
        $region13: #{gated_pixelcnn_forward.1} parent=11 // pred_check
          %p819 = pneg %p127
        $region14: #{gated_pixelcnn_forward.1} parent=11 // pred_check_branch
          %821 = sbr.rel (%p819) target = $region16
        $region15: #{gated_pixelcnn_forward.1} parent=11 // pred_region
          %s823 = ssub.s32 64, 64
          %824 = vsyncadd [#allocation3], %s823
          %s826 = sshll.u32 [#allocation2], 4
          %s827 = int_to_ptr.vmem [resolvable:$true] %s826
          %829 = dma.hbm_to_vmem [thread:$0]  %s3, 64, %s827, [#allocation3]
        $region16: #{gated_pixelcnn_forward.1} parent=11 // pred_fallthru
          _
        // Predicated region
        $region17: #{gated_pixelcnn_forward.1} parent=11 // pred_check
          %p830 = pneg %p148
        $region18: #{gated_pixelcnn_forward.1} parent=11 // pred_check_branch
          %832 = sbr.rel (%p830) target = $region20
        $region19: #{gated_pixelcnn_forward.1} parent=11 // pred_region
          _
        $region20: #{gated_pixelcnn_forward.1} parent=11 // pred_fallthru
          _
        // Predicated region
        $region21: #{gated_pixelcnn_forward.1} parent=11 // pred_check
          %p833 = pneg %p169
        $region22: #{gated_pixelcnn_forward.1} parent=11 // pred_check_branch
          %835 = sbr.rel (%p833) target = $region24
        $region23: #{gated_pixelcnn_forward.1} parent=11 // pred_region
          %s837 = ssub.s32 512, 512
          %838 = vsyncadd [#allocation5], %s837
          %s839 = sshll.u32 [#allocation4], 4
          %s840 = int_to_ptr.vmem [resolvable:$true] %s839
          %845 = dma.hbm_to_vmem [thread:$0]  %s7, 512, %s840, [#allocation5], 128, 128, 8
        $region24: #{gated_pixelcnn_forward.1} parent=11 // pred_fallthru
          _
        // Predicated region
        $region25: #{gated_pixelcnn_forward.1} parent=11 // pred_check
          %p846 = pneg %p190
        $region26: #{gated_pixelcnn_forward.1} parent=11 // pred_check_branch
          %848 = sbr.rel (%p846) target = $region28
        $region27: #{gated_pixelcnn_forward.1} parent=11 // pred_region
          _
        $region28: #{gated_pixelcnn_forward.1} parent=11 // pred_fallthru
          _
        // Predicated region
        $region29: #{gated_pixelcnn_forward.1} parent=11 // pred_check
          %p849 = pneg %p211
        $region30: #{gated_pixelcnn_forward.1} parent=11 // pred_check_branch
          %851 = sbr.rel (%p849) target = $region32
        $region31: #{gated_pixelcnn_forward.1} parent=11 // pred_region
          _
        $region32: #{gated_pixelcnn_forward.1} parent=11 // pred_fallthru
          _
        // Predicated region
        $region33: #{gated_pixelcnn_forward.1} parent=11 // pred_check
          %p852 = pneg %p232
        $region34: #{gated_pixelcnn_forward.1} parent=11 // pred_check_branch
          %854 = sbr.rel (%p852) target = $region36
        $region35: #{gated_pixelcnn_forward.1} parent=11 // pred_region
          _
        $region36: #{gated_pixelcnn_forward.1} parent=11 // pred_fallthru
          _
        // Predicated region
        $region37: #{gated_pixelcnn_forward.1} parent=11 // pred_check
          %p855 = pneg %p253
        $region38: #{gated_pixelcnn_forward.1} parent=11 // pred_check_branch
          %857 = sbr.rel (%p855) target = $region40
        $region39: #{gated_pixelcnn_forward.1} parent=11 // pred_region
          %s859 = ssub.s32 1536, 1536
          %860 = vsyncadd [#allocation5], %s859
          %s861 = sshll.u32 [#allocation6], 4
          %s862 = int_to_ptr.vmem [resolvable:$true] %s861
          %867 = dma.hbm_to_vmem [thread:$0]  %s15, 1536, %s862, [#allocation5], 128, 128, 8
        $region40: #{gated_pixelcnn_forward.1} parent=11 // pred_fallthru
          _
        // Predicated region
        $region41: #{gated_pixelcnn_forward.1} parent=11 // pred_check
          %p868 = pneg %p274
        $region42: #{gated_pixelcnn_forward.1} parent=11 // pred_check_branch
          %870 = sbr.rel (%p868) target = $region44
        $region43: #{gated_pixelcnn_forward.1} parent=11 // pred_region
          _
        $region44: #{gated_pixelcnn_forward.1} parent=11 // pred_fallthru
          _
        // Predicated region
        $region45: #{gated_pixelcnn_forward.1} parent=11 // pred_check
          %p871 = pneg %p295
        $region46: #{gated_pixelcnn_forward.1} parent=11 // pred_check_branch
          %873 = sbr.rel (%p871) target = $region48
        $region47: #{gated_pixelcnn_forward.1} parent=11 // pred_region
          %s875 = ssub.s32 1024, 1024
          %876 = vsyncadd [#allocation8], %s875
          %s877 = sshll.u32 [#allocation7], 4
          %s878 = int_to_ptr.vmem [resolvable:$true] %s877
          %883 = dma.hbm_to_vmem [thread:$0]  %s19, 1024, %s878, [#allocation8], 128, 128, 8
        $region48: #{gated_pixelcnn_forward.1} parent=11 // pred_fallthru
          _
        // Predicated region
        $region49: #{gated_pixelcnn_forward.1} parent=11 // pred_check
          %p884 = pneg %p316
        $region50: #{gated_pixelcnn_forward.1} parent=11 // pred_check_branch
          %886 = sbr.rel (%p884) target = $region52
        $region51: #{gated_pixelcnn_forward.1} parent=11 // pred_region
          _
        $region52: #{gated_pixelcnn_forward.1} parent=11 // pred_fallthru
          _
        // Predicated region
        $region53: #{gated_pixelcnn_forward.1} parent=11 // pred_check
          %p887 = pneg %p337
        $region54: #{gated_pixelcnn_forward.1} parent=11 // pred_check_branch
          %889 = sbr.rel (%p887) target = $region56
        $region55: #{gated_pixelcnn_forward.1} parent=11 // pred_region
          %s891 = ssub.s32 512, 512
          %892 = vsyncadd [#allocation8], %s891
          %s893 = sshll.u32 [#allocation9], 4
          %s894 = int_to_ptr.vmem [resolvable:$true] %s893
          %899 = dma.hbm_to_vmem [thread:$0]  %s23, 512, %s894, [#allocation8], 128, 128, 8
        $region56: #{gated_pixelcnn_forward.1} parent=11 // pred_fallthru
          _
        // Predicated region
        $region57: #{gated_pixelcnn_forward.1} parent=11 // pred_check
          %p900 = pneg %p358
        $region58: #{gated_pixelcnn_forward.1} parent=11 // pred_check_branch
          %902 = sbr.rel (%p900) target = $region60
        $region59: #{gated_pixelcnn_forward.1} parent=11 // pred_region
          _
        $region60: #{gated_pixelcnn_forward.1} parent=11 // pred_fallthru
          _
        // Predicated region
        $region61: #{gated_pixelcnn_forward.1} parent=11 // pred_check
          %p903 = pneg %p379
        $region62: #{gated_pixelcnn_forward.1} parent=11 // pred_check_branch
          %905 = sbr.rel (%p903) target = $region64
        $region63: #{gated_pixelcnn_forward.1} parent=11 // pred_region
          %s907 = ssub.s32 3072, 3072
          %908 = vsyncadd [#allocation11], %s907
          %s909 = sshll.u32 [#allocation10], 4
          %s910 = int_to_ptr.vmem [resolvable:$true] %s909
          %915 = dma.hbm_to_vmem [thread:$0]  %s27, 3072, %s910, [#allocation11], 128, 128, 8
        $region64: #{gated_pixelcnn_forward.1} parent=11 // pred_fallthru
          _
        // Predicated region
        $region65: #{gated_pixelcnn_forward.1} parent=11 // pred_check
          %p916 = pneg %p400
        $region66: #{gated_pixelcnn_forward.1} parent=11 // pred_check_branch
          %918 = sbr.rel (%p916) target = $region68
        $region67: #{gated_pixelcnn_forward.1} parent=11 // pred_region
          _
        $region68: #{gated_pixelcnn_forward.1} parent=11 // pred_fallthru
          _
        // Predicated region
        $region69: #{gated_pixelcnn_forward.1} parent=11 // pred_check
          %p919 = pneg %p421
        $region70: #{gated_pixelcnn_forward.1} parent=11 // pred_check_branch
          %921 = sbr.rel (%p919) target = $region72
        $region71: #{gated_pixelcnn_forward.1} parent=11 // pred_region
          %s923 = ssub.s32 1024, 1024
          %924 = vsyncadd [#allocation11], %s923
          %s925 = sshll.u32 [#allocation12], 4
          %s926 = int_to_ptr.vmem [resolvable:$true] %s925
          %931 = dma.hbm_to_vmem [thread:$0]  %s31, 1024, %s926, [#allocation11], 128, 128, 8
        $region72: #{gated_pixelcnn_forward.1} parent=11 // pred_fallthru
          _
        // Predicated region
        $region73: #{gated_pixelcnn_forward.1} parent=11 // pred_check
          %p932 = pneg %p442
        $region74: #{gated_pixelcnn_forward.1} parent=11 // pred_check_branch
          %934 = sbr.rel (%p932) target = $region76
        $region75: #{gated_pixelcnn_forward.1} parent=11 // pred_region
          _
        $region76: #{gated_pixelcnn_forward.1} parent=11 // pred_fallthru
          _
        // Predicated region
        $region77: #{gated_pixelcnn_forward.1} parent=11 // pred_check
          %p935 = pneg %p463
        $region78: #{gated_pixelcnn_forward.1} parent=11 // pred_check_branch
          %937 = sbr.rel (%p935) target = $region80
        $region79: #{gated_pixelcnn_forward.1} parent=11 // pred_region
          %s939 = ssub.s32 1024, 1024
          %940 = vsyncadd [#allocation14], %s939
          %s941 = sshll.u32 [#allocation13], 4
          %s942 = int_to_ptr.vmem [resolvable:$true] %s941
          %947 = dma.hbm_to_vmem [thread:$0]  %s35, 1024, %s942, [#allocation14], 128, 128, 8
        $region80: #{gated_pixelcnn_forward.1} parent=11 // pred_fallthru
          _
        // Predicated region
        $region81: #{gated_pixelcnn_forward.1} parent=11 // pred_check
          %p948 = pneg %p484
        $region82: #{gated_pixelcnn_forward.1} parent=11 // pred_check_branch
          %950 = sbr.rel (%p948) target = $region84
        $region83: #{gated_pixelcnn_forward.1} parent=11 // pred_region
          _
        $region84: #{gated_pixelcnn_forward.1} parent=11 // pred_fallthru
          _
        // Predicated region
        $region85: #{gated_pixelcnn_forward.1} parent=11 // pred_check
          %p951 = pneg %p505
        $region86: #{gated_pixelcnn_forward.1} parent=11 // pred_check_branch
          %953 = sbr.rel (%p951) target = $region88
        $region87: #{gated_pixelcnn_forward.1} parent=11 // pred_region
          %s955 = ssub.s32 512, 512
          %956 = vsyncadd [#allocation14], %s955
          %s957 = sshll.u32 [#allocation15], 4
          %s958 = int_to_ptr.vmem [resolvable:$true] %s957
          %963 = dma.hbm_to_vmem [thread:$0]  %s39, 512, %s958, [#allocation14], 128, 128, 8
        $region88: #{gated_pixelcnn_forward.1} parent=11 // pred_fallthru
          _
        // Predicated region
        $region89: #{gated_pixelcnn_forward.1} parent=11 // pred_check
          %p964 = pneg %p526
        $region90: #{gated_pixelcnn_forward.1} parent=11 // pred_check_branch
          %966 = sbr.rel (%p964) target = $region92
        $region91: #{gated_pixelcnn_forward.1} parent=11 // pred_region
          _
        $region92: #{gated_pixelcnn_forward.1} parent=11 // pred_fallthru
          _
        // Predicated region
        $region93: #{gated_pixelcnn_forward.1} parent=11 // pred_check
          %p967 = pneg %p547
        $region94: #{gated_pixelcnn_forward.1} parent=11 // pred_check_branch
          %969 = sbr.rel (%p967) target = $region96
        $region95: #{gated_pixelcnn_forward.1} parent=11 // pred_region
          %s971 = ssub.s32 3072, 3072
          %972 = vsyncadd [#allocation17], %s971
          %s973 = sshll.u32 [#allocation16], 4
          %s974 = int_to_ptr.vmem [resolvable:$true] %s973
          %979 = dma.hbm_to_vmem [thread:$0]  %s43, 3072, %s974, [#allocation17], 128, 128, 8
        $region96: #{gated_pixelcnn_forward.1} parent=11 // pred_fallthru
          _
        // Predicated region
        $region97: #{gated_pixelcnn_forward.1} parent=11 // pred_check
          %p980 = pneg %p568
        $region98: #{gated_pixelcnn_forward.1} parent=11 // pred_check_branch
          %982 = sbr.rel (%p980) target = $region100
        $region99: #{gated_pixelcnn_forward.1} parent=11 // pred_region
          _
        $region100: #{gated_pixelcnn_forward.1} parent=11 // pred_fallthru
          _
        // Predicated region
        $region101: #{gated_pixelcnn_forward.1} parent=11 // pred_check
          %p983 = pneg %p589
        $region102: #{gated_pixelcnn_forward.1} parent=11 // pred_check_branch
          %985 = sbr.rel (%p983) target = $region104
        $region103: #{gated_pixelcnn_forward.1} parent=11 // pred_region
          %s987 = ssub.s32 1024, 1024
          %988 = vsyncadd [#allocation17], %s987
          %s989 = sshll.u32 [#allocation18], 4
          %s990 = int_to_ptr.vmem [resolvable:$true] %s989
          %995 = dma.hbm_to_vmem [thread:$0]  %s47, 1024, %s990, [#allocation17], 128, 128, 8
        $region104: #{gated_pixelcnn_forward.1} parent=11 // pred_fallthru
          _
        // Predicated region
        $region105: #{gated_pixelcnn_forward.1} parent=11 // pred_check
          %p996 = pneg %p610
        $region106: #{gated_pixelcnn_forward.1} parent=11 // pred_check_branch
          %998 = sbr.rel (%p996) target = $region108
        $region107: #{gated_pixelcnn_forward.1} parent=11 // pred_region
          _
        $region108: #{gated_pixelcnn_forward.1} parent=11 // pred_fallthru
          _
        // Predicated region
        $region109: #{gated_pixelcnn_forward.1} parent=11 // pred_check
          %p999 = pneg %p631
        $region110: #{gated_pixelcnn_forward.1} parent=11 // pred_check_branch
          %1001 = sbr.rel (%p999) target = $region112
        $region111: #{gated_pixelcnn_forward.1} parent=11 // pred_region
          %s1003 = ssub.s32 1024, 1024
          %1004 = vsyncadd [#allocation20], %s1003
          %s1005 = sshll.u32 [#allocation19], 4
          %s1006 = int_to_ptr.vmem [resolvable:$true] %s1005
          %1011 = dma.hbm_to_vmem [thread:$0]  %s51, 1024, %s1006, [#allocation20], 128, 128, 8
        $region112: #{gated_pixelcnn_forward.1} parent=11 // pred_fallthru
          _
        // Predicated region
        $region113: #{gated_pixelcnn_forward.1} parent=11 // pred_check
          %p1012 = pneg %p652
        $region114: #{gated_pixelcnn_forward.1} parent=11 // pred_check_branch
          %1014 = sbr.rel (%p1012) target = $region116
        $region115: #{gated_pixelcnn_forward.1} parent=11 // pred_region
          _
        $region116: #{gated_pixelcnn_forward.1} parent=11 // pred_fallthru
          _
        // Predicated region
        $region117: #{gated_pixelcnn_forward.1} parent=11 // pred_check
          %p1015 = pneg %p673
        $region118: #{gated_pixelcnn_forward.1} parent=11 // pred_check_branch
          %1017 = sbr.rel (%p1015) target = $region120
        $region119: #{gated_pixelcnn_forward.1} parent=11 // pred_region
          %s1019 = ssub.s32 512, 512
          %1020 = vsyncadd [#allocation20], %s1019
          %s1021 = sshll.u32 [#allocation21], 4
          %s1022 = int_to_ptr.vmem [resolvable:$true] %s1021
          %1027 = dma.hbm_to_vmem [thread:$0]  %s55, 512, %s1022, [#allocation20], 128, 128, 8
        $region120: #{gated_pixelcnn_forward.1} parent=11 // pred_fallthru
          _
        // Predicated region
        $region121: #{gated_pixelcnn_forward.1} parent=11 // pred_check
          %p1028 = pneg %p694
        $region122: #{gated_pixelcnn_forward.1} parent=11 // pred_check_branch
          %1030 = sbr.rel (%p1028) target = $region124
        $region123: #{gated_pixelcnn_forward.1} parent=11 // pred_region
          _
        $region124: #{gated_pixelcnn_forward.1} parent=11 // pred_fallthru
          _
        // Predicated region
        $region125: #{gated_pixelcnn_forward.1} parent=11 // pred_check
          %p1031 = pneg %p715
        $region126: #{gated_pixelcnn_forward.1} parent=11 // pred_check_branch
          %1033 = sbr.rel (%p1031) target = $region128
        $region127: #{gated_pixelcnn_forward.1} parent=11 // pred_region
          _
        $region128: #{gated_pixelcnn_forward.1} parent=11 // pred_fallthru
          _
        // Predicated region
        $region129: #{gated_pixelcnn_forward.1} parent=11 // pred_check
          %p1034 = pneg %p736
        $region130: #{gated_pixelcnn_forward.1} parent=11 // pred_check_branch
          %1036 = sbr.rel (%p1034) target = $region132
        $region131: #{gated_pixelcnn_forward.1} parent=11 // pred_region
          _
        $region132: #{gated_pixelcnn_forward.1} parent=11 // pred_fallthru
          _
        // Predicated region
        $region133: #{gated_pixelcnn_forward.1} parent=11 // pred_check
          %p1037 = pneg %p757
        $region134: #{gated_pixelcnn_forward.1} parent=11 // pred_check_branch
          %1039 = sbr.rel (%p1037) target = $region136
        $region135: #{gated_pixelcnn_forward.1} parent=11 // pred_region
          _
        $region136: #{gated_pixelcnn_forward.1} parent=11 // pred_fallthru
          _
        // Predicated region
        $region137: #{gated_pixelcnn_forward.1} parent=11 // pred_check
          %p1040 = pneg %p778
        $region138: #{gated_pixelcnn_forward.1} parent=11 // pred_check_branch
          %1042 = sbr.rel (%p1040) target = $region140
        $region139: #{gated_pixelcnn_forward.1} parent=11 // pred_region
          _
        $region140: #{gated_pixelcnn_forward.1} parent=11 // pred_fallthru
          _
      $region12: #{gated_pixelcnn_forward.1} parent=5 // pred_fallthru
        _
      %p1043 = scmp.lt.s32.totalorder %s80, 2
      // Predicated region
      $region141: #{gated_pixelcnn_forward.1} parent=5 // pred_check
        %p1044 = pneg %p1043
      $region142: #{gated_pixelcnn_forward.1} parent=5 // pred_check_branch
        %1046 = sbr.rel (%p1044) target = $region144
      $region143: #{gated_pixelcnn_forward.1} parent=5 // pred_region
        // Predicated region
        $region145: #{gated_pixelcnn_forward.1} parent=143 // pred_check
          %p1047 = pneg %p100
        $region146: #{gated_pixelcnn_forward.1} parent=143 // pred_check_branch
          %1049 = sbr.rel (%p1047) target = $region148
        $region147: #{gated_pixelcnn_forward.1} parent=143 // pred_region
          %p1050 = scmp.lt.s32.totalorder %s80, 1
          %s1051 = scalar_select %p1050, %s80, 1
          %s1052 = smul.addr %s1051, 32
          %s1053 = smul.addr %s1052, 8
          %s1054 = scalar_lea.vmem %s1, %s1053
        $region148: #{gated_pixelcnn_forward.1} parent=143 // pred_fallthru
          _
      $region144: #{gated_pixelcnn_forward.1} parent=5 // pred_fallthru
        _
      %p1055 = scmp.le.s32.totalorder 1, %s80
      %p1056 = scmp.lt.s32.totalorder %s80, 3
      %p1057 = pnand %p1055, %p1056
      %p1058 = pneg %p1057
      // Predicated region
      $region149: #{gated_pixelcnn_forward.1} parent=5 // pred_check
        _
      $region150: #{gated_pixelcnn_forward.1} parent=5 // pred_check_branch
        %1060 = sbr.rel (%p1057) target = $region152
      $region151: #{gated_pixelcnn_forward.1} parent=5 // pred_region
        %s1061 = ssub.s32 %s80, 1
        // Predicated region
        $region153: #{gated_pixelcnn_forward.1} parent=151 // pred_check
          %p1062 = pneg %p127
        $region154: #{gated_pixelcnn_forward.1} parent=151 // pred_check_branch
          %1064 = sbr.rel (%p1062) target = $region156
        $region155: #{gated_pixelcnn_forward.1} parent=151 // pred_region
          %1065 = dma.done [#allocation3], 64
        $region156: #{gated_pixelcnn_forward.1} parent=151 // pred_fallthru
          _
        // Predicated region
        $region157: #{gated_pixelcnn_forward.1} parent=151 // pred_check
          %p1066 = pneg %p169
        $region158: #{gated_pixelcnn_forward.1} parent=151 // pred_check_branch
          %1068 = sbr.rel (%p1066) target = $region160
        $region159: #{gated_pixelcnn_forward.1} parent=151 // pred_region
          %1069 = dma.done [#allocation5], 512
        $region160: #{gated_pixelcnn_forward.1} parent=151 // pred_fallthru
          _
        // Predicated region
        $region161: #{gated_pixelcnn_forward.1} parent=151 // pred_check
          %p1070 = pneg %p253
        $region162: #{gated_pixelcnn_forward.1} parent=151 // pred_check_branch
          %1072 = sbr.rel (%p1070) target = $region164
        $region163: #{gated_pixelcnn_forward.1} parent=151 // pred_region
          %1073 = dma.done [#allocation5], 1536
        $region164: #{gated_pixelcnn_forward.1} parent=151 // pred_fallthru
          _
        // Predicated region
        $region165: #{gated_pixelcnn_forward.1} parent=151 // pred_check
          %p1074 = pneg %p295
        $region166: #{gated_pixelcnn_forward.1} parent=151 // pred_check_branch
          %1076 = sbr.rel (%p1074) target = $region168
        $region167: #{gated_pixelcnn_forward.1} parent=151 // pred_region
          %1077 = dma.done [#allocation8], 1024
        $region168: #{gated_pixelcnn_forward.1} parent=151 // pred_fallthru
          _
        // Predicated region
        $region169: #{gated_pixelcnn_forward.1} parent=151 // pred_check
          %p1078 = pneg %p337
        $region170: #{gated_pixelcnn_forward.1} parent=151 // pred_check_branch
          %1080 = sbr.rel (%p1078) target = $region172
        $region171: #{gated_pixelcnn_forward.1} parent=151 // pred_region
          %1081 = dma.done [#allocation8], 512
        $region172: #{gated_pixelcnn_forward.1} parent=151 // pred_fallthru
          _
        // Predicated region
        $region173: #{gated_pixelcnn_forward.1} parent=151 // pred_check
          %p1082 = pneg %p379
        $region174: #{gated_pixelcnn_forward.1} parent=151 // pred_check_branch
          %1084 = sbr.rel (%p1082) target = $region176
        $region175: #{gated_pixelcnn_forward.1} parent=151 // pred_region
          %1085 = dma.done [#allocation11], 3072
        $region176: #{gated_pixelcnn_forward.1} parent=151 // pred_fallthru
          _
        // Predicated region
        $region177: #{gated_pixelcnn_forward.1} parent=151 // pred_check
          %p1086 = pneg %p421
        $region178: #{gated_pixelcnn_forward.1} parent=151 // pred_check_branch
          %1088 = sbr.rel (%p1086) target = $region180
        $region179: #{gated_pixelcnn_forward.1} parent=151 // pred_region
          %1089 = dma.done [#allocation11], 1024
        $region180: #{gated_pixelcnn_forward.1} parent=151 // pred_fallthru
          _
        // Predicated region
        $region181: #{gated_pixelcnn_forward.1} parent=151 // pred_check
          %p1090 = pneg %p463
        $region182: #{gated_pixelcnn_forward.1} parent=151 // pred_check_branch
          %1092 = sbr.rel (%p1090) target = $region184
        $region183: #{gated_pixelcnn_forward.1} parent=151 // pred_region
          %1093 = dma.done [#allocation14], 1024
        $region184: #{gated_pixelcnn_forward.1} parent=151 // pred_fallthru
          _
        // Predicated region
        $region185: #{gated_pixelcnn_forward.1} parent=151 // pred_check
          %p1094 = pneg %p505
        $region186: #{gated_pixelcnn_forward.1} parent=151 // pred_check_branch
          %1096 = sbr.rel (%p1094) target = $region188
        $region187: #{gated_pixelcnn_forward.1} parent=151 // pred_region
          %1097 = dma.done [#allocation14], 512
        $region188: #{gated_pixelcnn_forward.1} parent=151 // pred_fallthru
          _
        // Predicated region
        $region189: #{gated_pixelcnn_forward.1} parent=151 // pred_check
          %p1098 = pneg %p547
        $region190: #{gated_pixelcnn_forward.1} parent=151 // pred_check_branch
          %1100 = sbr.rel (%p1098) target = $region192
        $region191: #{gated_pixelcnn_forward.1} parent=151 // pred_region
          %1101 = dma.done [#allocation17], 3072
        $region192: #{gated_pixelcnn_forward.1} parent=151 // pred_fallthru
          _
        // Predicated region
        $region193: #{gated_pixelcnn_forward.1} parent=151 // pred_check
          %p1102 = pneg %p589
        $region194: #{gated_pixelcnn_forward.1} parent=151 // pred_check_branch
          %1104 = sbr.rel (%p1102) target = $region196
        $region195: #{gated_pixelcnn_forward.1} parent=151 // pred_region
          %1105 = dma.done [#allocation17], 1024
        $region196: #{gated_pixelcnn_forward.1} parent=151 // pred_fallthru
          _
        // Predicated region
        $region197: #{gated_pixelcnn_forward.1} parent=151 // pred_check
          %p1106 = pneg %p631
        $region198: #{gated_pixelcnn_forward.1} parent=151 // pred_check_branch
          %1108 = sbr.rel (%p1106) target = $region200
        $region199: #{gated_pixelcnn_forward.1} parent=151 // pred_region
          %1109 = dma.done [#allocation20], 1024
        $region200: #{gated_pixelcnn_forward.1} parent=151 // pred_fallthru
          _
        // Predicated region
        $region201: #{gated_pixelcnn_forward.1} parent=151 // pred_check
          %p1110 = pneg %p673
        $region202: #{gated_pixelcnn_forward.1} parent=151 // pred_check_branch
          %1112 = sbr.rel (%p1110) target = $region204
        $region203: #{gated_pixelcnn_forward.1} parent=151 // pred_region
          %1113 = dma.done [#allocation20], 512
        $region204: #{gated_pixelcnn_forward.1} parent=151 // pred_fallthru
          _
        %p1114 = scmp.lt.s32.totalorder %s85, 1
        %s1115 = scalar_select %p1114, %s85, 1
        %s1116 = smul.addr %s1115, 32
        %s1117 = smul.addr %s1116, 8
        %s1118 = scalar_lea.vmem %s1, %s1117
        %p1119 = pneg %p106
        %p1120 = pneg %p103
        %p1121 = pneg %p127
        %p1122 = pneg %p124
        %p1123 = pneg %p148
        %p1124 = pneg %p145
        %p1125 = pneg %p169
        %p1126 = pneg %p166
        %p1127 = pneg %p190
        %p1128 = pneg %p187
        %p1129 = pneg %p211
        %p1130 = pneg %p208
        %p1131 = pneg %p232
        %p1132 = pneg %p229
        %p1133 = pneg %p253
        %p1134 = pneg %p250
        %p1135 = pneg %p274
        %p1136 = pneg %p271
        %p1137 = pneg %p295
        %p1138 = pneg %p292
        %p1139 = pneg %p316
        %p1140 = pneg %p313
        %p1141 = pneg %p337
        %p1142 = pneg %p334
        %p1143 = pneg %p358
        %p1144 = pneg %p355
        %p1145 = pneg %p379
        %p1146 = pneg %p376
        %p1147 = pneg %p400
        %p1148 = pneg %p397
        %p1149 = pneg %p421
        %p1150 = pneg %p418
        %p1151 = pneg %p442
        %p1152 = pneg %p439
        %p1153 = pneg %p463
        %p1154 = pneg %p460
        %p1155 = pneg %p484
        %p1156 = pneg %p481
        %p1157 = pneg %p505
        %p1158 = pneg %p502
        %p1159 = pneg %p526
        %p1160 = pneg %p523
        %p1161 = pneg %p547
        %p1162 = pneg %p544
        %p1163 = pneg %p568
        %p1164 = pneg %p565
        %p1165 = pneg %p589
        %p1166 = pneg %p586
        %p1167 = pneg %p610
        %p1168 = pneg %p607
        %p1169 = pneg %p631
        %p1170 = pneg %p628
        %p1171 = pneg %p652
        %p1172 = pneg %p649
        %p1173 = pneg %p673
        %p1174 = pneg %p670
        %p1175 = pneg %p694
        %p1176 = pneg %p691
        %p1177 = pneg %p715
        %p1178 = pneg %p712
        %p1179 = pneg %p736
        %p1180 = pneg %p733
        %p1181 = pneg %p757
        %p1182 = pneg %p754
        %p1183 = pneg %p778
        %p1184 = pneg %p775
        %p1185 = pneg %p804
        %p1186 = pneg %p801
        %p1187 = scmp.lt.s32.totalorder %s85, 1
        %s1188 = scalar_select %p1187, %s85, 1
        %s1189 = smul.addr %s1188, 2
        %s1190 = smul.addr %s1189, 4
        %s1191 = scalar_lea.vmem %s67, %s1190
        %p1192 = scmp.lt.s32.totalorder %s85, 1
        %s1193 = scalar_select %p1192, %s85, 1
        %s1194 = smul.addr %s1193, 32
        %s1195 = smul.addr %s1194, 8
        %s1196 = scalar_lea.vmem %s1, %s1195
        %p1197 = scmp.lt.s32.totalorder %s85, 1
        %s1198 = scalar_select %p1197, %s85, 1
        %s1199 = smul.addr %s1198, 2
        %s1200 = smul.addr %s1199, 4
        %s1201 = scalar_lea.vmem %s67, %s1200
        %v1202 = vld [vmem:[#allocation2] sm:$0xf]
        %v1203 = vld [vmem:[%s5] sm:$0x1]
        %v1204 = vld [vmem:[#allocation4] sm:$0xff]
        %v1205 = vld [vmem:[#allocation4 + $0x8] sm:$0xff]
        %v1206 = vld [vmem:[#allocation4 + $0x10] sm:$0xff]
        %v1207 = vld [vmem:[#allocation4 + $0x18] sm:$0xff]
        %v1208 = vld [vmem:[%s9] sm:$0x1]
        %v1209 = vld [vmem:[%s11] sm:$0xff]
        %v1210 = vld [vmem:[%s11 + $0x8] sm:$0xff]
        %v1211 = vld [vmem:[%s11 + $0x10] sm:$0xff]
        %v1212 = vld [vmem:[%s11 + $0x18] sm:$0xff]
        %v1213 = vld [vmem:[%s11 + $0x20] sm:$0xff]
        %v1214 = vld [vmem:[%s11 + $0x28] sm:$0xff]
        %v1215 = vld [vmem:[%s11 + $0x30] sm:$0xff]
        %v1216 = vld [vmem:[%s11 + $0x38] sm:$0xff]
        %v1217 = vld [vmem:[%s11 + $0x40] sm:$0xff]
        %v1218 = vld [vmem:[%s11 + $0x48] sm:$0xff]
        %v1219 = vld [vmem:[%s11 + $0x50] sm:$0xff]
        %v1220 = vld [vmem:[%s11 + $0x58] sm:$0xff]
        %v1221 = vld [vmem:[%s11 + $0x60] sm:$0xff]
        %v1222 = vld [vmem:[%s11 + $0x68] sm:$0xff]
        %v1223 = vld [vmem:[%s11 + $0x70] sm:$0xff]
        %v1224 = vld [vmem:[%s11 + $0x78] sm:$0xff]
        %v1225 = vld [vmem:[%s11 + $0x80] sm:$0xff]
        %v1226 = vld [vmem:[%s11 + $0x88] sm:$0xff]
        %v1227 = vld [vmem:[%s11 + $0x90] sm:$0xff]
        %v1228 = vld [vmem:[%s11 + $0x98] sm:$0xff]
        %v1229 = vld [vmem:[%s11 + $0xa0] sm:$0xff]
        %v1230 = vld [vmem:[%s11 + $0xa8] sm:$0xff]
        %v1231 = vld [vmem:[%s11 + $0xb0] sm:$0xff]
        %v1232 = vld [vmem:[%s11 + $0xb8] sm:$0xff]
        %v1233 = vld [vmem:[%s11 + $0xc0] sm:$0xff]
        %v1234 = vld [vmem:[%s11 + $0xc8] sm:$0xff]
        %v1235 = vld [vmem:[%s11 + $0xd0] sm:$0xff]
        %v1236 = vld [vmem:[%s11 + $0xd8] sm:$0xff]
        %v1237 = vld [vmem:[%s11 + $0xe0] sm:$0xff]
        %v1238 = vld [vmem:[%s11 + $0xe8] sm:$0xff]
        %v1239 = vld [vmem:[%s11 + $0xf0] sm:$0xff]
        %v1240 = vld [vmem:[%s11 + $0xf8] sm:$0xff]
        %v1241 = vld [vmem:[%s11 + $0x100] sm:$0xff]
        %v1242 = vld [vmem:[%s11 + $0x108] sm:$0xff]
        %v1243 = vld [vmem:[%s11 + $0x110] sm:$0xff]
        %v1244 = vld [vmem:[%s11 + $0x118] sm:$0xff]
        %v1245 = vld [vmem:[%s11 + $0x120] sm:$0xff]
        %v1246 = vld [vmem:[%s11 + $0x128] sm:$0xff]
        %v1247 = vld [vmem:[%s11 + $0x130] sm:$0xff]
        %v1248 = vld [vmem:[%s11 + $0x138] sm:$0xff]
        %v1249 = vld [vmem:[%s11 + $0x140] sm:$0xff]
        %v1250 = vld [vmem:[%s11 + $0x148] sm:$0xff]
        %v1251 = vld [vmem:[%s11 + $0x150] sm:$0xff]
        %v1252 = vld [vmem:[%s11 + $0x158] sm:$0xff]
        %v1253 = vld [vmem:[%s11 + $0x160] sm:$0xff]
        %v1254 = vld [vmem:[%s11 + $0x168] sm:$0xff]
        %v1255 = vld [vmem:[%s11 + $0x170] sm:$0xff]
        %v1256 = vld [vmem:[%s11 + $0x178] sm:$0xff]
        %v1257 = vld [vmem:[%s11 + $0x180] sm:$0xff]
        %v1258 = vld [vmem:[%s11 + $0x188] sm:$0xff]
        %v1259 = vld [vmem:[%s11 + $0x190] sm:$0xff]
        %v1260 = vld [vmem:[%s11 + $0x198] sm:$0xff]
        %v1261 = vld [vmem:[%s11 + $0x1a0] sm:$0xff]
        %v1262 = vld [vmem:[%s11 + $0x1a8] sm:$0xff]
        %v1263 = vld [vmem:[%s11 + $0x1b0] sm:$0xff]
        %v1264 = vld [vmem:[%s11 + $0x1b8] sm:$0xff]
        %v1265 = vld [vmem:[%s11 + $0x1c0] sm:$0xff]
        %v1266 = vld [vmem:[%s11 + $0x1c8] sm:$0xff]
        %v1267 = vld [vmem:[%s11 + $0x1d0] sm:$0xff]
        %v1268 = vld [vmem:[%s11 + $0x1d8] sm:$0xff]
        %v1269 = vld [vmem:[%s11 + $0x1e0] sm:$0xff]
        %v1270 = vld [vmem:[%s11 + $0x1e8] sm:$0xff]
        %v1271 = vld [vmem:[%s11 + $0x1f0] sm:$0xff]
        %v1272 = vld [vmem:[%s11 + $0x1f8] sm:$0xff]
        %v1273 = vld [vmem:[%s11 + $0x200] sm:$0xff]
        %v1274 = vld [vmem:[%s11 + $0x208] sm:$0xff]
        %v1275 = vld [vmem:[%s11 + $0x210] sm:$0xff]
        %v1276 = vld [vmem:[%s11 + $0x218] sm:$0xff]
        %v1277 = vld [vmem:[%s11 + $0x220] sm:$0xff]
        %v1278 = vld [vmem:[%s11 + $0x228] sm:$0xff]
        %v1279 = vld [vmem:[%s11 + $0x230] sm:$0xff]
        %v1280 = vld [vmem:[%s11 + $0x238] sm:$0xff]
        %v1281 = vld [vmem:[%s11 + $0x240] sm:$0xff]
        %v1282 = vld [vmem:[%s11 + $0x248] sm:$0xff]
        %v1283 = vld [vmem:[%s11 + $0x250] sm:$0xff]
        %v1284 = vld [vmem:[%s11 + $0x258] sm:$0xff]
        %v1285 = vld [vmem:[%s11 + $0x260] sm:$0xff]
        %v1286 = vld [vmem:[%s11 + $0x268] sm:$0xff]
        %v1287 = vld [vmem:[%s11 + $0x270] sm:$0xff]
        %v1288 = vld [vmem:[%s11 + $0x278] sm:$0xff]
        %v1289 = vld [vmem:[%s11 + $0x280] sm:$0xff]
        %v1290 = vld [vmem:[%s11 + $0x288] sm:$0xff]
        %v1291 = vld [vmem:[%s11 + $0x290] sm:$0xff]
        %v1292 = vld [vmem:[%s11 + $0x298] sm:$0xff]
        %v1293 = vld [vmem:[%s13] sm:$0x1]
        %v1294 = vld [vmem:[#allocation6] sm:$0xff]
        %v1295 = vld [vmem:[#allocation6 + $0x8] sm:$0xff]
        %v1296 = vld [vmem:[#allocation6 + $0x10] sm:$0xff]
        %v1297 = vld [vmem:[#allocation6 + $0x18] sm:$0xff]
        %v1298 = vld [vmem:[#allocation6 + $0x20] sm:$0xff]
        %v1299 = vld [vmem:[#allocation6 + $0x28] sm:$0xff]
        %v1300 = vld [vmem:[#allocation6 + $0x30] sm:$0xff]
        %v1301 = vld [vmem:[#allocation6 + $0x38] sm:$0xff]
        %v1302 = vld [vmem:[#allocation6 + $0x40] sm:$0xff]
        %v1303 = vld [vmem:[#allocation6 + $0x48] sm:$0xff]
        %v1304 = vld [vmem:[#allocation6 + $0x50] sm:$0xff]
        %v1305 = vld [vmem:[#allocation6 + $0x58] sm:$0xff]
        %v1306 = vld [vmem:[%s17] sm:$0x1]
        %v1307 = vld [vmem:[#allocation7] sm:$0xff]
        %v1308 = vld [vmem:[#allocation7 + $0x8] sm:$0xff]
        %v1309 = vld [vmem:[#allocation7 + $0x10] sm:$0xff]
        %v1310 = vld [vmem:[#allocation7 + $0x18] sm:$0xff]
        %v1311 = vld [vmem:[#allocation7 + $0x20] sm:$0xff]
        %v1312 = vld [vmem:[#allocation7 + $0x28] sm:$0xff]
        %v1313 = vld [vmem:[#allocation7 + $0x30] sm:$0xff]
        %v1314 = vld [vmem:[#allocation7 + $0x38] sm:$0xff]
        %v1315 = vld [vmem:[%s21] sm:$0x1]
        %v1316 = vld [vmem:[#allocation9] sm:$0xff]
        %v1317 = vld [vmem:[#allocation9 + $0x8] sm:$0xff]
        %v1318 = vld [vmem:[#allocation9 + $0x10] sm:$0xff]
        %v1319 = vld [vmem:[#allocation9 + $0x18] sm:$0xff]
        %v1320 = vld [vmem:[%s25] sm:$0x1]
        %v1321 = vld [vmem:[#allocation10] sm:$0xff]
        %v1322 = vld [vmem:[#allocation10 + $0x8] sm:$0xff]
        %v1323 = vld [vmem:[#allocation10 + $0x10] sm:$0xff]
        %v1324 = vld [vmem:[#allocation10 + $0x18] sm:$0xff]
        %v1325 = vld [vmem:[#allocation10 + $0x20] sm:$0xff]
        %v1326 = vld [vmem:[#allocation10 + $0x28] sm:$0xff]
        %v1327 = vld [vmem:[#allocation10 + $0x30] sm:$0xff]
        %v1328 = vld [vmem:[#allocation10 + $0x38] sm:$0xff]
        %v1329 = vld [vmem:[#allocation10 + $0x40] sm:$0xff]
        %v1330 = vld [vmem:[#allocation10 + $0x48] sm:$0xff]
        %v1331 = vld [vmem:[#allocation10 + $0x50] sm:$0xff]
        %v1332 = vld [vmem:[#allocation10 + $0x58] sm:$0xff]
        %v1333 = vld [vmem:[#allocation10 + $0x60] sm:$0xff]
        %v1334 = vld [vmem:[#allocation10 + $0x68] sm:$0xff]
        %v1335 = vld [vmem:[#allocation10 + $0x70] sm:$0xff]
        %v1336 = vld [vmem:[#allocation10 + $0x78] sm:$0xff]
        %v1337 = vld [vmem:[#allocation10 + $0x80] sm:$0xff]
        %v1338 = vld [vmem:[#allocation10 + $0x88] sm:$0xff]
        %v1339 = vld [vmem:[#allocation10 + $0x90] sm:$0xff]
        %v1340 = vld [vmem:[#allocation10 + $0x98] sm:$0xff]
        %v1341 = vld [vmem:[#allocation10 + $0xa0] sm:$0xff]
        %v1342 = vld [vmem:[#allocation10 + $0xa8] sm:$0xff]
        %v1343 = vld [vmem:[#allocation10 + $0xb0] sm:$0xff]
        %v1344 = vld [vmem:[#allocation10 + $0xb8] sm:$0xff]
        %v1345 = vld [vmem:[%s29] sm:$0x1]
        %v1346 = vld [vmem:[#allocation12] sm:$0xff]
        %v1347 = vld [vmem:[#allocation12 + $0x8] sm:$0xff]
        %v1348 = vld [vmem:[#allocation12 + $0x10] sm:$0xff]
        %v1349 = vld [vmem:[#allocation12 + $0x18] sm:$0xff]
        %v1350 = vld [vmem:[#allocation12 + $0x20] sm:$0xff]
        %v1351 = vld [vmem:[#allocation12 + $0x28] sm:$0xff]
        %v1352 = vld [vmem:[#allocation12 + $0x30] sm:$0xff]
        %v1353 = vld [vmem:[#allocation12 + $0x38] sm:$0xff]
        %v1354 = vld [vmem:[%s33] sm:$0x1]
        %v1355 = vld [vmem:[#allocation13] sm:$0xff]
        %v1356 = vld [vmem:[#allocation13 + $0x8] sm:$0xff]
        %v1357 = vld [vmem:[#allocation13 + $0x10] sm:$0xff]
        %v1358 = vld [vmem:[#allocation13 + $0x18] sm:$0xff]
        %v1359 = vld [vmem:[#allocation13 + $0x20] sm:$0xff]
        %v1360 = vld [vmem:[#allocation13 + $0x28] sm:$0xff]
        %v1361 = vld [vmem:[#allocation13 + $0x30] sm:$0xff]
        %v1362 = vld [vmem:[#allocation13 + $0x38] sm:$0xff]
        %v1363 = vld [vmem:[%s37] sm:$0x1]
        %v1364 = vld [vmem:[#allocation15] sm:$0xff]
        %v1365 = vld [vmem:[#allocation15 + $0x8] sm:$0xff]
        %v1366 = vld [vmem:[#allocation15 + $0x10] sm:$0xff]
        %v1367 = vld [vmem:[#allocation15 + $0x18] sm:$0xff]
        %v1368 = vld [vmem:[%s41] sm:$0x1]
        %v1369 = vld [vmem:[#allocation16] sm:$0xff]
        %v1370 = vld [vmem:[#allocation16 + $0x8] sm:$0xff]
        %v1371 = vld [vmem:[#allocation16 + $0x10] sm:$0xff]
        %v1372 = vld [vmem:[#allocation16 + $0x18] sm:$0xff]
        %v1373 = vld [vmem:[#allocation16 + $0x20] sm:$0xff]
        %v1374 = vld [vmem:[#allocation16 + $0x28] sm:$0xff]
        %v1375 = vld [vmem:[#allocation16 + $0x30] sm:$0xff]
        %v1376 = vld [vmem:[#allocation16 + $0x38] sm:$0xff]
        %v1377 = vld [vmem:[#allocation16 + $0x40] sm:$0xff]
        %v1378 = vld [vmem:[#allocation16 + $0x48] sm:$0xff]
        %v1379 = vld [vmem:[#allocation16 + $0x50] sm:$0xff]
        %v1380 = vld [vmem:[#allocation16 + $0x58] sm:$0xff]
        %v1381 = vld [vmem:[#allocation16 + $0x60] sm:$0xff]
        %v1382 = vld [vmem:[#allocation16 + $0x68] sm:$0xff]
        %v1383 = vld [vmem:[#allocation16 + $0x70] sm:$0xff]
        %v1384 = vld [vmem:[#allocation16 + $0x78] sm:$0xff]
        %v1385 = vld [vmem:[#allocation16 + $0x80] sm:$0xff]
        %v1386 = vld [vmem:[#allocation16 + $0x88] sm:$0xff]
        %v1387 = vld [vmem:[#allocation16 + $0x90] sm:$0xff]
        %v1388 = vld [vmem:[#allocation16 + $0x98] sm:$0xff]
        %v1389 = vld [vmem:[#allocation16 + $0xa0] sm:$0xff]
        %v1390 = vld [vmem:[#allocation16 + $0xa8] sm:$0xff]
        %v1391 = vld [vmem:[#allocation16 + $0xb0] sm:$0xff]
        %v1392 = vld [vmem:[#allocation16 + $0xb8] sm:$0xff]
        %v1393 = vld [vmem:[%s45] sm:$0x1]
        %v1394 = vld [vmem:[#allocation18] sm:$0xff]
        %v1395 = vld [vmem:[#allocation18 + $0x8] sm:$0xff]
        %v1396 = vld [vmem:[#allocation18 + $0x10] sm:$0xff]
        %v1397 = vld [vmem:[#allocation18 + $0x18] sm:$0xff]
        %v1398 = vld [vmem:[#allocation18 + $0x20] sm:$0xff]
        %v1399 = vld [vmem:[#allocation18 + $0x28] sm:$0xff]
        %v1400 = vld [vmem:[#allocation18 + $0x30] sm:$0xff]
        %v1401 = vld [vmem:[#allocation18 + $0x38] sm:$0xff]
        %v1402 = vld [vmem:[%s49] sm:$0x1]
        %v1403 = vld [vmem:[#allocation19] sm:$0xff]
        %v1404 = vld [vmem:[#allocation19 + $0x8] sm:$0xff]
        %v1405 = vld [vmem:[#allocation19 + $0x10] sm:$0xff]
        %v1406 = vld [vmem:[#allocation19 + $0x18] sm:$0xff]
        %v1407 = vld [vmem:[#allocation19 + $0x20] sm:$0xff]
        %v1408 = vld [vmem:[#allocation19 + $0x28] sm:$0xff]
        %v1409 = vld [vmem:[#allocation19 + $0x30] sm:$0xff]
        %v1410 = vld [vmem:[#allocation19 + $0x38] sm:$0xff]
        %v1411 = vld [vmem:[%s53] sm:$0x1]
        %v1412 = vld [vmem:[#allocation21] sm:$0xff]
        %v1413 = vld [vmem:[#allocation21 + $0x8] sm:$0xff]
        %v1414 = vld [vmem:[#allocation21 + $0x10] sm:$0xff]
        %v1415 = vld [vmem:[#allocation21 + $0x18] sm:$0xff]
        %v1416 = vld [vmem:[%s57] sm:$0x1]
        %v1417 = vld [vmem:[%s59] sm:$0xff]
        %v1418 = vld [vmem:[%s59 + $0x8] sm:$0xff]
        %v1419 = vld [vmem:[%s59 + $0x10] sm:$0xff]
        %v1420 = vld [vmem:[%s59 + $0x18] sm:$0xff]
        %v1421 = vld [vmem:[%s61] sm:$0x1]
        %v1422 = vld [vmem:[%s63] sm:$0xf]
        %v1423 = vld [vmem:[%s65] sm:$0xf]
        %v1424 = vld [vmem:[%s1196] sm:$0xff]
        %v1425 = vld [vmem:[%s1196 + $0x8] sm:$0xff]
        %v1426 = vld [vmem:[%s1196 + $0x10] sm:$0xff]
        %v1427 = vld [vmem:[%s1196 + $0x18] sm:$0xff]
        %v1428 = vld [vmem:[%s1196 + $0x20] sm:$0xff]
        %v1429 = vld [vmem:[%s1196 + $0x28] sm:$0xff]
        %v1430 = vld [vmem:[%s1196 + $0x30] sm:$0xff]
        %v1431 = vld [vmem:[%s1196 + $0x38] sm:$0xff]
        %v1432 = vld [vmem:[%s1196 + $0x40] sm:$0xff]
        %v1433 = vld [vmem:[%s1196 + $0x48] sm:$0xff]
        %v1434 = vld [vmem:[%s1196 + $0x50] sm:$0xff]
        %v1435 = vld [vmem:[%s1196 + $0x58] sm:$0xff]
        %v1436 = vld [vmem:[%s1196 + $0x60] sm:$0xff]
        %v1437 = vld [vmem:[%s1196 + $0x68] sm:$0xff]
        %v1438 = vld [vmem:[%s1196 + $0x70] sm:$0xff]
        %v1439 = vld [vmem:[%s1196 + $0x78] sm:$0xff]
        %v1440 = vld [vmem:[%s1196 + $0x80] sm:$0xff]
        %v1441 = vld [vmem:[%s1196 + $0x88] sm:$0xff]
        %v1442 = vld [vmem:[%s1196 + $0x90] sm:$0xff]
        %v1443 = vld [vmem:[%s1196 + $0x98] sm:$0xff]
        %v1444 = vld [vmem:[%s1196 + $0xa0] sm:$0xff]
        %v1445 = vld [vmem:[%s1196 + $0xa8] sm:$0xff]
        %v1446 = vld [vmem:[%s1196 + $0xb0] sm:$0xff]
        %v1447 = vld [vmem:[%s1196 + $0xb8] sm:$0xff]
        %v1448 = vld [vmem:[%s1196 + $0xc0] sm:$0xff]
        %v1449 = vld [vmem:[%s1196 + $0xc8] sm:$0xff]
        %v1450 = vld [vmem:[%s1196 + $0xd0] sm:$0xff]
        %v1451 = vld [vmem:[%s1196 + $0xd8] sm:$0xff]
        %v1452 = vld [vmem:[%s1196 + $0xe0] sm:$0xff]
        %v1453 = vld [vmem:[%s1196 + $0xe8] sm:$0xff]
        %v1454 = vld [vmem:[%s1196 + $0xf0] sm:$0xff]
        %v1455 = vld [vmem:[%s1196 + $0xf8] sm:$0xff]
        %v1457 = vlaneseq
        %v1458 = vshrl.u32 %v1457, 7
        %v1459 = vsub.s32 0, %v1458
        %v1460 = vrot.slane %v1203, %v1459
        %vm1462 = vcmask 31744
        %v1464 = vsel %vm1462, %v1424, 0
        %v1467 = vsel %vm1462, %v1425, 0
        %v1470 = vsel %vm1462, %v1426, 0
        %v1473 = vsel %vm1462, %v1427, 0
        %v1476 = vsel %vm1462, %v1428, 0
        %v1479 = vsel %vm1462, %v1429, 0
        %v1482 = vsel %vm1462, %v1430, 0
        %v1485 = vsel %vm1462, %v1431, 0
        %v1488 = vsel %vm1462, %v1432, 0
        %v1491 = vsel %vm1462, %v1433, 0
        %v1494 = vsel %vm1462, %v1434, 0
        %v1497 = vsel %vm1462, %v1435, 0
        %v1500 = vsel %vm1462, %v1436, 0
        %v1503 = vsel %vm1462, %v1437, 0
        %v1506 = vsel %vm1462, %v1438, 0
        %v1509 = vsel %vm1462, %v1439, 0
        %v1512 = vsel %vm1462, %v1440, 0
        %v1515 = vsel %vm1462, %v1441, 0
        %v1518 = vsel %vm1462, %v1442, 0
        %v1521 = vsel %vm1462, %v1443, 0
        %v1524 = vsel %vm1462, %v1444, 0
        %v1527 = vsel %vm1462, %v1445, 0
        %v1530 = vsel %vm1462, %v1446, 0
        %v1533 = vsel %vm1462, %v1447, 0
        %v1536 = vsel %vm1462, %v1448, 0
        %v1539 = vsel %vm1462, %v1449, 0
        %v1542 = vsel %vm1462, %v1450, 0
        %v1545 = vsel %vm1462, %v1451, 0
        %v1548 = vsel %vm1462, %v1452, 0
        %v1551 = vsel %vm1462, %v1453, 0
        %v1554 = vsel %vm1462, %v1454, 0
        %v1557 = vsel %vm1462, %v1455, 0
        %vm1559 = vcmask 1043456
        %v1561 = vsel %vm1559, %v1202, 0
        %1563 = vmatprep.subr.mxu0 0.0
        %1564 = vmatpush1.msra.mxu0 %v1561
        %1565 = vmatprep.subr.mxu0 0.0
        %1566 = vmatpush1.msra.mxu0 0.0
        %1567 = vmatprep.subr.mxu0 0.0
        %1568 = vmatpush1.msra.mxu0 0.0
        %1569 = vmatprep.subr.mxu0 0.0
        %1570 = vmatpush1.msra.mxu0 0.0
        %1571 = vmatprep.subr.mxu0 0.0
        %1572 = vmatpush1.msra.mxu0 0.0
        %1573 = vmatprep.subr.mxu0 0.0
        %1574 = vmatpush1.msra.mxu0 0.0
        %1575 = vmatprep.subr.mxu0 0.0
        %1576 = vmatpush1.msra.mxu0 0.0
        %1577 = vmatprep.subr.mxu0 0.0
        %1578 = vmatpush1.msra.mxu0 0.0
        %1579 = vmatprep.subr.mxu0 0.0
        %1580 = vmatpush1.msra.mxu0 0.0
        %1581 = vmatprep.subr.mxu0 0.0
        %1582 = vmatpush1.msra.mxu0 0.0
        %1583 = vmatprep.subr.mxu0 0.0
        %1584 = vmatpush1.msra.mxu0 0.0
        %1585 = vmatprep.subr.mxu0 0.0
        %1586 = vmatpush1.msra.mxu0 0.0
        %1587 = vmatprep.subr.mxu0 0.0
        %1588 = vmatpush1.msra.mxu0 0.0
        %1589 = vmatprep.subr.mxu0 0.0
        %1590 = vmatpush1.msra.mxu0 0.0
        %1591 = vmatprep.subr.mxu0 0.0
        %1592 = vmatpush1.msra.mxu0 0.0
        %1593 = vmatprep.subr.mxu0 0.0
        %1594 = vmatpush1.msra.mxu0 0.0
        %1595 = vmatprep.subr.mxu0 0.0
        %1596 = vmatpush1.msra.mxu0 0.0
        %1597 = vmatprep.subr.mxu0 0.0
        %1598 = vmatpush1.msra.mxu0 0.0
        %1599 = vmatprep.subr.mxu0 0.0
        %1600 = vmatpush1.msra.mxu0 0.0
        %1601 = vmatprep.subr.mxu0 0.0
        %1602 = vmatpush1.msra.mxu0 0.0
        %1603 = vmatprep.subr.mxu0 0.0
        %1604 = vmatpush1.msra.mxu0 0.0
        %1605 = vmatprep.subr.mxu0 0.0
        %1606 = vmatpush1.msra.mxu0 0.0
        %1607 = vmatprep.subr.mxu0 0.0
        %1608 = vmatpush1.msra.mxu0 0.0
        %1609 = vmatprep.subr.mxu0 0.0
        %1610 = vmatpush1.msra.mxu0 0.0
        %1611 = vmatprep.subr.mxu0 0.0
        %1612 = vmatpush1.msra.mxu0 0.0
        %1613 = vmatprep.subr.mxu0 0.0
        %1614 = vmatpush1.msra.mxu0 0.0
        %1615 = vmatprep.subr.mxu0 0.0
        %1616 = vmatpush1.msra.mxu0 0.0
        %1617 = vmatprep.subr.mxu0 0.0
        %1618 = vmatpush1.msra.mxu0 0.0
        %1619 = vmatprep.subr.mxu0 0.0
        %1620 = vmatpush1.msra.mxu0 0.0
        %1621 = vmatprep.subr.mxu0 0.0
        %1622 = vmatpush1.msra.mxu0 0.0
        %1623 = vmatprep.subr.mxu0 0.0
        %1624 = vmatpush1.msra.mxu0 0.0
        %1625 = vmatprep.subr.mxu0 0.0
        %1626 = vmatpush1.msra.mxu0 0.0
        %1627 = vmatprep.mubr.f32.mxu0 0.0
        %1628 = vmatmul.mubr.f32.gmra.mrb[0].mxu0 %v1464
        %v1629 = vpop.f32.mrb[0].mxu0
        %v1630 = vadd.f32 %v1460, %v1629
        %v1631 = vpop.f32.mrb[0].mxu0
        %1632 = vmatprep.mubr.f32.mxu0 0.0
        %1633 = vmatmul.mubr.f32.gmra.mrb[0].mxu0 %v1467
        %v1634 = vpop.f32.mrb[0].mxu0
        %v1635 = vadd.f32 %v1460, %v1634
        %v1636 = vpop.f32.mrb[0].mxu0
        %1637 = vmatprep.mubr.f32.mxu0 0.0
        %1638 = vmatmul.mubr.f32.gmra.mrb[0].mxu0 %v1470
        %v1639 = vpop.f32.mrb[0].mxu0
        %v1640 = vadd.f32 %v1460, %v1639
        %v1641 = vpop.f32.mrb[0].mxu0
        %1642 = vmatprep.mubr.f32.mxu0 0.0
        %1643 = vmatmul.mubr.f32.gmra.mrb[0].mxu0 %v1473
        %v1644 = vpop.f32.mrb[0].mxu0
        %v1645 = vadd.f32 %v1460, %v1644
        %v1646 = vpop.f32.mrb[0].mxu0
        %1647 = vmatprep.mubr.f32.mxu0 0.0
        %1648 = vmatmul.mubr.f32.gmra.mrb[0].mxu0 %v1476
        %v1649 = vpop.f32.mrb[0].mxu0
        %v1650 = vadd.f32 %v1460, %v1649
        %v1651 = vpop.f32.mrb[0].mxu0
        %1652 = vmatprep.mubr.f32.mxu0 0.0
        %1653 = vmatmul.mubr.f32.gmra.mrb[0].mxu0 %v1479
        %v1654 = vpop.f32.mrb[0].mxu0
        %v1655 = vadd.f32 %v1460, %v1654
        %v1656 = vpop.f32.mrb[0].mxu0
        %1657 = vmatprep.mubr.f32.mxu0 0.0
        %1658 = vmatmul.mubr.f32.gmra.mrb[0].mxu0 %v1482
        %v1659 = vpop.f32.mrb[0].mxu0
        %v1660 = vadd.f32 %v1460, %v1659
        %v1661 = vpop.f32.mrb[0].mxu0
        %1662 = vmatprep.mubr.f32.mxu0 0.0
        %1663 = vmatmul.mubr.f32.gmra.mrb[0].mxu0 %v1485
        %v1664 = vpop.f32.mrb[0].mxu0
        %v1665 = vadd.f32 %v1460, %v1664
        %v1666 = vpop.f32.mrb[0].mxu0
        %1667 = vmatprep.mubr.f32.mxu0 0.0
        %1668 = vmatmul.mubr.f32.gmra.mrb[0].mxu0 %v1488
        %v1669 = vpop.f32.mrb[0].mxu0
        %v1670 = vadd.f32 %v1460, %v1669
        %v1671 = vpop.f32.mrb[0].mxu0
        %1672 = vmatprep.mubr.f32.mxu0 0.0
        %1673 = vmatmul.mubr.f32.gmra.mrb[0].mxu0 %v1491
        %v1674 = vpop.f32.mrb[0].mxu0
        %v1675 = vadd.f32 %v1460, %v1674
        %v1676 = vpop.f32.mrb[0].mxu0
        %1677 = vmatprep.mubr.f32.mxu0 0.0
        %1678 = vmatmul.mubr.f32.gmra.mrb[0].mxu0 %v1494
        %v1679 = vpop.f32.mrb[0].mxu0
        %v1680 = vadd.f32 %v1460, %v1679
        %v1681 = vpop.f32.mrb[0].mxu0
        %1682 = vmatprep.mubr.f32.mxu0 0.0
        %1683 = vmatmul.mubr.f32.gmra.mrb[0].mxu0 %v1497
        %v1684 = vpop.f32.mrb[0].mxu0
        %v1685 = vadd.f32 %v1460, %v1684
        %v1686 = vpop.f32.mrb[0].mxu0
        %1687 = vmatprep.mubr.f32.mxu0 0.0
        %1688 = vmatmul.mubr.f32.gmra.mrb[0].mxu0 %v1500
        %v1689 = vpop.f32.mrb[0].mxu0
        %v1690 = vadd.f32 %v1460, %v1689
        %v1691 = vpop.f32.mrb[0].mxu0
        %1692 = vmatprep.mubr.f32.mxu0 0.0
        %1693 = vmatmul.mubr.f32.gmra.mrb[0].mxu0 %v1503
        %v1694 = vpop.f32.mrb[0].mxu0
        %v1695 = vadd.f32 %v1460, %v1694
        %v1696 = vpop.f32.mrb[0].mxu0
        %1697 = vmatprep.mubr.f32.mxu0 0.0
        %1698 = vmatmul.mubr.f32.gmra.mrb[0].mxu0 %v1506
        %v1699 = vpop.f32.mrb[0].mxu0
        %v1700 = vadd.f32 %v1460, %v1699
        %v1701 = vpop.f32.mrb[0].mxu0
        %1702 = vmatprep.mubr.f32.mxu0 0.0
        %1703 = vmatmul.mubr.f32.gmra.mrb[0].mxu0 %v1509
        %v1704 = vpop.f32.mrb[0].mxu0
        %v1705 = vadd.f32 %v1460, %v1704
        %v1706 = vpop.f32.mrb[0].mxu0
        %1707 = vmatprep.mubr.f32.mxu0 0.0
        %1708 = vmatmul.mubr.f32.gmra.mrb[0].mxu0 %v1512
        %v1709 = vpop.f32.mrb[0].mxu0
        %v1710 = vadd.f32 %v1460, %v1709
        %v1711 = vpop.f32.mrb[0].mxu0
        %1712 = vmatprep.mubr.f32.mxu0 0.0
        %1713 = vmatmul.mubr.f32.gmra.mrb[0].mxu0 %v1515
        %v1714 = vpop.f32.mrb[0].mxu0
        %v1715 = vadd.f32 %v1460, %v1714
        %v1716 = vpop.f32.mrb[0].mxu0
        %1717 = vmatprep.mubr.f32.mxu0 0.0
        %1718 = vmatmul.mubr.f32.gmra.mrb[0].mxu0 %v1518
        %v1719 = vpop.f32.mrb[0].mxu0
        %v1720 = vadd.f32 %v1460, %v1719
        %v1721 = vpop.f32.mrb[0].mxu0
        %1722 = vmatprep.mubr.f32.mxu0 0.0
        %1723 = vmatmul.mubr.f32.gmra.mrb[0].mxu0 %v1521
        %v1724 = vpop.f32.mrb[0].mxu0
        %v1725 = vadd.f32 %v1460, %v1724
        %v1726 = vpop.f32.mrb[0].mxu0
        %1727 = vmatprep.mubr.f32.mxu0 0.0
        %1728 = vmatmul.mubr.f32.gmra.mrb[0].mxu0 %v1524
        %v1729 = vpop.f32.mrb[0].mxu0
        %v1730 = vadd.f32 %v1460, %v1729
        %v1731 = vpop.f32.mrb[0].mxu0
        %1732 = vmatprep.mubr.f32.mxu0 0.0
        %1733 = vmatmul.mubr.f32.gmra.mrb[0].mxu0 %v1527
        %v1734 = vpop.f32.mrb[0].mxu0
        %v1735 = vadd.f32 %v1460, %v1734
        %v1736 = vpop.f32.mrb[0].mxu0
        %1737 = vmatprep.mubr.f32.mxu0 0.0
        %1738 = vmatmul.mubr.f32.gmra.mrb[0].mxu0 %v1530
        %v1739 = vpop.f32.mrb[0].mxu0
        %v1740 = vadd.f32 %v1460, %v1739
        %v1741 = vpop.f32.mrb[0].mxu0
        %1742 = vmatprep.mubr.f32.mxu0 0.0
        %1743 = vmatmul.mubr.f32.gmra.mrb[0].mxu0 %v1533
        %v1744 = vpop.f32.mrb[0].mxu0
        %v1745 = vadd.f32 %v1460, %v1744
        %v1746 = vpop.f32.mrb[0].mxu0
        %1747 = vmatprep.mubr.f32.mxu0 0.0
        %1748 = vmatmul.mubr.f32.gmra.mrb[0].mxu0 %v1536
        %v1749 = vpop.f32.mrb[0].mxu0
        %v1750 = vadd.f32 %v1460, %v1749
        %v1751 = vpop.f32.mrb[0].mxu0
        %1752 = vmatprep.mubr.f32.mxu0 0.0
        %1753 = vmatmul.mubr.f32.gmra.mrb[0].mxu0 %v1539
        %v1754 = vpop.f32.mrb[0].mxu0
        %v1755 = vadd.f32 %v1460, %v1754
        %v1756 = vpop.f32.mrb[0].mxu0
        %1757 = vmatprep.mubr.f32.mxu0 0.0
        %1758 = vmatmul.mubr.f32.gmra.mrb[0].mxu0 %v1542
        %v1759 = vpop.f32.mrb[0].mxu0
        %v1760 = vadd.f32 %v1460, %v1759
        %v1761 = vpop.f32.mrb[0].mxu0
        %1762 = vmatprep.mubr.f32.mxu0 0.0
        %1763 = vmatmul.mubr.f32.gmra.mrb[0].mxu0 %v1545
        %v1764 = vpop.f32.mrb[0].mxu0
        %v1765 = vadd.f32 %v1460, %v1764
        %v1766 = vpop.f32.mrb[0].mxu0
        %1767 = vmatprep.mubr.f32.mxu0 0.0
        %1768 = vmatmul.mubr.f32.gmra.mrb[0].mxu0 %v1548
        %v1769 = vpop.f32.mrb[0].mxu0
        %v1770 = vadd.f32 %v1460, %v1769
        %v1771 = vpop.f32.mrb[0].mxu0
        %1772 = vmatprep.mubr.f32.mxu0 0.0
        %1773 = vmatmul.mubr.f32.gmra.mrb[0].mxu0 %v1551
        %v1774 = vpop.f32.mrb[0].mxu0
        %v1775 = vadd.f32 %v1460, %v1774
        %v1776 = vpop.f32.mrb[0].mxu0
        %1777 = vmatprep.mubr.f32.mxu0 0.0
        %1778 = vmatmul.mubr.f32.gmra.mrb[0].mxu0 %v1554
        %v1779 = vpop.f32.mrb[0].mxu0
        %v1780 = vadd.f32 %v1460, %v1779
        %v1781 = vpop.f32.mrb[0].mxu0
        %1782 = vmatprep.mubr.f32.mxu0 0.0
        %1783 = vmatmul.mubr.f32.gmra.mrb[0].mxu0 %v1557
        %v1784 = vpop.f32.mrb[0].mxu0
        %v1785 = vadd.f32 %v1460, %v1784
        %v1786 = vpop.f32.mrb[0].mxu0
        %1787 = vdwg.mxu0
        %v1788 = vmax.f32 %v1630, 0.0
        %v1789 = vmax.f32 %v1635, 0.0
        %v1790 = vmax.f32 %v1640, 0.0
        %v1791 = vmax.f32 %v1645, 0.0
        %v1792 = vmax.f32 %v1650, 0.0
        %v1793 = vmax.f32 %v1655, 0.0
        %v1794 = vmax.f32 %v1660, 0.0
        %v1795 = vmax.f32 %v1665, 0.0
        %v1796 = vmax.f32 %v1670, 0.0
        %v1797 = vmax.f32 %v1675, 0.0
        %v1798 = vmax.f32 %v1680, 0.0
        %v1799 = vmax.f32 %v1685, 0.0
        %v1800 = vmax.f32 %v1690, 0.0
        %v1801 = vmax.f32 %v1695, 0.0
        %v1802 = vmax.f32 %v1700, 0.0
        %v1803 = vmax.f32 %v1705, 0.0
        %v1804 = vmax.f32 %v1710, 0.0
        %v1805 = vmax.f32 %v1715, 0.0
        %v1806 = vmax.f32 %v1720, 0.0
        %v1807 = vmax.f32 %v1725, 0.0
        %v1808 = vmax.f32 %v1730, 0.0
        %v1809 = vmax.f32 %v1735, 0.0
        %v1810 = vmax.f32 %v1740, 0.0
        %v1811 = vmax.f32 %v1745, 0.0
        %v1812 = vmax.f32 %v1750, 0.0
        %v1813 = vmax.f32 %v1755, 0.0
        %v1814 = vmax.f32 %v1760, 0.0
        %v1815 = vmax.f32 %v1765, 0.0
        %v1816 = vmax.f32 %v1770, 0.0
        %v1817 = vmax.f32 %v1775, 0.0
        %v1818 = vmax.f32 %v1780, 0.0
        %v1819 = vmax.f32 %v1785, 0.0
        %v1821 = vlaneseq
        %v1822 = vshrl.u32 %v1821, 7
        %v1823 = vsub.s32 0, %v1822
        %v1824 = vrot.slane %v1208, %v1823
        %vm1826 = vcmask 261120
        %v1828 = vsel %vm1826, %v1788, 0
        %v1831 = vsel %vm1826, %v1789, 0
        %v1834 = vsel %vm1826, %v1790, 0
        %v1837 = vsel %vm1826, %v1791, 0
        %v1840 = vsel %vm1826, %v1792, 0
        %v1843 = vsel %vm1826, %v1793, 0
        %v1846 = vsel %vm1826, %v1794, 0
        %v1849 = vsel %vm1826, %v1795, 0
        %v1852 = vsel %vm1826, %v1796, 0
        %v1855 = vsel %vm1826, %v1797, 0
        %v1858 = vsel %vm1826, %v1798, 0
        %v1861 = vsel %vm1826, %v1799, 0
        %v1864 = vsel %vm1826, %v1800, 0
        %v1867 = vsel %vm1826, %v1801, 0
        %v1870 = vsel %vm1826, %v1802, 0
        %v1873 = vsel %vm1826, %v1803, 0
        %v1876 = vsel %vm1826, %v1804, 0
        %v1879 = vsel %vm1826, %v1805, 0
        %v1882 = vsel %vm1826, %v1806, 0
        %v1885 = vsel %vm1826, %v1807, 0
        %v1888 = vsel %vm1826, %v1808, 0
        %v1891 = vsel %vm1826, %v1809, 0
        %v1894 = vsel %vm1826, %v1810, 0
        %v1897 = vsel %vm1826, %v1811, 0
        %v1900 = vsel %vm1826, %v1812, 0
        %v1903 = vsel %vm1826, %v1813, 0
        %v1906 = vsel %vm1826, %v1814, 0
        %v1909 = vsel %vm1826, %v1815, 0
        %v1912 = vsel %vm1826, %v1816, 0
        %v1915 = vsel %vm1826, %v1817, 0
        %v1918 = vsel %vm1826, %v1818, 0
        %v1921 = vsel %vm1826, %v1819, 0
        %1923 = vmatprep.subr.mxu0 0.0
        %1924 = vmatpush1.msra.mxu0 %v1204
        %1925 = vmatprep.subr.mxu0 0.0
        %1926 = vmatpush1.msra.mxu0 %v1205
        %1927 = vmatprep.subr.mxu0 0.0
        %1928 = vmatpush1.msra.mxu0 %v1206
        %1929 = vmatprep.subr.mxu0 0.0
        %1930 = vmatpush1.msra.mxu0 %v1207
        %1931 = vmatprep.subr.mxu0 0.0
        %1932 = vmatpush1.msra.mxu0 0.0
        %1933 = vmatprep.subr.mxu0 0.0
        %1934 = vmatpush1.msra.mxu0 0.0
        %1935 = vmatprep.subr.mxu0 0.0
        %1936 = vmatpush1.msra.mxu0 0.0
        %1937 = vmatprep.subr.mxu0 0.0
        %1938 = vmatpush1.msra.mxu0 0.0
        %1939 = vmatprep.subr.mxu0 0.0
        %1940 = vmatpush1.msra.mxu0 0.0
        %1941 = vmatprep.subr.mxu0 0.0
        %1942 = vmatpush1.msra.mxu0 0.0
        %1943 = vmatprep.subr.mxu0 0.0
        %1944 = vmatpush1.msra.mxu0 0.0
        %1945 = vmatprep.subr.mxu0 0.0
        %1946 = vmatpush1.msra.mxu0 0.0
        %1947 = vmatprep.subr.mxu0 0.0
        %1948 = vmatpush1.msra.mxu0 0.0
        %1949 = vmatprep.subr.mxu0 0.0
        %1950 = vmatpush1.msra.mxu0 0.0
        %1951 = vmatprep.subr.mxu0 0.0
        %1952 = vmatpush1.msra.mxu0 0.0
        %1953 = vmatprep.subr.mxu0 0.0
        %1954 = vmatpush1.msra.mxu0 0.0
        %1955 = vmatprep.subr.mxu0 0.0
        %1956 = vmatpush1.msra.mxu0 0.0
        %1957 = vmatprep.subr.mxu0 0.0
        %1958 = vmatpush1.msra.mxu0 0.0
        %1959 = vmatprep.subr.mxu0 0.0
        %1960 = vmatpush1.msra.mxu0 0.0
        %1961 = vmatprep.subr.mxu0 0.0
        %1962 = vmatpush1.msra.mxu0 0.0
        %1963 = vmatprep.subr.mxu0 0.0
        %1964 = vmatpush1.msra.mxu0 0.0
        %1965 = vmatprep.subr.mxu0 0.0
        %1966 = vmatpush1.msra.mxu0 0.0
        %1967 = vmatprep.subr.mxu0 0.0
        %1968 = vmatpush1.msra.mxu0 0.0
        %1969 = vmatprep.subr.mxu0 0.0
        %1970 = vmatpush1.msra.mxu0 0.0
        %1971 = vmatprep.subr.mxu0 0.0
        %1972 = vmatpush1.msra.mxu0 0.0
        %1973 = vmatprep.subr.mxu0 0.0
        %1974 = vmatpush1.msra.mxu0 0.0
        %1975 = vmatprep.subr.mxu0 0.0
        %1976 = vmatpush1.msra.mxu0 0.0
        %1977 = vmatprep.subr.mxu0 0.0
        %1978 = vmatpush1.msra.mxu0 0.0
        %1979 = vmatprep.subr.mxu0 0.0
        %1980 = vmatpush1.msra.mxu0 0.0
        %1981 = vmatprep.subr.mxu0 0.0
        %1982 = vmatpush1.msra.mxu0 0.0
        %1983 = vmatprep.subr.mxu0 0.0
        %1984 = vmatpush1.msra.mxu0 0.0
        %1985 = vmatprep.subr.mxu0 0.0
        %1986 = vmatpush1.msra.mxu0 0.0
        %1987 = vmatprep.mubr.f32.mxu0 0.0
        %1988 = vmatmul.mubr.f32.gmra.mrb[0].mxu0 %v1828
        %v1989 = vpop.f32.mrb[0].mxu0
        %v1990 = vadd.f32 %v1824, %v1989
        %v1991 = vpop.f32.mrb[0].mxu0
        %1992 = vmatprep.mubr.f32.mxu0 0.0
        %1993 = vmatmul.mubr.f32.gmra.mrb[0].mxu0 %v1831
        %v1994 = vpop.f32.mrb[0].mxu0
        %v1995 = vadd.f32 %v1824, %v1994
        %v1996 = vpop.f32.mrb[0].mxu0
        %1997 = vmatprep.mubr.f32.mxu0 0.0
        %1998 = vmatmul.mubr.f32.gmra.mrb[0].mxu0 %v1834
        %v1999 = vpop.f32.mrb[0].mxu0
        %v2000 = vadd.f32 %v1824, %v1999
        %v2001 = vpop.f32.mrb[0].mxu0
        %2002 = vmatprep.mubr.f32.mxu0 0.0
        %2003 = vmatmul.mubr.f32.gmra.mrb[0].mxu0 %v1837
        %v2004 = vpop.f32.mrb[0].mxu0
        %v2005 = vadd.f32 %v1824, %v2004
        %v2006 = vpop.f32.mrb[0].mxu0
        %2007 = vmatprep.mubr.f32.mxu0 0.0
        %2008 = vmatmul.mubr.f32.gmra.mrb[0].mxu0 %v1840
        %v2009 = vpop.f32.mrb[0].mxu0
        %v2010 = vadd.f32 %v1824, %v2009
        %v2011 = vpop.f32.mrb[0].mxu0
        %2012 = vmatprep.mubr.f32.mxu0 0.0
        %2013 = vmatmul.mubr.f32.gmra.mrb[0].mxu0 %v1843
        %v2014 = vpop.f32.mrb[0].mxu0
        %v2015 = vadd.f32 %v1824, %v2014
        %v2016 = vpop.f32.mrb[0].mxu0
        %2017 = vmatprep.mubr.f32.mxu0 0.0
        %2018 = vmatmul.mubr.f32.gmra.mrb[0].mxu0 %v1846
        %v2019 = vpop.f32.mrb[0].mxu0
        %v2020 = vadd.f32 %v1824, %v2019
        %v2021 = vpop.f32.mrb[0].mxu0
        %2022 = vmatprep.mubr.f32.mxu0 0.0
        %2023 = vmatmul.mubr.f32.gmra.mrb[0].mxu0 %v1849
        %v2024 = vpop.f32.mrb[0].mxu0
        %v2025 = vadd.f32 %v1824, %v2024
        %v2026 = vpop.f32.mrb[0].mxu0
        %2027 = vmatprep.mubr.f32.mxu0 0.0
        %2028 = vmatmul.mubr.f32.gmra.mrb[0].mxu0 %v1852
        %v2029 = vpop.f32.mrb[0].mxu0
        %v2030 = vadd.f32 %v1824, %v2029
        %v2031 = vpop.f32.mrb[0].mxu0
        %2032 = vmatprep.mubr.f32.mxu0 0.0
        %2033 = vmatmul.mubr.f32.gmra.mrb[0].mxu0 %v1855
        %v2034 = vpop.f32.mrb[0].mxu0
        %v2035 = vadd.f32 %v1824, %v2034
        %v2036 = vpop.f32.mrb[0].mxu0
        %2037 = vmatprep.mubr.f32.mxu0 0.0
        %2038 = vmatmul.mubr.f32.gmra.mrb[0].mxu0 %v1858
        %v2039 = vpop.f32.mrb[0].mxu0
        %v2040 = vadd.f32 %v1824, %v2039
        %v2041 = vpop.f32.mrb[0].mxu0
        %2042 = vmatprep.mubr.f32.mxu0 0.0
        %2043 = vmatmul.mubr.f32.gmra.mrb[0].mxu0 %v1861
        %v2044 = vpop.f32.mrb[0].mxu0
        %v2045 = vadd.f32 %v1824, %v2044
        %v2046 = vpop.f32.mrb[0].mxu0
        %2047 = vmatprep.mubr.f32.mxu0 0.0
        %2048 = vmatmul.mubr.f32.gmra.mrb[0].mxu0 %v1864
        %v2049 = vpop.f32.mrb[0].mxu0
        %v2050 = vadd.f32 %v1824, %v2049
        %v2051 = vpop.f32.mrb[0].mxu0
        %2052 = vmatprep.mubr.f32.mxu0 0.0
        %2053 = vmatmul.mubr.f32.gmra.mrb[0].mxu0 %v1867
        %v2054 = vpop.f32.mrb[0].mxu0
        %v2055 = vadd.f32 %v1824, %v2054
        %v2056 = vpop.f32.mrb[0].mxu0
        %2057 = vmatprep.mubr.f32.mxu0 0.0
        %2058 = vmatmul.mubr.f32.gmra.mrb[0].mxu0 %v1870
        %v2059 = vpop.f32.mrb[0].mxu0
        %v2060 = vadd.f32 %v1824, %v2059
        %v2061 = vpop.f32.mrb[0].mxu0
        %2062 = vmatprep.mubr.f32.mxu0 0.0
        %2063 = vmatmul.mubr.f32.gmra.mrb[0].mxu0 %v1873
        %v2064 = vpop.f32.mrb[0].mxu0
        %v2065 = vadd.f32 %v1824, %v2064
        %v2066 = vpop.f32.mrb[0].mxu0
        %2067 = vmatprep.mubr.f32.mxu0 0.0
        %2068 = vmatmul.mubr.f32.gmra.mrb[0].mxu0 %v1876
        %v2069 = vpop.f32.mrb[0].mxu0
        %v2070 = vadd.f32 %v1824, %v2069
        %v2071 = vpop.f32.mrb[0].mxu0
        %2072 = vmatprep.mubr.f32.mxu0 0.0
        %2073 = vmatmul.mubr.f32.gmra.mrb[0].mxu0 %v1879
        %v2074 = vpop.f32.mrb[0].mxu0
        %v2075 = vadd.f32 %v1824, %v2074
        %v2076 = vpop.f32.mrb[0].mxu0
        %2077 = vmatprep.mubr.f32.mxu0 0.0
        %2078 = vmatmul.mubr.f32.gmra.mrb[0].mxu0 %v1882
        %v2079 = vpop.f32.mrb[0].mxu0
        %v2080 = vadd.f32 %v1824, %v2079
        %v2081 = vpop.f32.mrb[0].mxu0
        %2082 = vmatprep.mubr.f32.mxu0 0.0
        %2083 = vmatmul.mubr.f32.gmra.mrb[0].mxu0 %v1885
        %v2084 = vpop.f32.mrb[0].mxu0
        %v2085 = vadd.f32 %v1824, %v2084
        %v2086 = vpop.f32.mrb[0].mxu0
        %2087 = vmatprep.mubr.f32.mxu0 0.0
        %2088 = vmatmul.mubr.f32.gmra.mrb[0].mxu0 %v1888
        %v2089 = vpop.f32.mrb[0].mxu0
        %v2090 = vadd.f32 %v1824, %v2089
        %v2091 = vpop.f32.mrb[0].mxu0
        %2092 = vmatprep.mubr.f32.mxu0 0.0
        %2093 = vmatmul.mubr.f32.gmra.mrb[0].mxu0 %v1891
        %v2094 = vpop.f32.mrb[0].mxu0
        %v2095 = vadd.f32 %v1824, %v2094
        %v2096 = vpop.f32.mrb[0].mxu0
        %2097 = vmatprep.mubr.f32.mxu0 0.0
        %2098 = vmatmul.mubr.f32.gmra.mrb[0].mxu0 %v1894
        %v2099 = vpop.f32.mrb[0].mxu0
        %v2100 = vadd.f32 %v1824, %v2099
        %v2101 = vpop.f32.mrb[0].mxu0
        %2102 = vmatprep.mubr.f32.mxu0 0.0
        %2103 = vmatmul.mubr.f32.gmra.mrb[0].mxu0 %v1897
        %v2104 = vpop.f32.mrb[0].mxu0
        %v2105 = vadd.f32 %v1824, %v2104
        %v2106 = vpop.f32.mrb[0].mxu0
        %2107 = vmatprep.mubr.f32.mxu0 0.0
        %2108 = vmatmul.mubr.f32.gmra.mrb[0].mxu0 %v1900
        %v2109 = vpop.f32.mrb[0].mxu0
        %v2110 = vadd.f32 %v1824, %v2109
        %v2111 = vpop.f32.mrb[0].mxu0
        %2112 = vmatprep.mubr.f32.mxu0 0.0
        %2113 = vmatmul.mubr.f32.gmra.mrb[0].mxu0 %v1903
        %v2114 = vpop.f32.mrb[0].mxu0
        %v2115 = vadd.f32 %v1824, %v2114
        %v2116 = vpop.f32.mrb[0].mxu0
        %2117 = vmatprep.mubr.f32.mxu0 0.0
        %2118 = vmatmul.mubr.f32.gmra.mrb[0].mxu0 %v1906
        %v2119 = vpop.f32.mrb[0].mxu0
        %v2120 = vadd.f32 %v1824, %v2119
        %v2121 = vpop.f32.mrb[0].mxu0
        %2122 = vmatprep.mubr.f32.mxu0 0.0
        %2123 = vmatmul.mubr.f32.gmra.mrb[0].mxu0 %v1909
        %v2124 = vpop.f32.mrb[0].mxu0
        %v2125 = vadd.f32 %v1824, %v2124
        %v2126 = vpop.f32.mrb[0].mxu0
        %2127 = vmatprep.mubr.f32.mxu0 0.0
        %2128 = vmatmul.mubr.f32.gmra.mrb[0].mxu0 %v1912
        %v2129 = vpop.f32.mrb[0].mxu0
        %v2130 = vadd.f32 %v1824, %v2129
        %v2131 = vpop.f32.mrb[0].mxu0
        %2132 = vmatprep.mubr.f32.mxu0 0.0
        %2133 = vmatmul.mubr.f32.gmra.mrb[0].mxu0 %v1915
        %v2134 = vpop.f32.mrb[0].mxu0
        %v2135 = vadd.f32 %v1824, %v2134
        %v2136 = vpop.f32.mrb[0].mxu0
        %2137 = vmatprep.mubr.f32.mxu0 0.0
        %2138 = vmatmul.mubr.f32.gmra.mrb[0].mxu0 %v1918
        %v2139 = vpop.f32.mrb[0].mxu0
        %v2140 = vadd.f32 %v1824, %v2139
        %v2141 = vpop.f32.mrb[0].mxu0
        %2142 = vmatprep.mubr.f32.mxu0 0.0
        %2143 = vmatmul.mubr.f32.gmra.mrb[0].mxu0 %v1921
        %v2144 = vpop.f32.mrb[0].mxu0
        %v2145 = vadd.f32 %v1824, %v2144
        %v2146 = vpop.f32.mrb[0].mxu0
        %2147 = vdwg.mxu0
        %v2148 = vlaneseq
        %v2149 = vshrl.u32 %v2148, 7
        %v2150 = vadd.s32 %v2149, 8
        %2180 = vrot.lane.b32.xlu0 0.0, 32
        %v2181 = vpop.permute.xlu0 %2180
        %2182 = vrot.lane.b32.xlu0 %v1990, 32
        %v2183 = vpop.permute.xlu0 %2182
        %2184 = vrot.lane.b32.xlu0 %v1995, 32
        %v2185 = vpop.permute.xlu0 %2184
        %2186 = vrot.lane.b32.xlu0 %v2000, 32
        %v2187 = vpop.permute.xlu0 %2186
        %2188 = vrot.lane.b32.xlu0 %v2005, 32
        %v2189 = vpop.permute.xlu0 %2188
        %2190 = vrot.lane.b32.xlu0 %v2010, 32
        %v2191 = vpop.permute.xlu0 %2190
        %2192 = vrot.lane.b32.xlu0 %v2015, 32
        %v2193 = vpop.permute.xlu0 %2192
        %2194 = vrot.lane.b32.xlu0 %v2020, 32
        %v2195 = vpop.permute.xlu0 %2194
        %2196 = vrot.lane.b32.xlu0 %v2025, 32
        %v2197 = vpop.permute.xlu0 %2196
        %2198 = vrot.lane.b32.xlu0 %v2030, 32
        %v2199 = vpop.permute.xlu0 %2198
        %2200 = vrot.lane.b32.xlu0 %v2035, 32
        %v2201 = vpop.permute.xlu0 %2200
        %2202 = vrot.lane.b32.xlu0 %v2040, 32
        %v2203 = vpop.permute.xlu0 %2202
        %2204 = vrot.lane.b32.xlu0 %v2045, 32
        %v2205 = vpop.permute.xlu0 %2204
        %2206 = vrot.lane.b32.xlu0 %v2050, 32
        %v2207 = vpop.permute.xlu0 %2206
        %2208 = vrot.lane.b32.xlu0 %v2055, 32
        %v2209 = vpop.permute.xlu0 %2208
        %2210 = vrot.lane.b32.xlu0 %v2060, 32
        %v2211 = vpop.permute.xlu0 %2210
        %2212 = vrot.lane.b32.xlu0 %v2065, 32
        %v2213 = vpop.permute.xlu0 %2212
        %2214 = vrot.lane.b32.xlu0 %v2070, 32
        %v2215 = vpop.permute.xlu0 %2214
        %2216 = vrot.lane.b32.xlu0 %v2075, 32
        %v2217 = vpop.permute.xlu0 %2216
        %2218 = vrot.lane.b32.xlu0 %v2080, 32
        %v2219 = vpop.permute.xlu0 %2218
        %2220 = vrot.lane.b32.xlu0 %v2085, 32
        %v2221 = vpop.permute.xlu0 %2220
        %2222 = vrot.lane.b32.xlu0 %v2090, 32
        %v2223 = vpop.permute.xlu0 %2222
        %2224 = vrot.lane.b32.xlu0 %v2095, 32
        %v2225 = vpop.permute.xlu0 %2224
        %2226 = vrot.lane.b32.xlu0 %v2100, 32
        %v2227 = vpop.permute.xlu0 %2226
        %2228 = vrot.lane.b32.xlu0 %v2105, 32
        %v2229 = vpop.permute.xlu0 %2228
        %2230 = vrot.lane.b32.xlu0 %v2110, 32
        %v2231 = vpop.permute.xlu0 %2230
        %2232 = vrot.lane.b32.xlu0 %v2115, 32
        %v2233 = vpop.permute.xlu0 %2232
        %2234 = vrot.lane.b32.xlu0 %v2120, 32
        %v2235 = vpop.permute.xlu0 %2234
        %2236 = vrot.lane.b32.xlu0 %v2125, 32
        %v2237 = vpop.permute.xlu0 %2236
        %2269 = vrot.lane.b32.xlu0 0.0, 64
        %v2270 = vpop.permute.xlu0 %2269
        %2271 = vrot.lane.b32.xlu0 %v1990, 64
        %v2272 = vpop.permute.xlu0 %2271
        %2273 = vrot.lane.b32.xlu0 %v1995, 64
        %v2274 = vpop.permute.xlu0 %2273
        %2275 = vrot.lane.b32.xlu0 %v2000, 64
        %v2276 = vpop.permute.xlu0 %2275
        %2277 = vrot.lane.b32.xlu0 %v2005, 64
        %v2278 = vpop.permute.xlu0 %2277
        %2279 = vrot.lane.b32.xlu0 %v2010, 64
        %v2280 = vpop.permute.xlu0 %2279
        %2281 = vrot.lane.b32.xlu0 %v2015, 64
        %v2282 = vpop.permute.xlu0 %2281
        %2283 = vrot.lane.b32.xlu0 %v2020, 64
        %v2284 = vpop.permute.xlu0 %2283
        %2285 = vrot.lane.b32.xlu0 %v2025, 64
        %v2286 = vpop.permute.xlu0 %2285
        %2287 = vrot.lane.b32.xlu0 %v2030, 64
        %v2288 = vpop.permute.xlu0 %2287
        %2289 = vrot.lane.b32.xlu0 %v2035, 64
        %v2290 = vpop.permute.xlu0 %2289
        %2291 = vrot.lane.b32.xlu0 %v2040, 64
        %v2292 = vpop.permute.xlu0 %2291
        %2293 = vrot.lane.b32.xlu0 %v2045, 64
        %v2294 = vpop.permute.xlu0 %2293
        %2295 = vrot.lane.b32.xlu0 %v2050, 64
        %v2296 = vpop.permute.xlu0 %2295
        %2297 = vrot.lane.b32.xlu0 %v2055, 64
        %v2298 = vpop.permute.xlu0 %2297
        %2299 = vrot.lane.b32.xlu0 %v2060, 64
        %v2300 = vpop.permute.xlu0 %2299
        %2301 = vrot.lane.b32.xlu0 %v2065, 64
        %v2302 = vpop.permute.xlu0 %2301
        %2303 = vrot.lane.b32.xlu0 %v2070, 64
        %v2304 = vpop.permute.xlu0 %2303
        %2305 = vrot.lane.b32.xlu0 %v2075, 64
        %v2306 = vpop.permute.xlu0 %2305
        %2307 = vrot.lane.b32.xlu0 %v2080, 64
        %v2308 = vpop.permute.xlu0 %2307
        %2309 = vrot.lane.b32.xlu0 %v2085, 64
        %v2310 = vpop.permute.xlu0 %2309
        %2311 = vrot.lane.b32.xlu0 %v2090, 64
        %v2312 = vpop.permute.xlu0 %2311
        %2313 = vrot.lane.b32.xlu0 %v2095, 64
        %v2314 = vpop.permute.xlu0 %2313
        %2315 = vrot.lane.b32.xlu0 %v2100, 64
        %v2316 = vpop.permute.xlu0 %2315
        %2317 = vrot.lane.b32.xlu0 %v2105, 64
        %v2318 = vpop.permute.xlu0 %2317
        %2319 = vrot.lane.b32.xlu0 %v2110, 64
        %v2320 = vpop.permute.xlu0 %2319
        %2321 = vrot.lane.b32.xlu0 %v2115, 64
        %v2322 = vpop.permute.xlu0 %2321
        %2323 = vrot.lane.b32.xlu0 %v2120, 64
        %v2324 = vpop.permute.xlu0 %2323
        %2325 = vrot.lane.b32.xlu0 %v2125, 64
        %v2326 = vpop.permute.xlu0 %2325
        %2327 = vrot.lane.b32.xlu0 %v2130, 64
        %v2328 = vpop.permute.xlu0 %2327
        %2329 = vrot.lane.b32.xlu0 %v2135, 64
        %v2330 = vpop.permute.xlu0 %2329
        %2364 = vrot.lane.b32.xlu0 %v1990, 96
        %v2365 = vpop.permute.xlu0 %2364
        %2366 = vrot.lane.b32.xlu0 %v1995, 96
        %v2367 = vpop.permute.xlu0 %2366
        %2368 = vrot.lane.b32.xlu0 %v2000, 96
        %v2369 = vpop.permute.xlu0 %2368
        %2370 = vrot.lane.b32.xlu0 %v2005, 96
        %v2371 = vpop.permute.xlu0 %2370
        %2372 = vrot.lane.b32.xlu0 %v2010, 96
        %v2373 = vpop.permute.xlu0 %2372
        %2374 = vrot.lane.b32.xlu0 %v2015, 96
        %v2375 = vpop.permute.xlu0 %2374
        %2376 = vrot.lane.b32.xlu0 %v2020, 96
        %v2377 = vpop.permute.xlu0 %2376
        %2378 = vrot.lane.b32.xlu0 %v2025, 96
        %v2379 = vpop.permute.xlu0 %2378
        %2380 = vrot.lane.b32.xlu0 %v2030, 96
        %v2381 = vpop.permute.xlu0 %2380
        %2382 = vrot.lane.b32.xlu0 %v2035, 96
        %v2383 = vpop.permute.xlu0 %2382
        %2384 = vrot.lane.b32.xlu0 %v2040, 96
        %v2385 = vpop.permute.xlu0 %2384
        %2386 = vrot.lane.b32.xlu0 %v2045, 96
        %v2387 = vpop.permute.xlu0 %2386
        %2388 = vrot.lane.b32.xlu0 %v2050, 96
        %v2389 = vpop.permute.xlu0 %2388
        %2390 = vrot.lane.b32.xlu0 %v2055, 96
        %v2391 = vpop.permute.xlu0 %2390
        %2392 = vrot.lane.b32.xlu0 %v2060, 96
        %v2393 = vpop.permute.xlu0 %2392
        %2394 = vrot.lane.b32.xlu0 %v2065, 96
        %v2395 = vpop.permute.xlu0 %2394
        %2396 = vrot.lane.b32.xlu0 %v2070, 96
        %v2397 = vpop.permute.xlu0 %2396
        %2398 = vrot.lane.b32.xlu0 %v2075, 96
        %v2399 = vpop.permute.xlu0 %2398
        %2400 = vrot.lane.b32.xlu0 %v2080, 96
        %v2401 = vpop.permute.xlu0 %2400
        %2402 = vrot.lane.b32.xlu0 %v2085, 96
        %v2403 = vpop.permute.xlu0 %2402
        %2404 = vrot.lane.b32.xlu0 %v2090, 96
        %v2405 = vpop.permute.xlu0 %2404
        %2406 = vrot.lane.b32.xlu0 %v2095, 96
        %v2407 = vpop.permute.xlu0 %2406
        %2408 = vrot.lane.b32.xlu0 %v2100, 96
        %v2409 = vpop.permute.xlu0 %2408
        %2410 = vrot.lane.b32.xlu0 %v2105, 96
        %v2411 = vpop.permute.xlu0 %2410
        %2412 = vrot.lane.b32.xlu0 %v2110, 96
        %v2413 = vpop.permute.xlu0 %2412
        %2414 = vrot.lane.b32.xlu0 %v2115, 96
        %v2415 = vpop.permute.xlu0 %2414
        %2416 = vrot.lane.b32.xlu0 %v2120, 96
        %v2417 = vpop.permute.xlu0 %2416
        %2418 = vrot.lane.b32.xlu0 %v2125, 96
        %v2419 = vpop.permute.xlu0 %2418
        %2420 = vrot.lane.b32.xlu0 %v2130, 96
        %v2421 = vpop.permute.xlu0 %2420
        %2422 = vrot.lane.b32.xlu0 %v2135, 96
        %v2423 = vpop.permute.xlu0 %2422
        %2424 = vrot.lane.b32.xlu0 %v2140, 96
        %v2425 = vpop.permute.xlu0 %2424
        %2426 = vrot.lane.b32.xlu0 %v2145, 96
        %v2427 = vpop.permute.xlu0 %2426
        %2460 = vrot.lane.b32.xlu0 %v2130, 32
        %v2461 = vpop.permute.xlu0 %2460
        %2462 = vrot.lane.b32.xlu0 %v2135, 32
        %v2463 = vpop.permute.xlu0 %2462
        %2464 = vrot.lane.b32.xlu0 %v2140, 32
        %v2465 = vpop.permute.xlu0 %2464
        %2466 = vrot.lane.b32.xlu0 %v2145, 32
        %v2467 = vpop.permute.xlu0 %2466
        %2472 = vrot.lane.b32.xlu0 %v2140, 64
        %v2473 = vpop.permute.xlu0 %2472
        %2474 = vrot.lane.b32.xlu0 %v2145, 64
        %v2475 = vpop.permute.xlu0 %2474
        %v2478 = vsel %vm1826, 0.0, %v2181
        %v2479 = vsel %vm1826, 0.0, %v2183
        %v2480 = vsel %vm1826, 0.0, %v2185
        %v2481 = vsel %vm1826, %v1990, %v2187
        %v2482 = vsel %vm1826, %v1995, %v2189
        %v2483 = vsel %vm1826, %v2000, %v2191
        %v2484 = vsel %vm1826, %v2005, %v2193
        %v2485 = vsel %vm1826, %v2010, %v2195
        %v2486 = vsel %vm1826, %v2015, %v2197
        %v2487 = vsel %vm1826, %v2020, %v2199
        %v2488 = vsel %vm1826, %v2025, %v2201
        %v2489 = vsel %vm1826, %v2030, %v2203
        %v2490 = vsel %vm1826, %v2035, %v2205
        %v2491 = vsel %vm1826, %v2040, %v2207
        %v2492 = vsel %vm1826, %v2045, %v2209
        %v2493 = vsel %vm1826, %v2050, %v2211
        %v2494 = vsel %vm1826, %v2055, %v2213
        %v2495 = vsel %vm1826, %v2060, %v2215
        %v2496 = vsel %vm1826, %v2065, %v2217
        %v2497 = vsel %vm1826, %v2070, %v2219
        %v2498 = vsel %vm1826, %v2075, %v2221
        %v2499 = vsel %vm1826, %v2080, %v2223
        %v2500 = vsel %vm1826, %v2085, %v2225
        %v2501 = vsel %vm1826, %v2090, %v2227
        %v2502 = vsel %vm1826, %v2095, %v2229
        %v2503 = vsel %vm1826, %v2100, %v2231
        %v2504 = vsel %vm1826, %v2105, %v2233
        %v2505 = vsel %vm1826, %v2110, %v2235
        %v2506 = vsel %vm1826, %v2115, %v2237
        %vm2507 = vcmask 523264
        %v2508 = vsel %vm2507, %v2478, %v2270
        %v2509 = vsel %vm2507, %v2478, %v2272
        %v2510 = vsel %vm2507, %v2478, %v2274
        %v2511 = vsel %vm2507, %v2479, %v2276
        %v2512 = vsel %vm2507, %v2480, %v2278
        %v2513 = vsel %vm2507, %v2481, %v2280
        %v2514 = vsel %vm2507, %v2482, %v2282
        %v2515 = vsel %vm2507, %v2483, %v2284
        %v2516 = vsel %vm2507, %v2484, %v2286
        %v2517 = vsel %vm2507, %v2485, %v2288
        %v2518 = vsel %vm2507, %v2486, %v2290
        %v2519 = vsel %vm2507, %v2487, %v2292
        %v2520 = vsel %vm2507, %v2488, %v2294
        %v2521 = vsel %vm2507, %v2489, %v2296
        %v2522 = vsel %vm2507, %v2490, %v2298
        %v2523 = vsel %vm2507, %v2491, %v2300
        %v2524 = vsel %vm2507, %v2492, %v2302
        %v2525 = vsel %vm2507, %v2493, %v2304
        %v2526 = vsel %vm2507, %v2494, %v2306
        %v2527 = vsel %vm2507, %v2495, %v2308
        %v2528 = vsel %vm2507, %v2496, %v2310
        %v2529 = vsel %vm2507, %v2497, %v2312
        %v2530 = vsel %vm2507, %v2498, %v2314
        %v2531 = vsel %vm2507, %v2499, %v2316
        %v2532 = vsel %vm2507, %v2500, %v2318
        %v2533 = vsel %vm2507, %v2501, %v2320
        %v2534 = vsel %vm2507, %v2502, %v2322
        %v2535 = vsel %vm2507, %v2503, %v2324
        %v2536 = vsel %vm2507, %v2504, %v2326
        %v2537 = vsel %vm2507, %v2505, %v2328
        %v2538 = vsel %vm2507, %v2506, %v2330
        %vm2539 = vcmask 785408
        %v2540 = vsel %vm2539, %v2508, %v2365
        %v2541 = vsel %vm2539, %v2508, %v2367
        %v2542 = vsel %vm2539, %v2509, %v2369
        %v2543 = vsel %vm2539, %v2510, %v2371
        %v2544 = vsel %vm2539, %v2511, %v2373
        %v2545 = vsel %vm2539, %v2512, %v2375
        %v2546 = vsel %vm2539, %v2513, %v2377
        %v2547 = vsel %vm2539, %v2514, %v2379
        %v2548 = vsel %vm2539, %v2515, %v2381
        %v2549 = vsel %vm2539, %v2516, %v2383
        %v2550 = vsel %vm2539, %v2517, %v2385
        %v2551 = vsel %vm2539, %v2518, %v2387
        %v2552 = vsel %vm2539, %v2519, %v2389
        %v2553 = vsel %vm2539, %v2520, %v2391
        %v2554 = vsel %vm2539, %v2521, %v2393
        %v2555 = vsel %vm2539, %v2522, %v2395
        %v2556 = vsel %vm2539, %v2523, %v2397
        %v2557 = vsel %vm2539, %v2524, %v2399
        %v2558 = vsel %vm2539, %v2525, %v2401
        %v2559 = vsel %vm2539, %v2526, %v2403
        %v2560 = vsel %vm2539, %v2527, %v2405
        %v2561 = vsel %vm2539, %v2528, %v2407
        %v2562 = vsel %vm2539, %v2529, %v2409
        %v2563 = vsel %vm2539, %v2530, %v2411
        %v2564 = vsel %vm2539, %v2531, %v2413
        %v2565 = vsel %vm2539, %v2532, %v2415
        %v2566 = vsel %vm2539, %v2533, %v2417
        %v2567 = vsel %vm2539, %v2534, %v2419
        %v2568 = vsel %vm2539, %v2535, %v2421
        %v2569 = vsel %vm2539, %v2536, %v2423
        %v2570 = vsel %vm2539, %v2537, %v2425
        %v2571 = vsel %vm2539, %v2538, %v2427
        %v2572 = vsel %vm1826, %v2120, %v2461
        %v2573 = vsel %vm1826, %v2125, %v2463
        %v2574 = vsel %vm1826, %v2130, %v2465
        %v2575 = vsel %vm1826, %v2135, %v2467
        %v2576 = vsel %vm1826, %v2140, %v2181
        %v2577 = vsel %vm1826, %v2145, %v2181
        %v2578 = vsel %vm2507, %v2572, %v2473
        %v2579 = vsel %vm2507, %v2573, %v2475
        %v2580 = vsel %vm2507, %v2574, %v2270
        %v2581 = vsel %vm2507, %v2575, %v2270
        %v2582 = vsel %vm2507, %v2576, %v2270
        %v2583 = vsel %vm2507, %v2577, %v2270
        %v2585 = vlaneseq
        %v2586 = vshrl.u32 %v2585, 7
        %v2587 = vsub.s32 0, %v2586
        %v2588 = vrot.slane %v1293, %v2587
        %v2590 = vadd.f32 %v2588, 0.0
        %v2592 = vsel %vm2539, %v2515, 0
        %v2595 = vsel %vm2539, %v2516, 0
        %v2598 = vsel %vm2539, %v2517, 0
        %v2601 = vsel %vm2539, %v2518, 0
        %v2604 = vsel %vm2539, %v2519, 0
        %v2607 = vsel %vm2539, %v2520, 0
        %v2610 = vsel %vm2539, %v2521, 0
        %v2613 = vsel %vm2539, %v2522, 0
        %v2616 = vsel %vm2539, %v2523, 0
        %v2619 = vsel %vm2539, %v2524, 0
        %v2622 = vsel %vm2539, %v2525, 0
        %v2625 = vsel %vm2539, %v2526, 0
        %v2628 = vsel %vm2539, %v2527, 0
        %v2631 = vsel %vm2539, %v2528, 0
        %v2634 = vsel %vm2539, %v2529, 0
        %v2637 = vsel %vm2539, %v2530, 0
        %v2640 = vsel %vm2539, %v2531, 0
        %v2643 = vsel %vm2539, %v2532, 0
        %v2646 = vsel %vm2539, %v2533, 0
        %v2649 = vsel %vm2539, %v2534, 0
        %v2652 = vsel %vm2539, %v2535, 0
        %v2655 = vsel %vm2539, %v2536, 0
        %v2658 = vsel %vm2539, %v2537, 0
        %v2661 = vsel %vm2539, %v2538, 0
        %v2664 = vsel %vm2539, %v2578, 0
        %v2667 = vsel %vm2539, %v2579, 0
        %v2670 = vsel %vm2539, %v2580, 0
        %v2673 = vsel %vm2539, %v2581, 0
        %v2676 = vsel %vm2539, %v2582, 0
        %v2679 = vsel %vm2539, %v2583, 0
        %v2682 = vsel %vm2539, %v2508, 0
        %2684 = vmatprep.subr.mxu0 0.0
        %2685 = vmatpush1.msra.mxu0 %v1209
        %2686 = vmatprep.subr.mxu0 0.0
        %2687 = vmatpush1.msra.mxu0 %v1210
        %2688 = vmatprep.subr.mxu0 0.0
        %2689 = vmatpush1.msra.mxu0 %v1211
        %2690 = vmatprep.subr.mxu0 0.0
        %2691 = vmatpush1.msra.mxu0 %v1212
        %2692 = vmatprep.subr.mxu0 0.0
        %2693 = vmatpush1.msra.mxu0 %v1213
        %2694 = vmatprep.subr.mxu0 0.0
        %2695 = vmatpush1.msra.mxu0 %v1214
        %2696 = vmatprep.subr.mxu0 0.0
        %2697 = vmatpush1.msra.mxu0 %v1215
        %2698 = vmatprep.subr.mxu0 0.0
        %2699 = vmatpush1.msra.mxu0 %v1216
        %2700 = vmatprep.subr.mxu0 0.0
        %2701 = vmatpush1.msra.mxu0 %v1217
        %2702 = vmatprep.subr.mxu0 0.0
        %2703 = vmatpush1.msra.mxu0 %v1218
        %2704 = vmatprep.subr.mxu0 0.0
        %2705 = vmatpush1.msra.mxu0 %v1219
        %2706 = vmatprep.subr.mxu0 0.0
        %2707 = vmatpush1.msra.mxu0 %v1220
        %2708 = vmatprep.subr.mxu0 0.0
        %2709 = vmatpush1.msra.mxu0 %v1221
        %2710 = vmatprep.subr.mxu0 0.0
        %2711 = vmatpush1.msra.mxu0 %v1222
        %2712 = vmatprep.subr.mxu0 0.0
        %2713 = vmatpush1.msra.mxu0 %v1223
        %2714 = vmatprep.subr.mxu0 0.0
        %2715 = vmatpush1.msra.mxu0 %v1224
        %2716 = vmatprep.subr.mxu0 0.0
        %2717 = vmatpush1.msra.mxu0 %v1225
        %2718 = vmatprep.subr.mxu0 0.0
        %2719 = vmatpush1.msra.mxu0 %v1226
        %2720 = vmatprep.subr.mxu0 0.0
        %2721 = vmatpush1.msra.mxu0 %v1227
        %2722 = vmatprep.subr.mxu0 0.0
        %2723 = vmatpush1.msra.mxu0 %v1228
        %2724 = vmatprep.subr.mxu0 0.0
        %2725 = vmatpush1.msra.mxu0 %v1229
        %2726 = vmatprep.subr.mxu0 0.0
        %2727 = vmatpush1.msra.mxu0 %v1230
        %2728 = vmatprep.subr.mxu0 0.0
        %2729 = vmatpush1.msra.mxu0 %v1231
        %2730 = vmatprep.subr.mxu0 0.0
        %2731 = vmatpush1.msra.mxu0 %v1232
        %2732 = vmatprep.subr.mxu0 0.0
        %2733 = vmatpush1.msra.mxu0 %v1233
        %2734 = vmatprep.subr.mxu0 0.0
        %2735 = vmatpush1.msra.mxu0 %v1234
        %2736 = vmatprep.subr.mxu0 0.0
        %2737 = vmatpush1.msra.mxu0 %v1235
        %2738 = vmatprep.subr.mxu0 0.0
        %2739 = vmatpush1.msra.mxu0 %v1236
        %2740 = vmatprep.subr.mxu0 0.0
        %2741 = vmatpush1.msra.mxu0 0.0
        %2742 = vmatprep.subr.mxu0 0.0
        %2743 = vmatpush1.msra.mxu0 0.0
        %2744 = vmatprep.subr.mxu0 0.0
        %2745 = vmatpush1.msra.mxu0 0.0
        %2746 = vmatprep.subr.mxu0 0.0
        %2747 = vmatpush1.msra.mxu0 0.0
        %2748 = vmatprep.mubr.f32.mxu0 %v2592
        %2749 = vmatmul.mubr.f32.gmra.mrb[0].mxu0 %v2540
        %v2750 = vpop.f32.mrb[0].mxu0
        %v2751 = vadd.f32 0.0, %v2750
        %v2752 = vpop.f32.mrb[0].mxu0
        %2753 = vmatprep.mubr.f32.mxu0 %v2595
        %2754 = vmatmul.mubr.f32.gmra.mrb[0].mxu0 %v2541
        %v2755 = vpop.f32.mrb[0].mxu0
        %v2756 = vadd.f32 0.0, %v2755
        %v2757 = vpop.f32.mrb[0].mxu0
        %2758 = vmatprep.mubr.f32.mxu0 %v2598
        %2759 = vmatmul.mubr.f32.gmra.mrb[0].mxu0 %v2542
        %v2760 = vpop.f32.mrb[0].mxu0
        %v2761 = vadd.f32 0.0, %v2760
        %v2762 = vpop.f32.mrb[0].mxu0
        %2763 = vmatprep.mubr.f32.mxu0 %v2601
        %2764 = vmatmul.mubr.f32.gmra.mrb[0].mxu0 %v2543
        %v2765 = vpop.f32.mrb[0].mxu0
        %v2766 = vadd.f32 0.0, %v2765
        %v2767 = vpop.f32.mrb[0].mxu0
        %2768 = vmatprep.mubr.f32.mxu0 %v2604
        %2769 = vmatmul.mubr.f32.gmra.mrb[0].mxu0 %v2544
        %v2770 = vpop.f32.mrb[0].mxu0
        %v2771 = vadd.f32 0.0, %v2770
        %v2772 = vpop.f32.mrb[0].mxu0
        %2773 = vmatprep.mubr.f32.mxu0 %v2607
        %2774 = vmatmul.mubr.f32.gmra.mrb[0].mxu0 %v2545
        %v2775 = vpop.f32.mrb[0].mxu0
        %v2776 = vadd.f32 0.0, %v2775
        %v2777 = vpop.f32.mrb[0].mxu0
        %2778 = vmatprep.mubr.f32.mxu0 %v2610
        %2779 = vmatmul.mubr.f32.gmra.mrb[0].mxu0 %v2546
        %v2780 = vpop.f32.mrb[0].mxu0
        %v2781 = vadd.f32 0.0, %v2780
        %v2782 = vpop.f32.mrb[0].mxu0
        %2783 = vmatprep.mubr.f32.mxu0 %v2613
        %2784 = vmatmul.mubr.f32.gmra.mrb[0].mxu0 %v2547
        %v2785 = vpop.f32.mrb[0].mxu0
        %v2786 = vadd.f32 0.0, %v2785
        %v2787 = vpop.f32.mrb[0].mxu0
        %2788 = vmatprep.mubr.f32.mxu0 %v2616
        %2789 = vmatmul.mubr.f32.gmra.mrb[0].mxu0 %v2548
        %v2790 = vpop.f32.mrb[0].mxu0
        %v2791 = vadd.f32 0.0, %v2790
        %v2792 = vpop.f32.mrb[0].mxu0
        %2793 = vmatprep.mubr.f32.mxu0 %v2619
        %2794 = vmatmul.mubr.f32.gmra.mrb[0].mxu0 %v2549
        %v2795 = vpop.f32.mrb[0].mxu0
        %v2796 = vadd.f32 0.0, %v2795
        %v2797 = vpop.f32.mrb[0].mxu0
        %2798 = vmatprep.mubr.f32.mxu0 %v2622
        %2799 = vmatmul.mubr.f32.gmra.mrb[0].mxu0 %v2550
        %v2800 = vpop.f32.mrb[0].mxu0
        %v2801 = vadd.f32 0.0, %v2800
        %v2802 = vpop.f32.mrb[0].mxu0
        %2803 = vmatprep.mubr.f32.mxu0 %v2625
        %2804 = vmatmul.mubr.f32.gmra.mrb[0].mxu0 %v2551
        %v2805 = vpop.f32.mrb[0].mxu0
        %v2806 = vadd.f32 0.0, %v2805
        %v2807 = vpop.f32.mrb[0].mxu0
        %2808 = vmatprep.mubr.f32.mxu0 %v2628
        %2809 = vmatmul.mubr.f32.gmra.mrb[0].mxu0 %v2552
        %v2810 = vpop.f32.mrb[0].mxu0
        %v2811 = vadd.f32 0.0, %v2810
        %v2812 = vpop.f32.mrb[0].mxu0
        %2813 = vmatprep.mubr.f32.mxu0 %v2631
        %2814 = vmatmul.mubr.f32.gmra.mrb[0].mxu0 %v2553
        %v2815 = vpop.f32.mrb[0].mxu0
        %v2816 = vadd.f32 0.0, %v2815
        %v2817 = vpop.f32.mrb[0].mxu0
        %2818 = vmatprep.mubr.f32.mxu0 %v2634
        %2819 = vmatmul.mubr.f32.gmra.mrb[0].mxu0 %v2554
        %v2820 = vpop.f32.mrb[0].mxu0
        %v2821 = vadd.f32 0.0, %v2820
        %v2822 = vpop.f32.mrb[0].mxu0
        %2823 = vmatprep.mubr.f32.mxu0 %v2637
        %2824 = vmatmul.mubr.f32.gmra.mrb[0].mxu0 %v2555
        %v2825 = vpop.f32.mrb[0].mxu0
        %v2826 = vadd.f32 0.0, %v2825
        %v2827 = vpop.f32.mrb[0].mxu0
        %2828 = vmatprep.mubr.f32.mxu0 %v2640
        %2829 = vmatmul.mubr.f32.gmra.mrb[0].mxu0 %v2556
        %v2830 = vpop.f32.mrb[0].mxu0
        %v2831 = vadd.f32 0.0, %v2830
        %v2832 = vpop.f32.mrb[0].mxu0
        %2833 = vmatprep.mubr.f32.mxu0 %v2643
        %2834 = vmatmul.mubr.f32.gmra.mrb[0].mxu0 %v2557
        %v2835 = vpop.f32.mrb[0].mxu0
        %v2836 = vadd.f32 0.0, %v2835
        %v2837 = vpop.f32.mrb[0].mxu0
        %2838 = vmatprep.mubr.f32.mxu0 %v2646
        %2839 = vmatmul.mubr.f32.gmra.mrb[0].mxu0 %v2558
        %v2840 = vpop.f32.mrb[0].mxu0
        %v2841 = vadd.f32 0.0, %v2840
        %v2842 = vpop.f32.mrb[0].mxu0
        %2843 = vmatprep.mubr.f32.mxu0 %v2649
        %2844 = vmatmul.mubr.f32.gmra.mrb[0].mxu0 %v2559
        %v2845 = vpop.f32.mrb[0].mxu0
        %v2846 = vadd.f32 0.0, %v2845
        %v2847 = vpop.f32.mrb[0].mxu0
        %2848 = vmatprep.mubr.f32.mxu0 %v2652
        %2849 = vmatmul.mubr.f32.gmra.mrb[0].mxu0 %v2560
        %v2850 = vpop.f32.mrb[0].mxu0
        %v2851 = vadd.f32 0.0, %v2850
        %v2852 = vpop.f32.mrb[0].mxu0
        %2853 = vmatprep.mubr.f32.mxu0 %v2655
        %2854 = vmatmul.mubr.f32.gmra.mrb[0].mxu0 %v2561
        %v2855 = vpop.f32.mrb[0].mxu0
        %v2856 = vadd.f32 0.0, %v2855
        %v2857 = vpop.f32.mrb[0].mxu0
        %2858 = vmatprep.mubr.f32.mxu0 %v2658
        %2859 = vmatmul.mubr.f32.gmra.mrb[0].mxu0 %v2562
        %v2860 = vpop.f32.mrb[0].mxu0
        %v2861 = vadd.f32 0.0, %v2860
        %v2862 = vpop.f32.mrb[0].mxu0
        %2863 = vmatprep.mubr.f32.mxu0 %v2661
        %2864 = vmatmul.mubr.f32.gmra.mrb[0].mxu0 %v2563
        %v2865 = vpop.f32.mrb[0].mxu0
        %v2866 = vadd.f32 0.0, %v2865
        %v2867 = vpop.f32.mrb[0].mxu0
        %2868 = vmatprep.mubr.f32.mxu0 %v2664
        %2869 = vmatmul.mubr.f32.gmra.mrb[0].mxu0 %v2564
        %v2870 = vpop.f32.mrb[0].mxu0
        %v2871 = vadd.f32 0.0, %v2870
        %v2872 = vpop.f32.mrb[0].mxu0
        %2873 = vmatprep.mubr.f32.mxu0 %v2667
        %2874 = vmatmul.mubr.f32.gmra.mrb[0].mxu0 %v2565
        %v2875 = vpop.f32.mrb[0].mxu0
        %v2876 = vadd.f32 0.0, %v2875
        %v2877 = vpop.f32.mrb[0].mxu0
        %2878 = vmatprep.mubr.f32.mxu0 %v2670
        %2879 = vmatmul.mubr.f32.gmra.mrb[0].mxu0 %v2566
        %v2880 = vpop.f32.mrb[0].mxu0
        %v2881 = vadd.f32 0.0, %v2880
        %v2882 = vpop.f32.mrb[0].mxu0
        %2883 = vmatprep.mubr.f32.mxu0 %v2673
        %2884 = vmatmul.mubr.f32.gmra.mrb[0].mxu0 %v2567
        %v2885 = vpop.f32.mrb[0].mxu0
        %v2886 = vadd.f32 0.0, %v2885
        %v2887 = vpop.f32.mrb[0].mxu0
        %2888 = vmatprep.mubr.f32.mxu0 %v2676
        %2889 = vmatmul.mubr.f32.gmra.mrb[0].mxu0 %v2568
        %v2890 = vpop.f32.mrb[0].mxu0
        %v2891 = vadd.f32 0.0, %v2890
        %v2892 = vpop.f32.mrb[0].mxu0
        %2893 = vmatprep.mubr.f32.mxu0 %v2679
        %2894 = vmatmul.mubr.f32.gmra.mrb[0].mxu0 %v2569
        %v2895 = vpop.f32.mrb[0].mxu0
        %v2896 = vadd.f32 0.0, %v2895
        %v2897 = vpop.f32.mrb[0].mxu0
        %2898 = vmatprep.mubr.f32.mxu0 %v2682
        %2899 = vmatmul.mubr.f32.gmra.mrb[0].mxu0 %v2570
        %v2900 = vpop.f32.mrb[0].mxu0
        %v2901 = vadd.f32 0.0, %v2900
        %v2902 = vpop.f32.mrb[0].mxu0
        %2903 = vmatprep.mubr.f32.mxu0 %v2682
        %2904 = vmatmul.mubr.f32.gmra.mrb[0].mxu0 %v2571
        %v2905 = vpop.f32.mrb[0].mxu0
        %v2906 = vadd.f32 0.0, %v2905
        %v2907 = vpop.f32.mrb[0].mxu0
        %2908 = vdwg.mxu0
        %v2909 = vrot.slane %v2751, 5
        %v2910 = vrot.slane %v2761, 5
        %v2911 = vrot.slane %v2771, 5
        %v2912 = vrot.slane %v2781, 5
        %v2913 = vrot.slane %v2791, 5
        %v2914 = vrot.slane %v2801, 5
        %v2915 = vrot.slane %v2811, 5
        %v2916 = vrot.slane %v2821, 5
        %v2917 = vrot.slane %v2831, 5
        %v2918 = vrot.slane %v2841, 5
        %v2919 = vrot.slane %v2851, 5
        %v2920 = vrot.slane %v2861, 5
        %v2921 = vrot.slane %v2871, 5
        %v2922 = vrot.slane %v2881, 5
        %v2923 = vrot.slane %v2891, 5
        %v2924 = vrot.slane %v2901, 5
        %v2925 = vrot.slane %v2756, 5
        %v2926 = vrot.slane %v2766, 5
        %v2927 = vrot.slane %v2776, 5
        %v2928 = vrot.slane %v2786, 5
        %v2929 = vrot.slane %v2796, 5
        %v2930 = vrot.slane %v2806, 5
        %v2931 = vrot.slane %v2816, 5
        %v2932 = vrot.slane %v2826, 5
        %v2933 = vrot.slane %v2836, 5
        %v2934 = vrot.slane %v2846, 5
        %v2935 = vrot.slane %v2856, 5
        %v2936 = vrot.slane %v2866, 5
        %v2937 = vrot.slane %v2876, 5
        %v2938 = vrot.slane %v2886, 5
        %v2939 = vrot.slane %v2896, 5
        %v2940 = vrot.slane %v2906, 5
        %vm2941 = vcmp.lt.s32.totalorder %v2149, 3
        %v2942 = vsel %vm2941, %v2909, %v2925
        %v2943 = vsel %vm2941, %v2910, %v2926
        %v2944 = vsel %vm2941, %v2911, %v2927
        %v2945 = vsel %vm2941, %v2912, %v2928
        %v2946 = vsel %vm2941, %v2913, %v2929
        %v2947 = vsel %vm2941, %v2914, %v2930
        %v2948 = vsel %vm2941, %v2915, %v2931
        %v2949 = vsel %vm2941, %v2916, %v2932
        %v2950 = vsel %vm2941, %v2917, %v2933
        %v2951 = vsel %vm2941, %v2918, %v2934
        %v2952 = vsel %vm2941, %v2919, %v2935
        %v2953 = vsel %vm2941, %v2920, %v2936
        %v2954 = vsel %vm2941, %v2921, %v2937
        %v2955 = vsel %vm2941, %v2922, %v2938
        %v2956 = vsel %vm2941, %v2923, %v2939
        %v2957 = vsel %vm2941, %v2924, %v2940
        %v2958 = vsel %vm2941, %v2925, %v2909
        %v2959 = vsel %vm2941, %v2926, %v2910
        %v2960 = vsel %vm2941, %v2927, %v2911
        %v2961 = vsel %vm2941, %v2928, %v2912
        %v2962 = vsel %vm2941, %v2929, %v2913
        %v2963 = vsel %vm2941, %v2930, %v2914
        %v2964 = vsel %vm2941, %v2931, %v2915
        %v2965 = vsel %vm2941, %v2932, %v2916
        %v2966 = vsel %vm2941, %v2933, %v2917
        %v2967 = vsel %vm2941, %v2934, %v2918
        %v2968 = vsel %vm2941, %v2935, %v2919
        %v2969 = vsel %vm2941, %v2936, %v2920
        %v2970 = vsel %vm2941, %v2937, %v2921
        %v2971 = vsel %vm2941, %v2938, %v2922
        %v2972 = vsel %vm2941, %v2939, %v2923
        %v2973 = vsel %vm2941, %v2940, %v2924
        %vm2974 = vcmp.ge.s32.totalorder %v2149, 3
        %vm2975 = vcmp.ge.s32.totalorder %v2150, 3
        %v2976 = vsel %vm2974, 1, 0
        %v2977 = vsel %vm2975, 1, 0
        %vm2978 = vcmp.eq.s32.totalorder %v2976, 1
        %vm2979 = vcmp.eq.s32.totalorder %v2977, 1
        %v2980 = vsel %vm2978, %v2958, 0.0
        %v2981 = vsel %vm2979, %v2942, 0.0
        %v2982 = vsel %vm2978, %v2959, 0.0
        %v2983 = vsel %vm2979, %v2943, 0.0
        %v2984 = vsel %vm2978, %v2960, 0.0
        %v2985 = vsel %vm2979, %v2944, 0.0
        %v2986 = vsel %vm2978, %v2961, 0.0
        %v2987 = vsel %vm2979, %v2945, 0.0
        %v2988 = vsel %vm2978, %v2962, 0.0
        %v2989 = vsel %vm2979, %v2946, 0.0
        %v2990 = vsel %vm2978, %v2963, 0.0
        %v2991 = vsel %vm2979, %v2947, 0.0
        %v2992 = vsel %vm2978, %v2964, 0.0
        %v2993 = vsel %vm2979, %v2948, 0.0
        %v2994 = vsel %vm2978, %v2965, 0.0
        %v2995 = vsel %vm2979, %v2949, 0.0
        %v2996 = vsel %vm2978, %v2966, 0.0
        %v2997 = vsel %vm2979, %v2950, 0.0
        %v2998 = vsel %vm2978, %v2967, 0.0
        %v2999 = vsel %vm2979, %v2951, 0.0
        %v3000 = vsel %vm2978, %v2968, 0.0
        %v3001 = vsel %vm2979, %v2952, 0.0
        %v3002 = vsel %vm2978, %v2969, 0.0
        %v3003 = vsel %vm2979, %v2953, 0.0
        %v3004 = vsel %vm2978, %v2970, 0.0
        %v3005 = vsel %vm2979, %v2954, 0.0
        %v3006 = vsel %vm2978, %v2971, 0.0
        %v3007 = vsel %vm2979, %v2955, 0.0
        %v3008 = vsel %vm2978, %v2972, 0.0
        %v3009 = vsel %vm2979, %v2956, 0.0
        %v3010 = vsel %vm2978, %v2973, 0.0
        %v3011 = vsel %vm2979, %v2957, 0.0
        %v3012 = vadd.f32 %v2590, %v2980
        %v3013 = vadd.f32 %v2590, %v2981
        %v3014 = vadd.f32 %v2590, %v2982
        %v3015 = vadd.f32 %v2590, %v2983
        %v3016 = vadd.f32 %v2590, %v2984
        %v3017 = vadd.f32 %v2590, %v2985
        %v3018 = vadd.f32 %v2590, %v2986
        %v3019 = vadd.f32 %v2590, %v2987
        %v3020 = vadd.f32 %v2590, %v2988
        %v3021 = vadd.f32 %v2590, %v2989
        %v3022 = vadd.f32 %v2590, %v2990
        %v3023 = vadd.f32 %v2590, %v2991
        %v3024 = vadd.f32 %v2590, %v2992
        %v3025 = vadd.f32 %v2590, %v2993
        %v3026 = vadd.f32 %v2590, %v2994
        %v3027 = vadd.f32 %v2590, %v2995
        %v3028 = vadd.f32 %v2590, %v2996
        %v3029 = vadd.f32 %v2590, %v2997
        %v3030 = vadd.f32 %v2590, %v2998
        %v3031 = vadd.f32 %v2590, %v2999
        %v3032 = vadd.f32 %v2590, %v3000
        %v3033 = vadd.f32 %v2590, %v3001
        %v3034 = vadd.f32 %v2590, %v3002
        %v3035 = vadd.f32 %v2590, %v3003
        %v3036 = vadd.f32 %v2590, %v3004
        %v3037 = vadd.f32 %v2590, %v3005
        %v3038 = vadd.f32 %v2590, %v3006
        %v3039 = vadd.f32 %v2590, %v3007
        %v3040 = vadd.f32 %v2590, %v3008
        %v3041 = vadd.f32 %v2590, %v3009
        %v3042 = vadd.f32 %v2590, %v3010
        %v3043 = vadd.f32 %v2590, %v3011
        %3044 = vmatprep.subr.mxu0 0.0
        %3045 = vmatpush1.msra.mxu0 %v1237
        %3046 = vmatprep.subr.mxu0 0.0
        %3047 = vmatpush1.msra.mxu0 %v1238
        %3048 = vmatprep.subr.mxu0 0.0
        %3049 = vmatpush1.msra.mxu0 %v1239
        %3050 = vmatprep.subr.mxu0 0.0
        %3051 = vmatpush1.msra.mxu0 %v1240
        %3052 = vmatprep.subr.mxu0 0.0
        %3053 = vmatpush1.msra.mxu0 %v1241
        %3054 = vmatprep.subr.mxu0 0.0
        %3055 = vmatpush1.msra.mxu0 %v1242
        %3056 = vmatprep.subr.mxu0 0.0
        %3057 = vmatpush1.msra.mxu0 %v1243
        %3058 = vmatprep.subr.mxu0 0.0
        %3059 = vmatpush1.msra.mxu0 %v1244
        %3060 = vmatprep.subr.mxu0 0.0
        %3061 = vmatpush1.msra.mxu0 %v1245
        %3062 = vmatprep.subr.mxu0 0.0
        %3063 = vmatpush1.msra.mxu0 %v1246
        %3064 = vmatprep.subr.mxu0 0.0
        %3065 = vmatpush1.msra.mxu0 %v1247
        %3066 = vmatprep.subr.mxu0 0.0
        %3067 = vmatpush1.msra.mxu0 %v1248
        %3068 = vmatprep.subr.mxu0 0.0
        %3069 = vmatpush1.msra.mxu0 %v1249
        %3070 = vmatprep.subr.mxu0 0.0
        %3071 = vmatpush1.msra.mxu0 %v1250
        %3072 = vmatprep.subr.mxu0 0.0
        %3073 = vmatpush1.msra.mxu0 %v1251
        %3074 = vmatprep.subr.mxu0 0.0
        %3075 = vmatpush1.msra.mxu0 %v1252
        %3076 = vmatprep.subr.mxu0 0.0
        %3077 = vmatpush1.msra.mxu0 %v1253
        %3078 = vmatprep.subr.mxu0 0.0
        %3079 = vmatpush1.msra.mxu0 %v1254
        %3080 = vmatprep.subr.mxu0 0.0
        %3081 = vmatpush1.msra.mxu0 %v1255
        %3082 = vmatprep.subr.mxu0 0.0
        %3083 = vmatpush1.msra.mxu0 %v1256
        %3084 = vmatprep.subr.mxu0 0.0
        %3085 = vmatpush1.msra.mxu0 %v1257
        %3086 = vmatprep.subr.mxu0 0.0
        %3087 = vmatpush1.msra.mxu0 %v1258
        %3088 = vmatprep.subr.mxu0 0.0
        %3089 = vmatpush1.msra.mxu0 %v1259
        %3090 = vmatprep.subr.mxu0 0.0
        %3091 = vmatpush1.msra.mxu0 %v1260
        %3092 = vmatprep.subr.mxu0 0.0
        %3093 = vmatpush1.msra.mxu0 %v1261
        %3094 = vmatprep.subr.mxu0 0.0
        %3095 = vmatpush1.msra.mxu0 %v1262
        %3096 = vmatprep.subr.mxu0 0.0
        %3097 = vmatpush1.msra.mxu0 %v1263
        %3098 = vmatprep.subr.mxu0 0.0
        %3099 = vmatpush1.msra.mxu0 %v1264
        %3100 = vmatprep.subr.mxu0 0.0
        %3101 = vmatpush1.msra.mxu0 0.0
        %3102 = vmatprep.subr.mxu0 0.0
        %3103 = vmatpush1.msra.mxu0 0.0
        %3104 = vmatprep.subr.mxu0 0.0
        %3105 = vmatpush1.msra.mxu0 0.0
        %3106 = vmatprep.subr.mxu0 0.0
        %3107 = vmatpush1.msra.mxu0 0.0
        %3108 = vmatprep.mubr.f32.mxu0 %v2592
        %3109 = vmatmul.mubr.f32.gmra.mrb[0].mxu0 %v2540
        %v3110 = vpop.f32.mrb[0].mxu0
        %v3111 = vadd.f32 0.0, %v3110
        %v3112 = vpop.f32.mrb[0].mxu0
        %3113 = vmatprep.mubr.f32.mxu0 %v2595
        %3114 = vmatmul.mubr.f32.gmra.mrb[0].mxu0 %v2541
        %v3115 = vpop.f32.mrb[0].mxu0
        %v3116 = vadd.f32 0.0, %v3115
        %v3117 = vpop.f32.mrb[0].mxu0
        %3118 = vmatprep.mubr.f32.mxu0 %v2598
        %3119 = vmatmul.mubr.f32.gmra.mrb[0].mxu0 %v2542
        %v3120 = vpop.f32.mrb[0].mxu0
        %v3121 = vadd.f32 0.0, %v3120
        %v3122 = vpop.f32.mrb[0].mxu0
        %3123 = vmatprep.mubr.f32.mxu0 %v2601
        %3124 = vmatmul.mubr.f32.gmra.mrb[0].mxu0 %v2543
        %v3125 = vpop.f32.mrb[0].mxu0
        %v3126 = vadd.f32 0.0, %v3125
        %v3127 = vpop.f32.mrb[0].mxu0
        %3128 = vmatprep.mubr.f32.mxu0 %v2604
        %3129 = vmatmul.mubr.f32.gmra.mrb[0].mxu0 %v2544
        %v3130 = vpop.f32.mrb[0].mxu0
        %v3131 = vadd.f32 0.0, %v3130
        %v3132 = vpop.f32.mrb[0].mxu0
        %3133 = vmatprep.mubr.f32.mxu0 %v2607
        %3134 = vmatmul.mubr.f32.gmra.mrb[0].mxu0 %v2545
        %v3135 = vpop.f32.mrb[0].mxu0
        %v3136 = vadd.f32 0.0, %v3135
        %v3137 = vpop.f32.mrb[0].mxu0
        %3138 = vmatprep.mubr.f32.mxu0 %v2610
        %3139 = vmatmul.mubr.f32.gmra.mrb[0].mxu0 %v2546
        %v3140 = vpop.f32.mrb[0].mxu0
        %v3141 = vadd.f32 0.0, %v3140
        %v3142 = vpop.f32.mrb[0].mxu0
        %3143 = vmatprep.mubr.f32.mxu0 %v2613
        %3144 = vmatmul.mubr.f32.gmra.mrb[0].mxu0 %v2547
        %v3145 = vpop.f32.mrb[0].mxu0
        %v3146 = vadd.f32 0.0, %v3145
        %v3147 = vpop.f32.mrb[0].mxu0
        %3148 = vmatprep.mubr.f32.mxu0 %v2616
        %3149 = vmatmul.mubr.f32.gmra.mrb[0].mxu0 %v2548
        %v3150 = vpop.f32.mrb[0].mxu0
        %v3151 = vadd.f32 0.0, %v3150
        %v3152 = vpop.f32.mrb[0].mxu0
        %3153 = vmatprep.mubr.f32.mxu0 %v2619
        %3154 = vmatmul.mubr.f32.gmra.mrb[0].mxu0 %v2549
        %v3155 = vpop.f32.mrb[0].mxu0
        %v3156 = vadd.f32 0.0, %v3155
        %v3157 = vpop.f32.mrb[0].mxu0
        %3158 = vmatprep.mubr.f32.mxu0 %v2622
        %3159 = vmatmul.mubr.f32.gmra.mrb[0].mxu0 %v2550
        %v3160 = vpop.f32.mrb[0].mxu0
        %v3161 = vadd.f32 0.0, %v3160
        %v3162 = vpop.f32.mrb[0].mxu0
        %3163 = vmatprep.mubr.f32.mxu0 %v2625
        %3164 = vmatmul.mubr.f32.gmra.mrb[0].mxu0 %v2551
        %v3165 = vpop.f32.mrb[0].mxu0
        %v3166 = vadd.f32 0.0, %v3165
        %v3167 = vpop.f32.mrb[0].mxu0
        %3168 = vmatprep.mubr.f32.mxu0 %v2628
        %3169 = vmatmul.mubr.f32.gmra.mrb[0].mxu0 %v2552
        %v3170 = vpop.f32.mrb[0].mxu0
        %v3171 = vadd.f32 0.0, %v3170
        %v3172 = vpop.f32.mrb[0].mxu0
        %3173 = vmatprep.mubr.f32.mxu0 %v2631
        %3174 = vmatmul.mubr.f32.gmra.mrb[0].mxu0 %v2553
        %v3175 = vpop.f32.mrb[0].mxu0
        %v3176 = vadd.f32 0.0, %v3175
        %v3177 = vpop.f32.mrb[0].mxu0
        %3178 = vmatprep.mubr.f32.mxu0 %v2634
        %3179 = vmatmul.mubr.f32.gmra.mrb[0].mxu0 %v2554
        %v3180 = vpop.f32.mrb[0].mxu0
        %v3181 = vadd.f32 0.0, %v3180
        %v3182 = vpop.f32.mrb[0].mxu0
        %3183 = vmatprep.mubr.f32.mxu0 %v2637
        %3184 = vmatmul.mubr.f32.gmra.mrb[0].mxu0 %v2555
        %v3185 = vpop.f32.mrb[0].mxu0
        %v3186 = vadd.f32 0.0, %v3185
        %v3187 = vpop.f32.mrb[0].mxu0
        %3188 = vmatprep.mubr.f32.mxu0 %v2640
        %3189 = vmatmul.mubr.f32.gmra.mrb[0].mxu0 %v2556
        %v3190 = vpop.f32.mrb[0].mxu0
        %v3191 = vadd.f32 0.0, %v3190
        %v3192 = vpop.f32.mrb[0].mxu0
        %3193 = vmatprep.mubr.f32.mxu0 %v2643
        %3194 = vmatmul.mubr.f32.gmra.mrb[0].mxu0 %v2557
        %v3195 = vpop.f32.mrb[0].mxu0
        %v3196 = vadd.f32 0.0, %v3195
        %v3197 = vpop.f32.mrb[0].mxu0
        %3198 = vmatprep.mubr.f32.mxu0 %v2646
        %3199 = vmatmul.mubr.f32.gmra.mrb[0].mxu0 %v2558
        %v3200 = vpop.f32.mrb[0].mxu0
        %v3201 = vadd.f32 0.0, %v3200
        %v3202 = vpop.f32.mrb[0].mxu0
        %3203 = vmatprep.mubr.f32.mxu0 %v2649
        %3204 = vmatmul.mubr.f32.gmra.mrb[0].mxu0 %v2559
        %v3205 = vpop.f32.mrb[0].mxu0
        %v3206 = vadd.f32 0.0, %v3205
        %v3207 = vpop.f32.mrb[0].mxu0
        %3208 = vmatprep.mubr.f32.mxu0 %v2652
        %3209 = vmatmul.mubr.f32.gmra.mrb[0].mxu0 %v2560
        %v3210 = vpop.f32.mrb[0].mxu0
        %v3211 = vadd.f32 0.0, %v3210
        %v3212 = vpop.f32.mrb[0].mxu0
        %3213 = vmatprep.mubr.f32.mxu0 %v2655
        %3214 = vmatmul.mubr.f32.gmra.mrb[0].mxu0 %v2561
        %v3215 = vpop.f32.mrb[0].mxu0
        %v3216 = vadd.f32 0.0, %v3215
        %v3217 = vpop.f32.mrb[0].mxu0
        %3218 = vmatprep.mubr.f32.mxu0 %v2658
        %3219 = vmatmul.mubr.f32.gmra.mrb[0].mxu0 %v2562
        %v3220 = vpop.f32.mrb[0].mxu0
        %v3221 = vadd.f32 0.0, %v3220
        %v3222 = vpop.f32.mrb[0].mxu0
        %3223 = vmatprep.mubr.f32.mxu0 %v2661
        %3224 = vmatmul.mubr.f32.gmra.mrb[0].mxu0 %v2563
        %v3225 = vpop.f32.mrb[0].mxu0
        %v3226 = vadd.f32 0.0, %v3225
        %v3227 = vpop.f32.mrb[0].mxu0
        %3228 = vmatprep.mubr.f32.mxu0 %v2664
        %3229 = vmatmul.mubr.f32.gmra.mrb[0].mxu0 %v2564
        %v3230 = vpop.f32.mrb[0].mxu0
        %v3231 = vadd.f32 0.0, %v3230
        %v3232 = vpop.f32.mrb[0].mxu0
        %3233 = vmatprep.mubr.f32.mxu0 %v2667
        %3234 = vmatmul.mubr.f32.gmra.mrb[0].mxu0 %v2565
        %v3235 = vpop.f32.mrb[0].mxu0
        %v3236 = vadd.f32 0.0, %v3235
        %v3237 = vpop.f32.mrb[0].mxu0
        %3238 = vmatprep.mubr.f32.mxu0 %v2670
        %3239 = vmatmul.mubr.f32.gmra.mrb[0].mxu0 %v2566
        %v3240 = vpop.f32.mrb[0].mxu0
        %v3241 = vadd.f32 0.0, %v3240
        %v3242 = vpop.f32.mrb[0].mxu0
        %3243 = vmatprep.mubr.f32.mxu0 %v2673
        %3244 = vmatmul.mubr.f32.gmra.mrb[0].mxu0 %v2567
        %v3245 = vpop.f32.mrb[0].mxu0
        %v3246 = vadd.f32 0.0, %v3245
        %v3247 = vpop.f32.mrb[0].mxu0
        %3248 = vmatprep.mubr.f32.mxu0 %v2676
        %3249 = vmatmul.mubr.f32.gmra.mrb[0].mxu0 %v2568
        %v3250 = vpop.f32.mrb[0].mxu0
        %v3251 = vadd.f32 0.0, %v3250
        %v3252 = vpop.f32.mrb[0].mxu0
        %3253 = vmatprep.mubr.f32.mxu0 %v2679
        %3254 = vmatmul.mubr.f32.gmra.mrb[0].mxu0 %v2569
        %v3255 = vpop.f32.mrb[0].mxu0
        %v3256 = vadd.f32 0.0, %v3255
        %v3257 = vpop.f32.mrb[0].mxu0
        %3258 = vmatprep.mubr.f32.mxu0 %v2682
        %3259 = vmatmul.mubr.f32.gmra.mrb[0].mxu0 %v2570
        %v3260 = vpop.f32.mrb[0].mxu0
        %v3261 = vadd.f32 0.0, %v3260
        %v3262 = vpop.f32.mrb[0].mxu0
        %3263 = vmatprep.mubr.f32.mxu0 %v2682
        %3264 = vmatmul.mubr.f32.gmra.mrb[0].mxu0 %v2571
        %v3265 = vpop.f32.mrb[0].mxu0
        %v3266 = vadd.f32 0.0, %v3265
        %v3267 = vpop.f32.mrb[0].mxu0
        %3268 = vdwg.mxu0
        %v3269 = vrot.slane %v3111, 6
        %v3270 = vrot.slane %v3121, 6
        %v3271 = vrot.slane %v3131, 6
        %v3272 = vrot.slane %v3141, 6
        %v3273 = vrot.slane %v3151, 6
        %v3274 = vrot.slane %v3161, 6
        %v3275 = vrot.slane %v3171, 6
        %v3276 = vrot.slane %v3181, 6
        %v3277 = vrot.slane %v3191, 6
        %v3278 = vrot.slane %v3201, 6
        %v3279 = vrot.slane %v3211, 6
        %v3280 = vrot.slane %v3221, 6
        %v3281 = vrot.slane %v3231, 6
        %v3282 = vrot.slane %v3241, 6
        %v3283 = vrot.slane %v3251, 6
        %v3284 = vrot.slane %v3261, 6
        %v3285 = vrot.slane %v3116, 6
        %v3286 = vrot.slane %v3126, 6
        %v3287 = vrot.slane %v3136, 6
        %v3288 = vrot.slane %v3146, 6
        %v3289 = vrot.slane %v3156, 6
        %v3290 = vrot.slane %v3166, 6
        %v3291 = vrot.slane %v3176, 6
        %v3292 = vrot.slane %v3186, 6
        %v3293 = vrot.slane %v3196, 6
        %v3294 = vrot.slane %v3206, 6
        %v3295 = vrot.slane %v3216, 6
        %v3296 = vrot.slane %v3226, 6
        %v3297 = vrot.slane %v3236, 6
        %v3298 = vrot.slane %v3246, 6
        %v3299 = vrot.slane %v3256, 6
        %v3300 = vrot.slane %v3266, 6
        %vm3301 = vcmp.lt.s32.totalorder %v2149, 2
        %v3302 = vsel %vm3301, %v3269, %v3285
        %v3303 = vsel %vm3301, %v3270, %v3286
        %v3304 = vsel %vm3301, %v3271, %v3287
        %v3305 = vsel %vm3301, %v3272, %v3288
        %v3306 = vsel %vm3301, %v3273, %v3289
        %v3307 = vsel %vm3301, %v3274, %v3290
        %v3308 = vsel %vm3301, %v3275, %v3291
        %v3309 = vsel %vm3301, %v3276, %v3292
        %v3310 = vsel %vm3301, %v3277, %v3293
        %v3311 = vsel %vm3301, %v3278, %v3294
        %v3312 = vsel %vm3301, %v3279, %v3295
        %v3313 = vsel %vm3301, %v3280, %v3296
        %v3314 = vsel %vm3301, %v3281, %v3297
        %v3315 = vsel %vm3301, %v3282, %v3298
        %v3316 = vsel %vm3301, %v3283, %v3299
        %v3317 = vsel %vm3301, %v3284, %v3300
        %v3318 = vsel %vm3301, %v3285, %v3269
        %v3319 = vsel %vm3301, %v3286, %v3270
        %v3320 = vsel %vm3301, %v3287, %v3271
        %v3321 = vsel %vm3301, %v3288, %v3272
        %v3322 = vsel %vm3301, %v3289, %v3273
        %v3323 = vsel %vm3301, %v3290, %v3274
        %v3324 = vsel %vm3301, %v3291, %v3275
        %v3325 = vsel %vm3301, %v3292, %v3276
        %v3326 = vsel %vm3301, %v3293, %v3277
        %v3327 = vsel %vm3301, %v3294, %v3278
        %v3328 = vsel %vm3301, %v3295, %v3279
        %v3329 = vsel %vm3301, %v3296, %v3280
        %v3330 = vsel %vm3301, %v3297, %v3281
        %v3331 = vsel %vm3301, %v3298, %v3282
        %v3332 = vsel %vm3301, %v3299, %v3283
        %v3333 = vsel %vm3301, %v3300, %v3284
        %vm3334 = vcmp.ge.s32.totalorder %v2149, 2
        %vm3335 = vcmp.ge.s32.totalorder %v2150, 2
        %v3336 = vsel %vm3334, 1, 0
        %v3337 = vsel %vm3335, 1, 0
        %vm3338 = vcmp.eq.s32.totalorder %v3336, 1
        %vm3339 = vcmp.eq.s32.totalorder %v3337, 1
        %v3340 = vsel %vm3338, %v3318, 0.0
        %v3341 = vsel %vm3339, %v3302, 0.0
        %v3342 = vsel %vm3338, %v3319, 0.0
        %v3343 = vsel %vm3339, %v3303, 0.0
        %v3344 = vsel %vm3338, %v3320, 0.0
        %v3345 = vsel %vm3339, %v3304, 0.0
        %v3346 = vsel %vm3338, %v3321, 0.0
        %v3347 = vsel %vm3339, %v3305, 0.0
        %v3348 = vsel %vm3338, %v3322, 0.0
        %v3349 = vsel %vm3339, %v3306, 0.0
        %v3350 = vsel %vm3338, %v3323, 0.0
        %v3351 = vsel %vm3339, %v3307, 0.0
        %v3352 = vsel %vm3338, %v3324, 0.0
        %v3353 = vsel %vm3339, %v3308, 0.0
        %v3354 = vsel %vm3338, %v3325, 0.0
        %v3355 = vsel %vm3339, %v3309, 0.0
        %v3356 = vsel %vm3338, %v3326, 0.0
        %v3357 = vsel %vm3339, %v3310, 0.0
        %v3358 = vsel %vm3338, %v3327, 0.0
        %v3359 = vsel %vm3339, %v3311, 0.0
        %v3360 = vsel %vm3338, %v3328, 0.0
        %v3361 = vsel %vm3339, %v3312, 0.0
        %v3362 = vsel %vm3338, %v3329, 0.0
        %v3363 = vsel %vm3339, %v3313, 0.0
        %v3364 = vsel %vm3338, %v3330, 0.0
        %v3365 = vsel %vm3339, %v3314, 0.0
        %v3366 = vsel %vm3338, %v3331, 0.0
        %v3367 = vsel %vm3339, %v3315, 0.0
        %v3368 = vsel %vm3338, %v3332, 0.0
        %v3369 = vsel %vm3339, %v3316, 0.0
        %v3370 = vsel %vm3338, %v3333, 0.0
        %v3371 = vsel %vm3339, %v3317, 0.0
        %v3372 = vadd.f32 %v3012, %v3340
        %v3373 = vadd.f32 %v3013, %v3341
        %v3374 = vadd.f32 %v3014, %v3342
        %v3375 = vadd.f32 %v3015, %v3343
        %v3376 = vadd.f32 %v3016, %v3344
        %v3377 = vadd.f32 %v3017, %v3345
        %v3378 = vadd.f32 %v3018, %v3346
        %v3379 = vadd.f32 %v3019, %v3347
        %v3380 = vadd.f32 %v3020, %v3348
        %v3381 = vadd.f32 %v3021, %v3349
        %v3382 = vadd.f32 %v3022, %v3350
        %v3383 = vadd.f32 %v3023, %v3351
        %v3384 = vadd.f32 %v3024, %v3352
        %v3385 = vadd.f32 %v3025, %v3353
        %v3386 = vadd.f32 %v3026, %v3354
        %v3387 = vadd.f32 %v3027, %v3355
        %v3388 = vadd.f32 %v3028, %v3356
        %v3389 = vadd.f32 %v3029, %v3357
        %v3390 = vadd.f32 %v3030, %v3358
        %v3391 = vadd.f32 %v3031, %v3359
        %v3392 = vadd.f32 %v3032, %v3360
        %v3393 = vadd.f32 %v3033, %v3361
        %v3394 = vadd.f32 %v3034, %v3362
        %v3395 = vadd.f32 %v3035, %v3363
        %v3396 = vadd.f32 %v3036, %v3364
        %v3397 = vadd.f32 %v3037, %v3365
        %v3398 = vadd.f32 %v3038, %v3366
        %v3399 = vadd.f32 %v3039, %v3367
        %v3400 = vadd.f32 %v3040, %v3368
        %v3401 = vadd.f32 %v3041, %v3369
        %v3402 = vadd.f32 %v3042, %v3370
        %v3403 = vadd.f32 %v3043, %v3371
        %3404 = vmatprep.subr.mxu0 0.0
        %3405 = vmatpush1.msra.mxu0 %v1265
        %3406 = vmatprep.subr.mxu0 0.0
        %3407 = vmatpush1.msra.mxu0 %v1266
        %3408 = vmatprep.subr.mxu0 0.0
        %3409 = vmatpush1.msra.mxu0 %v1267
        %3410 = vmatprep.subr.mxu0 0.0
        %3411 = vmatpush1.msra.mxu0 %v1268
        %3412 = vmatprep.subr.mxu0 0.0
        %3413 = vmatpush1.msra.mxu0 %v1269
        %3414 = vmatprep.subr.mxu0 0.0
        %3415 = vmatpush1.msra.mxu0 %v1270
        %3416 = vmatprep.subr.mxu0 0.0
        %3417 = vmatpush1.msra.mxu0 %v1271
        %3418 = vmatprep.subr.mxu0 0.0
        %3419 = vmatpush1.msra.mxu0 %v1272
        %3420 = vmatprep.subr.mxu0 0.0
        %3421 = vmatpush1.msra.mxu0 %v1273
        %3422 = vmatprep.subr.mxu0 0.0
        %3423 = vmatpush1.msra.mxu0 %v1274
        %3424 = vmatprep.subr.mxu0 0.0
        %3425 = vmatpush1.msra.mxu0 %v1275
        %3426 = vmatprep.subr.mxu0 0.0
        %3427 = vmatpush1.msra.mxu0 %v1276
        %3428 = vmatprep.subr.mxu0 0.0
        %3429 = vmatpush1.msra.mxu0 %v1277
        %3430 = vmatprep.subr.mxu0 0.0
        %3431 = vmatpush1.msra.mxu0 %v1278
        %3432 = vmatprep.subr.mxu0 0.0
        %3433 = vmatpush1.msra.mxu0 %v1279
        %3434 = vmatprep.subr.mxu0 0.0
        %3435 = vmatpush1.msra.mxu0 %v1280
        %3436 = vmatprep.subr.mxu0 0.0
        %3437 = vmatpush1.msra.mxu0 %v1281
        %3438 = vmatprep.subr.mxu0 0.0
        %3439 = vmatpush1.msra.mxu0 %v1282
        %3440 = vmatprep.subr.mxu0 0.0
        %3441 = vmatpush1.msra.mxu0 %v1283
        %3442 = vmatprep.subr.mxu0 0.0
        %3443 = vmatpush1.msra.mxu0 %v1284
        %3444 = vmatprep.subr.mxu0 0.0
        %3445 = vmatpush1.msra.mxu0 %v1285
        %3446 = vmatprep.subr.mxu0 0.0
        %3447 = vmatpush1.msra.mxu0 %v1286
        %3448 = vmatprep.subr.mxu0 0.0
        %3449 = vmatpush1.msra.mxu0 %v1287
        %3450 = vmatprep.subr.mxu0 0.0
        %3451 = vmatpush1.msra.mxu0 %v1288
        %3452 = vmatprep.subr.mxu0 0.0
        %3453 = vmatpush1.msra.mxu0 %v1289
        %3454 = vmatprep.subr.mxu0 0.0
        %3455 = vmatpush1.msra.mxu0 %v1290
        %3456 = vmatprep.subr.mxu0 0.0
        %3457 = vmatpush1.msra.mxu0 %v1291
        %3458 = vmatprep.subr.mxu0 0.0
        %3459 = vmatpush1.msra.mxu0 %v1292
        %3460 = vmatprep.subr.mxu0 0.0
        %3461 = vmatpush1.msra.mxu0 0.0
        %3462 = vmatprep.subr.mxu0 0.0
        %3463 = vmatpush1.msra.mxu0 0.0
        %3464 = vmatprep.subr.mxu0 0.0
        %3465 = vmatpush1.msra.mxu0 0.0
        %3466 = vmatprep.subr.mxu0 0.0
        %3467 = vmatpush1.msra.mxu0 0.0
        %3468 = vmatprep.mubr.f32.mxu0 %v2592
        %3469 = vmatmul.mubr.f32.gmra.mrb[0].mxu0 %v2540
        %v3470 = vpop.f32.mrb[0].mxu0
        %v3471 = vadd.f32 0.0, %v3470
        %v3472 = vpop.f32.mrb[0].mxu0
        %3473 = vmatprep.mubr.f32.mxu0 %v2595
        %3474 = vmatmul.mubr.f32.gmra.mrb[0].mxu0 %v2541
        %v3475 = vpop.f32.mrb[0].mxu0
        %v3476 = vadd.f32 0.0, %v3475
        %v3477 = vpop.f32.mrb[0].mxu0
        %3478 = vmatprep.mubr.f32.mxu0 %v2598
        %3479 = vmatmul.mubr.f32.gmra.mrb[0].mxu0 %v2542
        %v3480 = vpop.f32.mrb[0].mxu0
        %v3481 = vadd.f32 0.0, %v3480
        %v3482 = vpop.f32.mrb[0].mxu0
        %3483 = vmatprep.mubr.f32.mxu0 %v2601
        %3484 = vmatmul.mubr.f32.gmra.mrb[0].mxu0 %v2543
        %v3485 = vpop.f32.mrb[0].mxu0
        %v3486 = vadd.f32 0.0, %v3485
        %v3487 = vpop.f32.mrb[0].mxu0
        %3488 = vmatprep.mubr.f32.mxu0 %v2604
        %3489 = vmatmul.mubr.f32.gmra.mrb[0].mxu0 %v2544
        %v3490 = vpop.f32.mrb[0].mxu0
        %v3491 = vadd.f32 0.0, %v3490
        %v3492 = vpop.f32.mrb[0].mxu0
        %3493 = vmatprep.mubr.f32.mxu0 %v2607
        %3494 = vmatmul.mubr.f32.gmra.mrb[0].mxu0 %v2545
        %v3495 = vpop.f32.mrb[0].mxu0
        %v3496 = vadd.f32 0.0, %v3495
        %v3497 = vpop.f32.mrb[0].mxu0
        %3498 = vmatprep.mubr.f32.mxu0 %v2610
        %3499 = vmatmul.mubr.f32.gmra.mrb[0].mxu0 %v2546
        %v3500 = vpop.f32.mrb[0].mxu0
        %v3501 = vadd.f32 0.0, %v3500
        %v3502 = vpop.f32.mrb[0].mxu0
        %3503 = vmatprep.mubr.f32.mxu0 %v2613
        %3504 = vmatmul.mubr.f32.gmra.mrb[0].mxu0 %v2547
        %v3505 = vpop.f32.mrb[0].mxu0
        %v3506 = vadd.f32 0.0, %v3505
        %v3507 = vpop.f32.mrb[0].mxu0
        %3508 = vmatprep.mubr.f32.mxu0 %v2616
        %3509 = vmatmul.mubr.f32.gmra.mrb[0].mxu0 %v2548
        %v3510 = vpop.f32.mrb[0].mxu0
        %v3511 = vadd.f32 0.0, %v3510
        %v3512 = vpop.f32.mrb[0].mxu0
        %3513 = vmatprep.mubr.f32.mxu0 %v2619
        %3514 = vmatmul.mubr.f32.gmra.mrb[0].mxu0 %v2549
        %v3515 = vpop.f32.mrb[0].mxu0
        %v3516 = vadd.f32 0.0, %v3515
        %v3517 = vpop.f32.mrb[0].mxu0
        %3518 = vmatprep.mubr.f32.mxu0 %v2622
        %3519 = vmatmul.mubr.f32.gmra.mrb[0].mxu0 %v2550
        %v3520 = vpop.f32.mrb[0].mxu0
        %v3521 = vadd.f32 0.0, %v3520
        %v3522 = vpop.f32.mrb[0].mxu0
        %3523 = vmatprep.mubr.f32.mxu0 %v2625
        %3524 = vmatmul.mubr.f32.gmra.mrb[0].mxu0 %v2551
        %v3525 = vpop.f32.mrb[0].mxu0
        %v3526 = vadd.f32 0.0, %v3525
        %v3527 = vpop.f32.mrb[0].mxu0
        %3528 = vmatprep.mubr.f32.mxu0 %v2628
        %3529 = vmatmul.mubr.f32.gmra.mrb[0].mxu0 %v2552
        %v3530 = vpop.f32.mrb[0].mxu0
        %v3531 = vadd.f32 0.0, %v3530
        %v3532 = vpop.f32.mrb[0].mxu0
        %3533 = vmatprep.mubr.f32.mxu0 %v2631
        %3534 = vmatmul.mubr.f32.gmra.mrb[0].mxu0 %v2553
        %v3535 = vpop.f32.mrb[0].mxu0
        %v3536 = vadd.f32 0.0, %v3535
        %v3537 = vpop.f32.mrb[0].mxu0
        %3538 = vmatprep.mubr.f32.mxu0 %v2634
        %3539 = vmatmul.mubr.f32.gmra.mrb[0].mxu0 %v2554
        %v3540 = vpop.f32.mrb[0].mxu0
        %v3541 = vadd.f32 0.0, %v3540
        %v3542 = vpop.f32.mrb[0].mxu0
        %3543 = vmatprep.mubr.f32.mxu0 %v2637
        %3544 = vmatmul.mubr.f32.gmra.mrb[0].mxu0 %v2555
        %v3545 = vpop.f32.mrb[0].mxu0
        %v3546 = vadd.f32 0.0, %v3545
        %v3547 = vpop.f32.mrb[0].mxu0
        %3548 = vmatprep.mubr.f32.mxu0 %v2640
        %3549 = vmatmul.mubr.f32.gmra.mrb[0].mxu0 %v2556
        %v3550 = vpop.f32.mrb[0].mxu0
        %v3551 = vadd.f32 0.0, %v3550
        %v3552 = vpop.f32.mrb[0].mxu0
        %3553 = vmatprep.mubr.f32.mxu0 %v2643
        %3554 = vmatmul.mubr.f32.gmra.mrb[0].mxu0 %v2557
        %v3555 = vpop.f32.mrb[0].mxu0
        %v3556 = vadd.f32 0.0, %v3555
        %v3557 = vpop.f32.mrb[0].mxu0
        %3558 = vmatprep.mubr.f32.mxu0 %v2646
        %3559 = vmatmul.mubr.f32.gmra.mrb[0].mxu0 %v2558
        %v3560 = vpop.f32.mrb[0].mxu0
        %v3561 = vadd.f32 0.0, %v3560
        %v3562 = vpop.f32.mrb[0].mxu0
        %3563 = vmatprep.mubr.f32.mxu0 %v2649
        %3564 = vmatmul.mubr.f32.gmra.mrb[0].mxu0 %v2559
        %v3565 = vpop.f32.mrb[0].mxu0
        %v3566 = vadd.f32 0.0, %v3565
        %v3567 = vpop.f32.mrb[0].mxu0
        %3568 = vmatprep.mubr.f32.mxu0 %v2652
        %3569 = vmatmul.mubr.f32.gmra.mrb[0].mxu0 %v2560
        %v3570 = vpop.f32.mrb[0].mxu0
        %v3571 = vadd.f32 0.0, %v3570
        %v3572 = vpop.f32.mrb[0].mxu0
        %3573 = vmatprep.mubr.f32.mxu0 %v2655
        %3574 = vmatmul.mubr.f32.gmra.mrb[0].mxu0 %v2561
        %v3575 = vpop.f32.mrb[0].mxu0
        %v3576 = vadd.f32 0.0, %v3575
        %v3577 = vpop.f32.mrb[0].mxu0
        %3578 = vmatprep.mubr.f32.mxu0 %v2658
        %3579 = vmatmul.mubr.f32.gmra.mrb[0].mxu0 %v2562
        %v3580 = vpop.f32.mrb[0].mxu0
        %v3581 = vadd.f32 0.0, %v3580
        %v3582 = vpop.f32.mrb[0].mxu0
        %3583 = vmatprep.mubr.f32.mxu0 %v2661
        %3584 = vmatmul.mubr.f32.gmra.mrb[0].mxu0 %v2563
        %v3585 = vpop.f32.mrb[0].mxu0
        %v3586 = vadd.f32 0.0, %v3585
        %v3587 = vpop.f32.mrb[0].mxu0
        %3588 = vmatprep.mubr.f32.mxu0 %v2664
        %3589 = vmatmul.mubr.f32.gmra.mrb[0].mxu0 %v2564
        %v3590 = vpop.f32.mrb[0].mxu0
        %v3591 = vadd.f32 0.0, %v3590
        %v3592 = vpop.f32.mrb[0].mxu0
        %3593 = vmatprep.mubr.f32.mxu0 %v2667
        %3594 = vmatmul.mubr.f32.gmra.mrb[0].mxu0 %v2565
        %v3595 = vpop.f32.mrb[0].mxu0
        %v3596 = vadd.f32 0.0, %v3595
        %v3597 = vpop.f32.mrb[0].mxu0
        %3598 = vmatprep.mubr.f32.mxu0 %v2670
        %3599 = vmatmul.mubr.f32.gmra.mrb[0].mxu0 %v2566
        %v3600 = vpop.f32.mrb[0].mxu0
        %v3601 = vadd.f32 0.0, %v3600
        %v3602 = vpop.f32.mrb[0].mxu0
        %3603 = vmatprep.mubr.f32.mxu0 %v2673
        %3604 = vmatmul.mubr.f32.gmra.mrb[0].mxu0 %v2567
        %v3605 = vpop.f32.mrb[0].mxu0
        %v3606 = vadd.f32 0.0, %v3605
        %v3607 = vpop.f32.mrb[0].mxu0
        %3608 = vmatprep.mubr.f32.mxu0 %v2676
        %3609 = vmatmul.mubr.f32.gmra.mrb[0].mxu0 %v2568
        %v3610 = vpop.f32.mrb[0].mxu0
        %v3611 = vadd.f32 0.0, %v3610
        %v3612 = vpop.f32.mrb[0].mxu0
        %3613 = vmatprep.mubr.f32.mxu0 %v2679
        %3614 = vmatmul.mubr.f32.gmra.mrb[0].mxu0 %v2569
        %v3615 = vpop.f32.mrb[0].mxu0
        %v3616 = vadd.f32 0.0, %v3615
        %v3617 = vpop.f32.mrb[0].mxu0
        %3618 = vmatprep.mubr.f32.mxu0 %v2682
        %3619 = vmatmul.mubr.f32.gmra.mrb[0].mxu0 %v2570
        %v3620 = vpop.f32.mrb[0].mxu0
        %v3621 = vadd.f32 0.0, %v3620
        %v3622 = vpop.f32.mrb[0].mxu0
        %3623 = vmatprep.mubr.f32.mxu0 %v2682
        %3624 = vmatmul.mubr.f32.gmra.mrb[0].mxu0 %v2571
        %v3625 = vpop.f32.mrb[0].mxu0
        %v3626 = vadd.f32 0.0, %v3625
        %v3627 = vpop.f32.mrb[0].mxu0
        %3628 = vdwg.mxu0
        %v3629 = vrot.slane %v3471, 7
        %v3630 = vrot.slane %v3481, 7
        %v3631 = vrot.slane %v3491, 7
        %v3632 = vrot.slane %v3501, 7
        %v3633 = vrot.slane %v3511, 7
        %v3634 = vrot.slane %v3521, 7
        %v3635 = vrot.slane %v3531, 7
        %v3636 = vrot.slane %v3541, 7
        %v3637 = vrot.slane %v3551, 7
        %v3638 = vrot.slane %v3561, 7
        %v3639 = vrot.slane %v3571, 7
        %v3640 = vrot.slane %v3581, 7
        %v3641 = vrot.slane %v3591, 7
        %v3642 = vrot.slane %v3601, 7
        %v3643 = vrot.slane %v3611, 7
        %v3644 = vrot.slane %v3621, 7
        %v3645 = vrot.slane %v3476, 7
        %v3646 = vrot.slane %v3486, 7
        %v3647 = vrot.slane %v3496, 7
        %v3648 = vrot.slane %v3506, 7
        %v3649 = vrot.slane %v3516, 7
        %v3650 = vrot.slane %v3526, 7
        %v3651 = vrot.slane %v3536, 7
        %v3652 = vrot.slane %v3546, 7
        %v3653 = vrot.slane %v3556, 7
        %v3654 = vrot.slane %v3566, 7
        %v3655 = vrot.slane %v3576, 7
        %v3656 = vrot.slane %v3586, 7
        %v3657 = vrot.slane %v3596, 7
        %v3658 = vrot.slane %v3606, 7
        %v3659 = vrot.slane %v3616, 7
        %v3660 = vrot.slane %v3626, 7
        %vm3661 = vcmp.lt.s32.totalorder %v2149, 1
        %v3662 = vsel %vm3661, %v3629, %v3645
        %v3663 = vsel %vm3661, %v3630, %v3646
        %v3664 = vsel %vm3661, %v3631, %v3647
        %v3665 = vsel %vm3661, %v3632, %v3648
        %v3666 = vsel %vm3661, %v3633, %v3649
        %v3667 = vsel %vm3661, %v3634, %v3650
        %v3668 = vsel %vm3661, %v3635, %v3651
        %v3669 = vsel %vm3661, %v3636, %v3652
        %v3670 = vsel %vm3661, %v3637, %v3653
        %v3671 = vsel %vm3661, %v3638, %v3654
        %v3672 = vsel %vm3661, %v3639, %v3655
        %v3673 = vsel %vm3661, %v3640, %v3656
        %v3674 = vsel %vm3661, %v3641, %v3657
        %v3675 = vsel %vm3661, %v3642, %v3658
        %v3676 = vsel %vm3661, %v3643, %v3659
        %v3677 = vsel %vm3661, %v3644, %v3660
        %v3678 = vsel %vm3661, %v3645, %v3629
        %v3679 = vsel %vm3661, %v3646, %v3630
        %v3680 = vsel %vm3661, %v3647, %v3631
        %v3681 = vsel %vm3661, %v3648, %v3632
        %v3682 = vsel %vm3661, %v3649, %v3633
        %v3683 = vsel %vm3661, %v3650, %v3634
        %v3684 = vsel %vm3661, %v3651, %v3635
        %v3685 = vsel %vm3661, %v3652, %v3636
        %v3686 = vsel %vm3661, %v3653, %v3637
        %v3687 = vsel %vm3661, %v3654, %v3638
        %v3688 = vsel %vm3661, %v3655, %v3639
        %v3689 = vsel %vm3661, %v3656, %v3640
        %v3690 = vsel %vm3661, %v3657, %v3641
        %v3691 = vsel %vm3661, %v3658, %v3642
        %v3692 = vsel %vm3661, %v3659, %v3643
        %v3693 = vsel %vm3661, %v3660, %v3644
        %vm3694 = vcmp.ge.s32.totalorder %v2149, 1
        %vm3695 = vcmp.ge.s32.totalorder %v2150, 1
        %v3696 = vsel %vm3694, 1, 0
        %v3697 = vsel %vm3695, 1, 0
        %vm3698 = vcmp.eq.s32.totalorder %v3696, 1
        %vm3699 = vcmp.eq.s32.totalorder %v3697, 1
        %v3700 = vsel %vm3698, %v3678, 0.0
        %v3701 = vsel %vm3699, %v3662, 0.0
        %v3702 = vsel %vm3698, %v3679, 0.0
        %v3703 = vsel %vm3699, %v3663, 0.0
        %v3704 = vsel %vm3698, %v3680, 0.0
        %v3705 = vsel %vm3699, %v3664, 0.0
        %v3706 = vsel %vm3698, %v3681, 0.0
        %v3707 = vsel %vm3699, %v3665, 0.0
        %v3708 = vsel %vm3698, %v3682, 0.0
        %v3709 = vsel %vm3699, %v3666, 0.0
        %v3710 = vsel %vm3698, %v3683, 0.0
        %v3711 = vsel %vm3699, %v3667, 0.0
        %v3712 = vsel %vm3698, %v3684, 0.0
        %v3713 = vsel %vm3699, %v3668, 0.0
        %v3714 = vsel %vm3698, %v3685, 0.0
        %v3715 = vsel %vm3699, %v3669, 0.0
        %v3716 = vsel %vm3698, %v3686, 0.0
        %v3717 = vsel %vm3699, %v3670, 0.0
        %v3718 = vsel %vm3698, %v3687, 0.0
        %v3719 = vsel %vm3699, %v3671, 0.0
        %v3720 = vsel %vm3698, %v3688, 0.0
        %v3721 = vsel %vm3699, %v3672, 0.0
        %v3722 = vsel %vm3698, %v3689, 0.0
        %v3723 = vsel %vm3699, %v3673, 0.0
        %v3724 = vsel %vm3698, %v3690, 0.0
        %v3725 = vsel %vm3699, %v3674, 0.0
        %v3726 = vsel %vm3698, %v3691, 0.0
        %v3727 = vsel %vm3699, %v3675, 0.0
        %v3728 = vsel %vm3698, %v3692, 0.0
        %v3729 = vsel %vm3699, %v3676, 0.0
        %v3730 = vsel %vm3698, %v3693, 0.0
        %v3731 = vsel %vm3699, %v3677, 0.0
        %v3732 = vadd.f32 %v3372, %v3700
        %v3733 = vadd.f32 %v3373, %v3701
        %v3734 = vadd.f32 %v3374, %v3702
        %v3735 = vadd.f32 %v3375, %v3703
        %v3736 = vadd.f32 %v3376, %v3704
        %v3737 = vadd.f32 %v3377, %v3705
        %v3738 = vadd.f32 %v3378, %v3706
        %v3739 = vadd.f32 %v3379, %v3707
        %v3740 = vadd.f32 %v3380, %v3708
        %v3741 = vadd.f32 %v3381, %v3709
        %v3742 = vadd.f32 %v3382, %v3710
        %v3743 = vadd.f32 %v3383, %v3711
        %v3744 = vadd.f32 %v3384, %v3712
        %v3745 = vadd.f32 %v3385, %v3713
        %v3746 = vadd.f32 %v3386, %v3714
        %v3747 = vadd.f32 %v3387, %v3715
        %v3748 = vadd.f32 %v3388, %v3716
        %v3749 = vadd.f32 %v3389, %v3717
        %v3750 = vadd.f32 %v3390, %v3718
        %v3751 = vadd.f32 %v3391, %v3719
        %v3752 = vadd.f32 %v3392, %v3720
        %v3753 = vadd.f32 %v3393, %v3721
        %v3754 = vadd.f32 %v3394, %v3722
        %v3755 = vadd.f32 %v3395, %v3723
        %v3756 = vadd.f32 %v3396, %v3724
        %v3757 = vadd.f32 %v3397, %v3725
        %v3758 = vadd.f32 %v3398, %v3726
        %v3759 = vadd.f32 %v3399, %v3727
        %v3760 = vadd.f32 %v3400, %v3728
        %v3761 = vadd.f32 %v3401, %v3729
        %v3762 = vadd.f32 %v3402, %v3730
        %v3763 = vadd.f32 %v3403, %v3731
        %v3765 = vlaneseq
        %v3766 = vshrl.u32 %v3765, 7
        %v3767 = vsub.s32 0, %v3766
        %v3768 = vrot.slane %v1306, %v3767
        %v3771 = vsel %vm2539, %v2509, 0
        %v3774 = vsel %vm2539, %v2510, 0
        %v3777 = vsel %vm2539, %v2511, 0
        %v3780 = vsel %vm2539, %v2512, 0
        %v3783 = vsel %vm2539, %v2513, 0
        %v3786 = vsel %vm2539, %v2514, 0
        %3788 = vmatprep.subr.mxu0 0.0
        %3789 = vmatpush1.msra.mxu0 %v1294
        %3790 = vmatprep.subr.mxu0 0.0
        %3791 = vmatpush1.msra.mxu0 %v1295
        %3792 = vmatprep.subr.mxu0 0.0
        %3793 = vmatpush1.msra.mxu0 %v1296
        %3794 = vmatprep.subr.mxu0 0.0
        %3795 = vmatpush1.msra.mxu0 %v1297
        %3796 = vmatprep.subr.mxu0 0.0
        %3797 = vmatpush1.msra.mxu0 %v1298
        %3798 = vmatprep.subr.mxu0 0.0
        %3799 = vmatpush1.msra.mxu0 %v1299
        %3800 = vmatprep.subr.mxu0 0.0
        %3801 = vmatpush1.msra.mxu0 %v1300
        %3802 = vmatprep.subr.mxu0 0.0
        %3803 = vmatpush1.msra.mxu0 %v1301
        %3804 = vmatprep.subr.mxu0 0.0
        %3805 = vmatpush1.msra.mxu0 %v1302
        %3806 = vmatprep.subr.mxu0 0.0
        %3807 = vmatpush1.msra.mxu0 %v1303
        %3808 = vmatprep.subr.mxu0 0.0
        %3809 = vmatpush1.msra.mxu0 %v1304
        %3810 = vmatprep.subr.mxu0 0.0
        %3811 = vmatpush1.msra.mxu0 %v1305
        %3812 = vmatprep.subr.mxu0 0.0
        %3813 = vmatpush1.msra.mxu0 0.0
        %3814 = vmatprep.subr.mxu0 0.0
        %3815 = vmatpush1.msra.mxu0 0.0
        %3816 = vmatprep.subr.mxu0 0.0
        %3817 = vmatpush1.msra.mxu0 0.0
        %3818 = vmatprep.subr.mxu0 0.0
        %3819 = vmatpush1.msra.mxu0 0.0
        %3820 = vmatprep.subr.mxu0 0.0
        %3821 = vmatpush1.msra.mxu0 0.0
        %3822 = vmatprep.subr.mxu0 0.0
        %3823 = vmatpush1.msra.mxu0 0.0
        %3824 = vmatprep.subr.mxu0 0.0
        %3825 = vmatpush1.msra.mxu0 0.0
        %3826 = vmatprep.subr.mxu0 0.0
        %3827 = vmatpush1.msra.mxu0 0.0
        %3828 = vmatprep.subr.mxu0 0.0
        %3829 = vmatpush1.msra.mxu0 0.0
        %3830 = vmatprep.subr.mxu0 0.0
        %3831 = vmatpush1.msra.mxu0 0.0
        %3832 = vmatprep.subr.mxu0 0.0
        %3833 = vmatpush1.msra.mxu0 0.0
        %3834 = vmatprep.subr.mxu0 0.0
        %3835 = vmatpush1.msra.mxu0 0.0
        %3836 = vmatprep.subr.mxu0 0.0
        %3837 = vmatpush1.msra.mxu0 0.0
        %3838 = vmatprep.subr.mxu0 0.0
        %3839 = vmatpush1.msra.mxu0 0.0
        %3840 = vmatprep.subr.mxu0 0.0
        %3841 = vmatpush1.msra.mxu0 0.0
        %3842 = vmatprep.subr.mxu0 0.0
        %3843 = vmatpush1.msra.mxu0 0.0
        %3844 = vmatprep.subr.mxu0 0.0
        %3845 = vmatpush1.msra.mxu0 0.0
        %3846 = vmatprep.subr.mxu0 0.0
        %3847 = vmatpush1.msra.mxu0 0.0
        %3848 = vmatprep.subr.mxu0 0.0
        %3849 = vmatpush1.msra.mxu0 0.0
        %3850 = vmatprep.subr.mxu0 0.0
        %3851 = vmatpush1.msra.mxu0 0.0
        %3852 = vmatprep.mubr.f32.mxu0 0.0
        %3853 = vmatmul.mubr.f32.gmra.mrb[0].mxu0 %v2682
        %v3854 = vpop.f32.mrb[0].mxu0
        %v3855 = vadd.f32 %v3768, %v3854
        %v3856 = vpop.f32.mrb[0].mxu0
        %3857 = vmatprep.mubr.f32.mxu0 0.0
        %3858 = vmatmul.mubr.f32.gmra.mrb[0].mxu0 %v2682
        %v3859 = vpop.f32.mrb[0].mxu0
        %v3860 = vadd.f32 %v3768, %v3859
        %v3861 = vpop.f32.mrb[0].mxu0
        %3862 = vmatprep.mubr.f32.mxu0 0.0
        %3863 = vmatmul.mubr.f32.gmra.mrb[0].mxu0 %v3771
        %v3864 = vpop.f32.mrb[0].mxu0
        %v3865 = vadd.f32 %v3768, %v3864
        %v3866 = vpop.f32.mrb[0].mxu0
        %3867 = vmatprep.mubr.f32.mxu0 0.0
        %3868 = vmatmul.mubr.f32.gmra.mrb[0].mxu0 %v3774
        %v3869 = vpop.f32.mrb[0].mxu0
        %v3870 = vadd.f32 %v3768, %v3869
        %v3871 = vpop.f32.mrb[0].mxu0
        %3872 = vmatprep.mubr.f32.mxu0 0.0
        %3873 = vmatmul.mubr.f32.gmra.mrb[0].mxu0 %v3777
        %v3874 = vpop.f32.mrb[0].mxu0
        %v3875 = vadd.f32 %v3768, %v3874
        %v3876 = vpop.f32.mrb[0].mxu0
        %3877 = vmatprep.mubr.f32.mxu0 0.0
        %3878 = vmatmul.mubr.f32.gmra.mrb[0].mxu0 %v3780
        %v3879 = vpop.f32.mrb[0].mxu0
        %v3880 = vadd.f32 %v3768, %v3879
        %v3881 = vpop.f32.mrb[0].mxu0
        %3882 = vmatprep.mubr.f32.mxu0 0.0
        %3883 = vmatmul.mubr.f32.gmra.mrb[0].mxu0 %v3783
        %v3884 = vpop.f32.mrb[0].mxu0
        %v3885 = vadd.f32 %v3768, %v3884
        %v3886 = vpop.f32.mrb[0].mxu0
        %3887 = vmatprep.mubr.f32.mxu0 0.0
        %3888 = vmatmul.mubr.f32.gmra.mrb[0].mxu0 %v3786
        %v3889 = vpop.f32.mrb[0].mxu0
        %v3890 = vadd.f32 %v3768, %v3889
        %v3891 = vpop.f32.mrb[0].mxu0
        %3892 = vmatprep.mubr.f32.mxu0 0.0
        %3893 = vmatmul.mubr.f32.gmra.mrb[0].mxu0 %v2592
        %v3894 = vpop.f32.mrb[0].mxu0
        %v3895 = vadd.f32 %v3768, %v3894
        %v3896 = vpop.f32.mrb[0].mxu0
        %3897 = vmatprep.mubr.f32.mxu0 0.0
        %3898 = vmatmul.mubr.f32.gmra.mrb[0].mxu0 %v2595
        %v3899 = vpop.f32.mrb[0].mxu0
        %v3900 = vadd.f32 %v3768, %v3899
        %v3901 = vpop.f32.mrb[0].mxu0
        %3902 = vmatprep.mubr.f32.mxu0 0.0
        %3903 = vmatmul.mubr.f32.gmra.mrb[0].mxu0 %v2598
        %v3904 = vpop.f32.mrb[0].mxu0
        %v3905 = vadd.f32 %v3768, %v3904
        %v3906 = vpop.f32.mrb[0].mxu0
        %3907 = vmatprep.mubr.f32.mxu0 0.0
        %3908 = vmatmul.mubr.f32.gmra.mrb[0].mxu0 %v2601
        %v3909 = vpop.f32.mrb[0].mxu0
        %v3910 = vadd.f32 %v3768, %v3909
        %v3911 = vpop.f32.mrb[0].mxu0
        %3912 = vmatprep.mubr.f32.mxu0 0.0
        %3913 = vmatmul.mubr.f32.gmra.mrb[0].mxu0 %v2604
        %v3914 = vpop.f32.mrb[0].mxu0
        %v3915 = vadd.f32 %v3768, %v3914
        %v3916 = vpop.f32.mrb[0].mxu0
        %3917 = vmatprep.mubr.f32.mxu0 0.0
        %3918 = vmatmul.mubr.f32.gmra.mrb[0].mxu0 %v2607
        %v3919 = vpop.f32.mrb[0].mxu0
        %v3920 = vadd.f32 %v3768, %v3919
        %v3921 = vpop.f32.mrb[0].mxu0
        %3922 = vmatprep.mubr.f32.mxu0 0.0
        %3923 = vmatmul.mubr.f32.gmra.mrb[0].mxu0 %v2610
        %v3924 = vpop.f32.mrb[0].mxu0
        %v3925 = vadd.f32 %v3768, %v3924
        %v3926 = vpop.f32.mrb[0].mxu0
        %3927 = vmatprep.mubr.f32.mxu0 0.0
        %3928 = vmatmul.mubr.f32.gmra.mrb[0].mxu0 %v2613
        %v3929 = vpop.f32.mrb[0].mxu0
        %v3930 = vadd.f32 %v3768, %v3929
        %v3931 = vpop.f32.mrb[0].mxu0
        %3932 = vmatprep.mubr.f32.mxu0 0.0
        %3933 = vmatmul.mubr.f32.gmra.mrb[0].mxu0 %v2616
        %v3934 = vpop.f32.mrb[0].mxu0
        %v3935 = vadd.f32 %v3768, %v3934
        %v3936 = vpop.f32.mrb[0].mxu0
        %3937 = vmatprep.mubr.f32.mxu0 0.0
        %3938 = vmatmul.mubr.f32.gmra.mrb[0].mxu0 %v2619
        %v3939 = vpop.f32.mrb[0].mxu0
        %v3940 = vadd.f32 %v3768, %v3939
        %v3941 = vpop.f32.mrb[0].mxu0
        %3942 = vmatprep.mubr.f32.mxu0 0.0
        %3943 = vmatmul.mubr.f32.gmra.mrb[0].mxu0 %v2622
        %v3944 = vpop.f32.mrb[0].mxu0
        %v3945 = vadd.f32 %v3768, %v3944
        %v3946 = vpop.f32.mrb[0].mxu0
        %3947 = vmatprep.mubr.f32.mxu0 0.0
        %3948 = vmatmul.mubr.f32.gmra.mrb[0].mxu0 %v2625
        %v3949 = vpop.f32.mrb[0].mxu0
        %v3950 = vadd.f32 %v3768, %v3949
        %v3951 = vpop.f32.mrb[0].mxu0
        %3952 = vmatprep.mubr.f32.mxu0 0.0
        %3953 = vmatmul.mubr.f32.gmra.mrb[0].mxu0 %v2628
        %v3954 = vpop.f32.mrb[0].mxu0
        %v3955 = vadd.f32 %v3768, %v3954
        %v3956 = vpop.f32.mrb[0].mxu0
        %3957 = vmatprep.mubr.f32.mxu0 0.0
        %3958 = vmatmul.mubr.f32.gmra.mrb[0].mxu0 %v2631
        %v3959 = vpop.f32.mrb[0].mxu0
        %v3960 = vadd.f32 %v3768, %v3959
        %v3961 = vpop.f32.mrb[0].mxu0
        %3962 = vmatprep.mubr.f32.mxu0 0.0
        %3963 = vmatmul.mubr.f32.gmra.mrb[0].mxu0 %v2634
        %v3964 = vpop.f32.mrb[0].mxu0
        %v3965 = vadd.f32 %v3768, %v3964
        %v3966 = vpop.f32.mrb[0].mxu0
        %3967 = vmatprep.mubr.f32.mxu0 0.0
        %3968 = vmatmul.mubr.f32.gmra.mrb[0].mxu0 %v2637
        %v3969 = vpop.f32.mrb[0].mxu0
        %v3970 = vadd.f32 %v3768, %v3969
        %v3971 = vpop.f32.mrb[0].mxu0
        %3972 = vmatprep.mubr.f32.mxu0 0.0
        %3973 = vmatmul.mubr.f32.gmra.mrb[0].mxu0 %v2640
        %v3974 = vpop.f32.mrb[0].mxu0
        %v3975 = vadd.f32 %v3768, %v3974
        %v3976 = vpop.f32.mrb[0].mxu0
        %3977 = vmatprep.mubr.f32.mxu0 0.0
        %3978 = vmatmul.mubr.f32.gmra.mrb[0].mxu0 %v2643
        %v3979 = vpop.f32.mrb[0].mxu0
        %v3980 = vadd.f32 %v3768, %v3979
        %v3981 = vpop.f32.mrb[0].mxu0
        %3982 = vmatprep.mubr.f32.mxu0 0.0
        %3983 = vmatmul.mubr.f32.gmra.mrb[0].mxu0 %v2646
        %v3984 = vpop.f32.mrb[0].mxu0
        %v3985 = vadd.f32 %v3768, %v3984
        %v3986 = vpop.f32.mrb[0].mxu0
        %3987 = vmatprep.mubr.f32.mxu0 0.0
        %3988 = vmatmul.mubr.f32.gmra.mrb[0].mxu0 %v2649
        %v3989 = vpop.f32.mrb[0].mxu0
        %v3990 = vadd.f32 %v3768, %v3989
        %v3991 = vpop.f32.mrb[0].mxu0
        %3992 = vmatprep.mubr.f32.mxu0 0.0
        %3993 = vmatmul.mubr.f32.gmra.mrb[0].mxu0 %v2652
        %v3994 = vpop.f32.mrb[0].mxu0
        %v3995 = vadd.f32 %v3768, %v3994
        %v3996 = vpop.f32.mrb[0].mxu0
        %3997 = vmatprep.mubr.f32.mxu0 0.0
        %3998 = vmatmul.mubr.f32.gmra.mrb[0].mxu0 %v2655
        %v3999 = vpop.f32.mrb[0].mxu0
        %v4000 = vadd.f32 %v3768, %v3999
        %v4001 = vpop.f32.mrb[0].mxu0
        %4002 = vmatprep.mubr.f32.mxu0 0.0
        %4003 = vmatmul.mubr.f32.gmra.mrb[0].mxu0 %v2658
        %v4004 = vpop.f32.mrb[0].mxu0
        %v4005 = vadd.f32 %v3768, %v4004
        %v4006 = vpop.f32.mrb[0].mxu0
        %4007 = vmatprep.mubr.f32.mxu0 0.0
        %4008 = vmatmul.mubr.f32.gmra.mrb[0].mxu0 %v2661
        %v4009 = vpop.f32.mrb[0].mxu0
        %v4010 = vadd.f32 %v3768, %v4009
        %v4011 = vpop.f32.mrb[0].mxu0
        %4012 = vdwg.mxu0
        %v4014 = vlaneseq
        %v4015 = vshrl.u32 %v4014, 7
        %v4016 = vsub.s32 0, %v4015
        %v4017 = vrot.slane %v1315, %v4016
        %v4020 = vsel %vm2507, %v3732, 0
        %v4023 = vsel %vm2507, %v3733, 0
        %v4026 = vsel %vm2507, %v3734, 0
        %v4029 = vsel %vm2507, %v3735, 0
        %v4032 = vsel %vm2507, %v3736, 0
        %v4035 = vsel %vm2507, %v3737, 0
        %v4038 = vsel %vm2507, %v3738, 0
        %v4041 = vsel %vm2507, %v3739, 0
        %v4044 = vsel %vm2507, %v3740, 0
        %v4047 = vsel %vm2507, %v3741, 0
        %v4050 = vsel %vm2507, %v3742, 0
        %v4053 = vsel %vm2507, %v3743, 0
        %v4056 = vsel %vm2507, %v3744, 0
        %v4059 = vsel %vm2507, %v3745, 0
        %v4062 = vsel %vm2507, %v3746, 0
        %v4065 = vsel %vm2507, %v3747, 0
        %v4068 = vsel %vm2507, %v3748, 0
        %v4071 = vsel %vm2507, %v3749, 0
        %v4074 = vsel %vm2507, %v3750, 0
        %v4077 = vsel %vm2507, %v3751, 0
        %v4080 = vsel %vm2507, %v3752, 0
        %v4083 = vsel %vm2507, %v3753, 0
        %v4086 = vsel %vm2507, %v3754, 0
        %v4089 = vsel %vm2507, %v3755, 0
        %v4092 = vsel %vm2507, %v3756, 0
        %v4095 = vsel %vm2507, %v3757, 0
        %v4098 = vsel %vm2507, %v3758, 0
        %v4101 = vsel %vm2507, %v3759, 0
        %v4104 = vsel %vm2507, %v3760, 0
        %v4107 = vsel %vm2507, %v3761, 0
        %v4110 = vsel %vm2507, %v3762, 0
        %v4113 = vsel %vm2507, %v3763, 0
        %4115 = vmatprep.subr.mxu0 0.0
        %4116 = vmatpush1.msra.mxu0 %v1307
        %4117 = vmatprep.subr.mxu0 0.0
        %4118 = vmatpush1.msra.mxu0 %v1308
        %4119 = vmatprep.subr.mxu0 0.0
        %4120 = vmatpush1.msra.mxu0 %v1309
        %4121 = vmatprep.subr.mxu0 0.0
        %4122 = vmatpush1.msra.mxu0 %v1310
        %4123 = vmatprep.subr.mxu0 0.0
        %4124 = vmatpush1.msra.mxu0 %v1311
        %4125 = vmatprep.subr.mxu0 0.0
        %4126 = vmatpush1.msra.mxu0 %v1312
        %4127 = vmatprep.subr.mxu0 0.0
        %4128 = vmatpush1.msra.mxu0 %v1313
        %4129 = vmatprep.subr.mxu0 0.0
        %4130 = vmatpush1.msra.mxu0 %v1314
        %4131 = vmatprep.subr.mxu0 0.0
        %4132 = vmatpush1.msra.mxu0 0.0
        %4133 = vmatprep.subr.mxu0 0.0
        %4134 = vmatpush1.msra.mxu0 0.0
        %4135 = vmatprep.subr.mxu0 0.0
        %4136 = vmatpush1.msra.mxu0 0.0
        %4137 = vmatprep.subr.mxu0 0.0
        %4138 = vmatpush1.msra.mxu0 0.0
        %4139 = vmatprep.subr.mxu0 0.0
        %4140 = vmatpush1.msra.mxu0 0.0
        %4141 = vmatprep.subr.mxu0 0.0
        %4142 = vmatpush1.msra.mxu0 0.0
        %4143 = vmatprep.subr.mxu0 0.0
        %4144 = vmatpush1.msra.mxu0 0.0
        %4145 = vmatprep.subr.mxu0 0.0
        %4146 = vmatpush1.msra.mxu0 0.0
        %4147 = vmatprep.subr.mxu0 0.0
        %4148 = vmatpush1.msra.mxu0 0.0
        %4149 = vmatprep.subr.mxu0 0.0
        %4150 = vmatpush1.msra.mxu0 0.0
        %4151 = vmatprep.subr.mxu0 0.0
        %4152 = vmatpush1.msra.mxu0 0.0
        %4153 = vmatprep.subr.mxu0 0.0
        %4154 = vmatpush1.msra.mxu0 0.0
        %4155 = vmatprep.subr.mxu0 0.0
        %4156 = vmatpush1.msra.mxu0 0.0
        %4157 = vmatprep.subr.mxu0 0.0
        %4158 = vmatpush1.msra.mxu0 0.0
        %4159 = vmatprep.subr.mxu0 0.0
        %4160 = vmatpush1.msra.mxu0 0.0
        %4161 = vmatprep.subr.mxu0 0.0
        %4162 = vmatpush1.msra.mxu0 0.0
        %4163 = vmatprep.subr.mxu0 0.0
        %4164 = vmatpush1.msra.mxu0 0.0
        %4165 = vmatprep.subr.mxu0 0.0
        %4166 = vmatpush1.msra.mxu0 0.0
        %4167 = vmatprep.subr.mxu0 0.0
        %4168 = vmatpush1.msra.mxu0 0.0
        %4169 = vmatprep.subr.mxu0 0.0
        %4170 = vmatpush1.msra.mxu0 0.0
        %4171 = vmatprep.subr.mxu0 0.0
        %4172 = vmatpush1.msra.mxu0 0.0
        %4173 = vmatprep.subr.mxu0 0.0
        %4174 = vmatpush1.msra.mxu0 0.0
        %4175 = vmatprep.subr.mxu0 0.0
        %4176 = vmatpush1.msra.mxu0 0.0
        %4177 = vmatprep.subr.mxu0 0.0
        %4178 = vmatpush1.msra.mxu0 0.0
        %4179 = vmatprep.mubr.f32.mxu0 0.0
        %4180 = vmatmul.mubr.f32.gmra.mrb[0].mxu0 %v4020
        %v4181 = vpop.f32.mrb[0].mxu0
        %v4182 = vadd.f32 %v4017, %v4181
        %v4183 = vpop.f32.mrb[0].mxu0
        %4184 = vmatprep.mubr.f32.mxu0 0.0
        %4185 = vmatmul.mubr.f32.gmra.mrb[0].mxu0 %v4023
        %v4186 = vpop.f32.mrb[0].mxu0
        %v4187 = vadd.f32 %v4017, %v4186
        %v4188 = vpop.f32.mrb[0].mxu0
        %4189 = vmatprep.mubr.f32.mxu0 0.0
        %4190 = vmatmul.mubr.f32.gmra.mrb[0].mxu0 %v4026
        %v4191 = vpop.f32.mrb[0].mxu0
        %v4192 = vadd.f32 %v4017, %v4191
        %v4193 = vpop.f32.mrb[0].mxu0
        %4194 = vmatprep.mubr.f32.mxu0 0.0
        %4195 = vmatmul.mubr.f32.gmra.mrb[0].mxu0 %v4029
        %v4196 = vpop.f32.mrb[0].mxu0
        %v4197 = vadd.f32 %v4017, %v4196
        %v4198 = vpop.f32.mrb[0].mxu0
        %4199 = vmatprep.mubr.f32.mxu0 0.0
        %4200 = vmatmul.mubr.f32.gmra.mrb[0].mxu0 %v4032
        %v4201 = vpop.f32.mrb[0].mxu0
        %v4202 = vadd.f32 %v4017, %v4201
        %v4203 = vpop.f32.mrb[0].mxu0
        %4204 = vmatprep.mubr.f32.mxu0 0.0
        %4205 = vmatmul.mubr.f32.gmra.mrb[0].mxu0 %v4035
        %v4206 = vpop.f32.mrb[0].mxu0
        %v4207 = vadd.f32 %v4017, %v4206
        %v4208 = vpop.f32.mrb[0].mxu0
        %4209 = vmatprep.mubr.f32.mxu0 0.0
        %4210 = vmatmul.mubr.f32.gmra.mrb[0].mxu0 %v4038
        %v4211 = vpop.f32.mrb[0].mxu0
        %v4212 = vadd.f32 %v4017, %v4211
        %v4213 = vpop.f32.mrb[0].mxu0
        %4214 = vmatprep.mubr.f32.mxu0 0.0
        %4215 = vmatmul.mubr.f32.gmra.mrb[0].mxu0 %v4041
        %v4216 = vpop.f32.mrb[0].mxu0
        %v4217 = vadd.f32 %v4017, %v4216
        %v4218 = vpop.f32.mrb[0].mxu0
        %4219 = vmatprep.mubr.f32.mxu0 0.0
        %4220 = vmatmul.mubr.f32.gmra.mrb[0].mxu0 %v4044
        %v4221 = vpop.f32.mrb[0].mxu0
        %v4222 = vadd.f32 %v4017, %v4221
        %v4223 = vpop.f32.mrb[0].mxu0
        %4224 = vmatprep.mubr.f32.mxu0 0.0
        %4225 = vmatmul.mubr.f32.gmra.mrb[0].mxu0 %v4047
        %v4226 = vpop.f32.mrb[0].mxu0
        %v4227 = vadd.f32 %v4017, %v4226
        %v4228 = vpop.f32.mrb[0].mxu0
        %4229 = vmatprep.mubr.f32.mxu0 0.0
        %4230 = vmatmul.mubr.f32.gmra.mrb[0].mxu0 %v4050
        %v4231 = vpop.f32.mrb[0].mxu0
        %v4232 = vadd.f32 %v4017, %v4231
        %v4233 = vpop.f32.mrb[0].mxu0
        %4234 = vmatprep.mubr.f32.mxu0 0.0
        %4235 = vmatmul.mubr.f32.gmra.mrb[0].mxu0 %v4053
        %v4236 = vpop.f32.mrb[0].mxu0
        %v4237 = vadd.f32 %v4017, %v4236
        %v4238 = vpop.f32.mrb[0].mxu0
        %4239 = vmatprep.mubr.f32.mxu0 0.0
        %4240 = vmatmul.mubr.f32.gmra.mrb[0].mxu0 %v4056
        %v4241 = vpop.f32.mrb[0].mxu0
        %v4242 = vadd.f32 %v4017, %v4241
        %v4243 = vpop.f32.mrb[0].mxu0
        %4244 = vmatprep.mubr.f32.mxu0 0.0
        %4245 = vmatmul.mubr.f32.gmra.mrb[0].mxu0 %v4059
        %v4246 = vpop.f32.mrb[0].mxu0
        %v4247 = vadd.f32 %v4017, %v4246
        %v4248 = vpop.f32.mrb[0].mxu0
        %4249 = vmatprep.mubr.f32.mxu0 0.0
        %4250 = vmatmul.mubr.f32.gmra.mrb[0].mxu0 %v4062
        %v4251 = vpop.f32.mrb[0].mxu0
        %v4252 = vadd.f32 %v4017, %v4251
        %v4253 = vpop.f32.mrb[0].mxu0
        %4254 = vmatprep.mubr.f32.mxu0 0.0
        %4255 = vmatmul.mubr.f32.gmra.mrb[0].mxu0 %v4065
        %v4256 = vpop.f32.mrb[0].mxu0
        %v4257 = vadd.f32 %v4017, %v4256
        %v4258 = vpop.f32.mrb[0].mxu0
        %4259 = vmatprep.mubr.f32.mxu0 0.0
        %4260 = vmatmul.mubr.f32.gmra.mrb[0].mxu0 %v4068
        %v4261 = vpop.f32.mrb[0].mxu0
        %v4262 = vadd.f32 %v4017, %v4261
        %v4263 = vpop.f32.mrb[0].mxu0
        %4264 = vmatprep.mubr.f32.mxu0 0.0
        %4265 = vmatmul.mubr.f32.gmra.mrb[0].mxu0 %v4071
        %v4266 = vpop.f32.mrb[0].mxu0
        %v4267 = vadd.f32 %v4017, %v4266
        %v4268 = vpop.f32.mrb[0].mxu0
        %4269 = vmatprep.mubr.f32.mxu0 0.0
        %4270 = vmatmul.mubr.f32.gmra.mrb[0].mxu0 %v4074
        %v4271 = vpop.f32.mrb[0].mxu0
        %v4272 = vadd.f32 %v4017, %v4271
        %v4273 = vpop.f32.mrb[0].mxu0
        %4274 = vmatprep.mubr.f32.mxu0 0.0
        %4275 = vmatmul.mubr.f32.gmra.mrb[0].mxu0 %v4077
        %v4276 = vpop.f32.mrb[0].mxu0
        %v4277 = vadd.f32 %v4017, %v4276
        %v4278 = vpop.f32.mrb[0].mxu0
        %4279 = vmatprep.mubr.f32.mxu0 0.0
        %4280 = vmatmul.mubr.f32.gmra.mrb[0].mxu0 %v4080
        %v4281 = vpop.f32.mrb[0].mxu0
        %v4282 = vadd.f32 %v4017, %v4281
        %v4283 = vpop.f32.mrb[0].mxu0
        %4284 = vmatprep.mubr.f32.mxu0 0.0
        %4285 = vmatmul.mubr.f32.gmra.mrb[0].mxu0 %v4083
        %v4286 = vpop.f32.mrb[0].mxu0
        %v4287 = vadd.f32 %v4017, %v4286
        %v4288 = vpop.f32.mrb[0].mxu0
        %4289 = vmatprep.mubr.f32.mxu0 0.0
        %4290 = vmatmul.mubr.f32.gmra.mrb[0].mxu0 %v4086
        %v4291 = vpop.f32.mrb[0].mxu0
        %v4292 = vadd.f32 %v4017, %v4291
        %v4293 = vpop.f32.mrb[0].mxu0
        %4294 = vmatprep.mubr.f32.mxu0 0.0
        %4295 = vmatmul.mubr.f32.gmra.mrb[0].mxu0 %v4089
        %v4296 = vpop.f32.mrb[0].mxu0
        %v4297 = vadd.f32 %v4017, %v4296
        %v4298 = vpop.f32.mrb[0].mxu0
        %4299 = vmatprep.mubr.f32.mxu0 0.0
        %4300 = vmatmul.mubr.f32.gmra.mrb[0].mxu0 %v4092
        %v4301 = vpop.f32.mrb[0].mxu0
        %v4302 = vadd.f32 %v4017, %v4301
        %v4303 = vpop.f32.mrb[0].mxu0
        %4304 = vmatprep.mubr.f32.mxu0 0.0
        %4305 = vmatmul.mubr.f32.gmra.mrb[0].mxu0 %v4095
        %v4306 = vpop.f32.mrb[0].mxu0
        %v4307 = vadd.f32 %v4017, %v4306
        %v4308 = vpop.f32.mrb[0].mxu0
        %4309 = vmatprep.mubr.f32.mxu0 0.0
        %4310 = vmatmul.mubr.f32.gmra.mrb[0].mxu0 %v4098
        %v4311 = vpop.f32.mrb[0].mxu0
        %v4312 = vadd.f32 %v4017, %v4311
        %v4313 = vpop.f32.mrb[0].mxu0
        %4314 = vmatprep.mubr.f32.mxu0 0.0
        %4315 = vmatmul.mubr.f32.gmra.mrb[0].mxu0 %v4101
        %v4316 = vpop.f32.mrb[0].mxu0
        %v4317 = vadd.f32 %v4017, %v4316
        %v4318 = vpop.f32.mrb[0].mxu0
        %4319 = vmatprep.mubr.f32.mxu0 0.0
        %4320 = vmatmul.mubr.f32.gmra.mrb[0].mxu0 %v4104
        %v4321 = vpop.f32.mrb[0].mxu0
        %v4322 = vadd.f32 %v4017, %v4321
        %v4323 = vpop.f32.mrb[0].mxu0
        %4324 = vmatprep.mubr.f32.mxu0 0.0
        %4325 = vmatmul.mubr.f32.gmra.mrb[0].mxu0 %v4107
        %v4326 = vpop.f32.mrb[0].mxu0
        %v4327 = vadd.f32 %v4017, %v4326
        %v4328 = vpop.f32.mrb[0].mxu0
        %4329 = vmatprep.mubr.f32.mxu0 0.0
        %4330 = vmatmul.mubr.f32.gmra.mrb[0].mxu0 %v4110
        %v4331 = vpop.f32.mrb[0].mxu0
        %v4332 = vadd.f32 %v4017, %v4331
        %v4333 = vpop.f32.mrb[0].mxu0
        %4334 = vmatprep.mubr.f32.mxu0 0.0
        %4335 = vmatmul.mubr.f32.gmra.mrb[0].mxu0 %v4113
        %v4336 = vpop.f32.mrb[0].mxu0
        %v4337 = vadd.f32 %v4017, %v4336
        %v4338 = vpop.f32.mrb[0].mxu0
        %4339 = vdwg.mxu0
        %v4340 = vtanh.pop %v3732
        %v4341 = vtanh.pop %v3733
        %v4342 = vtanh.pop %v3734
        %v4343 = vtanh.pop %v3735
        %v4344 = vtanh.pop %v3736
        %v4345 = vtanh.pop %v3737
        %v4346 = vtanh.pop %v3738
        %v4347 = vtanh.pop %v3739
        %v4348 = vtanh.pop %v3740
        %v4349 = vtanh.pop %v3741
        %v4350 = vtanh.pop %v3742
        %v4351 = vtanh.pop %v3743
        %v4352 = vtanh.pop %v3744
        %v4353 = vtanh.pop %v3745
        %v4354 = vtanh.pop %v3746
        %v4355 = vtanh.pop %v3747
        %v4356 = vtanh.pop %v3748
        %v4357 = vtanh.pop %v3749
        %v4358 = vtanh.pop %v3750
        %v4359 = vtanh.pop %v3751
        %v4360 = vtanh.pop %v3752
        %v4361 = vtanh.pop %v3753
        %v4362 = vtanh.pop %v3754
        %v4363 = vtanh.pop %v3755
        %v4364 = vtanh.pop %v3756
        %v4365 = vtanh.pop %v3757
        %v4366 = vtanh.pop %v3758
        %v4367 = vtanh.pop %v3759
        %v4368 = vtanh.pop %v3760
        %v4369 = vtanh.pop %v3761
        %v4370 = vtanh.pop %v3762
        %v4371 = vtanh.pop %v3763
        %v4372 = vxor.u32 %v3732, 2147483648
        %v4373 = vxor.u32 %v3733, 2147483648
        %v4374 = vxor.u32 %v3734, 2147483648
        %v4375 = vxor.u32 %v3735, 2147483648
        %v4376 = vxor.u32 %v3736, 2147483648
        %v4377 = vxor.u32 %v3737, 2147483648
        %v4378 = vxor.u32 %v3738, 2147483648
        %v4379 = vxor.u32 %v3739, 2147483648
        %v4380 = vxor.u32 %v3740, 2147483648
        %v4381 = vxor.u32 %v3741, 2147483648
        %v4382 = vxor.u32 %v3742, 2147483648
        %v4383 = vxor.u32 %v3743, 2147483648
        %v4384 = vxor.u32 %v3744, 2147483648
        %v4385 = vxor.u32 %v3745, 2147483648
        %v4386 = vxor.u32 %v3746, 2147483648
        %v4387 = vxor.u32 %v3747, 2147483648
        %v4388 = vxor.u32 %v3748, 2147483648
        %v4389 = vxor.u32 %v3749, 2147483648
        %v4390 = vxor.u32 %v3750, 2147483648
        %v4391 = vxor.u32 %v3751, 2147483648
        %v4392 = vxor.u32 %v3752, 2147483648
        %v4393 = vxor.u32 %v3753, 2147483648
        %v4394 = vxor.u32 %v3754, 2147483648
        %v4395 = vxor.u32 %v3755, 2147483648
        %v4396 = vxor.u32 %v3756, 2147483648
        %v4397 = vxor.u32 %v3757, 2147483648
        %v4398 = vxor.u32 %v3758, 2147483648
        %v4399 = vxor.u32 %v3759, 2147483648
        %v4400 = vxor.u32 %v3760, 2147483648
        %v4401 = vxor.u32 %v3761, 2147483648
        %v4402 = vxor.u32 %v3762, 2147483648
        %v4403 = vxor.u32 %v3763, 2147483648
        %v4404 = vmul.f32 %v4372, 1.442695
        %v4405 = vpow.pop %v4404
        %v4406 = vmul.f32 %v4373, 1.442695
        %v4407 = vpow.pop %v4406
        %v4408 = vmul.f32 %v4374, 1.442695
        %v4409 = vpow.pop %v4408
        %v4410 = vmul.f32 %v4375, 1.442695
        %v4411 = vpow.pop %v4410
        %v4412 = vmul.f32 %v4376, 1.442695
        %v4413 = vpow.pop %v4412
        %v4414 = vmul.f32 %v4377, 1.442695
        %v4415 = vpow.pop %v4414
        %v4416 = vmul.f32 %v4378, 1.442695
        %v4417 = vpow.pop %v4416
        %v4418 = vmul.f32 %v4379, 1.442695
        %v4419 = vpow.pop %v4418
        %v4420 = vmul.f32 %v4380, 1.442695
        %v4421 = vpow.pop %v4420
        %v4422 = vmul.f32 %v4381, 1.442695
        %v4423 = vpow.pop %v4422
        %v4424 = vmul.f32 %v4382, 1.442695
        %v4425 = vpow.pop %v4424
        %v4426 = vmul.f32 %v4383, 1.442695
        %v4427 = vpow.pop %v4426
        %v4428 = vmul.f32 %v4384, 1.442695
        %v4429 = vpow.pop %v4428
        %v4430 = vmul.f32 %v4385, 1.442695
        %v4431 = vpow.pop %v4430
        %v4432 = vmul.f32 %v4386, 1.442695
        %v4433 = vpow.pop %v4432
        %v4434 = vmul.f32 %v4387, 1.442695
        %v4435 = vpow.pop %v4434
        %v4436 = vmul.f32 %v4388, 1.442695
        %v4437 = vpow.pop %v4436
        %v4438 = vmul.f32 %v4389, 1.442695
        %v4439 = vpow.pop %v4438
        %v4440 = vmul.f32 %v4390, 1.442695
        %v4441 = vpow.pop %v4440
        %v4442 = vmul.f32 %v4391, 1.442695
        %v4443 = vpow.pop %v4442
        %v4444 = vmul.f32 %v4392, 1.442695
        %v4445 = vpow.pop %v4444
        %v4446 = vmul.f32 %v4393, 1.442695
        %v4447 = vpow.pop %v4446
        %v4448 = vmul.f32 %v4394, 1.442695
        %v4449 = vpow.pop %v4448
        %v4450 = vmul.f32 %v4395, 1.442695
        %v4451 = vpow.pop %v4450
        %v4452 = vmul.f32 %v4396, 1.442695
        %v4453 = vpow.pop %v4452
        %v4454 = vmul.f32 %v4397, 1.442695
        %v4455 = vpow.pop %v4454
        %v4456 = vmul.f32 %v4398, 1.442695
        %v4457 = vpow.pop %v4456
        %v4458 = vmul.f32 %v4399, 1.442695
        %v4459 = vpow.pop %v4458
        %v4460 = vmul.f32 %v4400, 1.442695
        %v4461 = vpow.pop %v4460
        %v4462 = vmul.f32 %v4401, 1.442695
        %v4463 = vpow.pop %v4462
        %v4464 = vmul.f32 %v4402, 1.442695
        %v4465 = vpow.pop %v4464
        %v4466 = vmul.f32 %v4403, 1.442695
        %v4467 = vpow.pop %v4466
        %v4468 = vadd.f32 %v4405, 1.0
        %v4469 = vadd.f32 %v4407, 1.0
        %v4470 = vadd.f32 %v4409, 1.0
        %v4471 = vadd.f32 %v4411, 1.0
        %v4472 = vadd.f32 %v4413, 1.0
        %v4473 = vadd.f32 %v4415, 1.0
        %v4474 = vadd.f32 %v4417, 1.0
        %v4475 = vadd.f32 %v4419, 1.0
        %v4476 = vadd.f32 %v4421, 1.0
        %v4477 = vadd.f32 %v4423, 1.0
        %v4478 = vadd.f32 %v4425, 1.0
        %v4479 = vadd.f32 %v4427, 1.0
        %v4480 = vadd.f32 %v4429, 1.0
        %v4481 = vadd.f32 %v4431, 1.0
        %v4482 = vadd.f32 %v4433, 1.0
        %v4483 = vadd.f32 %v4435, 1.0
        %v4484 = vadd.f32 %v4437, 1.0
        %v4485 = vadd.f32 %v4439, 1.0
        %v4486 = vadd.f32 %v4441, 1.0
        %v4487 = vadd.f32 %v4443, 1.0
        %v4488 = vadd.f32 %v4445, 1.0
        %v4489 = vadd.f32 %v4447, 1.0
        %v4490 = vadd.f32 %v4449, 1.0
        %v4491 = vadd.f32 %v4451, 1.0
        %v4492 = vadd.f32 %v4453, 1.0
        %v4493 = vadd.f32 %v4455, 1.0
        %v4494 = vadd.f32 %v4457, 1.0
        %v4495 = vadd.f32 %v4459, 1.0
        %v4496 = vadd.f32 %v4461, 1.0
        %v4497 = vadd.f32 %v4463, 1.0
        %v4498 = vadd.f32 %v4465, 1.0
        %v4499 = vadd.f32 %v4467, 1.0
        %v4500 = vrcp.pop %v4468
        %v4501 = vmul.f32 1.0, %v4500
        %v4502 = vrcp.pop %v4469
        %v4503 = vmul.f32 1.0, %v4502
        %v4504 = vrcp.pop %v4470
        %v4505 = vmul.f32 1.0, %v4504
        %v4506 = vrcp.pop %v4471
        %v4507 = vmul.f32 1.0, %v4506
        %v4508 = vrcp.pop %v4472
        %v4509 = vmul.f32 1.0, %v4508
        %v4510 = vrcp.pop %v4473
        %v4511 = vmul.f32 1.0, %v4510
        %v4512 = vrcp.pop %v4474
        %v4513 = vmul.f32 1.0, %v4512
        %v4514 = vrcp.pop %v4475
        %v4515 = vmul.f32 1.0, %v4514
        %v4516 = vrcp.pop %v4476
        %v4517 = vmul.f32 1.0, %v4516
        %v4518 = vrcp.pop %v4477
        %v4519 = vmul.f32 1.0, %v4518
        %v4520 = vrcp.pop %v4478
        %v4521 = vmul.f32 1.0, %v4520
        %v4522 = vrcp.pop %v4479
        %v4523 = vmul.f32 1.0, %v4522
        %v4524 = vrcp.pop %v4480
        %v4525 = vmul.f32 1.0, %v4524
        %v4526 = vrcp.pop %v4481
        %v4527 = vmul.f32 1.0, %v4526
        %v4528 = vrcp.pop %v4482
        %v4529 = vmul.f32 1.0, %v4528
        %v4530 = vrcp.pop %v4483
        %v4531 = vmul.f32 1.0, %v4530
        %v4532 = vrcp.pop %v4484
        %v4533 = vmul.f32 1.0, %v4532
        %v4534 = vrcp.pop %v4485
        %v4535 = vmul.f32 1.0, %v4534
        %v4536 = vrcp.pop %v4486
        %v4537 = vmul.f32 1.0, %v4536
        %v4538 = vrcp.pop %v4487
        %v4539 = vmul.f32 1.0, %v4538
        %v4540 = vrcp.pop %v4488
        %v4541 = vmul.f32 1.0, %v4540
        %v4542 = vrcp.pop %v4489
        %v4543 = vmul.f32 1.0, %v4542
        %v4544 = vrcp.pop %v4490
        %v4545 = vmul.f32 1.0, %v4544
        %v4546 = vrcp.pop %v4491
        %v4547 = vmul.f32 1.0, %v4546
        %v4548 = vrcp.pop %v4492
        %v4549 = vmul.f32 1.0, %v4548
        %v4550 = vrcp.pop %v4493
        %v4551 = vmul.f32 1.0, %v4550
        %v4552 = vrcp.pop %v4494
        %v4553 = vmul.f32 1.0, %v4552
        %v4554 = vrcp.pop %v4495
        %v4555 = vmul.f32 1.0, %v4554
        %v4556 = vrcp.pop %v4496
        %v4557 = vmul.f32 1.0, %v4556
        %v4558 = vrcp.pop %v4497
        %v4559 = vmul.f32 1.0, %v4558
        %v4560 = vrcp.pop %v4498
        %v4561 = vmul.f32 1.0, %v4560
        %v4562 = vrcp.pop %v4499
        %v4563 = vmul.f32 1.0, %v4562
        %4596 = vrot.lane.b32.xlu0 %v4501, 96
        %v4597 = vpop.permute.xlu0 %4596
        %4598 = vrot.lane.b32.xlu0 %v4503, 96
        %v4599 = vpop.permute.xlu0 %4598
        %4600 = vrot.lane.b32.xlu0 %v4505, 96
        %v4601 = vpop.permute.xlu0 %4600
        %4602 = vrot.lane.b32.xlu0 %v4507, 96
        %v4603 = vpop.permute.xlu0 %4602
        %4604 = vrot.lane.b32.xlu0 %v4509, 96
        %v4605 = vpop.permute.xlu0 %4604
        %4606 = vrot.lane.b32.xlu0 %v4511, 96
        %v4607 = vpop.permute.xlu0 %4606
        %4608 = vrot.lane.b32.xlu0 %v4513, 96
        %v4609 = vpop.permute.xlu0 %4608
        %4610 = vrot.lane.b32.xlu0 %v4515, 96
        %v4611 = vpop.permute.xlu0 %4610
        %4612 = vrot.lane.b32.xlu0 %v4517, 96
        %v4613 = vpop.permute.xlu0 %4612
        %4614 = vrot.lane.b32.xlu0 %v4519, 96
        %v4615 = vpop.permute.xlu0 %4614
        %4616 = vrot.lane.b32.xlu0 %v4521, 96
        %v4617 = vpop.permute.xlu0 %4616
        %4618 = vrot.lane.b32.xlu0 %v4523, 96
        %v4619 = vpop.permute.xlu0 %4618
        %4620 = vrot.lane.b32.xlu0 %v4525, 96
        %v4621 = vpop.permute.xlu0 %4620
        %4622 = vrot.lane.b32.xlu0 %v4527, 96
        %v4623 = vpop.permute.xlu0 %4622
        %4624 = vrot.lane.b32.xlu0 %v4529, 96
        %v4625 = vpop.permute.xlu0 %4624
        %4626 = vrot.lane.b32.xlu0 %v4531, 96
        %v4627 = vpop.permute.xlu0 %4626
        %4628 = vrot.lane.b32.xlu0 %v4533, 96
        %v4629 = vpop.permute.xlu0 %4628
        %4630 = vrot.lane.b32.xlu0 %v4535, 96
        %v4631 = vpop.permute.xlu0 %4630
        %4632 = vrot.lane.b32.xlu0 %v4537, 96
        %v4633 = vpop.permute.xlu0 %4632
        %4634 = vrot.lane.b32.xlu0 %v4539, 96
        %v4635 = vpop.permute.xlu0 %4634
        %4636 = vrot.lane.b32.xlu0 %v4541, 96
        %v4637 = vpop.permute.xlu0 %4636
        %4638 = vrot.lane.b32.xlu0 %v4543, 96
        %v4639 = vpop.permute.xlu0 %4638
        %4640 = vrot.lane.b32.xlu0 %v4545, 96
        %v4641 = vpop.permute.xlu0 %4640
        %4642 = vrot.lane.b32.xlu0 %v4547, 96
        %v4643 = vpop.permute.xlu0 %4642
        %4644 = vrot.lane.b32.xlu0 %v4549, 96
        %v4645 = vpop.permute.xlu0 %4644
        %4646 = vrot.lane.b32.xlu0 %v4551, 96
        %v4647 = vpop.permute.xlu0 %4646
        %4648 = vrot.lane.b32.xlu0 %v4553, 96
        %v4649 = vpop.permute.xlu0 %4648
        %4650 = vrot.lane.b32.xlu0 %v4555, 96
        %v4651 = vpop.permute.xlu0 %4650
        %4652 = vrot.lane.b32.xlu0 %v4557, 96
        %v4653 = vpop.permute.xlu0 %4652
        %4654 = vrot.lane.b32.xlu0 %v4559, 96
        %v4655 = vpop.permute.xlu0 %4654
        %4656 = vrot.lane.b32.xlu0 %v4561, 96
        %v4657 = vpop.permute.xlu0 %4656
        %4658 = vrot.lane.b32.xlu0 %v4563, 96
        %v4659 = vpop.permute.xlu0 %4658
        %v4692 = vmul.f32 %v4340, %v4597
        %v4693 = vmul.f32 %v4341, %v4599
        %v4694 = vmul.f32 %v4342, %v4601
        %v4695 = vmul.f32 %v4343, %v4603
        %v4696 = vmul.f32 %v4344, %v4605
        %v4697 = vmul.f32 %v4345, %v4607
        %v4698 = vmul.f32 %v4346, %v4609
        %v4699 = vmul.f32 %v4347, %v4611
        %v4700 = vmul.f32 %v4348, %v4613
        %v4701 = vmul.f32 %v4349, %v4615
        %v4702 = vmul.f32 %v4350, %v4617
        %v4703 = vmul.f32 %v4351, %v4619
        %v4704 = vmul.f32 %v4352, %v4621
        %v4705 = vmul.f32 %v4353, %v4623
        %v4706 = vmul.f32 %v4354, %v4625
        %v4707 = vmul.f32 %v4355, %v4627
        %v4708 = vmul.f32 %v4356, %v4629
        %v4709 = vmul.f32 %v4357, %v4631
        %v4710 = vmul.f32 %v4358, %v4633
        %v4711 = vmul.f32 %v4359, %v4635
        %v4712 = vmul.f32 %v4360, %v4637
        %v4713 = vmul.f32 %v4361, %v4639
        %v4714 = vmul.f32 %v4362, %v4641
        %v4715 = vmul.f32 %v4363, %v4643
        %v4716 = vmul.f32 %v4364, %v4645
        %v4717 = vmul.f32 %v4365, %v4647
        %v4718 = vmul.f32 %v4366, %v4649
        %v4719 = vmul.f32 %v4367, %v4651
        %v4720 = vmul.f32 %v4368, %v4653
        %v4721 = vmul.f32 %v4369, %v4655
        %v4722 = vmul.f32 %v4370, %v4657
        %v4723 = vmul.f32 %v4371, %v4659
        %v4724 = vadd.f32 %v4182, %v3855
        %v4725 = vadd.f32 %v4187, %v3860
        %v4726 = vadd.f32 %v4192, %v3865
        %v4727 = vadd.f32 %v4197, %v3870
        %v4728 = vadd.f32 %v4202, %v3875
        %v4729 = vadd.f32 %v4207, %v3880
        %v4730 = vadd.f32 %v4212, %v3885
        %v4731 = vadd.f32 %v4217, %v3890
        %v4732 = vadd.f32 %v4222, %v3895
        %v4733 = vadd.f32 %v4227, %v3900
        %v4734 = vadd.f32 %v4232, %v3905
        %v4735 = vadd.f32 %v4237, %v3910
        %v4736 = vadd.f32 %v4242, %v3915
        %v4737 = vadd.f32 %v4247, %v3920
        %v4738 = vadd.f32 %v4252, %v3925
        %v4739 = vadd.f32 %v4257, %v3930
        %v4740 = vadd.f32 %v4262, %v3935
        %v4741 = vadd.f32 %v4267, %v3940
        %v4742 = vadd.f32 %v4272, %v3945
        %v4743 = vadd.f32 %v4277, %v3950
        %v4744 = vadd.f32 %v4282, %v3955
        %v4745 = vadd.f32 %v4287, %v3960
        %v4746 = vadd.f32 %v4292, %v3965
        %v4747 = vadd.f32 %v4297, %v3970
        %v4748 = vadd.f32 %v4302, %v3975
        %v4749 = vadd.f32 %v4307, %v3980
        %v4750 = vadd.f32 %v4312, %v3985
        %v4751 = vadd.f32 %v4317, %v3990
        %v4752 = vadd.f32 %v4322, %v3995
        %v4753 = vadd.f32 %v4327, %v4000
        %v4754 = vadd.f32 %v4332, %v4005
        %v4755 = vadd.f32 %v4337, %v4010
        %v4756 = vtanh.pop %v4724
        %v4757 = vtanh.pop %v4725
        %v4758 = vtanh.pop %v4726
        %v4759 = vtanh.pop %v4727
        %v4760 = vtanh.pop %v4728
        %v4761 = vtanh.pop %v4729
        %v4762 = vtanh.pop %v4730
        %v4763 = vtanh.pop %v4731
        %v4764 = vtanh.pop %v4732
        %v4765 = vtanh.pop %v4733
        %v4766 = vtanh.pop %v4734
        %v4767 = vtanh.pop %v4735
        %v4768 = vtanh.pop %v4736
        %v4769 = vtanh.pop %v4737
        %v4770 = vtanh.pop %v4738
        %v4771 = vtanh.pop %v4739
        %v4772 = vtanh.pop %v4740
        %v4773 = vtanh.pop %v4741
        %v4774 = vtanh.pop %v4742
        %v4775 = vtanh.pop %v4743
        %v4776 = vtanh.pop %v4744
        %v4777 = vtanh.pop %v4745
        %v4778 = vtanh.pop %v4746
        %v4779 = vtanh.pop %v4747
        %v4780 = vtanh.pop %v4748
        %v4781 = vtanh.pop %v4749
        %v4782 = vtanh.pop %v4750
        %v4783 = vtanh.pop %v4751
        %v4784 = vtanh.pop %v4752
        %v4785 = vtanh.pop %v4753
        %v4786 = vtanh.pop %v4754
        %v4787 = vtanh.pop %v4755
        %v4788 = vxor.u32 %v4724, 2147483648
        %v4789 = vxor.u32 %v4725, 2147483648
        %v4790 = vxor.u32 %v4726, 2147483648
        %v4791 = vxor.u32 %v4727, 2147483648
        %v4792 = vxor.u32 %v4728, 2147483648
        %v4793 = vxor.u32 %v4729, 2147483648
        %v4794 = vxor.u32 %v4730, 2147483648
        %v4795 = vxor.u32 %v4731, 2147483648
        %v4796 = vxor.u32 %v4732, 2147483648
        %v4797 = vxor.u32 %v4733, 2147483648
        %v4798 = vxor.u32 %v4734, 2147483648
        %v4799 = vxor.u32 %v4735, 2147483648
        %v4800 = vxor.u32 %v4736, 2147483648
        %v4801 = vxor.u32 %v4737, 2147483648
        %v4802 = vxor.u32 %v4738, 2147483648
        %v4803 = vxor.u32 %v4739, 2147483648
        %v4804 = vxor.u32 %v4740, 2147483648
        %v4805 = vxor.u32 %v4741, 2147483648
        %v4806 = vxor.u32 %v4742, 2147483648
        %v4807 = vxor.u32 %v4743, 2147483648
        %v4808 = vxor.u32 %v4744, 2147483648
        %v4809 = vxor.u32 %v4745, 2147483648
        %v4810 = vxor.u32 %v4746, 2147483648
        %v4811 = vxor.u32 %v4747, 2147483648
        %v4812 = vxor.u32 %v4748, 2147483648
        %v4813 = vxor.u32 %v4749, 2147483648
        %v4814 = vxor.u32 %v4750, 2147483648
        %v4815 = vxor.u32 %v4751, 2147483648
        %v4816 = vxor.u32 %v4752, 2147483648
        %v4817 = vxor.u32 %v4753, 2147483648
        %v4818 = vxor.u32 %v4754, 2147483648
        %v4819 = vxor.u32 %v4755, 2147483648
        %v4820 = vmul.f32 %v4788, 1.442695
        %v4821 = vpow.pop %v4820
        %v4822 = vmul.f32 %v4789, 1.442695
        %v4823 = vpow.pop %v4822
        %v4824 = vmul.f32 %v4790, 1.442695
        %v4825 = vpow.pop %v4824
        %v4826 = vmul.f32 %v4791, 1.442695
        %v4827 = vpow.pop %v4826
        %v4828 = vmul.f32 %v4792, 1.442695
        %v4829 = vpow.pop %v4828
        %v4830 = vmul.f32 %v4793, 1.442695
        %v4831 = vpow.pop %v4830
        %v4832 = vmul.f32 %v4794, 1.442695
        %v4833 = vpow.pop %v4832
        %v4834 = vmul.f32 %v4795, 1.442695
        %v4835 = vpow.pop %v4834
        %v4836 = vmul.f32 %v4796, 1.442695
        %v4837 = vpow.pop %v4836
        %v4838 = vmul.f32 %v4797, 1.442695
        %v4839 = vpow.pop %v4838
        %v4840 = vmul.f32 %v4798, 1.442695
        %v4841 = vpow.pop %v4840
        %v4842 = vmul.f32 %v4799, 1.442695
        %v4843 = vpow.pop %v4842
        %v4844 = vmul.f32 %v4800, 1.442695
        %v4845 = vpow.pop %v4844
        %v4846 = vmul.f32 %v4801, 1.442695
        %v4847 = vpow.pop %v4846
        %v4848 = vmul.f32 %v4802, 1.442695
        %v4849 = vpow.pop %v4848
        %v4850 = vmul.f32 %v4803, 1.442695
        %v4851 = vpow.pop %v4850
        %v4852 = vmul.f32 %v4804, 1.442695
        %v4853 = vpow.pop %v4852
        %v4854 = vmul.f32 %v4805, 1.442695
        %v4855 = vpow.pop %v4854
        %v4856 = vmul.f32 %v4806, 1.442695
        %v4857 = vpow.pop %v4856
        %v4858 = vmul.f32 %v4807, 1.442695
        %v4859 = vpow.pop %v4858
        %v4860 = vmul.f32 %v4808, 1.442695
        %v4861 = vpow.pop %v4860
        %v4862 = vmul.f32 %v4809, 1.442695
        %v4863 = vpow.pop %v4862
        %v4864 = vmul.f32 %v4810, 1.442695
        %v4865 = vpow.pop %v4864
        %v4866 = vmul.f32 %v4811, 1.442695
        %v4867 = vpow.pop %v4866
        %v4868 = vmul.f32 %v4812, 1.442695
        %v4869 = vpow.pop %v4868
        %v4870 = vmul.f32 %v4813, 1.442695
        %v4871 = vpow.pop %v4870
        %v4872 = vmul.f32 %v4814, 1.442695
        %v4873 = vpow.pop %v4872
        %v4874 = vmul.f32 %v4815, 1.442695
        %v4875 = vpow.pop %v4874
        %v4876 = vmul.f32 %v4816, 1.442695
        %v4877 = vpow.pop %v4876
        %v4878 = vmul.f32 %v4817, 1.442695
        %v4879 = vpow.pop %v4878
        %v4880 = vmul.f32 %v4818, 1.442695
        %v4881 = vpow.pop %v4880
        %v4882 = vmul.f32 %v4819, 1.442695
        %v4883 = vpow.pop %v4882
        %v4884 = vadd.f32 %v4821, 1.0
        %v4885 = vadd.f32 %v4823, 1.0
        %v4886 = vadd.f32 %v4825, 1.0
        %v4887 = vadd.f32 %v4827, 1.0
        %v4888 = vadd.f32 %v4829, 1.0
        %v4889 = vadd.f32 %v4831, 1.0
        %v4890 = vadd.f32 %v4833, 1.0
        %v4891 = vadd.f32 %v4835, 1.0
        %v4892 = vadd.f32 %v4837, 1.0
        %v4893 = vadd.f32 %v4839, 1.0
        %v4894 = vadd.f32 %v4841, 1.0
        %v4895 = vadd.f32 %v4843, 1.0
        %v4896 = vadd.f32 %v4845, 1.0
        %v4897 = vadd.f32 %v4847, 1.0
        %v4898 = vadd.f32 %v4849, 1.0
        %v4899 = vadd.f32 %v4851, 1.0
        %v4900 = vadd.f32 %v4853, 1.0
        %v4901 = vadd.f32 %v4855, 1.0
        %v4902 = vadd.f32 %v4857, 1.0
        %v4903 = vadd.f32 %v4859, 1.0
        %v4904 = vadd.f32 %v4861, 1.0
        %v4905 = vadd.f32 %v4863, 1.0
        %v4906 = vadd.f32 %v4865, 1.0
        %v4907 = vadd.f32 %v4867, 1.0
        %v4908 = vadd.f32 %v4869, 1.0
        %v4909 = vadd.f32 %v4871, 1.0
        %v4910 = vadd.f32 %v4873, 1.0
        %v4911 = vadd.f32 %v4875, 1.0
        %v4912 = vadd.f32 %v4877, 1.0
        %v4913 = vadd.f32 %v4879, 1.0
        %v4914 = vadd.f32 %v4881, 1.0
        %v4915 = vadd.f32 %v4883, 1.0
        %v4916 = vrcp.pop %v4884
        %v4917 = vmul.f32 1.0, %v4916
        %v4918 = vrcp.pop %v4885
        %v4919 = vmul.f32 1.0, %v4918
        %v4920 = vrcp.pop %v4886
        %v4921 = vmul.f32 1.0, %v4920
        %v4922 = vrcp.pop %v4887
        %v4923 = vmul.f32 1.0, %v4922
        %v4924 = vrcp.pop %v4888
        %v4925 = vmul.f32 1.0, %v4924
        %v4926 = vrcp.pop %v4889
        %v4927 = vmul.f32 1.0, %v4926
        %v4928 = vrcp.pop %v4890
        %v4929 = vmul.f32 1.0, %v4928
        %v4930 = vrcp.pop %v4891
        %v4931 = vmul.f32 1.0, %v4930
        %v4932 = vrcp.pop %v4892
        %v4933 = vmul.f32 1.0, %v4932
        %v4934 = vrcp.pop %v4893
        %v4935 = vmul.f32 1.0, %v4934
        %v4936 = vrcp.pop %v4894
        %v4937 = vmul.f32 1.0, %v4936
        %v4938 = vrcp.pop %v4895
        %v4939 = vmul.f32 1.0, %v4938
        %v4940 = vrcp.pop %v4896
        %v4941 = vmul.f32 1.0, %v4940
        %v4942 = vrcp.pop %v4897
        %v4943 = vmul.f32 1.0, %v4942
        %v4944 = vrcp.pop %v4898
        %v4945 = vmul.f32 1.0, %v4944
        %v4946 = vrcp.pop %v4899
        %v4947 = vmul.f32 1.0, %v4946
        %v4948 = vrcp.pop %v4900
        %v4949 = vmul.f32 1.0, %v4948
        %v4950 = vrcp.pop %v4901
        %v4951 = vmul.f32 1.0, %v4950
        %v4952 = vrcp.pop %v4902
        %v4953 = vmul.f32 1.0, %v4952
        %v4954 = vrcp.pop %v4903
        %v4955 = vmul.f32 1.0, %v4954
        %v4956 = vrcp.pop %v4904
        %v4957 = vmul.f32 1.0, %v4956
        %v4958 = vrcp.pop %v4905
        %v4959 = vmul.f32 1.0, %v4958
        %v4960 = vrcp.pop %v4906
        %v4961 = vmul.f32 1.0, %v4960
        %v4962 = vrcp.pop %v4907
        %v4963 = vmul.f32 1.0, %v4962
        %v4964 = vrcp.pop %v4908
        %v4965 = vmul.f32 1.0, %v4964
        %v4966 = vrcp.pop %v4909
        %v4967 = vmul.f32 1.0, %v4966
        %v4968 = vrcp.pop %v4910
        %v4969 = vmul.f32 1.0, %v4968
        %v4970 = vrcp.pop %v4911
        %v4971 = vmul.f32 1.0, %v4970
        %v4972 = vrcp.pop %v4912
        %v4973 = vmul.f32 1.0, %v4972
        %v4974 = vrcp.pop %v4913
        %v4975 = vmul.f32 1.0, %v4974
        %v4976 = vrcp.pop %v4914
        %v4977 = vmul.f32 1.0, %v4976
        %v4978 = vrcp.pop %v4915
        %v4979 = vmul.f32 1.0, %v4978
        %5012 = vrot.lane.b32.xlu0 %v4917, 96
        %v5013 = vpop.permute.xlu0 %5012
        %5014 = vrot.lane.b32.xlu0 %v4919, 96
        %v5015 = vpop.permute.xlu0 %5014
        %5016 = vrot.lane.b32.xlu0 %v4921, 96
        %v5017 = vpop.permute.xlu0 %5016
        %5018 = vrot.lane.b32.xlu0 %v4923, 96
        %v5019 = vpop.permute.xlu0 %5018
        %5020 = vrot.lane.b32.xlu0 %v4925, 96
        %v5021 = vpop.permute.xlu0 %5020
        %5022 = vrot.lane.b32.xlu0 %v4927, 96
        %v5023 = vpop.permute.xlu0 %5022
        %5024 = vrot.lane.b32.xlu0 %v4929, 96
        %v5025 = vpop.permute.xlu0 %5024
        %5026 = vrot.lane.b32.xlu0 %v4931, 96
        %v5027 = vpop.permute.xlu0 %5026
        %5028 = vrot.lane.b32.xlu0 %v4933, 96
        %v5029 = vpop.permute.xlu0 %5028
        %5030 = vrot.lane.b32.xlu0 %v4935, 96
        %v5031 = vpop.permute.xlu0 %5030
        %5032 = vrot.lane.b32.xlu0 %v4937, 96
        %v5033 = vpop.permute.xlu0 %5032
        %5034 = vrot.lane.b32.xlu0 %v4939, 96
        %v5035 = vpop.permute.xlu0 %5034
        %5036 = vrot.lane.b32.xlu0 %v4941, 96
        %v5037 = vpop.permute.xlu0 %5036
        %5038 = vrot.lane.b32.xlu0 %v4943, 96
        %v5039 = vpop.permute.xlu0 %5038
        %5040 = vrot.lane.b32.xlu0 %v4945, 96
        %v5041 = vpop.permute.xlu0 %5040
        %5042 = vrot.lane.b32.xlu0 %v4947, 96
        %v5043 = vpop.permute.xlu0 %5042
        %5044 = vrot.lane.b32.xlu0 %v4949, 96
        %v5045 = vpop.permute.xlu0 %5044
        %5046 = vrot.lane.b32.xlu0 %v4951, 96
        %v5047 = vpop.permute.xlu0 %5046
        %5048 = vrot.lane.b32.xlu0 %v4953, 96
        %v5049 = vpop.permute.xlu0 %5048
        %5050 = vrot.lane.b32.xlu0 %v4955, 96
        %v5051 = vpop.permute.xlu0 %5050
        %5052 = vrot.lane.b32.xlu0 %v4957, 96
        %v5053 = vpop.permute.xlu0 %5052
        %5054 = vrot.lane.b32.xlu0 %v4959, 96
        %v5055 = vpop.permute.xlu0 %5054
        %5056 = vrot.lane.b32.xlu0 %v4961, 96
        %v5057 = vpop.permute.xlu0 %5056
        %5058 = vrot.lane.b32.xlu0 %v4963, 96
        %v5059 = vpop.permute.xlu0 %5058
        %5060 = vrot.lane.b32.xlu0 %v4965, 96
        %v5061 = vpop.permute.xlu0 %5060
        %5062 = vrot.lane.b32.xlu0 %v4967, 96
        %v5063 = vpop.permute.xlu0 %5062
        %5064 = vrot.lane.b32.xlu0 %v4969, 96
        %v5065 = vpop.permute.xlu0 %5064
        %5066 = vrot.lane.b32.xlu0 %v4971, 96
        %v5067 = vpop.permute.xlu0 %5066
        %5068 = vrot.lane.b32.xlu0 %v4973, 96
        %v5069 = vpop.permute.xlu0 %5068
        %5070 = vrot.lane.b32.xlu0 %v4975, 96
        %v5071 = vpop.permute.xlu0 %5070
        %5072 = vrot.lane.b32.xlu0 %v4977, 96
        %v5073 = vpop.permute.xlu0 %5072
        %5074 = vrot.lane.b32.xlu0 %v4979, 96
        %v5075 = vpop.permute.xlu0 %5074
        %v5108 = vmul.f32 %v4756, %v5013
        %v5109 = vmul.f32 %v4757, %v5015
        %v5110 = vmul.f32 %v4758, %v5017
        %v5111 = vmul.f32 %v4759, %v5019
        %v5112 = vmul.f32 %v4760, %v5021
        %v5113 = vmul.f32 %v4761, %v5023
        %v5114 = vmul.f32 %v4762, %v5025
        %v5115 = vmul.f32 %v4763, %v5027
        %v5116 = vmul.f32 %v4764, %v5029
        %v5117 = vmul.f32 %v4765, %v5031
        %v5118 = vmul.f32 %v4766, %v5033
        %v5119 = vmul.f32 %v4767, %v5035
        %v5120 = vmul.f32 %v4768, %v5037
        %v5121 = vmul.f32 %v4769, %v5039
        %v5122 = vmul.f32 %v4770, %v5041
        %v5123 = vmul.f32 %v4771, %v5043
        %v5124 = vmul.f32 %v4772, %v5045
        %v5125 = vmul.f32 %v4773, %v5047
        %v5126 = vmul.f32 %v4774, %v5049
        %v5127 = vmul.f32 %v4775, %v5051
        %v5128 = vmul.f32 %v4776, %v5053
        %v5129 = vmul.f32 %v4777, %v5055
        %v5130 = vmul.f32 %v4778, %v5057
        %v5131 = vmul.f32 %v4779, %v5059
        %v5132 = vmul.f32 %v4780, %v5061
        %v5133 = vmul.f32 %v4781, %v5063
        %v5134 = vmul.f32 %v4782, %v5065
        %v5135 = vmul.f32 %v4783, %v5067
        %v5136 = vmul.f32 %v4784, %v5069
        %v5137 = vmul.f32 %v4785, %v5071
        %v5138 = vmul.f32 %v4786, %v5073
        %v5139 = vmul.f32 %v4787, %v5075
        %v5141 = vlaneseq
        %v5142 = vshrl.u32 %v5141, 7
        %v5143 = vsub.s32 0, %v5142
        %v5144 = vrot.slane %v1320, %v5143
        %v5147 = vsel %vm1826, %v5108, 0
        %v5150 = vsel %vm1826, %v5109, 0
        %v5153 = vsel %vm1826, %v5110, 0
        %v5156 = vsel %vm1826, %v5111, 0
        %v5159 = vsel %vm1826, %v5112, 0
        %v5162 = vsel %vm1826, %v5113, 0
        %v5165 = vsel %vm1826, %v5114, 0
        %v5168 = vsel %vm1826, %v5115, 0
        %v5171 = vsel %vm1826, %v5116, 0
        %v5174 = vsel %vm1826, %v5117, 0
        %v5177 = vsel %vm1826, %v5118, 0
        %v5180 = vsel %vm1826, %v5119, 0
        %v5183 = vsel %vm1826, %v5120, 0
        %v5186 = vsel %vm1826, %v5121, 0
        %v5189 = vsel %vm1826, %v5122, 0
        %v5192 = vsel %vm1826, %v5123, 0
        %v5195 = vsel %vm1826, %v5124, 0
        %v5198 = vsel %vm1826, %v5125, 0
        %v5201 = vsel %vm1826, %v5126, 0
        %v5204 = vsel %vm1826, %v5127, 0
        %v5207 = vsel %vm1826, %v5128, 0
        %v5210 = vsel %vm1826, %v5129, 0
        %v5213 = vsel %vm1826, %v5130, 0
        %v5216 = vsel %vm1826, %v5131, 0
        %v5219 = vsel %vm1826, %v5132, 0
        %v5222 = vsel %vm1826, %v5133, 0
        %v5225 = vsel %vm1826, %v5134, 0
        %v5228 = vsel %vm1826, %v5135, 0
        %v5231 = vsel %vm1826, %v5136, 0
        %v5234 = vsel %vm1826, %v5137, 0
        %v5237 = vsel %vm1826, %v5138, 0
        %v5240 = vsel %vm1826, %v5139, 0
        %5242 = vmatprep.subr.mxu0 0.0
        %5243 = vmatpush1.msra.mxu0 %v1316
        %5244 = vmatprep.subr.mxu0 0.0
        %5245 = vmatpush1.msra.mxu0 %v1317
        %5246 = vmatprep.subr.mxu0 0.0
        %5247 = vmatpush1.msra.mxu0 %v1318
        %5248 = vmatprep.subr.mxu0 0.0
        %5249 = vmatpush1.msra.mxu0 %v1319
        %5250 = vmatprep.subr.mxu0 0.0
        %5251 = vmatpush1.msra.mxu0 0.0
        %5252 = vmatprep.subr.mxu0 0.0
        %5253 = vmatpush1.msra.mxu0 0.0
        %5254 = vmatprep.subr.mxu0 0.0
        %5255 = vmatpush1.msra.mxu0 0.0
        %5256 = vmatprep.subr.mxu0 0.0
        %5257 = vmatpush1.msra.mxu0 0.0
        %5258 = vmatprep.subr.mxu0 0.0
        %5259 = vmatpush1.msra.mxu0 0.0
        %5260 = vmatprep.subr.mxu0 0.0
        %5261 = vmatpush1.msra.mxu0 0.0
        %5262 = vmatprep.subr.mxu0 0.0
        %5263 = vmatpush1.msra.mxu0 0.0
        %5264 = vmatprep.subr.mxu0 0.0
        %5265 = vmatpush1.msra.mxu0 0.0
        %5266 = vmatprep.subr.mxu0 0.0
        %5267 = vmatpush1.msra.mxu0 0.0
        %5268 = vmatprep.subr.mxu0 0.0
        %5269 = vmatpush1.msra.mxu0 0.0
        %5270 = vmatprep.subr.mxu0 0.0
        %5271 = vmatpush1.msra.mxu0 0.0
        %5272 = vmatprep.subr.mxu0 0.0
        %5273 = vmatpush1.msra.mxu0 0.0
        %5274 = vmatprep.subr.mxu0 0.0
        %5275 = vmatpush1.msra.mxu0 0.0
        %5276 = vmatprep.subr.mxu0 0.0
        %5277 = vmatpush1.msra.mxu0 0.0
        %5278 = vmatprep.subr.mxu0 0.0
        %5279 = vmatpush1.msra.mxu0 0.0
        %5280 = vmatprep.subr.mxu0 0.0
        %5281 = vmatpush1.msra.mxu0 0.0
        %5282 = vmatprep.subr.mxu0 0.0
        %5283 = vmatpush1.msra.mxu0 0.0
        %5284 = vmatprep.subr.mxu0 0.0
        %5285 = vmatpush1.msra.mxu0 0.0
        %5286 = vmatprep.subr.mxu0 0.0
        %5287 = vmatpush1.msra.mxu0 0.0
        %5288 = vmatprep.subr.mxu0 0.0
        %5289 = vmatpush1.msra.mxu0 0.0
        %5290 = vmatprep.subr.mxu0 0.0
        %5291 = vmatpush1.msra.mxu0 0.0
        %5292 = vmatprep.subr.mxu0 0.0
        %5293 = vmatpush1.msra.mxu0 0.0
        %5294 = vmatprep.subr.mxu0 0.0
        %5295 = vmatpush1.msra.mxu0 0.0
        %5296 = vmatprep.subr.mxu0 0.0
        %5297 = vmatpush1.msra.mxu0 0.0
        %5298 = vmatprep.subr.mxu0 0.0
        %5299 = vmatpush1.msra.mxu0 0.0
        %5300 = vmatprep.subr.mxu0 0.0
        %5301 = vmatpush1.msra.mxu0 0.0
        %5302 = vmatprep.subr.mxu0 0.0
        %5303 = vmatpush1.msra.mxu0 0.0
        %5304 = vmatprep.subr.mxu0 0.0
        %5305 = vmatpush1.msra.mxu0 0.0
        %5306 = vmatprep.mubr.f32.mxu0 0.0
        %5307 = vmatmul.mubr.f32.gmra.mrb[0].mxu0 %v5147
        %v5308 = vpop.f32.mrb[0].mxu0
        %v5309 = vadd.f32 %v5144, %v5308
        %v5310 = vpop.f32.mrb[0].mxu0
        %5311 = vmatprep.mubr.f32.mxu0 0.0
        %5312 = vmatmul.mubr.f32.gmra.mrb[0].mxu0 %v5150
        %v5313 = vpop.f32.mrb[0].mxu0
        %v5314 = vadd.f32 %v5144, %v5313
        %v5315 = vpop.f32.mrb[0].mxu0
        %5316 = vmatprep.mubr.f32.mxu0 0.0
        %5317 = vmatmul.mubr.f32.gmra.mrb[0].mxu0 %v5153
        %v5318 = vpop.f32.mrb[0].mxu0
        %v5319 = vadd.f32 %v5144, %v5318
        %v5320 = vpop.f32.mrb[0].mxu0
        %5321 = vmatprep.mubr.f32.mxu0 0.0
        %5322 = vmatmul.mubr.f32.gmra.mrb[0].mxu0 %v5156
        %v5323 = vpop.f32.mrb[0].mxu0
        %v5324 = vadd.f32 %v5144, %v5323
        %v5325 = vpop.f32.mrb[0].mxu0
        %5326 = vmatprep.mubr.f32.mxu0 0.0
        %5327 = vmatmul.mubr.f32.gmra.mrb[0].mxu0 %v5159
        %v5328 = vpop.f32.mrb[0].mxu0
        %v5329 = vadd.f32 %v5144, %v5328
        %v5330 = vpop.f32.mrb[0].mxu0
        %5331 = vmatprep.mubr.f32.mxu0 0.0
        %5332 = vmatmul.mubr.f32.gmra.mrb[0].mxu0 %v5162
        %v5333 = vpop.f32.mrb[0].mxu0
        %v5334 = vadd.f32 %v5144, %v5333
        %v5335 = vpop.f32.mrb[0].mxu0
        %5336 = vmatprep.mubr.f32.mxu0 0.0
        %5337 = vmatmul.mubr.f32.gmra.mrb[0].mxu0 %v5165
        %v5338 = vpop.f32.mrb[0].mxu0
        %v5339 = vadd.f32 %v5144, %v5338
        %v5340 = vpop.f32.mrb[0].mxu0
        %5341 = vmatprep.mubr.f32.mxu0 0.0
        %5342 = vmatmul.mubr.f32.gmra.mrb[0].mxu0 %v5168
        %v5343 = vpop.f32.mrb[0].mxu0
        %v5344 = vadd.f32 %v5144, %v5343
        %v5345 = vpop.f32.mrb[0].mxu0
        %5346 = vmatprep.mubr.f32.mxu0 0.0
        %5347 = vmatmul.mubr.f32.gmra.mrb[0].mxu0 %v5171
        %v5348 = vpop.f32.mrb[0].mxu0
        %v5349 = vadd.f32 %v5144, %v5348
        %v5350 = vpop.f32.mrb[0].mxu0
        %5351 = vmatprep.mubr.f32.mxu0 0.0
        %5352 = vmatmul.mubr.f32.gmra.mrb[0].mxu0 %v5174
        %v5353 = vpop.f32.mrb[0].mxu0
        %v5354 = vadd.f32 %v5144, %v5353
        %v5355 = vpop.f32.mrb[0].mxu0
        %5356 = vmatprep.mubr.f32.mxu0 0.0
        %5357 = vmatmul.mubr.f32.gmra.mrb[0].mxu0 %v5177
        %v5358 = vpop.f32.mrb[0].mxu0
        %v5359 = vadd.f32 %v5144, %v5358
        %v5360 = vpop.f32.mrb[0].mxu0
        %5361 = vmatprep.mubr.f32.mxu0 0.0
        %5362 = vmatmul.mubr.f32.gmra.mrb[0].mxu0 %v5180
        %v5363 = vpop.f32.mrb[0].mxu0
        %v5364 = vadd.f32 %v5144, %v5363
        %v5365 = vpop.f32.mrb[0].mxu0
        %5366 = vmatprep.mubr.f32.mxu0 0.0
        %5367 = vmatmul.mubr.f32.gmra.mrb[0].mxu0 %v5183
        %v5368 = vpop.f32.mrb[0].mxu0
        %v5369 = vadd.f32 %v5144, %v5368
        %v5370 = vpop.f32.mrb[0].mxu0
        %5371 = vmatprep.mubr.f32.mxu0 0.0
        %5372 = vmatmul.mubr.f32.gmra.mrb[0].mxu0 %v5186
        %v5373 = vpop.f32.mrb[0].mxu0
        %v5374 = vadd.f32 %v5144, %v5373
        %v5375 = vpop.f32.mrb[0].mxu0
        %5376 = vmatprep.mubr.f32.mxu0 0.0
        %5377 = vmatmul.mubr.f32.gmra.mrb[0].mxu0 %v5189
        %v5378 = vpop.f32.mrb[0].mxu0
        %v5379 = vadd.f32 %v5144, %v5378
        %v5380 = vpop.f32.mrb[0].mxu0
        %5381 = vmatprep.mubr.f32.mxu0 0.0
        %5382 = vmatmul.mubr.f32.gmra.mrb[0].mxu0 %v5192
        %v5383 = vpop.f32.mrb[0].mxu0
        %v5384 = vadd.f32 %v5144, %v5383
        %v5385 = vpop.f32.mrb[0].mxu0
        %5386 = vmatprep.mubr.f32.mxu0 0.0
        %5387 = vmatmul.mubr.f32.gmra.mrb[0].mxu0 %v5195
        %v5388 = vpop.f32.mrb[0].mxu0
        %v5389 = vadd.f32 %v5144, %v5388
        %v5390 = vpop.f32.mrb[0].mxu0
        %5391 = vmatprep.mubr.f32.mxu0 0.0
        %5392 = vmatmul.mubr.f32.gmra.mrb[0].mxu0 %v5198
        %v5393 = vpop.f32.mrb[0].mxu0
        %v5394 = vadd.f32 %v5144, %v5393
        %v5395 = vpop.f32.mrb[0].mxu0
        %5396 = vmatprep.mubr.f32.mxu0 0.0
        %5397 = vmatmul.mubr.f32.gmra.mrb[0].mxu0 %v5201
        %v5398 = vpop.f32.mrb[0].mxu0
        %v5399 = vadd.f32 %v5144, %v5398
        %v5400 = vpop.f32.mrb[0].mxu0
        %5401 = vmatprep.mubr.f32.mxu0 0.0
        %5402 = vmatmul.mubr.f32.gmra.mrb[0].mxu0 %v5204
        %v5403 = vpop.f32.mrb[0].mxu0
        %v5404 = vadd.f32 %v5144, %v5403
        %v5405 = vpop.f32.mrb[0].mxu0
        %5406 = vmatprep.mubr.f32.mxu0 0.0
        %5407 = vmatmul.mubr.f32.gmra.mrb[0].mxu0 %v5207
        %v5408 = vpop.f32.mrb[0].mxu0
        %v5409 = vadd.f32 %v5144, %v5408
        %v5410 = vpop.f32.mrb[0].mxu0
        %5411 = vmatprep.mubr.f32.mxu0 0.0
        %5412 = vmatmul.mubr.f32.gmra.mrb[0].mxu0 %v5210
        %v5413 = vpop.f32.mrb[0].mxu0
        %v5414 = vadd.f32 %v5144, %v5413
        %v5415 = vpop.f32.mrb[0].mxu0
        %5416 = vmatprep.mubr.f32.mxu0 0.0
        %5417 = vmatmul.mubr.f32.gmra.mrb[0].mxu0 %v5213
        %v5418 = vpop.f32.mrb[0].mxu0
        %v5419 = vadd.f32 %v5144, %v5418
        %v5420 = vpop.f32.mrb[0].mxu0
        %5421 = vmatprep.mubr.f32.mxu0 0.0
        %5422 = vmatmul.mubr.f32.gmra.mrb[0].mxu0 %v5216
        %v5423 = vpop.f32.mrb[0].mxu0
        %v5424 = vadd.f32 %v5144, %v5423
        %v5425 = vpop.f32.mrb[0].mxu0
        %5426 = vmatprep.mubr.f32.mxu0 0.0
        %5427 = vmatmul.mubr.f32.gmra.mrb[0].mxu0 %v5219
        %v5428 = vpop.f32.mrb[0].mxu0
        %v5429 = vadd.f32 %v5144, %v5428
        %v5430 = vpop.f32.mrb[0].mxu0
        %5431 = vmatprep.mubr.f32.mxu0 0.0
        %5432 = vmatmul.mubr.f32.gmra.mrb[0].mxu0 %v5222
        %v5433 = vpop.f32.mrb[0].mxu0
        %v5434 = vadd.f32 %v5144, %v5433
        %v5435 = vpop.f32.mrb[0].mxu0
        %5436 = vmatprep.mubr.f32.mxu0 0.0
        %5437 = vmatmul.mubr.f32.gmra.mrb[0].mxu0 %v5225
        %v5438 = vpop.f32.mrb[0].mxu0
        %v5439 = vadd.f32 %v5144, %v5438
        %v5440 = vpop.f32.mrb[0].mxu0
        %5441 = vmatprep.mubr.f32.mxu0 0.0
        %5442 = vmatmul.mubr.f32.gmra.mrb[0].mxu0 %v5228
        %v5443 = vpop.f32.mrb[0].mxu0
        %v5444 = vadd.f32 %v5144, %v5443
        %v5445 = vpop.f32.mrb[0].mxu0
        %5446 = vmatprep.mubr.f32.mxu0 0.0
        %5447 = vmatmul.mubr.f32.gmra.mrb[0].mxu0 %v5231
        %v5448 = vpop.f32.mrb[0].mxu0
        %v5449 = vadd.f32 %v5144, %v5448
        %v5450 = vpop.f32.mrb[0].mxu0
        %5451 = vmatprep.mubr.f32.mxu0 0.0
        %5452 = vmatmul.mubr.f32.gmra.mrb[0].mxu0 %v5234
        %v5453 = vpop.f32.mrb[0].mxu0
        %v5454 = vadd.f32 %v5144, %v5453
        %v5455 = vpop.f32.mrb[0].mxu0
        %5456 = vmatprep.mubr.f32.mxu0 0.0
        %5457 = vmatmul.mubr.f32.gmra.mrb[0].mxu0 %v5237
        %v5458 = vpop.f32.mrb[0].mxu0
        %v5459 = vadd.f32 %v5144, %v5458
        %v5460 = vpop.f32.mrb[0].mxu0
        %5461 = vmatprep.mubr.f32.mxu0 0.0
        %5462 = vmatmul.mubr.f32.gmra.mrb[0].mxu0 %v5240
        %v5463 = vpop.f32.mrb[0].mxu0
        %v5464 = vadd.f32 %v5144, %v5463
        %v5465 = vpop.f32.mrb[0].mxu0
        %5466 = vdwg.mxu0
        %5499 = vrot.lane.b32.xlu0 %v4692, 32
        %v5500 = vpop.permute.xlu0 %5499
        %5501 = vrot.lane.b32.xlu0 %v4693, 32
        %v5502 = vpop.permute.xlu0 %5501
        %5503 = vrot.lane.b32.xlu0 %v4694, 32
        %v5504 = vpop.permute.xlu0 %5503
        %5505 = vrot.lane.b32.xlu0 %v4695, 32
        %v5506 = vpop.permute.xlu0 %5505
        %5507 = vrot.lane.b32.xlu0 %v4696, 32
        %v5508 = vpop.permute.xlu0 %5507
        %5509 = vrot.lane.b32.xlu0 %v4697, 32
        %v5510 = vpop.permute.xlu0 %5509
        %5511 = vrot.lane.b32.xlu0 %v4698, 32
        %v5512 = vpop.permute.xlu0 %5511
        %5513 = vrot.lane.b32.xlu0 %v4699, 32
        %v5514 = vpop.permute.xlu0 %5513
        %5515 = vrot.lane.b32.xlu0 %v4700, 32
        %v5516 = vpop.permute.xlu0 %5515
        %5517 = vrot.lane.b32.xlu0 %v4701, 32
        %v5518 = vpop.permute.xlu0 %5517
        %5519 = vrot.lane.b32.xlu0 %v4702, 32
        %v5520 = vpop.permute.xlu0 %5519
        %5521 = vrot.lane.b32.xlu0 %v4703, 32
        %v5522 = vpop.permute.xlu0 %5521
        %5523 = vrot.lane.b32.xlu0 %v4704, 32
        %v5524 = vpop.permute.xlu0 %5523
        %5525 = vrot.lane.b32.xlu0 %v4705, 32
        %v5526 = vpop.permute.xlu0 %5525
        %5527 = vrot.lane.b32.xlu0 %v4706, 32
        %v5528 = vpop.permute.xlu0 %5527
        %5529 = vrot.lane.b32.xlu0 %v4707, 32
        %v5530 = vpop.permute.xlu0 %5529
        %5531 = vrot.lane.b32.xlu0 %v4708, 32
        %v5532 = vpop.permute.xlu0 %5531
        %5533 = vrot.lane.b32.xlu0 %v4709, 32
        %v5534 = vpop.permute.xlu0 %5533
        %5535 = vrot.lane.b32.xlu0 %v4710, 32
        %v5536 = vpop.permute.xlu0 %5535
        %5537 = vrot.lane.b32.xlu0 %v4711, 32
        %v5538 = vpop.permute.xlu0 %5537
        %5539 = vrot.lane.b32.xlu0 %v4712, 32
        %v5540 = vpop.permute.xlu0 %5539
        %5541 = vrot.lane.b32.xlu0 %v4713, 32
        %v5542 = vpop.permute.xlu0 %5541
        %5543 = vrot.lane.b32.xlu0 %v4714, 32
        %v5544 = vpop.permute.xlu0 %5543
        %5545 = vrot.lane.b32.xlu0 %v4715, 32
        %v5546 = vpop.permute.xlu0 %5545
        %5547 = vrot.lane.b32.xlu0 %v4716, 32
        %v5548 = vpop.permute.xlu0 %5547
        %5549 = vrot.lane.b32.xlu0 %v4717, 32
        %v5550 = vpop.permute.xlu0 %5549
        %5551 = vrot.lane.b32.xlu0 %v4718, 32
        %v5552 = vpop.permute.xlu0 %5551
        %5553 = vrot.lane.b32.xlu0 %v4719, 32
        %v5554 = vpop.permute.xlu0 %5553
        %5555 = vrot.lane.b32.xlu0 %v4720, 32
        %v5556 = vpop.permute.xlu0 %5555
        %5557 = vrot.lane.b32.xlu0 %v4721, 32
        %v5558 = vpop.permute.xlu0 %5557
        %5559 = vrot.lane.b32.xlu0 %v4722, 32
        %v5560 = vpop.permute.xlu0 %5559
        %5561 = vrot.lane.b32.xlu0 %v4723, 32
        %v5562 = vpop.permute.xlu0 %5561
        %5595 = vrot.lane.b32.xlu0 %v4694, 64
        %v5596 = vpop.permute.xlu0 %5595
        %5597 = vrot.lane.b32.xlu0 %v4695, 64
        %v5598 = vpop.permute.xlu0 %5597
        %5599 = vrot.lane.b32.xlu0 %v4696, 64
        %v5600 = vpop.permute.xlu0 %5599
        %5601 = vrot.lane.b32.xlu0 %v4697, 64
        %v5602 = vpop.permute.xlu0 %5601
        %5603 = vrot.lane.b32.xlu0 %v4698, 64
        %v5604 = vpop.permute.xlu0 %5603
        %5605 = vrot.lane.b32.xlu0 %v4699, 64
        %v5606 = vpop.permute.xlu0 %5605
        %5607 = vrot.lane.b32.xlu0 %v4700, 64
        %v5608 = vpop.permute.xlu0 %5607
        %5609 = vrot.lane.b32.xlu0 %v4701, 64
        %v5610 = vpop.permute.xlu0 %5609
        %5611 = vrot.lane.b32.xlu0 %v4702, 64
        %v5612 = vpop.permute.xlu0 %5611
        %5613 = vrot.lane.b32.xlu0 %v4703, 64
        %v5614 = vpop.permute.xlu0 %5613
        %5615 = vrot.lane.b32.xlu0 %v4704, 64
        %v5616 = vpop.permute.xlu0 %5615
        %5617 = vrot.lane.b32.xlu0 %v4705, 64
        %v5618 = vpop.permute.xlu0 %5617
        %5619 = vrot.lane.b32.xlu0 %v4706, 64
        %v5620 = vpop.permute.xlu0 %5619
        %5621 = vrot.lane.b32.xlu0 %v4707, 64
        %v5622 = vpop.permute.xlu0 %5621
        %5623 = vrot.lane.b32.xlu0 %v4708, 64
        %v5624 = vpop.permute.xlu0 %5623
        %5625 = vrot.lane.b32.xlu0 %v4709, 64
        %v5626 = vpop.permute.xlu0 %5625
        %5627 = vrot.lane.b32.xlu0 %v4710, 64
        %v5628 = vpop.permute.xlu0 %5627
        %5629 = vrot.lane.b32.xlu0 %v4711, 64
        %v5630 = vpop.permute.xlu0 %5629
        %5631 = vrot.lane.b32.xlu0 %v4712, 64
        %v5632 = vpop.permute.xlu0 %5631
        %5633 = vrot.lane.b32.xlu0 %v4713, 64
        %v5634 = vpop.permute.xlu0 %5633
        %5635 = vrot.lane.b32.xlu0 %v4714, 64
        %v5636 = vpop.permute.xlu0 %5635
        %5637 = vrot.lane.b32.xlu0 %v4715, 64
        %v5638 = vpop.permute.xlu0 %5637
        %5639 = vrot.lane.b32.xlu0 %v4716, 64
        %v5640 = vpop.permute.xlu0 %5639
        %5641 = vrot.lane.b32.xlu0 %v4717, 64
        %v5642 = vpop.permute.xlu0 %5641
        %5643 = vrot.lane.b32.xlu0 %v4718, 64
        %v5644 = vpop.permute.xlu0 %5643
        %5645 = vrot.lane.b32.xlu0 %v4719, 64
        %v5646 = vpop.permute.xlu0 %5645
        %5647 = vrot.lane.b32.xlu0 %v4720, 64
        %v5648 = vpop.permute.xlu0 %5647
        %5649 = vrot.lane.b32.xlu0 %v4721, 64
        %v5650 = vpop.permute.xlu0 %5649
        %5651 = vrot.lane.b32.xlu0 %v4722, 64
        %v5652 = vpop.permute.xlu0 %5651
        %5653 = vrot.lane.b32.xlu0 %v4723, 64
        %v5654 = vpop.permute.xlu0 %5653
        %v5685 = vsel %vm1826, 0.0, %v5500
        %v5686 = vsel %vm1826, 0.0, %v5502
        %v5687 = vsel %vm1826, %v4692, %v5504
        %v5688 = vsel %vm1826, %v4693, %v5506
        %v5689 = vsel %vm1826, %v4694, %v5508
        %v5690 = vsel %vm1826, %v4695, %v5510
        %v5691 = vsel %vm1826, %v4696, %v5512
        %v5692 = vsel %vm1826, %v4697, %v5514
        %v5693 = vsel %vm1826, %v4698, %v5516
        %v5694 = vsel %vm1826, %v4699, %v5518
        %v5695 = vsel %vm1826, %v4700, %v5520
        %v5696 = vsel %vm1826, %v4701, %v5522
        %v5697 = vsel %vm1826, %v4702, %v5524
        %v5698 = vsel %vm1826, %v4703, %v5526
        %v5699 = vsel %vm1826, %v4704, %v5528
        %v5700 = vsel %vm1826, %v4705, %v5530
        %v5701 = vsel %vm1826, %v4706, %v5532
        %v5702 = vsel %vm1826, %v4707, %v5534
        %v5703 = vsel %vm1826, %v4708, %v5536
        %v5704 = vsel %vm1826, %v4709, %v5538
        %v5705 = vsel %vm1826, %v4710, %v5540
        %v5706 = vsel %vm1826, %v4711, %v5542
        %v5707 = vsel %vm1826, %v4712, %v5544
        %v5708 = vsel %vm1826, %v4713, %v5546
        %v5709 = vsel %vm1826, %v4714, %v5548
        %v5710 = vsel %vm1826, %v4715, %v5550
        %v5711 = vsel %vm1826, %v4716, %v5552
        %v5712 = vsel %vm1826, %v4717, %v5554
        %v5713 = vsel %vm1826, %v4718, %v5556
        %v5714 = vsel %vm1826, %v4719, %v5558
        %v5715 = vsel %vm1826, %v4720, %v5560
        %v5716 = vsel %vm1826, %v4721, %v5562
        %v5717 = vsel %vm2507, %v5685, %v5596
        %v5718 = vsel %vm2507, %v5686, %v5598
        %v5719 = vsel %vm2507, %v5687, %v5600
        %v5720 = vsel %vm2507, %v5688, %v5602
        %v5721 = vsel %vm2507, %v5689, %v5604
        %v5722 = vsel %vm2507, %v5690, %v5606
        %v5723 = vsel %vm2507, %v5691, %v5608
        %v5724 = vsel %vm2507, %v5692, %v5610
        %v5725 = vsel %vm2507, %v5693, %v5612
        %v5726 = vsel %vm2507, %v5694, %v5614
        %v5727 = vsel %vm2507, %v5695, %v5616
        %v5728 = vsel %vm2507, %v5696, %v5618
        %v5729 = vsel %vm2507, %v5697, %v5620
        %v5730 = vsel %vm2507, %v5698, %v5622
        %v5731 = vsel %vm2507, %v5699, %v5624
        %v5732 = vsel %vm2507, %v5700, %v5626
        %v5733 = vsel %vm2507, %v5701, %v5628
        %v5734 = vsel %vm2507, %v5702, %v5630
        %v5735 = vsel %vm2507, %v5703, %v5632
        %v5736 = vsel %vm2507, %v5704, %v5634
        %v5737 = vsel %vm2507, %v5705, %v5636
        %v5738 = vsel %vm2507, %v5706, %v5638
        %v5739 = vsel %vm2507, %v5707, %v5640
        %v5740 = vsel %vm2507, %v5708, %v5642
        %v5741 = vsel %vm2507, %v5709, %v5644
        %v5742 = vsel %vm2507, %v5710, %v5646
        %v5743 = vsel %vm2507, %v5711, %v5648
        %v5744 = vsel %vm2507, %v5712, %v5650
        %v5745 = vsel %vm2507, %v5713, %v5652
        %v5746 = vsel %vm2507, %v5714, %v5654
        %v5747 = vsel %vm2507, %v5715, %v2270
        %v5748 = vsel %vm2507, %v5716, %v2270
        %v5750 = vlaneseq
        %v5751 = vshrl.u32 %v5750, 7
        %v5752 = vsub.s32 0, %v5751
        %v5753 = vrot.slane %v1345, %v5752
        %v5755 = vadd.f32 %v5753, 0.0
        %v5757 = vsel %vm2539, %v5717, 0
        %v5760 = vsel %vm2539, %v5718, 0
        %v5763 = vsel %vm2539, %v5719, 0
        %v5766 = vsel %vm2539, %v5720, 0
        %v5769 = vsel %vm2539, %v5721, 0
        %v5772 = vsel %vm2539, %v5722, 0
        %v5775 = vsel %vm2539, %v5723, 0
        %v5778 = vsel %vm2539, %v5724, 0
        %v5781 = vsel %vm2539, %v5725, 0
        %v5784 = vsel %vm2539, %v5726, 0
        %v5787 = vsel %vm2539, %v5727, 0
        %v5790 = vsel %vm2539, %v5728, 0
        %v5793 = vsel %vm2539, %v5729, 0
        %v5796 = vsel %vm2539, %v5730, 0
        %v5799 = vsel %vm2539, %v5731, 0
        %v5802 = vsel %vm2539, %v5732, 0
        %v5805 = vsel %vm2539, %v5733, 0
        %v5808 = vsel %vm2539, %v5734, 0
        %v5811 = vsel %vm2539, %v5735, 0
        %v5814 = vsel %vm2539, %v5736, 0
        %v5817 = vsel %vm2539, %v5737, 0
        %v5820 = vsel %vm2539, %v5738, 0
        %v5823 = vsel %vm2539, %v5739, 0
        %v5826 = vsel %vm2539, %v5740, 0
        %v5829 = vsel %vm2539, %v5741, 0
        %v5832 = vsel %vm2539, %v5742, 0
        %v5835 = vsel %vm2539, %v5743, 0
        %v5838 = vsel %vm2539, %v5744, 0
        %v5841 = vsel %vm2539, %v5745, 0
        %v5844 = vsel %vm2539, %v5746, 0
        %v5847 = vsel %vm2539, %v5747, 0
        %v5850 = vsel %vm2539, %v5748, 0
        %5852 = vmatprep.subr.mxu0 0.0
        %5853 = vmatpush1.msra.mxu0 %v1321
        %5854 = vmatprep.subr.mxu0 0.0
        %5855 = vmatpush1.msra.mxu0 %v1322
        %5856 = vmatprep.subr.mxu0 0.0
        %5857 = vmatpush1.msra.mxu0 %v1323
        %5858 = vmatprep.subr.mxu0 0.0
        %5859 = vmatpush1.msra.mxu0 %v1324
        %5860 = vmatprep.subr.mxu0 0.0
        %5861 = vmatpush1.msra.mxu0 %v1325
        %5862 = vmatprep.subr.mxu0 0.0
        %5863 = vmatpush1.msra.mxu0 %v1326
        %5864 = vmatprep.subr.mxu0 0.0
        %5865 = vmatpush1.msra.mxu0 %v1327
        %5866 = vmatprep.subr.mxu0 0.0
        %5867 = vmatpush1.msra.mxu0 %v1328
        %5868 = vmatprep.subr.mxu0 0.0
        %5869 = vmatpush1.msra.mxu0 %v1329
        %5870 = vmatprep.subr.mxu0 0.0
        %5871 = vmatpush1.msra.mxu0 %v1330
        %5872 = vmatprep.subr.mxu0 0.0
        %5873 = vmatpush1.msra.mxu0 %v1331
        %5874 = vmatprep.subr.mxu0 0.0
        %5875 = vmatpush1.msra.mxu0 %v1332
        %5876 = vmatprep.subr.mxu0 0.0
        %5877 = vmatpush1.msra.mxu0 0.0
        %5878 = vmatprep.subr.mxu0 0.0
        %5879 = vmatpush1.msra.mxu0 0.0
        %5880 = vmatprep.subr.mxu0 0.0
        %5881 = vmatpush1.msra.mxu0 0.0
        %5882 = vmatprep.subr.mxu0 0.0
        %5883 = vmatpush1.msra.mxu0 0.0
        %5884 = vmatprep.subr.mxu0 0.0
        %5885 = vmatpush1.msra.mxu0 0.0
        %5886 = vmatprep.subr.mxu0 0.0
        %5887 = vmatpush1.msra.mxu0 0.0
        %5888 = vmatprep.subr.mxu0 0.0
        %5889 = vmatpush1.msra.mxu0 0.0
        %5890 = vmatprep.subr.mxu0 0.0
        %5891 = vmatpush1.msra.mxu0 0.0
        %5892 = vmatprep.subr.mxu0 0.0
        %5893 = vmatpush1.msra.mxu0 0.0
        %5894 = vmatprep.subr.mxu0 0.0
        %5895 = vmatpush1.msra.mxu0 0.0
        %5896 = vmatprep.subr.mxu0 0.0
        %5897 = vmatpush1.msra.mxu0 0.0
        %5898 = vmatprep.subr.mxu0 0.0
        %5899 = vmatpush1.msra.mxu0 0.0
        %5900 = vmatprep.subr.mxu0 0.0
        %5901 = vmatpush1.msra.mxu0 0.0
        %5902 = vmatprep.subr.mxu0 0.0
        %5903 = vmatpush1.msra.mxu0 0.0
        %5904 = vmatprep.subr.mxu0 0.0
        %5905 = vmatpush1.msra.mxu0 0.0
        %5906 = vmatprep.subr.mxu0 0.0
        %5907 = vmatpush1.msra.mxu0 0.0
        %5908 = vmatprep.subr.mxu0 0.0
        %5909 = vmatpush1.msra.mxu0 0.0
        %5910 = vmatprep.subr.mxu0 0.0
        %5911 = vmatpush1.msra.mxu0 0.0
        %5912 = vmatprep.subr.mxu0 0.0
        %5913 = vmatpush1.msra.mxu0 0.0
        %5914 = vmatprep.subr.mxu0 0.0
        %5915 = vmatpush1.msra.mxu0 0.0
        %5916 = vmatprep.mubr.f32.mxu0 0.0
        %5917 = vmatmul.mubr.f32.gmra.mrb[0].mxu0 %v5757
        %v5918 = vpop.f32.mrb[0].mxu0
        %v5919 = vadd.f32 0.0, %v5918
        %v5920 = vpop.f32.mrb[0].mxu0
        %5921 = vmatprep.mubr.f32.mxu0 0.0
        %5922 = vmatmul.mubr.f32.gmra.mrb[0].mxu0 %v5760
        %v5923 = vpop.f32.mrb[0].mxu0
        %v5924 = vadd.f32 0.0, %v5923
        %v5925 = vpop.f32.mrb[0].mxu0
        %5926 = vmatprep.mubr.f32.mxu0 0.0
        %5927 = vmatmul.mubr.f32.gmra.mrb[0].mxu0 %v5763
        %v5928 = vpop.f32.mrb[0].mxu0
        %v5929 = vadd.f32 0.0, %v5928
        %v5930 = vpop.f32.mrb[0].mxu0
        %5931 = vmatprep.mubr.f32.mxu0 0.0
        %5932 = vmatmul.mubr.f32.gmra.mrb[0].mxu0 %v5766
        %v5933 = vpop.f32.mrb[0].mxu0
        %v5934 = vadd.f32 0.0, %v5933
        %v5935 = vpop.f32.mrb[0].mxu0
        %5936 = vmatprep.mubr.f32.mxu0 0.0
        %5937 = vmatmul.mubr.f32.gmra.mrb[0].mxu0 %v5769
        %v5938 = vpop.f32.mrb[0].mxu0
        %v5939 = vadd.f32 0.0, %v5938
        %v5940 = vpop.f32.mrb[0].mxu0
        %5941 = vmatprep.mubr.f32.mxu0 0.0
        %5942 = vmatmul.mubr.f32.gmra.mrb[0].mxu0 %v5772
        %v5943 = vpop.f32.mrb[0].mxu0
        %v5944 = vadd.f32 0.0, %v5943
        %v5945 = vpop.f32.mrb[0].mxu0
        %5946 = vmatprep.mubr.f32.mxu0 0.0
        %5947 = vmatmul.mubr.f32.gmra.mrb[0].mxu0 %v5775
        %v5948 = vpop.f32.mrb[0].mxu0
        %v5949 = vadd.f32 0.0, %v5948
        %v5950 = vpop.f32.mrb[0].mxu0
        %5951 = vmatprep.mubr.f32.mxu0 0.0
        %5952 = vmatmul.mubr.f32.gmra.mrb[0].mxu0 %v5778
        %v5953 = vpop.f32.mrb[0].mxu0
        %v5954 = vadd.f32 0.0, %v5953
        %v5955 = vpop.f32.mrb[0].mxu0
        %5956 = vmatprep.mubr.f32.mxu0 0.0
        %5957 = vmatmul.mubr.f32.gmra.mrb[0].mxu0 %v5781
        %v5958 = vpop.f32.mrb[0].mxu0
        %v5959 = vadd.f32 0.0, %v5958
        %v5960 = vpop.f32.mrb[0].mxu0
        %5961 = vmatprep.mubr.f32.mxu0 0.0
        %5962 = vmatmul.mubr.f32.gmra.mrb[0].mxu0 %v5784
        %v5963 = vpop.f32.mrb[0].mxu0
        %v5964 = vadd.f32 0.0, %v5963
        %v5965 = vpop.f32.mrb[0].mxu0
        %5966 = vmatprep.mubr.f32.mxu0 0.0
        %5967 = vmatmul.mubr.f32.gmra.mrb[0].mxu0 %v5787
        %v5968 = vpop.f32.mrb[0].mxu0
        %v5969 = vadd.f32 0.0, %v5968
        %v5970 = vpop.f32.mrb[0].mxu0
        %5971 = vmatprep.mubr.f32.mxu0 0.0
        %5972 = vmatmul.mubr.f32.gmra.mrb[0].mxu0 %v5790
        %v5973 = vpop.f32.mrb[0].mxu0
        %v5974 = vadd.f32 0.0, %v5973
        %v5975 = vpop.f32.mrb[0].mxu0
        %5976 = vmatprep.mubr.f32.mxu0 0.0
        %5977 = vmatmul.mubr.f32.gmra.mrb[0].mxu0 %v5793
        %v5978 = vpop.f32.mrb[0].mxu0
        %v5979 = vadd.f32 0.0, %v5978
        %v5980 = vpop.f32.mrb[0].mxu0
        %5981 = vmatprep.mubr.f32.mxu0 0.0
        %5982 = vmatmul.mubr.f32.gmra.mrb[0].mxu0 %v5796
        %v5983 = vpop.f32.mrb[0].mxu0
        %v5984 = vadd.f32 0.0, %v5983
        %v5985 = vpop.f32.mrb[0].mxu0
        %5986 = vmatprep.mubr.f32.mxu0 0.0
        %5987 = vmatmul.mubr.f32.gmra.mrb[0].mxu0 %v5799
        %v5988 = vpop.f32.mrb[0].mxu0
        %v5989 = vadd.f32 0.0, %v5988
        %v5990 = vpop.f32.mrb[0].mxu0
        %5991 = vmatprep.mubr.f32.mxu0 0.0
        %5992 = vmatmul.mubr.f32.gmra.mrb[0].mxu0 %v5802
        %v5993 = vpop.f32.mrb[0].mxu0
        %v5994 = vadd.f32 0.0, %v5993
        %v5995 = vpop.f32.mrb[0].mxu0
        %5996 = vmatprep.mubr.f32.mxu0 0.0
        %5997 = vmatmul.mubr.f32.gmra.mrb[0].mxu0 %v5805
        %v5998 = vpop.f32.mrb[0].mxu0
        %v5999 = vadd.f32 0.0, %v5998
        %v6000 = vpop.f32.mrb[0].mxu0
        %6001 = vmatprep.mubr.f32.mxu0 0.0
        %6002 = vmatmul.mubr.f32.gmra.mrb[0].mxu0 %v5808
        %v6003 = vpop.f32.mrb[0].mxu0
        %v6004 = vadd.f32 0.0, %v6003
        %v6005 = vpop.f32.mrb[0].mxu0
        %6006 = vmatprep.mubr.f32.mxu0 0.0
        %6007 = vmatmul.mubr.f32.gmra.mrb[0].mxu0 %v5811
        %v6008 = vpop.f32.mrb[0].mxu0
        %v6009 = vadd.f32 0.0, %v6008
        %v6010 = vpop.f32.mrb[0].mxu0
        %6011 = vmatprep.mubr.f32.mxu0 0.0
        %6012 = vmatmul.mubr.f32.gmra.mrb[0].mxu0 %v5814
        %v6013 = vpop.f32.mrb[0].mxu0
        %v6014 = vadd.f32 0.0, %v6013
        %v6015 = vpop.f32.mrb[0].mxu0
        %6016 = vmatprep.mubr.f32.mxu0 0.0
        %6017 = vmatmul.mubr.f32.gmra.mrb[0].mxu0 %v5817
        %v6018 = vpop.f32.mrb[0].mxu0
        %v6019 = vadd.f32 0.0, %v6018
        %v6020 = vpop.f32.mrb[0].mxu0
        %6021 = vmatprep.mubr.f32.mxu0 0.0
        %6022 = vmatmul.mubr.f32.gmra.mrb[0].mxu0 %v5820
        %v6023 = vpop.f32.mrb[0].mxu0
        %v6024 = vadd.f32 0.0, %v6023
        %v6025 = vpop.f32.mrb[0].mxu0
        %6026 = vmatprep.mubr.f32.mxu0 0.0
        %6027 = vmatmul.mubr.f32.gmra.mrb[0].mxu0 %v5823
        %v6028 = vpop.f32.mrb[0].mxu0
        %v6029 = vadd.f32 0.0, %v6028
        %v6030 = vpop.f32.mrb[0].mxu0
        %6031 = vmatprep.mubr.f32.mxu0 0.0
        %6032 = vmatmul.mubr.f32.gmra.mrb[0].mxu0 %v5826
        %v6033 = vpop.f32.mrb[0].mxu0
        %v6034 = vadd.f32 0.0, %v6033
        %v6035 = vpop.f32.mrb[0].mxu0
        %6036 = vmatprep.mubr.f32.mxu0 0.0
        %6037 = vmatmul.mubr.f32.gmra.mrb[0].mxu0 %v5829
        %v6038 = vpop.f32.mrb[0].mxu0
        %v6039 = vadd.f32 0.0, %v6038
        %v6040 = vpop.f32.mrb[0].mxu0
        %6041 = vmatprep.mubr.f32.mxu0 0.0
        %6042 = vmatmul.mubr.f32.gmra.mrb[0].mxu0 %v5832
        %v6043 = vpop.f32.mrb[0].mxu0
        %v6044 = vadd.f32 0.0, %v6043
        %v6045 = vpop.f32.mrb[0].mxu0
        %6046 = vmatprep.mubr.f32.mxu0 0.0
        %6047 = vmatmul.mubr.f32.gmra.mrb[0].mxu0 %v5835
        %v6048 = vpop.f32.mrb[0].mxu0
        %v6049 = vadd.f32 0.0, %v6048
        %v6050 = vpop.f32.mrb[0].mxu0
        %6051 = vmatprep.mubr.f32.mxu0 0.0
        %6052 = vmatmul.mubr.f32.gmra.mrb[0].mxu0 %v5838
        %v6053 = vpop.f32.mrb[0].mxu0
        %v6054 = vadd.f32 0.0, %v6053
        %v6055 = vpop.f32.mrb[0].mxu0
        %6056 = vmatprep.mubr.f32.mxu0 0.0
        %6057 = vmatmul.mubr.f32.gmra.mrb[0].mxu0 %v5841
        %v6058 = vpop.f32.mrb[0].mxu0
        %v6059 = vadd.f32 0.0, %v6058
        %v6060 = vpop.f32.mrb[0].mxu0
        %6061 = vmatprep.mubr.f32.mxu0 0.0
        %6062 = vmatmul.mubr.f32.gmra.mrb[0].mxu0 %v5844
        %v6063 = vpop.f32.mrb[0].mxu0
        %v6064 = vadd.f32 0.0, %v6063
        %v6065 = vpop.f32.mrb[0].mxu0
        %6066 = vmatprep.mubr.f32.mxu0 0.0
        %6067 = vmatmul.mubr.f32.gmra.mrb[0].mxu0 %v5847
        %v6068 = vpop.f32.mrb[0].mxu0
        %v6069 = vadd.f32 0.0, %v6068
        %v6070 = vpop.f32.mrb[0].mxu0
        %6071 = vmatprep.mubr.f32.mxu0 0.0
        %6072 = vmatmul.mubr.f32.gmra.mrb[0].mxu0 %v5850
        %v6073 = vpop.f32.mrb[0].mxu0
        %v6074 = vadd.f32 0.0, %v6073
        %v6075 = vpop.f32.mrb[0].mxu0
        %6076 = vdwg.mxu0
        %v6077 = vrot.slane %v5919, 7
        %v6078 = vrot.slane %v5929, 7
        %v6079 = vrot.slane %v5939, 7
        %v6080 = vrot.slane %v5949, 7
        %v6081 = vrot.slane %v5959, 7
        %v6082 = vrot.slane %v5969, 7
        %v6083 = vrot.slane %v5979, 7
        %v6084 = vrot.slane %v5989, 7
        %v6085 = vrot.slane %v5999, 7
        %v6086 = vrot.slane %v6009, 7
        %v6087 = vrot.slane %v6019, 7
        %v6088 = vrot.slane %v6029, 7
        %v6089 = vrot.slane %v6039, 7
        %v6090 = vrot.slane %v6049, 7
        %v6091 = vrot.slane %v6059, 7
        %v6092 = vrot.slane %v6069, 7
        %v6093 = vrot.slane %v5924, 7
        %v6094 = vrot.slane %v5934, 7
        %v6095 = vrot.slane %v5944, 7
        %v6096 = vrot.slane %v5954, 7
        %v6097 = vrot.slane %v5964, 7
        %v6098 = vrot.slane %v5974, 7
        %v6099 = vrot.slane %v5984, 7
        %v6100 = vrot.slane %v5994, 7
        %v6101 = vrot.slane %v6004, 7
        %v6102 = vrot.slane %v6014, 7
        %v6103 = vrot.slane %v6024, 7
        %v6104 = vrot.slane %v6034, 7
        %v6105 = vrot.slane %v6044, 7
        %v6106 = vrot.slane %v6054, 7
        %v6107 = vrot.slane %v6064, 7
        %v6108 = vrot.slane %v6074, 7
        %v6109 = vsel %vm3661, %v6077, %v6093
        %v6110 = vsel %vm3661, %v6078, %v6094
        %v6111 = vsel %vm3661, %v6079, %v6095
        %v6112 = vsel %vm3661, %v6080, %v6096
        %v6113 = vsel %vm3661, %v6081, %v6097
        %v6114 = vsel %vm3661, %v6082, %v6098
        %v6115 = vsel %vm3661, %v6083, %v6099
        %v6116 = vsel %vm3661, %v6084, %v6100
        %v6117 = vsel %vm3661, %v6085, %v6101
        %v6118 = vsel %vm3661, %v6086, %v6102
        %v6119 = vsel %vm3661, %v6087, %v6103
        %v6120 = vsel %vm3661, %v6088, %v6104
        %v6121 = vsel %vm3661, %v6089, %v6105
        %v6122 = vsel %vm3661, %v6090, %v6106
        %v6123 = vsel %vm3661, %v6091, %v6107
        %v6124 = vsel %vm3661, %v6092, %v6108
        %v6125 = vsel %vm3661, %v6093, %v6077
        %v6126 = vsel %vm3661, %v6094, %v6078
        %v6127 = vsel %vm3661, %v6095, %v6079
        %v6128 = vsel %vm3661, %v6096, %v6080
        %v6129 = vsel %vm3661, %v6097, %v6081
        %v6130 = vsel %vm3661, %v6098, %v6082
        %v6131 = vsel %vm3661, %v6099, %v6083
        %v6132 = vsel %vm3661, %v6100, %v6084
        %v6133 = vsel %vm3661, %v6101, %v6085
        %v6134 = vsel %vm3661, %v6102, %v6086
        %v6135 = vsel %vm3661, %v6103, %v6087
        %v6136 = vsel %vm3661, %v6104, %v6088
        %v6137 = vsel %vm3661, %v6105, %v6089
        %v6138 = vsel %vm3661, %v6106, %v6090
        %v6139 = vsel %vm3661, %v6107, %v6091
        %v6140 = vsel %vm3661, %v6108, %v6092
        %v6141 = vsel %vm3698, %v6125, 0.0
        %v6142 = vsel %vm3699, %v6109, 0.0
        %v6143 = vsel %vm3698, %v6126, 0.0
        %v6144 = vsel %vm3699, %v6110, 0.0
        %v6145 = vsel %vm3698, %v6127, 0.0
        %v6146 = vsel %vm3699, %v6111, 0.0
        %v6147 = vsel %vm3698, %v6128, 0.0
        %v6148 = vsel %vm3699, %v6112, 0.0
        %v6149 = vsel %vm3698, %v6129, 0.0
        %v6150 = vsel %vm3699, %v6113, 0.0
        %v6151 = vsel %vm3698, %v6130, 0.0
        %v6152 = vsel %vm3699, %v6114, 0.0
        %v6153 = vsel %vm3698, %v6131, 0.0
        %v6154 = vsel %vm3699, %v6115, 0.0
        %v6155 = vsel %vm3698, %v6132, 0.0
        %v6156 = vsel %vm3699, %v6116, 0.0
        %v6157 = vsel %vm3698, %v6133, 0.0
        %v6158 = vsel %vm3699, %v6117, 0.0
        %v6159 = vsel %vm3698, %v6134, 0.0
        %v6160 = vsel %vm3699, %v6118, 0.0
        %v6161 = vsel %vm3698, %v6135, 0.0
        %v6162 = vsel %vm3699, %v6119, 0.0
        %v6163 = vsel %vm3698, %v6136, 0.0
        %v6164 = vsel %vm3699, %v6120, 0.0
        %v6165 = vsel %vm3698, %v6137, 0.0
        %v6166 = vsel %vm3699, %v6121, 0.0
        %v6167 = vsel %vm3698, %v6138, 0.0
        %v6168 = vsel %vm3699, %v6122, 0.0
        %v6169 = vsel %vm3698, %v6139, 0.0
        %v6170 = vsel %vm3699, %v6123, 0.0
        %v6171 = vsel %vm3698, %v6140, 0.0
        %v6172 = vsel %vm3699, %v6124, 0.0
        %v6173 = vadd.f32 %v5755, %v6141
        %v6174 = vadd.f32 %v5755, %v6142
        %v6175 = vadd.f32 %v5755, %v6143
        %v6176 = vadd.f32 %v5755, %v6144
        %v6177 = vadd.f32 %v5755, %v6145
        %v6178 = vadd.f32 %v5755, %v6146
        %v6179 = vadd.f32 %v5755, %v6147
        %v6180 = vadd.f32 %v5755, %v6148
        %v6181 = vadd.f32 %v5755, %v6149
        %v6182 = vadd.f32 %v5755, %v6150
        %v6183 = vadd.f32 %v5755, %v6151
        %v6184 = vadd.f32 %v5755, %v6152
        %v6185 = vadd.f32 %v5755, %v6153
        %v6186 = vadd.f32 %v5755, %v6154
        %v6187 = vadd.f32 %v5755, %v6155
        %v6188 = vadd.f32 %v5755, %v6156
        %v6189 = vadd.f32 %v5755, %v6157
        %v6190 = vadd.f32 %v5755, %v6158
        %v6191 = vadd.f32 %v5755, %v6159
        %v6192 = vadd.f32 %v5755, %v6160
        %v6193 = vadd.f32 %v5755, %v6161
        %v6194 = vadd.f32 %v5755, %v6162
        %v6195 = vadd.f32 %v5755, %v6163
        %v6196 = vadd.f32 %v5755, %v6164
        %v6197 = vadd.f32 %v5755, %v6165
        %v6198 = vadd.f32 %v5755, %v6166
        %v6199 = vadd.f32 %v5755, %v6167
        %v6200 = vadd.f32 %v5755, %v6168
        %v6201 = vadd.f32 %v5755, %v6169
        %v6202 = vadd.f32 %v5755, %v6170
        %v6203 = vadd.f32 %v5755, %v6171
        %v6204 = vadd.f32 %v5755, %v6172
        %6205 = vmatprep.subr.mxu0 0.0
        %6206 = vmatpush1.msra.mxu0 %v1333
        %6207 = vmatprep.subr.mxu0 0.0
        %6208 = vmatpush1.msra.mxu0 %v1334
        %6209 = vmatprep.subr.mxu0 0.0
        %6210 = vmatpush1.msra.mxu0 %v1335
        %6211 = vmatprep.subr.mxu0 0.0
        %6212 = vmatpush1.msra.mxu0 %v1336
        %6213 = vmatprep.subr.mxu0 0.0
        %6214 = vmatpush1.msra.mxu0 %v1337
        %6215 = vmatprep.subr.mxu0 0.0
        %6216 = vmatpush1.msra.mxu0 %v1338
        %6217 = vmatprep.subr.mxu0 0.0
        %6218 = vmatpush1.msra.mxu0 %v1339
        %6219 = vmatprep.subr.mxu0 0.0
        %6220 = vmatpush1.msra.mxu0 %v1340
        %6221 = vmatprep.subr.mxu0 0.0
        %6222 = vmatpush1.msra.mxu0 %v1341
        %6223 = vmatprep.subr.mxu0 0.0
        %6224 = vmatpush1.msra.mxu0 %v1342
        %6225 = vmatprep.subr.mxu0 0.0
        %6226 = vmatpush1.msra.mxu0 %v1343
        %6227 = vmatprep.subr.mxu0 0.0
        %6228 = vmatpush1.msra.mxu0 %v1344
        %6229 = vmatprep.subr.mxu0 0.0
        %6230 = vmatpush1.msra.mxu0 0.0
        %6231 = vmatprep.subr.mxu0 0.0
        %6232 = vmatpush1.msra.mxu0 0.0
        %6233 = vmatprep.subr.mxu0 0.0
        %6234 = vmatpush1.msra.mxu0 0.0
        %6235 = vmatprep.subr.mxu0 0.0
        %6236 = vmatpush1.msra.mxu0 0.0
        %6237 = vmatprep.subr.mxu0 0.0
        %6238 = vmatpush1.msra.mxu0 0.0
        %6239 = vmatprep.subr.mxu0 0.0
        %6240 = vmatpush1.msra.mxu0 0.0
        %6241 = vmatprep.subr.mxu0 0.0
        %6242 = vmatpush1.msra.mxu0 0.0
        %6243 = vmatprep.subr.mxu0 0.0
        %6244 = vmatpush1.msra.mxu0 0.0
        %6245 = vmatprep.subr.mxu0 0.0
        %6246 = vmatpush1.msra.mxu0 0.0
        %6247 = vmatprep.subr.mxu0 0.0
        %6248 = vmatpush1.msra.mxu0 0.0
        %6249 = vmatprep.subr.mxu0 0.0
        %6250 = vmatpush1.msra.mxu0 0.0
        %6251 = vmatprep.subr.mxu0 0.0
        %6252 = vmatpush1.msra.mxu0 0.0
        %6253 = vmatprep.subr.mxu0 0.0
        %6254 = vmatpush1.msra.mxu0 0.0
        %6255 = vmatprep.subr.mxu0 0.0
        %6256 = vmatpush1.msra.mxu0 0.0
        %6257 = vmatprep.subr.mxu0 0.0
        %6258 = vmatpush1.msra.mxu0 0.0
        %6259 = vmatprep.subr.mxu0 0.0
        %6260 = vmatpush1.msra.mxu0 0.0
        %6261 = vmatprep.subr.mxu0 0.0
        %6262 = vmatpush1.msra.mxu0 0.0
        %6263 = vmatprep.subr.mxu0 0.0
        %6264 = vmatpush1.msra.mxu0 0.0
        %6265 = vmatprep.subr.mxu0 0.0
        %6266 = vmatpush1.msra.mxu0 0.0
        %6267 = vmatprep.subr.mxu0 0.0
        %6268 = vmatpush1.msra.mxu0 0.0
        %6269 = vmatprep.mubr.f32.mxu0 0.0
        %6270 = vmatmul.mubr.f32.gmra.mrb[0].mxu0 %v5757
        %v6271 = vpop.f32.mrb[0].mxu0
        %v6272 = vadd.f32 0.0, %v6271
        %v6273 = vpop.f32.mrb[0].mxu0
        %6274 = vmatprep.mubr.f32.mxu0 0.0
        %6275 = vmatmul.mubr.f32.gmra.mrb[0].mxu0 %v5760
        %v6276 = vpop.f32.mrb[0].mxu0
        %v6277 = vadd.f32 0.0, %v6276
        %v6278 = vpop.f32.mrb[0].mxu0
        %6279 = vmatprep.mubr.f32.mxu0 0.0
        %6280 = vmatmul.mubr.f32.gmra.mrb[0].mxu0 %v5763
        %v6281 = vpop.f32.mrb[0].mxu0
        %v6282 = vadd.f32 0.0, %v6281
        %v6283 = vpop.f32.mrb[0].mxu0
        %6284 = vmatprep.mubr.f32.mxu0 0.0
        %6285 = vmatmul.mubr.f32.gmra.mrb[0].mxu0 %v5766
        %v6286 = vpop.f32.mrb[0].mxu0
        %v6287 = vadd.f32 0.0, %v6286
        %v6288 = vpop.f32.mrb[0].mxu0
        %6289 = vmatprep.mubr.f32.mxu0 0.0
        %6290 = vmatmul.mubr.f32.gmra.mrb[0].mxu0 %v5769
        %v6291 = vpop.f32.mrb[0].mxu0
        %v6292 = vadd.f32 0.0, %v6291
        %v6293 = vpop.f32.mrb[0].mxu0
        %6294 = vmatprep.mubr.f32.mxu0 0.0
        %6295 = vmatmul.mubr.f32.gmra.mrb[0].mxu0 %v5772
        %v6296 = vpop.f32.mrb[0].mxu0
        %v6297 = vadd.f32 0.0, %v6296
        %v6298 = vpop.f32.mrb[0].mxu0
        %6299 = vmatprep.mubr.f32.mxu0 0.0
        %6300 = vmatmul.mubr.f32.gmra.mrb[0].mxu0 %v5775
        %v6301 = vpop.f32.mrb[0].mxu0
        %v6302 = vadd.f32 0.0, %v6301
        %v6303 = vpop.f32.mrb[0].mxu0
        %6304 = vmatprep.mubr.f32.mxu0 0.0
        %6305 = vmatmul.mubr.f32.gmra.mrb[0].mxu0 %v5778
        %v6306 = vpop.f32.mrb[0].mxu0
        %v6307 = vadd.f32 0.0, %v6306
        %v6308 = vpop.f32.mrb[0].mxu0
        %6309 = vmatprep.mubr.f32.mxu0 0.0
        %6310 = vmatmul.mubr.f32.gmra.mrb[0].mxu0 %v5781
        %v6311 = vpop.f32.mrb[0].mxu0
        %v6312 = vadd.f32 0.0, %v6311
        %v6313 = vpop.f32.mrb[0].mxu0
        %6314 = vmatprep.mubr.f32.mxu0 0.0
        %6315 = vmatmul.mubr.f32.gmra.mrb[0].mxu0 %v5784
        %v6316 = vpop.f32.mrb[0].mxu0
        %v6317 = vadd.f32 0.0, %v6316
        %v6318 = vpop.f32.mrb[0].mxu0
        %6319 = vmatprep.mubr.f32.mxu0 0.0
        %6320 = vmatmul.mubr.f32.gmra.mrb[0].mxu0 %v5787
        %v6321 = vpop.f32.mrb[0].mxu0
        %v6322 = vadd.f32 0.0, %v6321
        %v6323 = vpop.f32.mrb[0].mxu0
        %6324 = vmatprep.mubr.f32.mxu0 0.0
        %6325 = vmatmul.mubr.f32.gmra.mrb[0].mxu0 %v5790
        %v6326 = vpop.f32.mrb[0].mxu0
        %v6327 = vadd.f32 0.0, %v6326
        %v6328 = vpop.f32.mrb[0].mxu0
        %6329 = vmatprep.mubr.f32.mxu0 0.0
        %6330 = vmatmul.mubr.f32.gmra.mrb[0].mxu0 %v5793
        %v6331 = vpop.f32.mrb[0].mxu0
        %v6332 = vadd.f32 0.0, %v6331
        %v6333 = vpop.f32.mrb[0].mxu0
        %6334 = vmatprep.mubr.f32.mxu0 0.0
        %6335 = vmatmul.mubr.f32.gmra.mrb[0].mxu0 %v5796
        %v6336 = vpop.f32.mrb[0].mxu0
        %v6337 = vadd.f32 0.0, %v6336
        %v6338 = vpop.f32.mrb[0].mxu0
        %6339 = vmatprep.mubr.f32.mxu0 0.0
        %6340 = vmatmul.mubr.f32.gmra.mrb[0].mxu0 %v5799
        %v6341 = vpop.f32.mrb[0].mxu0
        %v6342 = vadd.f32 0.0, %v6341
        %v6343 = vpop.f32.mrb[0].mxu0
        %6344 = vmatprep.mubr.f32.mxu0 0.0
        %6345 = vmatmul.mubr.f32.gmra.mrb[0].mxu0 %v5802
        %v6346 = vpop.f32.mrb[0].mxu0
        %v6347 = vadd.f32 0.0, %v6346
        %v6348 = vpop.f32.mrb[0].mxu0
        %6349 = vmatprep.mubr.f32.mxu0 0.0
        %6350 = vmatmul.mubr.f32.gmra.mrb[0].mxu0 %v5805
        %v6351 = vpop.f32.mrb[0].mxu0
        %v6352 = vadd.f32 0.0, %v6351
        %v6353 = vpop.f32.mrb[0].mxu0
        %6354 = vmatprep.mubr.f32.mxu0 0.0
        %6355 = vmatmul.mubr.f32.gmra.mrb[0].mxu0 %v5808
        %v6356 = vpop.f32.mrb[0].mxu0
        %v6357 = vadd.f32 0.0, %v6356
        %v6358 = vpop.f32.mrb[0].mxu0
        %6359 = vmatprep.mubr.f32.mxu0 0.0
        %6360 = vmatmul.mubr.f32.gmra.mrb[0].mxu0 %v5811
        %v6361 = vpop.f32.mrb[0].mxu0
        %v6362 = vadd.f32 0.0, %v6361
        %v6363 = vpop.f32.mrb[0].mxu0
        %6364 = vmatprep.mubr.f32.mxu0 0.0
        %6365 = vmatmul.mubr.f32.gmra.mrb[0].mxu0 %v5814
        %v6366 = vpop.f32.mrb[0].mxu0
        %v6367 = vadd.f32 0.0, %v6366
        %v6368 = vpop.f32.mrb[0].mxu0
        %6369 = vmatprep.mubr.f32.mxu0 0.0
        %6370 = vmatmul.mubr.f32.gmra.mrb[0].mxu0 %v5817
        %v6371 = vpop.f32.mrb[0].mxu0
        %v6372 = vadd.f32 0.0, %v6371
        %v6373 = vpop.f32.mrb[0].mxu0
        %6374 = vmatprep.mubr.f32.mxu0 0.0
        %6375 = vmatmul.mubr.f32.gmra.mrb[0].mxu0 %v5820
        %v6376 = vpop.f32.mrb[0].mxu0
        %v6377 = vadd.f32 0.0, %v6376
        %v6378 = vpop.f32.mrb[0].mxu0
        %6379 = vmatprep.mubr.f32.mxu0 0.0
        %6380 = vmatmul.mubr.f32.gmra.mrb[0].mxu0 %v5823
        %v6381 = vpop.f32.mrb[0].mxu0
        %v6382 = vadd.f32 0.0, %v6381
        %v6383 = vpop.f32.mrb[0].mxu0
        %6384 = vmatprep.mubr.f32.mxu0 0.0
        %6385 = vmatmul.mubr.f32.gmra.mrb[0].mxu0 %v5826
        %v6386 = vpop.f32.mrb[0].mxu0
        %v6387 = vadd.f32 0.0, %v6386
        %v6388 = vpop.f32.mrb[0].mxu0
        %6389 = vmatprep.mubr.f32.mxu0 0.0
        %6390 = vmatmul.mubr.f32.gmra.mrb[0].mxu0 %v5829
        %v6391 = vpop.f32.mrb[0].mxu0
        %v6392 = vadd.f32 0.0, %v6391
        %v6393 = vpop.f32.mrb[0].mxu0
        %6394 = vmatprep.mubr.f32.mxu0 0.0
        %6395 = vmatmul.mubr.f32.gmra.mrb[0].mxu0 %v5832
        %v6396 = vpop.f32.mrb[0].mxu0
        %v6397 = vadd.f32 0.0, %v6396
        %v6398 = vpop.f32.mrb[0].mxu0
        %6399 = vmatprep.mubr.f32.mxu0 0.0
        %6400 = vmatmul.mubr.f32.gmra.mrb[0].mxu0 %v5835
        %v6401 = vpop.f32.mrb[0].mxu0
        %v6402 = vadd.f32 0.0, %v6401
        %v6403 = vpop.f32.mrb[0].mxu0
        %6404 = vmatprep.mubr.f32.mxu0 0.0
        %6405 = vmatmul.mubr.f32.gmra.mrb[0].mxu0 %v5838
        %v6406 = vpop.f32.mrb[0].mxu0
        %v6407 = vadd.f32 0.0, %v6406
        %v6408 = vpop.f32.mrb[0].mxu0
        %6409 = vmatprep.mubr.f32.mxu0 0.0
        %6410 = vmatmul.mubr.f32.gmra.mrb[0].mxu0 %v5841
        %v6411 = vpop.f32.mrb[0].mxu0
        %v6412 = vadd.f32 0.0, %v6411
        %v6413 = vpop.f32.mrb[0].mxu0
        %6414 = vmatprep.mubr.f32.mxu0 0.0
        %6415 = vmatmul.mubr.f32.gmra.mrb[0].mxu0 %v5844
        %v6416 = vpop.f32.mrb[0].mxu0
        %v6417 = vadd.f32 0.0, %v6416
        %v6418 = vpop.f32.mrb[0].mxu0
        %6419 = vmatprep.mubr.f32.mxu0 0.0
        %6420 = vmatmul.mubr.f32.gmra.mrb[0].mxu0 %v5847
        %v6421 = vpop.f32.mrb[0].mxu0
        %v6422 = vadd.f32 0.0, %v6421
        %v6423 = vpop.f32.mrb[0].mxu0
        %6424 = vmatprep.mubr.f32.mxu0 0.0
        %6425 = vmatmul.mubr.f32.gmra.mrb[0].mxu0 %v5850
        %v6426 = vpop.f32.mrb[0].mxu0
        %v6427 = vadd.f32 0.0, %v6426
        %v6428 = vpop.f32.mrb[0].mxu0
        %6429 = vdwg.mxu0
        %v6430 = vadd.f32 %v6173, %v6272
        %v6431 = vadd.f32 %v6174, %v6277
        %v6432 = vadd.f32 %v6175, %v6282
        %v6433 = vadd.f32 %v6176, %v6287
        %v6434 = vadd.f32 %v6177, %v6292
        %v6435 = vadd.f32 %v6178, %v6297
        %v6436 = vadd.f32 %v6179, %v6302
        %v6437 = vadd.f32 %v6180, %v6307
        %v6438 = vadd.f32 %v6181, %v6312
        %v6439 = vadd.f32 %v6182, %v6317
        %v6440 = vadd.f32 %v6183, %v6322
        %v6441 = vadd.f32 %v6184, %v6327
        %v6442 = vadd.f32 %v6185, %v6332
        %v6443 = vadd.f32 %v6186, %v6337
        %v6444 = vadd.f32 %v6187, %v6342
        %v6445 = vadd.f32 %v6188, %v6347
        %v6446 = vadd.f32 %v6189, %v6352
        %v6447 = vadd.f32 %v6190, %v6357
        %v6448 = vadd.f32 %v6191, %v6362
        %v6449 = vadd.f32 %v6192, %v6367
        %v6450 = vadd.f32 %v6193, %v6372
        %v6451 = vadd.f32 %v6194, %v6377
        %v6452 = vadd.f32 %v6195, %v6382
        %v6453 = vadd.f32 %v6196, %v6387
        %v6454 = vadd.f32 %v6197, %v6392
        %v6455 = vadd.f32 %v6198, %v6397
        %v6456 = vadd.f32 %v6199, %v6402
        %v6457 = vadd.f32 %v6200, %v6407
        %v6458 = vadd.f32 %v6201, %v6412
        %v6459 = vadd.f32 %v6202, %v6417
        %v6460 = vadd.f32 %v6203, %v6422
        %v6461 = vadd.f32 %v6204, %v6427
        %6494 = vrot.lane.b32.xlu0 %v5309, 32
        %v6495 = vpop.permute.xlu0 %6494
        %6496 = vrot.lane.b32.xlu0 %v5314, 32
        %v6497 = vpop.permute.xlu0 %6496
        %6498 = vrot.lane.b32.xlu0 %v5319, 32
        %v6499 = vpop.permute.xlu0 %6498
        %6500 = vrot.lane.b32.xlu0 %v5324, 32
        %v6501 = vpop.permute.xlu0 %6500
        %6502 = vrot.lane.b32.xlu0 %v5329, 32
        %v6503 = vpop.permute.xlu0 %6502
        %6504 = vrot.lane.b32.xlu0 %v5334, 32
        %v6505 = vpop.permute.xlu0 %6504
        %6506 = vrot.lane.b32.xlu0 %v5339, 32
        %v6507 = vpop.permute.xlu0 %6506
        %6508 = vrot.lane.b32.xlu0 %v5344, 32
        %v6509 = vpop.permute.xlu0 %6508
        %6510 = vrot.lane.b32.xlu0 %v5349, 32
        %v6511 = vpop.permute.xlu0 %6510
        %6512 = vrot.lane.b32.xlu0 %v5354, 32
        %v6513 = vpop.permute.xlu0 %6512
        %6514 = vrot.lane.b32.xlu0 %v5359, 32
        %v6515 = vpop.permute.xlu0 %6514
        %6516 = vrot.lane.b32.xlu0 %v5364, 32
        %v6517 = vpop.permute.xlu0 %6516
        %6518 = vrot.lane.b32.xlu0 %v5369, 32
        %v6519 = vpop.permute.xlu0 %6518
        %6520 = vrot.lane.b32.xlu0 %v5374, 32
        %v6521 = vpop.permute.xlu0 %6520
        %6522 = vrot.lane.b32.xlu0 %v5379, 32
        %v6523 = vpop.permute.xlu0 %6522
        %6524 = vrot.lane.b32.xlu0 %v5384, 32
        %v6525 = vpop.permute.xlu0 %6524
        %6526 = vrot.lane.b32.xlu0 %v5389, 32
        %v6527 = vpop.permute.xlu0 %6526
        %6528 = vrot.lane.b32.xlu0 %v5394, 32
        %v6529 = vpop.permute.xlu0 %6528
        %6530 = vrot.lane.b32.xlu0 %v5399, 32
        %v6531 = vpop.permute.xlu0 %6530
        %6532 = vrot.lane.b32.xlu0 %v5404, 32
        %v6533 = vpop.permute.xlu0 %6532
        %6534 = vrot.lane.b32.xlu0 %v5409, 32
        %v6535 = vpop.permute.xlu0 %6534
        %6536 = vrot.lane.b32.xlu0 %v5414, 32
        %v6537 = vpop.permute.xlu0 %6536
        %6538 = vrot.lane.b32.xlu0 %v5419, 32
        %v6539 = vpop.permute.xlu0 %6538
        %6540 = vrot.lane.b32.xlu0 %v5424, 32
        %v6541 = vpop.permute.xlu0 %6540
        %6542 = vrot.lane.b32.xlu0 %v5429, 32
        %v6543 = vpop.permute.xlu0 %6542
        %6544 = vrot.lane.b32.xlu0 %v5434, 32
        %v6545 = vpop.permute.xlu0 %6544
        %6546 = vrot.lane.b32.xlu0 %v5439, 32
        %v6547 = vpop.permute.xlu0 %6546
        %6548 = vrot.lane.b32.xlu0 %v5444, 32
        %v6549 = vpop.permute.xlu0 %6548
        %6550 = vrot.lane.b32.xlu0 %v5449, 32
        %v6551 = vpop.permute.xlu0 %6550
        %6552 = vrot.lane.b32.xlu0 %v5454, 32
        %v6553 = vpop.permute.xlu0 %6552
        %6554 = vrot.lane.b32.xlu0 %v5459, 32
        %v6555 = vpop.permute.xlu0 %6554
        %6556 = vrot.lane.b32.xlu0 %v5464, 32
        %v6557 = vpop.permute.xlu0 %6556
        %v6590 = vsel %vm1826, 0.0, %v6495
        %v6591 = vsel %vm1826, 0.0, %v6497
        %v6592 = vsel %vm1826, %v5309, %v6499
        %v6593 = vsel %vm1826, %v5314, %v6501
        %v6594 = vsel %vm1826, %v5319, %v6503
        %v6595 = vsel %vm1826, %v5324, %v6505
        %v6596 = vsel %vm1826, %v5329, %v6507
        %v6597 = vsel %vm1826, %v5334, %v6509
        %v6598 = vsel %vm1826, %v5339, %v6511
        %v6599 = vsel %vm1826, %v5344, %v6513
        %v6600 = vsel %vm1826, %v5349, %v6515
        %v6601 = vsel %vm1826, %v5354, %v6517
        %v6602 = vsel %vm1826, %v5359, %v6519
        %v6603 = vsel %vm1826, %v5364, %v6521
        %v6604 = vsel %vm1826, %v5369, %v6523
        %v6605 = vsel %vm1826, %v5374, %v6525
        %v6606 = vsel %vm1826, %v5379, %v6527
        %v6607 = vsel %vm1826, %v5384, %v6529
        %v6608 = vsel %vm1826, %v5389, %v6531
        %v6609 = vsel %vm1826, %v5394, %v6533
        %v6610 = vsel %vm1826, %v5399, %v6535
        %v6611 = vsel %vm1826, %v5404, %v6537
        %v6612 = vsel %vm1826, %v5409, %v6539
        %v6613 = vsel %vm1826, %v5414, %v6541
        %v6614 = vsel %vm1826, %v5419, %v6543
        %v6615 = vsel %vm1826, %v5424, %v6545
        %v6616 = vsel %vm1826, %v5429, %v6547
        %v6617 = vsel %vm1826, %v5434, %v6549
        %v6618 = vsel %vm1826, %v5439, %v6551
        %v6619 = vsel %vm1826, %v5444, %v6553
        %v6620 = vsel %vm1826, %v5449, %v6555
        %v6621 = vsel %vm1826, %v5454, %v6557
        %v6623 = vlaneseq
        %v6624 = vshrl.u32 %v6623, 7
        %v6625 = vsub.s32 0, %v6624
        %v6626 = vrot.slane %v1354, %v6625
        %v6629 = vsel %vm2507, %v6590, 0
        %v6632 = vsel %vm2507, %v6591, 0
        %v6635 = vsel %vm2507, %v6592, 0
        %v6638 = vsel %vm2507, %v6593, 0
        %v6641 = vsel %vm2507, %v6594, 0
        %v6644 = vsel %vm2507, %v6595, 0
        %v6647 = vsel %vm2507, %v6596, 0
        %v6650 = vsel %vm2507, %v6597, 0
        %v6653 = vsel %vm2507, %v6598, 0
        %v6656 = vsel %vm2507, %v6599, 0
        %v6659 = vsel %vm2507, %v6600, 0
        %v6662 = vsel %vm2507, %v6601, 0
        %v6665 = vsel %vm2507, %v6602, 0
        %v6668 = vsel %vm2507, %v6603, 0
        %v6671 = vsel %vm2507, %v6604, 0
        %v6674 = vsel %vm2507, %v6605, 0
        %v6677 = vsel %vm2507, %v6606, 0
        %v6680 = vsel %vm2507, %v6607, 0
        %v6683 = vsel %vm2507, %v6608, 0
        %v6686 = vsel %vm2507, %v6609, 0
        %v6689 = vsel %vm2507, %v6610, 0
        %v6692 = vsel %vm2507, %v6611, 0
        %v6695 = vsel %vm2507, %v6612, 0
        %v6698 = vsel %vm2507, %v6613, 0
        %v6701 = vsel %vm2507, %v6614, 0
        %v6704 = vsel %vm2507, %v6615, 0
        %v6707 = vsel %vm2507, %v6616, 0
        %v6710 = vsel %vm2507, %v6617, 0
        %v6713 = vsel %vm2507, %v6618, 0
        %v6716 = vsel %vm2507, %v6619, 0
        %v6719 = vsel %vm2507, %v6620, 0
        %v6722 = vsel %vm2507, %v6621, 0
        %6724 = vmatprep.subr.mxu0 0.0
        %6725 = vmatpush1.msra.mxu0 %v1346
        %6726 = vmatprep.subr.mxu0 0.0
        %6727 = vmatpush1.msra.mxu0 %v1347
        %6728 = vmatprep.subr.mxu0 0.0
        %6729 = vmatpush1.msra.mxu0 %v1348
        %6730 = vmatprep.subr.mxu0 0.0
        %6731 = vmatpush1.msra.mxu0 %v1349
        %6732 = vmatprep.subr.mxu0 0.0
        %6733 = vmatpush1.msra.mxu0 %v1350
        %6734 = vmatprep.subr.mxu0 0.0
        %6735 = vmatpush1.msra.mxu0 %v1351
        %6736 = vmatprep.subr.mxu0 0.0
        %6737 = vmatpush1.msra.mxu0 %v1352
        %6738 = vmatprep.subr.mxu0 0.0
        %6739 = vmatpush1.msra.mxu0 %v1353
        %6740 = vmatprep.subr.mxu0 0.0
        %6741 = vmatpush1.msra.mxu0 0.0
        %6742 = vmatprep.subr.mxu0 0.0
        %6743 = vmatpush1.msra.mxu0 0.0
        %6744 = vmatprep.subr.mxu0 0.0
        %6745 = vmatpush1.msra.mxu0 0.0
        %6746 = vmatprep.subr.mxu0 0.0
        %6747 = vmatpush1.msra.mxu0 0.0
        %6748 = vmatprep.subr.mxu0 0.0
        %6749 = vmatpush1.msra.mxu0 0.0
        %6750 = vmatprep.subr.mxu0 0.0
        %6751 = vmatpush1.msra.mxu0 0.0
        %6752 = vmatprep.subr.mxu0 0.0
        %6753 = vmatpush1.msra.mxu0 0.0
        %6754 = vmatprep.subr.mxu0 0.0
        %6755 = vmatpush1.msra.mxu0 0.0
        %6756 = vmatprep.subr.mxu0 0.0
        %6757 = vmatpush1.msra.mxu0 0.0
        %6758 = vmatprep.subr.mxu0 0.0
        %6759 = vmatpush1.msra.mxu0 0.0
        %6760 = vmatprep.subr.mxu0 0.0
        %6761 = vmatpush1.msra.mxu0 0.0
        %6762 = vmatprep.subr.mxu0 0.0
        %6763 = vmatpush1.msra.mxu0 0.0
        %6764 = vmatprep.subr.mxu0 0.0
        %6765 = vmatpush1.msra.mxu0 0.0
        %6766 = vmatprep.subr.mxu0 0.0
        %6767 = vmatpush1.msra.mxu0 0.0
        %6768 = vmatprep.subr.mxu0 0.0
        %6769 = vmatpush1.msra.mxu0 0.0
        %6770 = vmatprep.subr.mxu0 0.0
        %6771 = vmatpush1.msra.mxu0 0.0
        %6772 = vmatprep.subr.mxu0 0.0
        %6773 = vmatpush1.msra.mxu0 0.0
        %6774 = vmatprep.subr.mxu0 0.0
        %6775 = vmatpush1.msra.mxu0 0.0
        %6776 = vmatprep.subr.mxu0 0.0
        %6777 = vmatpush1.msra.mxu0 0.0
        %6778 = vmatprep.subr.mxu0 0.0
        %6779 = vmatpush1.msra.mxu0 0.0
        %6780 = vmatprep.subr.mxu0 0.0
        %6781 = vmatpush1.msra.mxu0 0.0
        %6782 = vmatprep.subr.mxu0 0.0
        %6783 = vmatpush1.msra.mxu0 0.0
        %6784 = vmatprep.subr.mxu0 0.0
        %6785 = vmatpush1.msra.mxu0 0.0
        %6786 = vmatprep.subr.mxu0 0.0
        %6787 = vmatpush1.msra.mxu0 0.0
        %6788 = vmatprep.mubr.f32.mxu0 0.0
        %6789 = vmatmul.mubr.f32.gmra.mrb[0].mxu0 %v6629
        %v6790 = vpop.f32.mrb[0].mxu0
        %v6791 = vadd.f32 %v6626, %v6790
        %v6792 = vpop.f32.mrb[0].mxu0
        %6793 = vmatprep.mubr.f32.mxu0 0.0
        %6794 = vmatmul.mubr.f32.gmra.mrb[0].mxu0 %v6632
        %v6795 = vpop.f32.mrb[0].mxu0
        %v6796 = vadd.f32 %v6626, %v6795
        %v6797 = vpop.f32.mrb[0].mxu0
        %6798 = vmatprep.mubr.f32.mxu0 0.0
        %6799 = vmatmul.mubr.f32.gmra.mrb[0].mxu0 %v6635
        %v6800 = vpop.f32.mrb[0].mxu0
        %v6801 = vadd.f32 %v6626, %v6800
        %v6802 = vpop.f32.mrb[0].mxu0
        %6803 = vmatprep.mubr.f32.mxu0 0.0
        %6804 = vmatmul.mubr.f32.gmra.mrb[0].mxu0 %v6638
        %v6805 = vpop.f32.mrb[0].mxu0
        %v6806 = vadd.f32 %v6626, %v6805
        %v6807 = vpop.f32.mrb[0].mxu0
        %6808 = vmatprep.mubr.f32.mxu0 0.0
        %6809 = vmatmul.mubr.f32.gmra.mrb[0].mxu0 %v6641
        %v6810 = vpop.f32.mrb[0].mxu0
        %v6811 = vadd.f32 %v6626, %v6810
        %v6812 = vpop.f32.mrb[0].mxu0
        %6813 = vmatprep.mubr.f32.mxu0 0.0
        %6814 = vmatmul.mubr.f32.gmra.mrb[0].mxu0 %v6644
        %v6815 = vpop.f32.mrb[0].mxu0
        %v6816 = vadd.f32 %v6626, %v6815
        %v6817 = vpop.f32.mrb[0].mxu0
        %6818 = vmatprep.mubr.f32.mxu0 0.0
        %6819 = vmatmul.mubr.f32.gmra.mrb[0].mxu0 %v6647
        %v6820 = vpop.f32.mrb[0].mxu0
        %v6821 = vadd.f32 %v6626, %v6820
        %v6822 = vpop.f32.mrb[0].mxu0
        %6823 = vmatprep.mubr.f32.mxu0 0.0
        %6824 = vmatmul.mubr.f32.gmra.mrb[0].mxu0 %v6650
        %v6825 = vpop.f32.mrb[0].mxu0
        %v6826 = vadd.f32 %v6626, %v6825
        %v6827 = vpop.f32.mrb[0].mxu0
        %6828 = vmatprep.mubr.f32.mxu0 0.0
        %6829 = vmatmul.mubr.f32.gmra.mrb[0].mxu0 %v6653
        %v6830 = vpop.f32.mrb[0].mxu0
        %v6831 = vadd.f32 %v6626, %v6830
        %v6832 = vpop.f32.mrb[0].mxu0
        %6833 = vmatprep.mubr.f32.mxu0 0.0
        %6834 = vmatmul.mubr.f32.gmra.mrb[0].mxu0 %v6656
        %v6835 = vpop.f32.mrb[0].mxu0
        %v6836 = vadd.f32 %v6626, %v6835
        %v6837 = vpop.f32.mrb[0].mxu0
        %6838 = vmatprep.mubr.f32.mxu0 0.0
        %6839 = vmatmul.mubr.f32.gmra.mrb[0].mxu0 %v6659
        %v6840 = vpop.f32.mrb[0].mxu0
        %v6841 = vadd.f32 %v6626, %v6840
        %v6842 = vpop.f32.mrb[0].mxu0
        %6843 = vmatprep.mubr.f32.mxu0 0.0
        %6844 = vmatmul.mubr.f32.gmra.mrb[0].mxu0 %v6662
        %v6845 = vpop.f32.mrb[0].mxu0
        %v6846 = vadd.f32 %v6626, %v6845
        %v6847 = vpop.f32.mrb[0].mxu0
        %6848 = vmatprep.mubr.f32.mxu0 0.0
        %6849 = vmatmul.mubr.f32.gmra.mrb[0].mxu0 %v6665
        %v6850 = vpop.f32.mrb[0].mxu0
        %v6851 = vadd.f32 %v6626, %v6850
        %v6852 = vpop.f32.mrb[0].mxu0
        %6853 = vmatprep.mubr.f32.mxu0 0.0
        %6854 = vmatmul.mubr.f32.gmra.mrb[0].mxu0 %v6668
        %v6855 = vpop.f32.mrb[0].mxu0
        %v6856 = vadd.f32 %v6626, %v6855
        %v6857 = vpop.f32.mrb[0].mxu0
        %6858 = vmatprep.mubr.f32.mxu0 0.0
        %6859 = vmatmul.mubr.f32.gmra.mrb[0].mxu0 %v6671
        %v6860 = vpop.f32.mrb[0].mxu0
        %v6861 = vadd.f32 %v6626, %v6860
        %v6862 = vpop.f32.mrb[0].mxu0
        %6863 = vmatprep.mubr.f32.mxu0 0.0
        %6864 = vmatmul.mubr.f32.gmra.mrb[0].mxu0 %v6674
        %v6865 = vpop.f32.mrb[0].mxu0
        %v6866 = vadd.f32 %v6626, %v6865
        %v6867 = vpop.f32.mrb[0].mxu0
        %6868 = vmatprep.mubr.f32.mxu0 0.0
        %6869 = vmatmul.mubr.f32.gmra.mrb[0].mxu0 %v6677
        %v6870 = vpop.f32.mrb[0].mxu0
        %v6871 = vadd.f32 %v6626, %v6870
        %v6872 = vpop.f32.mrb[0].mxu0
        %6873 = vmatprep.mubr.f32.mxu0 0.0
        %6874 = vmatmul.mubr.f32.gmra.mrb[0].mxu0 %v6680
        %v6875 = vpop.f32.mrb[0].mxu0
        %v6876 = vadd.f32 %v6626, %v6875
        %v6877 = vpop.f32.mrb[0].mxu0
        %6878 = vmatprep.mubr.f32.mxu0 0.0
        %6879 = vmatmul.mubr.f32.gmra.mrb[0].mxu0 %v6683
        %v6880 = vpop.f32.mrb[0].mxu0
        %v6881 = vadd.f32 %v6626, %v6880
        %v6882 = vpop.f32.mrb[0].mxu0
        %6883 = vmatprep.mubr.f32.mxu0 0.0
        %6884 = vmatmul.mubr.f32.gmra.mrb[0].mxu0 %v6686
        %v6885 = vpop.f32.mrb[0].mxu0
        %v6886 = vadd.f32 %v6626, %v6885
        %v6887 = vpop.f32.mrb[0].mxu0
        %6888 = vmatprep.mubr.f32.mxu0 0.0
        %6889 = vmatmul.mubr.f32.gmra.mrb[0].mxu0 %v6689
        %v6890 = vpop.f32.mrb[0].mxu0
        %v6891 = vadd.f32 %v6626, %v6890
        %v6892 = vpop.f32.mrb[0].mxu0
        %6893 = vmatprep.mubr.f32.mxu0 0.0
        %6894 = vmatmul.mubr.f32.gmra.mrb[0].mxu0 %v6692
        %v6895 = vpop.f32.mrb[0].mxu0
        %v6896 = vadd.f32 %v6626, %v6895
        %v6897 = vpop.f32.mrb[0].mxu0
        %6898 = vmatprep.mubr.f32.mxu0 0.0
        %6899 = vmatmul.mubr.f32.gmra.mrb[0].mxu0 %v6695
        %v6900 = vpop.f32.mrb[0].mxu0
        %v6901 = vadd.f32 %v6626, %v6900
        %v6902 = vpop.f32.mrb[0].mxu0
        %6903 = vmatprep.mubr.f32.mxu0 0.0
        %6904 = vmatmul.mubr.f32.gmra.mrb[0].mxu0 %v6698
        %v6905 = vpop.f32.mrb[0].mxu0
        %v6906 = vadd.f32 %v6626, %v6905
        %v6907 = vpop.f32.mrb[0].mxu0
        %6908 = vmatprep.mubr.f32.mxu0 0.0
        %6909 = vmatmul.mubr.f32.gmra.mrb[0].mxu0 %v6701
        %v6910 = vpop.f32.mrb[0].mxu0
        %v6911 = vadd.f32 %v6626, %v6910
        %v6912 = vpop.f32.mrb[0].mxu0
        %6913 = vmatprep.mubr.f32.mxu0 0.0
        %6914 = vmatmul.mubr.f32.gmra.mrb[0].mxu0 %v6704
        %v6915 = vpop.f32.mrb[0].mxu0
        %v6916 = vadd.f32 %v6626, %v6915
        %v6917 = vpop.f32.mrb[0].mxu0
        %6918 = vmatprep.mubr.f32.mxu0 0.0
        %6919 = vmatmul.mubr.f32.gmra.mrb[0].mxu0 %v6707
        %v6920 = vpop.f32.mrb[0].mxu0
        %v6921 = vadd.f32 %v6626, %v6920
        %v6922 = vpop.f32.mrb[0].mxu0
        %6923 = vmatprep.mubr.f32.mxu0 0.0
        %6924 = vmatmul.mubr.f32.gmra.mrb[0].mxu0 %v6710
        %v6925 = vpop.f32.mrb[0].mxu0
        %v6926 = vadd.f32 %v6626, %v6925
        %v6927 = vpop.f32.mrb[0].mxu0
        %6928 = vmatprep.mubr.f32.mxu0 0.0
        %6929 = vmatmul.mubr.f32.gmra.mrb[0].mxu0 %v6713
        %v6930 = vpop.f32.mrb[0].mxu0
        %v6931 = vadd.f32 %v6626, %v6930
        %v6932 = vpop.f32.mrb[0].mxu0
        %6933 = vmatprep.mubr.f32.mxu0 0.0
        %6934 = vmatmul.mubr.f32.gmra.mrb[0].mxu0 %v6716
        %v6935 = vpop.f32.mrb[0].mxu0
        %v6936 = vadd.f32 %v6626, %v6935
        %v6937 = vpop.f32.mrb[0].mxu0
        %6938 = vmatprep.mubr.f32.mxu0 0.0
        %6939 = vmatmul.mubr.f32.gmra.mrb[0].mxu0 %v6719
        %v6940 = vpop.f32.mrb[0].mxu0
        %v6941 = vadd.f32 %v6626, %v6940
        %v6942 = vpop.f32.mrb[0].mxu0
        %6943 = vmatprep.mubr.f32.mxu0 0.0
        %6944 = vmatmul.mubr.f32.gmra.mrb[0].mxu0 %v6722
        %v6945 = vpop.f32.mrb[0].mxu0
        %v6946 = vadd.f32 %v6626, %v6945
        %v6947 = vpop.f32.mrb[0].mxu0
        %6948 = vdwg.mxu0
        %v6950 = vlaneseq
        %v6951 = vshrl.u32 %v6950, 7
        %v6952 = vsub.s32 0, %v6951
        %v6953 = vrot.slane %v1363, %v6952
        %v6956 = vsel %vm2507, %v6430, 0
        %v6959 = vsel %vm2507, %v6431, 0
        %v6962 = vsel %vm2507, %v6432, 0
        %v6965 = vsel %vm2507, %v6433, 0
        %v6968 = vsel %vm2507, %v6434, 0
        %v6971 = vsel %vm2507, %v6435, 0
        %v6974 = vsel %vm2507, %v6436, 0
        %v6977 = vsel %vm2507, %v6437, 0
        %v6980 = vsel %vm2507, %v6438, 0
        %v6983 = vsel %vm2507, %v6439, 0
        %v6986 = vsel %vm2507, %v6440, 0
        %v6989 = vsel %vm2507, %v6441, 0
        %v6992 = vsel %vm2507, %v6442, 0
        %v6995 = vsel %vm2507, %v6443, 0
        %v6998 = vsel %vm2507, %v6444, 0
        %v7001 = vsel %vm2507, %v6445, 0
        %v7004 = vsel %vm2507, %v6446, 0
        %v7007 = vsel %vm2507, %v6447, 0
        %v7010 = vsel %vm2507, %v6448, 0
        %v7013 = vsel %vm2507, %v6449, 0
        %v7016 = vsel %vm2507, %v6450, 0
        %v7019 = vsel %vm2507, %v6451, 0
        %v7022 = vsel %vm2507, %v6452, 0
        %v7025 = vsel %vm2507, %v6453, 0
        %v7028 = vsel %vm2507, %v6454, 0
        %v7031 = vsel %vm2507, %v6455, 0
        %v7034 = vsel %vm2507, %v6456, 0
        %v7037 = vsel %vm2507, %v6457, 0
        %v7040 = vsel %vm2507, %v6458, 0
        %v7043 = vsel %vm2507, %v6459, 0
        %v7046 = vsel %vm2507, %v6460, 0
        %v7049 = vsel %vm2507, %v6461, 0
        %7051 = vmatprep.subr.mxu0 0.0
        %7052 = vmatpush1.msra.mxu0 %v1355
        %7053 = vmatprep.subr.mxu0 0.0
        %7054 = vmatpush1.msra.mxu0 %v1356
        %7055 = vmatprep.subr.mxu0 0.0
        %7056 = vmatpush1.msra.mxu0 %v1357
        %7057 = vmatprep.subr.mxu0 0.0
        %7058 = vmatpush1.msra.mxu0 %v1358
        %7059 = vmatprep.subr.mxu0 0.0
        %7060 = vmatpush1.msra.mxu0 %v1359
        %7061 = vmatprep.subr.mxu0 0.0
        %7062 = vmatpush1.msra.mxu0 %v1360
        %7063 = vmatprep.subr.mxu0 0.0
        %7064 = vmatpush1.msra.mxu0 %v1361
        %7065 = vmatprep.subr.mxu0 0.0
        %7066 = vmatpush1.msra.mxu0 %v1362
        %7067 = vmatprep.subr.mxu0 0.0
        %7068 = vmatpush1.msra.mxu0 0.0
        %7069 = vmatprep.subr.mxu0 0.0
        %7070 = vmatpush1.msra.mxu0 0.0
        %7071 = vmatprep.subr.mxu0 0.0
        %7072 = vmatpush1.msra.mxu0 0.0
        %7073 = vmatprep.subr.mxu0 0.0
        %7074 = vmatpush1.msra.mxu0 0.0
        %7075 = vmatprep.subr.mxu0 0.0
        %7076 = vmatpush1.msra.mxu0 0.0
        %7077 = vmatprep.subr.mxu0 0.0
        %7078 = vmatpush1.msra.mxu0 0.0
        %7079 = vmatprep.subr.mxu0 0.0
        %7080 = vmatpush1.msra.mxu0 0.0
        %7081 = vmatprep.subr.mxu0 0.0
        %7082 = vmatpush1.msra.mxu0 0.0
        %7083 = vmatprep.subr.mxu0 0.0
        %7084 = vmatpush1.msra.mxu0 0.0
        %7085 = vmatprep.subr.mxu0 0.0
        %7086 = vmatpush1.msra.mxu0 0.0
        %7087 = vmatprep.subr.mxu0 0.0
        %7088 = vmatpush1.msra.mxu0 0.0
        %7089 = vmatprep.subr.mxu0 0.0
        %7090 = vmatpush1.msra.mxu0 0.0
        %7091 = vmatprep.subr.mxu0 0.0
        %7092 = vmatpush1.msra.mxu0 0.0
        %7093 = vmatprep.subr.mxu0 0.0
        %7094 = vmatpush1.msra.mxu0 0.0
        %7095 = vmatprep.subr.mxu0 0.0
        %7096 = vmatpush1.msra.mxu0 0.0
        %7097 = vmatprep.subr.mxu0 0.0
        %7098 = vmatpush1.msra.mxu0 0.0
        %7099 = vmatprep.subr.mxu0 0.0
        %7100 = vmatpush1.msra.mxu0 0.0
        %7101 = vmatprep.subr.mxu0 0.0
        %7102 = vmatpush1.msra.mxu0 0.0
        %7103 = vmatprep.subr.mxu0 0.0
        %7104 = vmatpush1.msra.mxu0 0.0
        %7105 = vmatprep.subr.mxu0 0.0
        %7106 = vmatpush1.msra.mxu0 0.0
        %7107 = vmatprep.subr.mxu0 0.0
        %7108 = vmatpush1.msra.mxu0 0.0
        %7109 = vmatprep.subr.mxu0 0.0
        %7110 = vmatpush1.msra.mxu0 0.0
        %7111 = vmatprep.subr.mxu0 0.0
        %7112 = vmatpush1.msra.mxu0 0.0
        %7113 = vmatprep.subr.mxu0 0.0
        %7114 = vmatpush1.msra.mxu0 0.0
        %7115 = vmatprep.mubr.f32.mxu0 0.0
        %7116 = vmatmul.mubr.f32.gmra.mrb[0].mxu0 %v6956
        %v7117 = vpop.f32.mrb[0].mxu0
        %v7118 = vadd.f32 %v6953, %v7117
        %v7119 = vpop.f32.mrb[0].mxu0
        %7120 = vmatprep.mubr.f32.mxu0 0.0
        %7121 = vmatmul.mubr.f32.gmra.mrb[0].mxu0 %v6959
        %v7122 = vpop.f32.mrb[0].mxu0
        %v7123 = vadd.f32 %v6953, %v7122
        %v7124 = vpop.f32.mrb[0].mxu0
        %7125 = vmatprep.mubr.f32.mxu0 0.0
        %7126 = vmatmul.mubr.f32.gmra.mrb[0].mxu0 %v6962
        %v7127 = vpop.f32.mrb[0].mxu0
        %v7128 = vadd.f32 %v6953, %v7127
        %v7129 = vpop.f32.mrb[0].mxu0
        %7130 = vmatprep.mubr.f32.mxu0 0.0
        %7131 = vmatmul.mubr.f32.gmra.mrb[0].mxu0 %v6965
        %v7132 = vpop.f32.mrb[0].mxu0
        %v7133 = vadd.f32 %v6953, %v7132
        %v7134 = vpop.f32.mrb[0].mxu0
        %7135 = vmatprep.mubr.f32.mxu0 0.0
        %7136 = vmatmul.mubr.f32.gmra.mrb[0].mxu0 %v6968
        %v7137 = vpop.f32.mrb[0].mxu0
        %v7138 = vadd.f32 %v6953, %v7137
        %v7139 = vpop.f32.mrb[0].mxu0
        %7140 = vmatprep.mubr.f32.mxu0 0.0
        %7141 = vmatmul.mubr.f32.gmra.mrb[0].mxu0 %v6971
        %v7142 = vpop.f32.mrb[0].mxu0
        %v7143 = vadd.f32 %v6953, %v7142
        %v7144 = vpop.f32.mrb[0].mxu0
        %7145 = vmatprep.mubr.f32.mxu0 0.0
        %7146 = vmatmul.mubr.f32.gmra.mrb[0].mxu0 %v6974
        %v7147 = vpop.f32.mrb[0].mxu0
        %v7148 = vadd.f32 %v6953, %v7147
        %v7149 = vpop.f32.mrb[0].mxu0
        %7150 = vmatprep.mubr.f32.mxu0 0.0
        %7151 = vmatmul.mubr.f32.gmra.mrb[0].mxu0 %v6977
        %v7152 = vpop.f32.mrb[0].mxu0
        %v7153 = vadd.f32 %v6953, %v7152
        %v7154 = vpop.f32.mrb[0].mxu0
        %7155 = vmatprep.mubr.f32.mxu0 0.0
        %7156 = vmatmul.mubr.f32.gmra.mrb[0].mxu0 %v6980
        %v7157 = vpop.f32.mrb[0].mxu0
        %v7158 = vadd.f32 %v6953, %v7157
        %v7159 = vpop.f32.mrb[0].mxu0
        %7160 = vmatprep.mubr.f32.mxu0 0.0
        %7161 = vmatmul.mubr.f32.gmra.mrb[0].mxu0 %v6983
        %v7162 = vpop.f32.mrb[0].mxu0
        %v7163 = vadd.f32 %v6953, %v7162
        %v7164 = vpop.f32.mrb[0].mxu0
        %7165 = vmatprep.mubr.f32.mxu0 0.0
        %7166 = vmatmul.mubr.f32.gmra.mrb[0].mxu0 %v6986
        %v7167 = vpop.f32.mrb[0].mxu0
        %v7168 = vadd.f32 %v6953, %v7167
        %v7169 = vpop.f32.mrb[0].mxu0
        %7170 = vmatprep.mubr.f32.mxu0 0.0
        %7171 = vmatmul.mubr.f32.gmra.mrb[0].mxu0 %v6989
        %v7172 = vpop.f32.mrb[0].mxu0
        %v7173 = vadd.f32 %v6953, %v7172
        %v7174 = vpop.f32.mrb[0].mxu0
        %7175 = vmatprep.mubr.f32.mxu0 0.0
        %7176 = vmatmul.mubr.f32.gmra.mrb[0].mxu0 %v6992
        %v7177 = vpop.f32.mrb[0].mxu0
        %v7178 = vadd.f32 %v6953, %v7177
        %v7179 = vpop.f32.mrb[0].mxu0
        %7180 = vmatprep.mubr.f32.mxu0 0.0
        %7181 = vmatmul.mubr.f32.gmra.mrb[0].mxu0 %v6995
        %v7182 = vpop.f32.mrb[0].mxu0
        %v7183 = vadd.f32 %v6953, %v7182
        %v7184 = vpop.f32.mrb[0].mxu0
        %7185 = vmatprep.mubr.f32.mxu0 0.0
        %7186 = vmatmul.mubr.f32.gmra.mrb[0].mxu0 %v6998
        %v7187 = vpop.f32.mrb[0].mxu0
        %v7188 = vadd.f32 %v6953, %v7187
        %v7189 = vpop.f32.mrb[0].mxu0
        %7190 = vmatprep.mubr.f32.mxu0 0.0
        %7191 = vmatmul.mubr.f32.gmra.mrb[0].mxu0 %v7001
        %v7192 = vpop.f32.mrb[0].mxu0
        %v7193 = vadd.f32 %v6953, %v7192
        %v7194 = vpop.f32.mrb[0].mxu0
        %7195 = vmatprep.mubr.f32.mxu0 0.0
        %7196 = vmatmul.mubr.f32.gmra.mrb[0].mxu0 %v7004
        %v7197 = vpop.f32.mrb[0].mxu0
        %v7198 = vadd.f32 %v6953, %v7197
        %v7199 = vpop.f32.mrb[0].mxu0
        %7200 = vmatprep.mubr.f32.mxu0 0.0
        %7201 = vmatmul.mubr.f32.gmra.mrb[0].mxu0 %v7007
        %v7202 = vpop.f32.mrb[0].mxu0
        %v7203 = vadd.f32 %v6953, %v7202
        %v7204 = vpop.f32.mrb[0].mxu0
        %7205 = vmatprep.mubr.f32.mxu0 0.0
        %7206 = vmatmul.mubr.f32.gmra.mrb[0].mxu0 %v7010
        %v7207 = vpop.f32.mrb[0].mxu0
        %v7208 = vadd.f32 %v6953, %v7207
        %v7209 = vpop.f32.mrb[0].mxu0
        %7210 = vmatprep.mubr.f32.mxu0 0.0
        %7211 = vmatmul.mubr.f32.gmra.mrb[0].mxu0 %v7013
        %v7212 = vpop.f32.mrb[0].mxu0
        %v7213 = vadd.f32 %v6953, %v7212
        %v7214 = vpop.f32.mrb[0].mxu0
        %7215 = vmatprep.mubr.f32.mxu0 0.0
        %7216 = vmatmul.mubr.f32.gmra.mrb[0].mxu0 %v7016
        %v7217 = vpop.f32.mrb[0].mxu0
        %v7218 = vadd.f32 %v6953, %v7217
        %v7219 = vpop.f32.mrb[0].mxu0
        %7220 = vmatprep.mubr.f32.mxu0 0.0
        %7221 = vmatmul.mubr.f32.gmra.mrb[0].mxu0 %v7019
        %v7222 = vpop.f32.mrb[0].mxu0
        %v7223 = vadd.f32 %v6953, %v7222
        %v7224 = vpop.f32.mrb[0].mxu0
        %7225 = vmatprep.mubr.f32.mxu0 0.0
        %7226 = vmatmul.mubr.f32.gmra.mrb[0].mxu0 %v7022
        %v7227 = vpop.f32.mrb[0].mxu0
        %v7228 = vadd.f32 %v6953, %v7227
        %v7229 = vpop.f32.mrb[0].mxu0
        %7230 = vmatprep.mubr.f32.mxu0 0.0
        %7231 = vmatmul.mubr.f32.gmra.mrb[0].mxu0 %v7025
        %v7232 = vpop.f32.mrb[0].mxu0
        %v7233 = vadd.f32 %v6953, %v7232
        %v7234 = vpop.f32.mrb[0].mxu0
        %7235 = vmatprep.mubr.f32.mxu0 0.0
        %7236 = vmatmul.mubr.f32.gmra.mrb[0].mxu0 %v7028
        %v7237 = vpop.f32.mrb[0].mxu0
        %v7238 = vadd.f32 %v6953, %v7237
        %v7239 = vpop.f32.mrb[0].mxu0
        %7240 = vmatprep.mubr.f32.mxu0 0.0
        %7241 = vmatmul.mubr.f32.gmra.mrb[0].mxu0 %v7031
        %v7242 = vpop.f32.mrb[0].mxu0
        %v7243 = vadd.f32 %v6953, %v7242
        %v7244 = vpop.f32.mrb[0].mxu0
        %7245 = vmatprep.mubr.f32.mxu0 0.0
        %7246 = vmatmul.mubr.f32.gmra.mrb[0].mxu0 %v7034
        %v7247 = vpop.f32.mrb[0].mxu0
        %v7248 = vadd.f32 %v6953, %v7247
        %v7249 = vpop.f32.mrb[0].mxu0
        %7250 = vmatprep.mubr.f32.mxu0 0.0
        %7251 = vmatmul.mubr.f32.gmra.mrb[0].mxu0 %v7037
        %v7252 = vpop.f32.mrb[0].mxu0
        %v7253 = vadd.f32 %v6953, %v7252
        %v7254 = vpop.f32.mrb[0].mxu0
        %7255 = vmatprep.mubr.f32.mxu0 0.0
        %7256 = vmatmul.mubr.f32.gmra.mrb[0].mxu0 %v7040
        %v7257 = vpop.f32.mrb[0].mxu0
        %v7258 = vadd.f32 %v6953, %v7257
        %v7259 = vpop.f32.mrb[0].mxu0
        %7260 = vmatprep.mubr.f32.mxu0 0.0
        %7261 = vmatmul.mubr.f32.gmra.mrb[0].mxu0 %v7043
        %v7262 = vpop.f32.mrb[0].mxu0
        %v7263 = vadd.f32 %v6953, %v7262
        %v7264 = vpop.f32.mrb[0].mxu0
        %7265 = vmatprep.mubr.f32.mxu0 0.0
        %7266 = vmatmul.mubr.f32.gmra.mrb[0].mxu0 %v7046
        %v7267 = vpop.f32.mrb[0].mxu0
        %v7268 = vadd.f32 %v6953, %v7267
        %v7269 = vpop.f32.mrb[0].mxu0
        %7270 = vmatprep.mubr.f32.mxu0 0.0
        %7271 = vmatmul.mubr.f32.gmra.mrb[0].mxu0 %v7049
        %v7272 = vpop.f32.mrb[0].mxu0
        %v7273 = vadd.f32 %v6953, %v7272
        %v7274 = vpop.f32.mrb[0].mxu0
        %7275 = vdwg.mxu0
        %v7276 = vtanh.pop %v6430
        %v7277 = vtanh.pop %v6431
        %v7278 = vtanh.pop %v6432
        %v7279 = vtanh.pop %v6433
        %v7280 = vtanh.pop %v6434
        %v7281 = vtanh.pop %v6435
        %v7282 = vtanh.pop %v6436
        %v7283 = vtanh.pop %v6437
        %v7284 = vtanh.pop %v6438
        %v7285 = vtanh.pop %v6439
        %v7286 = vtanh.pop %v6440
        %v7287 = vtanh.pop %v6441
        %v7288 = vtanh.pop %v6442
        %v7289 = vtanh.pop %v6443
        %v7290 = vtanh.pop %v6444
        %v7291 = vtanh.pop %v6445
        %v7292 = vtanh.pop %v6446
        %v7293 = vtanh.pop %v6447
        %v7294 = vtanh.pop %v6448
        %v7295 = vtanh.pop %v6449
        %v7296 = vtanh.pop %v6450
        %v7297 = vtanh.pop %v6451
        %v7298 = vtanh.pop %v6452
        %v7299 = vtanh.pop %v6453
        %v7300 = vtanh.pop %v6454
        %v7301 = vtanh.pop %v6455
        %v7302 = vtanh.pop %v6456
        %v7303 = vtanh.pop %v6457
        %v7304 = vtanh.pop %v6458
        %v7305 = vtanh.pop %v6459
        %v7306 = vtanh.pop %v6460
        %v7307 = vtanh.pop %v6461
        %v7308 = vxor.u32 %v6430, 2147483648
        %v7309 = vxor.u32 %v6431, 2147483648
        %v7310 = vxor.u32 %v6432, 2147483648
        %v7311 = vxor.u32 %v6433, 2147483648
        %v7312 = vxor.u32 %v6434, 2147483648
        %v7313 = vxor.u32 %v6435, 2147483648
        %v7314 = vxor.u32 %v6436, 2147483648
        %v7315 = vxor.u32 %v6437, 2147483648
        %v7316 = vxor.u32 %v6438, 2147483648
        %v7317 = vxor.u32 %v6439, 2147483648
        %v7318 = vxor.u32 %v6440, 2147483648
        %v7319 = vxor.u32 %v6441, 2147483648
        %v7320 = vxor.u32 %v6442, 2147483648
        %v7321 = vxor.u32 %v6443, 2147483648
        %v7322 = vxor.u32 %v6444, 2147483648
        %v7323 = vxor.u32 %v6445, 2147483648
        %v7324 = vxor.u32 %v6446, 2147483648
        %v7325 = vxor.u32 %v6447, 2147483648
        %v7326 = vxor.u32 %v6448, 2147483648
        %v7327 = vxor.u32 %v6449, 2147483648
        %v7328 = vxor.u32 %v6450, 2147483648
        %v7329 = vxor.u32 %v6451, 2147483648
        %v7330 = vxor.u32 %v6452, 2147483648
        %v7331 = vxor.u32 %v6453, 2147483648
        %v7332 = vxor.u32 %v6454, 2147483648
        %v7333 = vxor.u32 %v6455, 2147483648
        %v7334 = vxor.u32 %v6456, 2147483648
        %v7335 = vxor.u32 %v6457, 2147483648
        %v7336 = vxor.u32 %v6458, 2147483648
        %v7337 = vxor.u32 %v6459, 2147483648
        %v7338 = vxor.u32 %v6460, 2147483648
        %v7339 = vxor.u32 %v6461, 2147483648
        %v7340 = vmul.f32 %v7308, 1.442695
        %v7341 = vpow.pop %v7340
        %v7342 = vmul.f32 %v7309, 1.442695
        %v7343 = vpow.pop %v7342
        %v7344 = vmul.f32 %v7310, 1.442695
        %v7345 = vpow.pop %v7344
        %v7346 = vmul.f32 %v7311, 1.442695
        %v7347 = vpow.pop %v7346
        %v7348 = vmul.f32 %v7312, 1.442695
        %v7349 = vpow.pop %v7348
        %v7350 = vmul.f32 %v7313, 1.442695
        %v7351 = vpow.pop %v7350
        %v7352 = vmul.f32 %v7314, 1.442695
        %v7353 = vpow.pop %v7352
        %v7354 = vmul.f32 %v7315, 1.442695
        %v7355 = vpow.pop %v7354
        %v7356 = vmul.f32 %v7316, 1.442695
        %v7357 = vpow.pop %v7356
        %v7358 = vmul.f32 %v7317, 1.442695
        %v7359 = vpow.pop %v7358
        %v7360 = vmul.f32 %v7318, 1.442695
        %v7361 = vpow.pop %v7360
        %v7362 = vmul.f32 %v7319, 1.442695
        %v7363 = vpow.pop %v7362
        %v7364 = vmul.f32 %v7320, 1.442695
        %v7365 = vpow.pop %v7364
        %v7366 = vmul.f32 %v7321, 1.442695
        %v7367 = vpow.pop %v7366
        %v7368 = vmul.f32 %v7322, 1.442695
        %v7369 = vpow.pop %v7368
        %v7370 = vmul.f32 %v7323, 1.442695
        %v7371 = vpow.pop %v7370
        %v7372 = vmul.f32 %v7324, 1.442695
        %v7373 = vpow.pop %v7372
        %v7374 = vmul.f32 %v7325, 1.442695
        %v7375 = vpow.pop %v7374
        %v7376 = vmul.f32 %v7326, 1.442695
        %v7377 = vpow.pop %v7376
        %v7378 = vmul.f32 %v7327, 1.442695
        %v7379 = vpow.pop %v7378
        %v7380 = vmul.f32 %v7328, 1.442695
        %v7381 = vpow.pop %v7380
        %v7382 = vmul.f32 %v7329, 1.442695
        %v7383 = vpow.pop %v7382
        %v7384 = vmul.f32 %v7330, 1.442695
        %v7385 = vpow.pop %v7384
        %v7386 = vmul.f32 %v7331, 1.442695
        %v7387 = vpow.pop %v7386
        %v7388 = vmul.f32 %v7332, 1.442695
        %v7389 = vpow.pop %v7388
        %v7390 = vmul.f32 %v7333, 1.442695
        %v7391 = vpow.pop %v7390
        %v7392 = vmul.f32 %v7334, 1.442695
        %v7393 = vpow.pop %v7392
        %v7394 = vmul.f32 %v7335, 1.442695
        %v7395 = vpow.pop %v7394
        %v7396 = vmul.f32 %v7336, 1.442695
        %v7397 = vpow.pop %v7396
        %v7398 = vmul.f32 %v7337, 1.442695
        %v7399 = vpow.pop %v7398
        %v7400 = vmul.f32 %v7338, 1.442695
        %v7401 = vpow.pop %v7400
        %v7402 = vmul.f32 %v7339, 1.442695
        %v7403 = vpow.pop %v7402
        %v7404 = vadd.f32 %v7341, 1.0
        %v7405 = vadd.f32 %v7343, 1.0
        %v7406 = vadd.f32 %v7345, 1.0
        %v7407 = vadd.f32 %v7347, 1.0
        %v7408 = vadd.f32 %v7349, 1.0
        %v7409 = vadd.f32 %v7351, 1.0
        %v7410 = vadd.f32 %v7353, 1.0
        %v7411 = vadd.f32 %v7355, 1.0
        %v7412 = vadd.f32 %v7357, 1.0
        %v7413 = vadd.f32 %v7359, 1.0
        %v7414 = vadd.f32 %v7361, 1.0
        %v7415 = vadd.f32 %v7363, 1.0
        %v7416 = vadd.f32 %v7365, 1.0
        %v7417 = vadd.f32 %v7367, 1.0
        %v7418 = vadd.f32 %v7369, 1.0
        %v7419 = vadd.f32 %v7371, 1.0
        %v7420 = vadd.f32 %v7373, 1.0
        %v7421 = vadd.f32 %v7375, 1.0
        %v7422 = vadd.f32 %v7377, 1.0
        %v7423 = vadd.f32 %v7379, 1.0
        %v7424 = vadd.f32 %v7381, 1.0
        %v7425 = vadd.f32 %v7383, 1.0
        %v7426 = vadd.f32 %v7385, 1.0
        %v7427 = vadd.f32 %v7387, 1.0
        %v7428 = vadd.f32 %v7389, 1.0
        %v7429 = vadd.f32 %v7391, 1.0
        %v7430 = vadd.f32 %v7393, 1.0
        %v7431 = vadd.f32 %v7395, 1.0
        %v7432 = vadd.f32 %v7397, 1.0
        %v7433 = vadd.f32 %v7399, 1.0
        %v7434 = vadd.f32 %v7401, 1.0
        %v7435 = vadd.f32 %v7403, 1.0
        %v7436 = vrcp.pop %v7404
        %v7437 = vmul.f32 1.0, %v7436
        %v7438 = vrcp.pop %v7405
        %v7439 = vmul.f32 1.0, %v7438
        %v7440 = vrcp.pop %v7406
        %v7441 = vmul.f32 1.0, %v7440
        %v7442 = vrcp.pop %v7407
        %v7443 = vmul.f32 1.0, %v7442
        %v7444 = vrcp.pop %v7408
        %v7445 = vmul.f32 1.0, %v7444
        %v7446 = vrcp.pop %v7409
        %v7447 = vmul.f32 1.0, %v7446
        %v7448 = vrcp.pop %v7410
        %v7449 = vmul.f32 1.0, %v7448
        %v7450 = vrcp.pop %v7411
        %v7451 = vmul.f32 1.0, %v7450
        %v7452 = vrcp.pop %v7412
        %v7453 = vmul.f32 1.0, %v7452
        %v7454 = vrcp.pop %v7413
        %v7455 = vmul.f32 1.0, %v7454
        %v7456 = vrcp.pop %v7414
        %v7457 = vmul.f32 1.0, %v7456
        %v7458 = vrcp.pop %v7415
        %v7459 = vmul.f32 1.0, %v7458
        %v7460 = vrcp.pop %v7416
        %v7461 = vmul.f32 1.0, %v7460
        %v7462 = vrcp.pop %v7417
        %v7463 = vmul.f32 1.0, %v7462
        %v7464 = vrcp.pop %v7418
        %v7465 = vmul.f32 1.0, %v7464
        %v7466 = vrcp.pop %v7419
        %v7467 = vmul.f32 1.0, %v7466
        %v7468 = vrcp.pop %v7420
        %v7469 = vmul.f32 1.0, %v7468
        %v7470 = vrcp.pop %v7421
        %v7471 = vmul.f32 1.0, %v7470
        %v7472 = vrcp.pop %v7422
        %v7473 = vmul.f32 1.0, %v7472
        %v7474 = vrcp.pop %v7423
        %v7475 = vmul.f32 1.0, %v7474
        %v7476 = vrcp.pop %v7424
        %v7477 = vmul.f32 1.0, %v7476
        %v7478 = vrcp.pop %v7425
        %v7479 = vmul.f32 1.0, %v7478
        %v7480 = vrcp.pop %v7426
        %v7481 = vmul.f32 1.0, %v7480
        %v7482 = vrcp.pop %v7427
        %v7483 = vmul.f32 1.0, %v7482
        %v7484 = vrcp.pop %v7428
        %v7485 = vmul.f32 1.0, %v7484
        %v7486 = vrcp.pop %v7429
        %v7487 = vmul.f32 1.0, %v7486
        %v7488 = vrcp.pop %v7430
        %v7489 = vmul.f32 1.0, %v7488
        %v7490 = vrcp.pop %v7431
        %v7491 = vmul.f32 1.0, %v7490
        %v7492 = vrcp.pop %v7432
        %v7493 = vmul.f32 1.0, %v7492
        %v7494 = vrcp.pop %v7433
        %v7495 = vmul.f32 1.0, %v7494
        %v7496 = vrcp.pop %v7434
        %v7497 = vmul.f32 1.0, %v7496
        %v7498 = vrcp.pop %v7435
        %v7499 = vmul.f32 1.0, %v7498
        %7532 = vrot.lane.b32.xlu0 %v7437, 96
        %v7533 = vpop.permute.xlu0 %7532
        %7534 = vrot.lane.b32.xlu0 %v7439, 96
        %v7535 = vpop.permute.xlu0 %7534
        %7536 = vrot.lane.b32.xlu0 %v7441, 96
        %v7537 = vpop.permute.xlu0 %7536
        %7538 = vrot.lane.b32.xlu0 %v7443, 96
        %v7539 = vpop.permute.xlu0 %7538
        %7540 = vrot.lane.b32.xlu0 %v7445, 96
        %v7541 = vpop.permute.xlu0 %7540
        %7542 = vrot.lane.b32.xlu0 %v7447, 96
        %v7543 = vpop.permute.xlu0 %7542
        %7544 = vrot.lane.b32.xlu0 %v7449, 96
        %v7545 = vpop.permute.xlu0 %7544
        %7546 = vrot.lane.b32.xlu0 %v7451, 96
        %v7547 = vpop.permute.xlu0 %7546
        %7548 = vrot.lane.b32.xlu0 %v7453, 96
        %v7549 = vpop.permute.xlu0 %7548
        %7550 = vrot.lane.b32.xlu0 %v7455, 96
        %v7551 = vpop.permute.xlu0 %7550
        %7552 = vrot.lane.b32.xlu0 %v7457, 96
        %v7553 = vpop.permute.xlu0 %7552
        %7554 = vrot.lane.b32.xlu0 %v7459, 96
        %v7555 = vpop.permute.xlu0 %7554
        %7556 = vrot.lane.b32.xlu0 %v7461, 96
        %v7557 = vpop.permute.xlu0 %7556
        %7558 = vrot.lane.b32.xlu0 %v7463, 96
        %v7559 = vpop.permute.xlu0 %7558
        %7560 = vrot.lane.b32.xlu0 %v7465, 96
        %v7561 = vpop.permute.xlu0 %7560
        %7562 = vrot.lane.b32.xlu0 %v7467, 96
        %v7563 = vpop.permute.xlu0 %7562
        %7564 = vrot.lane.b32.xlu0 %v7469, 96
        %v7565 = vpop.permute.xlu0 %7564
        %7566 = vrot.lane.b32.xlu0 %v7471, 96
        %v7567 = vpop.permute.xlu0 %7566
        %7568 = vrot.lane.b32.xlu0 %v7473, 96
        %v7569 = vpop.permute.xlu0 %7568
        %7570 = vrot.lane.b32.xlu0 %v7475, 96
        %v7571 = vpop.permute.xlu0 %7570
        %7572 = vrot.lane.b32.xlu0 %v7477, 96
        %v7573 = vpop.permute.xlu0 %7572
        %7574 = vrot.lane.b32.xlu0 %v7479, 96
        %v7575 = vpop.permute.xlu0 %7574
        %7576 = vrot.lane.b32.xlu0 %v7481, 96
        %v7577 = vpop.permute.xlu0 %7576
        %7578 = vrot.lane.b32.xlu0 %v7483, 96
        %v7579 = vpop.permute.xlu0 %7578
        %7580 = vrot.lane.b32.xlu0 %v7485, 96
        %v7581 = vpop.permute.xlu0 %7580
        %7582 = vrot.lane.b32.xlu0 %v7487, 96
        %v7583 = vpop.permute.xlu0 %7582
        %7584 = vrot.lane.b32.xlu0 %v7489, 96
        %v7585 = vpop.permute.xlu0 %7584
        %7586 = vrot.lane.b32.xlu0 %v7491, 96
        %v7587 = vpop.permute.xlu0 %7586
        %7588 = vrot.lane.b32.xlu0 %v7493, 96
        %v7589 = vpop.permute.xlu0 %7588
        %7590 = vrot.lane.b32.xlu0 %v7495, 96
        %v7591 = vpop.permute.xlu0 %7590
        %7592 = vrot.lane.b32.xlu0 %v7497, 96
        %v7593 = vpop.permute.xlu0 %7592
        %7594 = vrot.lane.b32.xlu0 %v7499, 96
        %v7595 = vpop.permute.xlu0 %7594
        %v7628 = vmul.f32 %v7276, %v7533
        %v7629 = vmul.f32 %v7277, %v7535
        %v7630 = vmul.f32 %v7278, %v7537
        %v7631 = vmul.f32 %v7279, %v7539
        %v7632 = vmul.f32 %v7280, %v7541
        %v7633 = vmul.f32 %v7281, %v7543
        %v7634 = vmul.f32 %v7282, %v7545
        %v7635 = vmul.f32 %v7283, %v7547
        %v7636 = vmul.f32 %v7284, %v7549
        %v7637 = vmul.f32 %v7285, %v7551
        %v7638 = vmul.f32 %v7286, %v7553
        %v7639 = vmul.f32 %v7287, %v7555
        %v7640 = vmul.f32 %v7288, %v7557
        %v7641 = vmul.f32 %v7289, %v7559
        %v7642 = vmul.f32 %v7290, %v7561
        %v7643 = vmul.f32 %v7291, %v7563
        %v7644 = vmul.f32 %v7292, %v7565
        %v7645 = vmul.f32 %v7293, %v7567
        %v7646 = vmul.f32 %v7294, %v7569
        %v7647 = vmul.f32 %v7295, %v7571
        %v7648 = vmul.f32 %v7296, %v7573
        %v7649 = vmul.f32 %v7297, %v7575
        %v7650 = vmul.f32 %v7298, %v7577
        %v7651 = vmul.f32 %v7299, %v7579
        %v7652 = vmul.f32 %v7300, %v7581
        %v7653 = vmul.f32 %v7301, %v7583
        %v7654 = vmul.f32 %v7302, %v7585
        %v7655 = vmul.f32 %v7303, %v7587
        %v7656 = vmul.f32 %v7304, %v7589
        %v7657 = vmul.f32 %v7305, %v7591
        %v7658 = vmul.f32 %v7306, %v7593
        %v7659 = vmul.f32 %v7307, %v7595
        %v7660 = vadd.f32 %v7118, %v6791
        %v7661 = vadd.f32 %v7123, %v6796
        %v7662 = vadd.f32 %v7128, %v6801
        %v7663 = vadd.f32 %v7133, %v6806
        %v7664 = vadd.f32 %v7138, %v6811
        %v7665 = vadd.f32 %v7143, %v6816
        %v7666 = vadd.f32 %v7148, %v6821
        %v7667 = vadd.f32 %v7153, %v6826
        %v7668 = vadd.f32 %v7158, %v6831
        %v7669 = vadd.f32 %v7163, %v6836
        %v7670 = vadd.f32 %v7168, %v6841
        %v7671 = vadd.f32 %v7173, %v6846
        %v7672 = vadd.f32 %v7178, %v6851
        %v7673 = vadd.f32 %v7183, %v6856
        %v7674 = vadd.f32 %v7188, %v6861
        %v7675 = vadd.f32 %v7193, %v6866
        %v7676 = vadd.f32 %v7198, %v6871
        %v7677 = vadd.f32 %v7203, %v6876
        %v7678 = vadd.f32 %v7208, %v6881
        %v7679 = vadd.f32 %v7213, %v6886
        %v7680 = vadd.f32 %v7218, %v6891
        %v7681 = vadd.f32 %v7223, %v6896
        %v7682 = vadd.f32 %v7228, %v6901
        %v7683 = vadd.f32 %v7233, %v6906
        %v7684 = vadd.f32 %v7238, %v6911
        %v7685 = vadd.f32 %v7243, %v6916
        %v7686 = vadd.f32 %v7248, %v6921
        %v7687 = vadd.f32 %v7253, %v6926
        %v7688 = vadd.f32 %v7258, %v6931
        %v7689 = vadd.f32 %v7263, %v6936
        %v7690 = vadd.f32 %v7268, %v6941
        %v7691 = vadd.f32 %v7273, %v6946
        %v7692 = vtanh.pop %v7660
        %v7693 = vtanh.pop %v7661
        %v7694 = vtanh.pop %v7662
        %v7695 = vtanh.pop %v7663
        %v7696 = vtanh.pop %v7664
        %v7697 = vtanh.pop %v7665
        %v7698 = vtanh.pop %v7666
        %v7699 = vtanh.pop %v7667
        %v7700 = vtanh.pop %v7668
        %v7701 = vtanh.pop %v7669
        %v7702 = vtanh.pop %v7670
        %v7703 = vtanh.pop %v7671
        %v7704 = vtanh.pop %v7672
        %v7705 = vtanh.pop %v7673
        %v7706 = vtanh.pop %v7674
        %v7707 = vtanh.pop %v7675
        %v7708 = vtanh.pop %v7676
        %v7709 = vtanh.pop %v7677
        %v7710 = vtanh.pop %v7678
        %v7711 = vtanh.pop %v7679
        %v7712 = vtanh.pop %v7680
        %v7713 = vtanh.pop %v7681
        %v7714 = vtanh.pop %v7682
        %v7715 = vtanh.pop %v7683
        %v7716 = vtanh.pop %v7684
        %v7717 = vtanh.pop %v7685
        %v7718 = vtanh.pop %v7686
        %v7719 = vtanh.pop %v7687
        %v7720 = vtanh.pop %v7688
        %v7721 = vtanh.pop %v7689
        %v7722 = vtanh.pop %v7690
        %v7723 = vtanh.pop %v7691
        %v7724 = vxor.u32 %v7660, 2147483648
        %v7725 = vxor.u32 %v7661, 2147483648
        %v7726 = vxor.u32 %v7662, 2147483648
        %v7727 = vxor.u32 %v7663, 2147483648
        %v7728 = vxor.u32 %v7664, 2147483648
        %v7729 = vxor.u32 %v7665, 2147483648
        %v7730 = vxor.u32 %v7666, 2147483648
        %v7731 = vxor.u32 %v7667, 2147483648
        %v7732 = vxor.u32 %v7668, 2147483648
        %v7733 = vxor.u32 %v7669, 2147483648
        %v7734 = vxor.u32 %v7670, 2147483648
        %v7735 = vxor.u32 %v7671, 2147483648
        %v7736 = vxor.u32 %v7672, 2147483648
        %v7737 = vxor.u32 %v7673, 2147483648
        %v7738 = vxor.u32 %v7674, 2147483648
        %v7739 = vxor.u32 %v7675, 2147483648
        %v7740 = vxor.u32 %v7676, 2147483648
        %v7741 = vxor.u32 %v7677, 2147483648
        %v7742 = vxor.u32 %v7678, 2147483648
        %v7743 = vxor.u32 %v7679, 2147483648
        %v7744 = vxor.u32 %v7680, 2147483648
        %v7745 = vxor.u32 %v7681, 2147483648
        %v7746 = vxor.u32 %v7682, 2147483648
        %v7747 = vxor.u32 %v7683, 2147483648
        %v7748 = vxor.u32 %v7684, 2147483648
        %v7749 = vxor.u32 %v7685, 2147483648
        %v7750 = vxor.u32 %v7686, 2147483648
        %v7751 = vxor.u32 %v7687, 2147483648
        %v7752 = vxor.u32 %v7688, 2147483648
        %v7753 = vxor.u32 %v7689, 2147483648
        %v7754 = vxor.u32 %v7690, 2147483648
        %v7755 = vxor.u32 %v7691, 2147483648
        %v7756 = vmul.f32 %v7724, 1.442695
        %v7757 = vpow.pop %v7756
        %v7758 = vmul.f32 %v7725, 1.442695
        %v7759 = vpow.pop %v7758
        %v7760 = vmul.f32 %v7726, 1.442695
        %v7761 = vpow.pop %v7760
        %v7762 = vmul.f32 %v7727, 1.442695
        %v7763 = vpow.pop %v7762
        %v7764 = vmul.f32 %v7728, 1.442695
        %v7765 = vpow.pop %v7764
        %v7766 = vmul.f32 %v7729, 1.442695
        %v7767 = vpow.pop %v7766
        %v7768 = vmul.f32 %v7730, 1.442695
        %v7769 = vpow.pop %v7768
        %v7770 = vmul.f32 %v7731, 1.442695
        %v7771 = vpow.pop %v7770
        %v7772 = vmul.f32 %v7732, 1.442695
        %v7773 = vpow.pop %v7772
        %v7774 = vmul.f32 %v7733, 1.442695
        %v7775 = vpow.pop %v7774
        %v7776 = vmul.f32 %v7734, 1.442695
        %v7777 = vpow.pop %v7776
        %v7778 = vmul.f32 %v7735, 1.442695
        %v7779 = vpow.pop %v7778
        %v7780 = vmul.f32 %v7736, 1.442695
        %v7781 = vpow.pop %v7780
        %v7782 = vmul.f32 %v7737, 1.442695
        %v7783 = vpow.pop %v7782
        %v7784 = vmul.f32 %v7738, 1.442695
        %v7785 = vpow.pop %v7784
        %v7786 = vmul.f32 %v7739, 1.442695
        %v7787 = vpow.pop %v7786
        %v7788 = vmul.f32 %v7740, 1.442695
        %v7789 = vpow.pop %v7788
        %v7790 = vmul.f32 %v7741, 1.442695
        %v7791 = vpow.pop %v7790
        %v7792 = vmul.f32 %v7742, 1.442695
        %v7793 = vpow.pop %v7792
        %v7794 = vmul.f32 %v7743, 1.442695
        %v7795 = vpow.pop %v7794
        %v7796 = vmul.f32 %v7744, 1.442695
        %v7797 = vpow.pop %v7796
        %v7798 = vmul.f32 %v7745, 1.442695
        %v7799 = vpow.pop %v7798
        %v7800 = vmul.f32 %v7746, 1.442695
        %v7801 = vpow.pop %v7800
        %v7802 = vmul.f32 %v7747, 1.442695
        %v7803 = vpow.pop %v7802
        %v7804 = vmul.f32 %v7748, 1.442695
        %v7805 = vpow.pop %v7804
        %v7806 = vmul.f32 %v7749, 1.442695
        %v7807 = vpow.pop %v7806
        %v7808 = vmul.f32 %v7750, 1.442695
        %v7809 = vpow.pop %v7808
        %v7810 = vmul.f32 %v7751, 1.442695
        %v7811 = vpow.pop %v7810
        %v7812 = vmul.f32 %v7752, 1.442695
        %v7813 = vpow.pop %v7812
        %v7814 = vmul.f32 %v7753, 1.442695
        %v7815 = vpow.pop %v7814
        %v7816 = vmul.f32 %v7754, 1.442695
        %v7817 = vpow.pop %v7816
        %v7818 = vmul.f32 %v7755, 1.442695
        %v7819 = vpow.pop %v7818
        %v7820 = vadd.f32 %v7757, 1.0
        %v7821 = vadd.f32 %v7759, 1.0
        %v7822 = vadd.f32 %v7761, 1.0
        %v7823 = vadd.f32 %v7763, 1.0
        %v7824 = vadd.f32 %v7765, 1.0
        %v7825 = vadd.f32 %v7767, 1.0
        %v7826 = vadd.f32 %v7769, 1.0
        %v7827 = vadd.f32 %v7771, 1.0
        %v7828 = vadd.f32 %v7773, 1.0
        %v7829 = vadd.f32 %v7775, 1.0
        %v7830 = vadd.f32 %v7777, 1.0
        %v7831 = vadd.f32 %v7779, 1.0
        %v7832 = vadd.f32 %v7781, 1.0
        %v7833 = vadd.f32 %v7783, 1.0
        %v7834 = vadd.f32 %v7785, 1.0
        %v7835 = vadd.f32 %v7787, 1.0
        %v7836 = vadd.f32 %v7789, 1.0
        %v7837 = vadd.f32 %v7791, 1.0
        %v7838 = vadd.f32 %v7793, 1.0
        %v7839 = vadd.f32 %v7795, 1.0
        %v7840 = vadd.f32 %v7797, 1.0
        %v7841 = vadd.f32 %v7799, 1.0
        %v7842 = vadd.f32 %v7801, 1.0
        %v7843 = vadd.f32 %v7803, 1.0
        %v7844 = vadd.f32 %v7805, 1.0
        %v7845 = vadd.f32 %v7807, 1.0
        %v7846 = vadd.f32 %v7809, 1.0
        %v7847 = vadd.f32 %v7811, 1.0
        %v7848 = vadd.f32 %v7813, 1.0
        %v7849 = vadd.f32 %v7815, 1.0
        %v7850 = vadd.f32 %v7817, 1.0
        %v7851 = vadd.f32 %v7819, 1.0
        %v7852 = vrcp.pop %v7820
        %v7853 = vmul.f32 1.0, %v7852
        %v7854 = vrcp.pop %v7821
        %v7855 = vmul.f32 1.0, %v7854
        %v7856 = vrcp.pop %v7822
        %v7857 = vmul.f32 1.0, %v7856
        %v7858 = vrcp.pop %v7823
        %v7859 = vmul.f32 1.0, %v7858
        %v7860 = vrcp.pop %v7824
        %v7861 = vmul.f32 1.0, %v7860
        %v7862 = vrcp.pop %v7825
        %v7863 = vmul.f32 1.0, %v7862
        %v7864 = vrcp.pop %v7826
        %v7865 = vmul.f32 1.0, %v7864
        %v7866 = vrcp.pop %v7827
        %v7867 = vmul.f32 1.0, %v7866
        %v7868 = vrcp.pop %v7828
        %v7869 = vmul.f32 1.0, %v7868
        %v7870 = vrcp.pop %v7829
        %v7871 = vmul.f32 1.0, %v7870
        %v7872 = vrcp.pop %v7830
        %v7873 = vmul.f32 1.0, %v7872
        %v7874 = vrcp.pop %v7831
        %v7875 = vmul.f32 1.0, %v7874
        %v7876 = vrcp.pop %v7832
        %v7877 = vmul.f32 1.0, %v7876
        %v7878 = vrcp.pop %v7833
        %v7879 = vmul.f32 1.0, %v7878
        %v7880 = vrcp.pop %v7834
        %v7881 = vmul.f32 1.0, %v7880
        %v7882 = vrcp.pop %v7835
        %v7883 = vmul.f32 1.0, %v7882
        %v7884 = vrcp.pop %v7836
        %v7885 = vmul.f32 1.0, %v7884
        %v7886 = vrcp.pop %v7837
        %v7887 = vmul.f32 1.0, %v7886
        %v7888 = vrcp.pop %v7838
        %v7889 = vmul.f32 1.0, %v7888
        %v7890 = vrcp.pop %v7839
        %v7891 = vmul.f32 1.0, %v7890
        %v7892 = vrcp.pop %v7840
        %v7893 = vmul.f32 1.0, %v7892
        %v7894 = vrcp.pop %v7841
        %v7895 = vmul.f32 1.0, %v7894
        %v7896 = vrcp.pop %v7842
        %v7897 = vmul.f32 1.0, %v7896
        %v7898 = vrcp.pop %v7843
        %v7899 = vmul.f32 1.0, %v7898
        %v7900 = vrcp.pop %v7844
        %v7901 = vmul.f32 1.0, %v7900
        %v7902 = vrcp.pop %v7845
        %v7903 = vmul.f32 1.0, %v7902
        %v7904 = vrcp.pop %v7846
        %v7905 = vmul.f32 1.0, %v7904
        %v7906 = vrcp.pop %v7847
        %v7907 = vmul.f32 1.0, %v7906
        %v7908 = vrcp.pop %v7848
        %v7909 = vmul.f32 1.0, %v7908
        %v7910 = vrcp.pop %v7849
        %v7911 = vmul.f32 1.0, %v7910
        %v7912 = vrcp.pop %v7850
        %v7913 = vmul.f32 1.0, %v7912
        %v7914 = vrcp.pop %v7851
        %v7915 = vmul.f32 1.0, %v7914
        %7948 = vrot.lane.b32.xlu0 %v7853, 96
        %v7949 = vpop.permute.xlu0 %7948
        %7950 = vrot.lane.b32.xlu0 %v7855, 96
        %v7951 = vpop.permute.xlu0 %7950
        %7952 = vrot.lane.b32.xlu0 %v7857, 96
        %v7953 = vpop.permute.xlu0 %7952
        %7954 = vrot.lane.b32.xlu0 %v7859, 96
        %v7955 = vpop.permute.xlu0 %7954
        %7956 = vrot.lane.b32.xlu0 %v7861, 96
        %v7957 = vpop.permute.xlu0 %7956
        %7958 = vrot.lane.b32.xlu0 %v7863, 96
        %v7959 = vpop.permute.xlu0 %7958
        %7960 = vrot.lane.b32.xlu0 %v7865, 96
        %v7961 = vpop.permute.xlu0 %7960
        %7962 = vrot.lane.b32.xlu0 %v7867, 96
        %v7963 = vpop.permute.xlu0 %7962
        %7964 = vrot.lane.b32.xlu0 %v7869, 96
        %v7965 = vpop.permute.xlu0 %7964
        %7966 = vrot.lane.b32.xlu0 %v7871, 96
        %v7967 = vpop.permute.xlu0 %7966
        %7968 = vrot.lane.b32.xlu0 %v7873, 96
        %v7969 = vpop.permute.xlu0 %7968
        %7970 = vrot.lane.b32.xlu0 %v7875, 96
        %v7971 = vpop.permute.xlu0 %7970
        %7972 = vrot.lane.b32.xlu0 %v7877, 96
        %v7973 = vpop.permute.xlu0 %7972
        %7974 = vrot.lane.b32.xlu0 %v7879, 96
        %v7975 = vpop.permute.xlu0 %7974
        %7976 = vrot.lane.b32.xlu0 %v7881, 96
        %v7977 = vpop.permute.xlu0 %7976
        %7978 = vrot.lane.b32.xlu0 %v7883, 96
        %v7979 = vpop.permute.xlu0 %7978
        %7980 = vrot.lane.b32.xlu0 %v7885, 96
        %v7981 = vpop.permute.xlu0 %7980
        %7982 = vrot.lane.b32.xlu0 %v7887, 96
        %v7983 = vpop.permute.xlu0 %7982
        %7984 = vrot.lane.b32.xlu0 %v7889, 96
        %v7985 = vpop.permute.xlu0 %7984
        %7986 = vrot.lane.b32.xlu0 %v7891, 96
        %v7987 = vpop.permute.xlu0 %7986
        %7988 = vrot.lane.b32.xlu0 %v7893, 96
        %v7989 = vpop.permute.xlu0 %7988
        %7990 = vrot.lane.b32.xlu0 %v7895, 96
        %v7991 = vpop.permute.xlu0 %7990
        %7992 = vrot.lane.b32.xlu0 %v7897, 96
        %v7993 = vpop.permute.xlu0 %7992
        %7994 = vrot.lane.b32.xlu0 %v7899, 96
        %v7995 = vpop.permute.xlu0 %7994
        %7996 = vrot.lane.b32.xlu0 %v7901, 96
        %v7997 = vpop.permute.xlu0 %7996
        %7998 = vrot.lane.b32.xlu0 %v7903, 96
        %v7999 = vpop.permute.xlu0 %7998
        %8000 = vrot.lane.b32.xlu0 %v7905, 96
        %v8001 = vpop.permute.xlu0 %8000
        %8002 = vrot.lane.b32.xlu0 %v7907, 96
        %v8003 = vpop.permute.xlu0 %8002
        %8004 = vrot.lane.b32.xlu0 %v7909, 96
        %v8005 = vpop.permute.xlu0 %8004
        %8006 = vrot.lane.b32.xlu0 %v7911, 96
        %v8007 = vpop.permute.xlu0 %8006
        %8008 = vrot.lane.b32.xlu0 %v7913, 96
        %v8009 = vpop.permute.xlu0 %8008
        %8010 = vrot.lane.b32.xlu0 %v7915, 96
        %v8011 = vpop.permute.xlu0 %8010
        %v8044 = vmul.f32 %v7692, %v7949
        %v8045 = vmul.f32 %v7693, %v7951
        %v8046 = vmul.f32 %v7694, %v7953
        %v8047 = vmul.f32 %v7695, %v7955
        %v8048 = vmul.f32 %v7696, %v7957
        %v8049 = vmul.f32 %v7697, %v7959
        %v8050 = vmul.f32 %v7698, %v7961
        %v8051 = vmul.f32 %v7699, %v7963
        %v8052 = vmul.f32 %v7700, %v7965
        %v8053 = vmul.f32 %v7701, %v7967
        %v8054 = vmul.f32 %v7702, %v7969
        %v8055 = vmul.f32 %v7703, %v7971
        %v8056 = vmul.f32 %v7704, %v7973
        %v8057 = vmul.f32 %v7705, %v7975
        %v8058 = vmul.f32 %v7706, %v7977
        %v8059 = vmul.f32 %v7707, %v7979
        %v8060 = vmul.f32 %v7708, %v7981
        %v8061 = vmul.f32 %v7709, %v7983
        %v8062 = vmul.f32 %v7710, %v7985
        %v8063 = vmul.f32 %v7711, %v7987
        %v8064 = vmul.f32 %v7712, %v7989
        %v8065 = vmul.f32 %v7713, %v7991
        %v8066 = vmul.f32 %v7714, %v7993
        %v8067 = vmul.f32 %v7715, %v7995
        %v8068 = vmul.f32 %v7716, %v7997
        %v8069 = vmul.f32 %v7717, %v7999
        %v8070 = vmul.f32 %v7718, %v8001
        %v8071 = vmul.f32 %v7719, %v8003
        %v8072 = vmul.f32 %v7720, %v8005
        %v8073 = vmul.f32 %v7721, %v8007
        %v8074 = vmul.f32 %v7722, %v8009
        %v8075 = vmul.f32 %v7723, %v8011
        %v8077 = vlaneseq
        %v8078 = vshrl.u32 %v8077, 7
        %v8079 = vsub.s32 0, %v8078
        %v8080 = vrot.slane %v1368, %v8079
        %v8083 = vsel %vm1826, %v8044, 0
        %v8086 = vsel %vm1826, %v8045, 0
        %v8089 = vsel %vm1826, %v8046, 0
        %v8092 = vsel %vm1826, %v8047, 0
        %v8095 = vsel %vm1826, %v8048, 0
        %v8098 = vsel %vm1826, %v8049, 0
        %v8101 = vsel %vm1826, %v8050, 0
        %v8104 = vsel %vm1826, %v8051, 0
        %v8107 = vsel %vm1826, %v8052, 0
        %v8110 = vsel %vm1826, %v8053, 0
        %v8113 = vsel %vm1826, %v8054, 0
        %v8116 = vsel %vm1826, %v8055, 0
        %v8119 = vsel %vm1826, %v8056, 0
        %v8122 = vsel %vm1826, %v8057, 0
        %v8125 = vsel %vm1826, %v8058, 0
        %v8128 = vsel %vm1826, %v8059, 0
        %v8131 = vsel %vm1826, %v8060, 0
        %v8134 = vsel %vm1826, %v8061, 0
        %v8137 = vsel %vm1826, %v8062, 0
        %v8140 = vsel %vm1826, %v8063, 0
        %v8143 = vsel %vm1826, %v8064, 0
        %v8146 = vsel %vm1826, %v8065, 0
        %v8149 = vsel %vm1826, %v8066, 0
        %v8152 = vsel %vm1826, %v8067, 0
        %v8155 = vsel %vm1826, %v8068, 0
        %v8158 = vsel %vm1826, %v8069, 0
        %v8161 = vsel %vm1826, %v8070, 0
        %v8164 = vsel %vm1826, %v8071, 0
        %v8167 = vsel %vm1826, %v8072, 0
        %v8170 = vsel %vm1826, %v8073, 0
        %v8173 = vsel %vm1826, %v8074, 0
        %v8176 = vsel %vm1826, %v8075, 0
        %8178 = vmatprep.subr.mxu0 0.0
        %8179 = vmatpush1.msra.mxu0 %v1364
        %8180 = vmatprep.subr.mxu0 0.0
        %8181 = vmatpush1.msra.mxu0 %v1365
        %8182 = vmatprep.subr.mxu0 0.0
        %8183 = vmatpush1.msra.mxu0 %v1366
        %8184 = vmatprep.subr.mxu0 0.0
        %8185 = vmatpush1.msra.mxu0 %v1367
        %8186 = vmatprep.subr.mxu0 0.0
        %8187 = vmatpush1.msra.mxu0 0.0
        %8188 = vmatprep.subr.mxu0 0.0
        %8189 = vmatpush1.msra.mxu0 0.0
        %8190 = vmatprep.subr.mxu0 0.0
        %8191 = vmatpush1.msra.mxu0 0.0
        %8192 = vmatprep.subr.mxu0 0.0
        %8193 = vmatpush1.msra.mxu0 0.0
        %8194 = vmatprep.subr.mxu0 0.0
        %8195 = vmatpush1.msra.mxu0 0.0
        %8196 = vmatprep.subr.mxu0 0.0
        %8197 = vmatpush1.msra.mxu0 0.0
        %8198 = vmatprep.subr.mxu0 0.0
        %8199 = vmatpush1.msra.mxu0 0.0
        %8200 = vmatprep.subr.mxu0 0.0
        %8201 = vmatpush1.msra.mxu0 0.0
        %8202 = vmatprep.subr.mxu0 0.0
        %8203 = vmatpush1.msra.mxu0 0.0
        %8204 = vmatprep.subr.mxu0 0.0
        %8205 = vmatpush1.msra.mxu0 0.0
        %8206 = vmatprep.subr.mxu0 0.0
        %8207 = vmatpush1.msra.mxu0 0.0
        %8208 = vmatprep.subr.mxu0 0.0
        %8209 = vmatpush1.msra.mxu0 0.0
        %8210 = vmatprep.subr.mxu0 0.0
        %8211 = vmatpush1.msra.mxu0 0.0
        %8212 = vmatprep.subr.mxu0 0.0
        %8213 = vmatpush1.msra.mxu0 0.0
        %8214 = vmatprep.subr.mxu0 0.0
        %8215 = vmatpush1.msra.mxu0 0.0
        %8216 = vmatprep.subr.mxu0 0.0
        %8217 = vmatpush1.msra.mxu0 0.0
        %8218 = vmatprep.subr.mxu0 0.0
        %8219 = vmatpush1.msra.mxu0 0.0
        %8220 = vmatprep.subr.mxu0 0.0
        %8221 = vmatpush1.msra.mxu0 0.0
        %8222 = vmatprep.subr.mxu0 0.0
        %8223 = vmatpush1.msra.mxu0 0.0
        %8224 = vmatprep.subr.mxu0 0.0
        %8225 = vmatpush1.msra.mxu0 0.0
        %8226 = vmatprep.subr.mxu0 0.0
        %8227 = vmatpush1.msra.mxu0 0.0
        %8228 = vmatprep.subr.mxu0 0.0
        %8229 = vmatpush1.msra.mxu0 0.0
        %8230 = vmatprep.subr.mxu0 0.0
        %8231 = vmatpush1.msra.mxu0 0.0
        %8232 = vmatprep.subr.mxu0 0.0
        %8233 = vmatpush1.msra.mxu0 0.0
        %8234 = vmatprep.subr.mxu0 0.0
        %8235 = vmatpush1.msra.mxu0 0.0
        %8236 = vmatprep.subr.mxu0 0.0
        %8237 = vmatpush1.msra.mxu0 0.0
        %8238 = vmatprep.subr.mxu0 0.0
        %8239 = vmatpush1.msra.mxu0 0.0
        %8240 = vmatprep.subr.mxu0 0.0
        %8241 = vmatpush1.msra.mxu0 0.0
        %8242 = vmatprep.mubr.f32.mxu0 0.0
        %8243 = vmatmul.mubr.f32.gmra.mrb[0].mxu0 %v8083
        %v8244 = vpop.f32.mrb[0].mxu0
        %v8245 = vadd.f32 %v8080, %v8244
        %v8246 = vpop.f32.mrb[0].mxu0
        %8247 = vmatprep.mubr.f32.mxu0 0.0
        %8248 = vmatmul.mubr.f32.gmra.mrb[0].mxu0 %v8086
        %v8249 = vpop.f32.mrb[0].mxu0
        %v8250 = vadd.f32 %v8080, %v8249
        %v8251 = vpop.f32.mrb[0].mxu0
        %8252 = vmatprep.mubr.f32.mxu0 0.0
        %8253 = vmatmul.mubr.f32.gmra.mrb[0].mxu0 %v8089
        %v8254 = vpop.f32.mrb[0].mxu0
        %v8255 = vadd.f32 %v8080, %v8254
        %v8256 = vpop.f32.mrb[0].mxu0
        %8257 = vmatprep.mubr.f32.mxu0 0.0
        %8258 = vmatmul.mubr.f32.gmra.mrb[0].mxu0 %v8092
        %v8259 = vpop.f32.mrb[0].mxu0
        %v8260 = vadd.f32 %v8080, %v8259
        %v8261 = vpop.f32.mrb[0].mxu0
        %8262 = vmatprep.mubr.f32.mxu0 0.0
        %8263 = vmatmul.mubr.f32.gmra.mrb[0].mxu0 %v8095
        %v8264 = vpop.f32.mrb[0].mxu0
        %v8265 = vadd.f32 %v8080, %v8264
        %v8266 = vpop.f32.mrb[0].mxu0
        %8267 = vmatprep.mubr.f32.mxu0 0.0
        %8268 = vmatmul.mubr.f32.gmra.mrb[0].mxu0 %v8098
        %v8269 = vpop.f32.mrb[0].mxu0
        %v8270 = vadd.f32 %v8080, %v8269
        %v8271 = vpop.f32.mrb[0].mxu0
        %8272 = vmatprep.mubr.f32.mxu0 0.0
        %8273 = vmatmul.mubr.f32.gmra.mrb[0].mxu0 %v8101
        %v8274 = vpop.f32.mrb[0].mxu0
        %v8275 = vadd.f32 %v8080, %v8274
        %v8276 = vpop.f32.mrb[0].mxu0
        %8277 = vmatprep.mubr.f32.mxu0 0.0
        %8278 = vmatmul.mubr.f32.gmra.mrb[0].mxu0 %v8104
        %v8279 = vpop.f32.mrb[0].mxu0
        %v8280 = vadd.f32 %v8080, %v8279
        %v8281 = vpop.f32.mrb[0].mxu0
        %8282 = vmatprep.mubr.f32.mxu0 0.0
        %8283 = vmatmul.mubr.f32.gmra.mrb[0].mxu0 %v8107
        %v8284 = vpop.f32.mrb[0].mxu0
        %v8285 = vadd.f32 %v8080, %v8284
        %v8286 = vpop.f32.mrb[0].mxu0
        %8287 = vmatprep.mubr.f32.mxu0 0.0
        %8288 = vmatmul.mubr.f32.gmra.mrb[0].mxu0 %v8110
        %v8289 = vpop.f32.mrb[0].mxu0
        %v8290 = vadd.f32 %v8080, %v8289
        %v8291 = vpop.f32.mrb[0].mxu0
        %8292 = vmatprep.mubr.f32.mxu0 0.0
        %8293 = vmatmul.mubr.f32.gmra.mrb[0].mxu0 %v8113
        %v8294 = vpop.f32.mrb[0].mxu0
        %v8295 = vadd.f32 %v8080, %v8294
        %v8296 = vpop.f32.mrb[0].mxu0
        %8297 = vmatprep.mubr.f32.mxu0 0.0
        %8298 = vmatmul.mubr.f32.gmra.mrb[0].mxu0 %v8116
        %v8299 = vpop.f32.mrb[0].mxu0
        %v8300 = vadd.f32 %v8080, %v8299
        %v8301 = vpop.f32.mrb[0].mxu0
        %8302 = vmatprep.mubr.f32.mxu0 0.0
        %8303 = vmatmul.mubr.f32.gmra.mrb[0].mxu0 %v8119
        %v8304 = vpop.f32.mrb[0].mxu0
        %v8305 = vadd.f32 %v8080, %v8304
        %v8306 = vpop.f32.mrb[0].mxu0
        %8307 = vmatprep.mubr.f32.mxu0 0.0
        %8308 = vmatmul.mubr.f32.gmra.mrb[0].mxu0 %v8122
        %v8309 = vpop.f32.mrb[0].mxu0
        %v8310 = vadd.f32 %v8080, %v8309
        %v8311 = vpop.f32.mrb[0].mxu0
        %8312 = vmatprep.mubr.f32.mxu0 0.0
        %8313 = vmatmul.mubr.f32.gmra.mrb[0].mxu0 %v8125
        %v8314 = vpop.f32.mrb[0].mxu0
        %v8315 = vadd.f32 %v8080, %v8314
        %v8316 = vpop.f32.mrb[0].mxu0
        %8317 = vmatprep.mubr.f32.mxu0 0.0
        %8318 = vmatmul.mubr.f32.gmra.mrb[0].mxu0 %v8128
        %v8319 = vpop.f32.mrb[0].mxu0
        %v8320 = vadd.f32 %v8080, %v8319
        %v8321 = vpop.f32.mrb[0].mxu0
        %8322 = vmatprep.mubr.f32.mxu0 0.0
        %8323 = vmatmul.mubr.f32.gmra.mrb[0].mxu0 %v8131
        %v8324 = vpop.f32.mrb[0].mxu0
        %v8325 = vadd.f32 %v8080, %v8324
        %v8326 = vpop.f32.mrb[0].mxu0
        %8327 = vmatprep.mubr.f32.mxu0 0.0
        %8328 = vmatmul.mubr.f32.gmra.mrb[0].mxu0 %v8134
        %v8329 = vpop.f32.mrb[0].mxu0
        %v8330 = vadd.f32 %v8080, %v8329
        %v8331 = vpop.f32.mrb[0].mxu0
        %8332 = vmatprep.mubr.f32.mxu0 0.0
        %8333 = vmatmul.mubr.f32.gmra.mrb[0].mxu0 %v8137
        %v8334 = vpop.f32.mrb[0].mxu0
        %v8335 = vadd.f32 %v8080, %v8334
        %v8336 = vpop.f32.mrb[0].mxu0
        %8337 = vmatprep.mubr.f32.mxu0 0.0
        %8338 = vmatmul.mubr.f32.gmra.mrb[0].mxu0 %v8140
        %v8339 = vpop.f32.mrb[0].mxu0
        %v8340 = vadd.f32 %v8080, %v8339
        %v8341 = vpop.f32.mrb[0].mxu0
        %8342 = vmatprep.mubr.f32.mxu0 0.0
        %8343 = vmatmul.mubr.f32.gmra.mrb[0].mxu0 %v8143
        %v8344 = vpop.f32.mrb[0].mxu0
        %v8345 = vadd.f32 %v8080, %v8344
        %v8346 = vpop.f32.mrb[0].mxu0
        %8347 = vmatprep.mubr.f32.mxu0 0.0
        %8348 = vmatmul.mubr.f32.gmra.mrb[0].mxu0 %v8146
        %v8349 = vpop.f32.mrb[0].mxu0
        %v8350 = vadd.f32 %v8080, %v8349
        %v8351 = vpop.f32.mrb[0].mxu0
        %8352 = vmatprep.mubr.f32.mxu0 0.0
        %8353 = vmatmul.mubr.f32.gmra.mrb[0].mxu0 %v8149
        %v8354 = vpop.f32.mrb[0].mxu0
        %v8355 = vadd.f32 %v8080, %v8354
        %v8356 = vpop.f32.mrb[0].mxu0
        %8357 = vmatprep.mubr.f32.mxu0 0.0
        %8358 = vmatmul.mubr.f32.gmra.mrb[0].mxu0 %v8152
        %v8359 = vpop.f32.mrb[0].mxu0
        %v8360 = vadd.f32 %v8080, %v8359
        %v8361 = vpop.f32.mrb[0].mxu0
        %8362 = vmatprep.mubr.f32.mxu0 0.0
        %8363 = vmatmul.mubr.f32.gmra.mrb[0].mxu0 %v8155
        %v8364 = vpop.f32.mrb[0].mxu0
        %v8365 = vadd.f32 %v8080, %v8364
        %v8366 = vpop.f32.mrb[0].mxu0
        %8367 = vmatprep.mubr.f32.mxu0 0.0
        %8368 = vmatmul.mubr.f32.gmra.mrb[0].mxu0 %v8158
        %v8369 = vpop.f32.mrb[0].mxu0
        %v8370 = vadd.f32 %v8080, %v8369
        %v8371 = vpop.f32.mrb[0].mxu0
        %8372 = vmatprep.mubr.f32.mxu0 0.0
        %8373 = vmatmul.mubr.f32.gmra.mrb[0].mxu0 %v8161
        %v8374 = vpop.f32.mrb[0].mxu0
        %v8375 = vadd.f32 %v8080, %v8374
        %v8376 = vpop.f32.mrb[0].mxu0
        %8377 = vmatprep.mubr.f32.mxu0 0.0
        %8378 = vmatmul.mubr.f32.gmra.mrb[0].mxu0 %v8164
        %v8379 = vpop.f32.mrb[0].mxu0
        %v8380 = vadd.f32 %v8080, %v8379
        %v8381 = vpop.f32.mrb[0].mxu0
        %8382 = vmatprep.mubr.f32.mxu0 0.0
        %8383 = vmatmul.mubr.f32.gmra.mrb[0].mxu0 %v8167
        %v8384 = vpop.f32.mrb[0].mxu0
        %v8385 = vadd.f32 %v8080, %v8384
        %v8386 = vpop.f32.mrb[0].mxu0
        %8387 = vmatprep.mubr.f32.mxu0 0.0
        %8388 = vmatmul.mubr.f32.gmra.mrb[0].mxu0 %v8170
        %v8389 = vpop.f32.mrb[0].mxu0
        %v8390 = vadd.f32 %v8080, %v8389
        %v8391 = vpop.f32.mrb[0].mxu0
        %8392 = vmatprep.mubr.f32.mxu0 0.0
        %8393 = vmatmul.mubr.f32.gmra.mrb[0].mxu0 %v8173
        %v8394 = vpop.f32.mrb[0].mxu0
        %v8395 = vadd.f32 %v8080, %v8394
        %v8396 = vpop.f32.mrb[0].mxu0
        %8397 = vmatprep.mubr.f32.mxu0 0.0
        %8398 = vmatmul.mubr.f32.gmra.mrb[0].mxu0 %v8176
        %v8399 = vpop.f32.mrb[0].mxu0
        %v8400 = vadd.f32 %v8080, %v8399
        %v8401 = vpop.f32.mrb[0].mxu0
        %8402 = vdwg.mxu0
        %v8403 = vadd.f32 %v8245, %v5309
        %v8404 = vadd.f32 %v8250, %v5314
        %v8405 = vadd.f32 %v8255, %v5319
        %v8406 = vadd.f32 %v8260, %v5324
        %v8407 = vadd.f32 %v8265, %v5329
        %v8408 = vadd.f32 %v8270, %v5334
        %v8409 = vadd.f32 %v8275, %v5339
        %v8410 = vadd.f32 %v8280, %v5344
        %v8411 = vadd.f32 %v8285, %v5349
        %v8412 = vadd.f32 %v8290, %v5354
        %v8413 = vadd.f32 %v8295, %v5359
        %v8414 = vadd.f32 %v8300, %v5364
        %v8415 = vadd.f32 %v8305, %v5369
        %v8416 = vadd.f32 %v8310, %v5374
        %v8417 = vadd.f32 %v8315, %v5379
        %v8418 = vadd.f32 %v8320, %v5384
        %v8419 = vadd.f32 %v8325, %v5389
        %v8420 = vadd.f32 %v8330, %v5394
        %v8421 = vadd.f32 %v8335, %v5399
        %v8422 = vadd.f32 %v8340, %v5404
        %v8423 = vadd.f32 %v8345, %v5409
        %v8424 = vadd.f32 %v8350, %v5414
        %v8425 = vadd.f32 %v8355, %v5419
        %v8426 = vadd.f32 %v8360, %v5424
        %v8427 = vadd.f32 %v8365, %v5429
        %v8428 = vadd.f32 %v8370, %v5434
        %v8429 = vadd.f32 %v8375, %v5439
        %v8430 = vadd.f32 %v8380, %v5444
        %v8431 = vadd.f32 %v8385, %v5449
        %v8432 = vadd.f32 %v8390, %v5454
        %v8433 = vadd.f32 %v8395, %v5459
        %v8434 = vadd.f32 %v8400, %v5464
        %8467 = vrot.lane.b32.xlu0 %v7628, 32
        %v8468 = vpop.permute.xlu0 %8467
        %8469 = vrot.lane.b32.xlu0 %v7629, 32
        %v8470 = vpop.permute.xlu0 %8469
        %8471 = vrot.lane.b32.xlu0 %v7630, 32
        %v8472 = vpop.permute.xlu0 %8471
        %8473 = vrot.lane.b32.xlu0 %v7631, 32
        %v8474 = vpop.permute.xlu0 %8473
        %8475 = vrot.lane.b32.xlu0 %v7632, 32
        %v8476 = vpop.permute.xlu0 %8475
        %8477 = vrot.lane.b32.xlu0 %v7633, 32
        %v8478 = vpop.permute.xlu0 %8477
        %8479 = vrot.lane.b32.xlu0 %v7634, 32
        %v8480 = vpop.permute.xlu0 %8479
        %8481 = vrot.lane.b32.xlu0 %v7635, 32
        %v8482 = vpop.permute.xlu0 %8481
        %8483 = vrot.lane.b32.xlu0 %v7636, 32
        %v8484 = vpop.permute.xlu0 %8483
        %8485 = vrot.lane.b32.xlu0 %v7637, 32
        %v8486 = vpop.permute.xlu0 %8485
        %8487 = vrot.lane.b32.xlu0 %v7638, 32
        %v8488 = vpop.permute.xlu0 %8487
        %8489 = vrot.lane.b32.xlu0 %v7639, 32
        %v8490 = vpop.permute.xlu0 %8489
        %8491 = vrot.lane.b32.xlu0 %v7640, 32
        %v8492 = vpop.permute.xlu0 %8491
        %8493 = vrot.lane.b32.xlu0 %v7641, 32
        %v8494 = vpop.permute.xlu0 %8493
        %8495 = vrot.lane.b32.xlu0 %v7642, 32
        %v8496 = vpop.permute.xlu0 %8495
        %8497 = vrot.lane.b32.xlu0 %v7643, 32
        %v8498 = vpop.permute.xlu0 %8497
        %8499 = vrot.lane.b32.xlu0 %v7644, 32
        %v8500 = vpop.permute.xlu0 %8499
        %8501 = vrot.lane.b32.xlu0 %v7645, 32
        %v8502 = vpop.permute.xlu0 %8501
        %8503 = vrot.lane.b32.xlu0 %v7646, 32
        %v8504 = vpop.permute.xlu0 %8503
        %8505 = vrot.lane.b32.xlu0 %v7647, 32
        %v8506 = vpop.permute.xlu0 %8505
        %8507 = vrot.lane.b32.xlu0 %v7648, 32
        %v8508 = vpop.permute.xlu0 %8507
        %8509 = vrot.lane.b32.xlu0 %v7649, 32
        %v8510 = vpop.permute.xlu0 %8509
        %8511 = vrot.lane.b32.xlu0 %v7650, 32
        %v8512 = vpop.permute.xlu0 %8511
        %8513 = vrot.lane.b32.xlu0 %v7651, 32
        %v8514 = vpop.permute.xlu0 %8513
        %8515 = vrot.lane.b32.xlu0 %v7652, 32
        %v8516 = vpop.permute.xlu0 %8515
        %8517 = vrot.lane.b32.xlu0 %v7653, 32
        %v8518 = vpop.permute.xlu0 %8517
        %8519 = vrot.lane.b32.xlu0 %v7654, 32
        %v8520 = vpop.permute.xlu0 %8519
        %8521 = vrot.lane.b32.xlu0 %v7655, 32
        %v8522 = vpop.permute.xlu0 %8521
        %8523 = vrot.lane.b32.xlu0 %v7656, 32
        %v8524 = vpop.permute.xlu0 %8523
        %8525 = vrot.lane.b32.xlu0 %v7657, 32
        %v8526 = vpop.permute.xlu0 %8525
        %8527 = vrot.lane.b32.xlu0 %v7658, 32
        %v8528 = vpop.permute.xlu0 %8527
        %8529 = vrot.lane.b32.xlu0 %v7659, 32
        %v8530 = vpop.permute.xlu0 %8529
        %8563 = vrot.lane.b32.xlu0 %v7630, 64
        %v8564 = vpop.permute.xlu0 %8563
        %8565 = vrot.lane.b32.xlu0 %v7631, 64
        %v8566 = vpop.permute.xlu0 %8565
        %8567 = vrot.lane.b32.xlu0 %v7632, 64
        %v8568 = vpop.permute.xlu0 %8567
        %8569 = vrot.lane.b32.xlu0 %v7633, 64
        %v8570 = vpop.permute.xlu0 %8569
        %8571 = vrot.lane.b32.xlu0 %v7634, 64
        %v8572 = vpop.permute.xlu0 %8571
        %8573 = vrot.lane.b32.xlu0 %v7635, 64
        %v8574 = vpop.permute.xlu0 %8573
        %8575 = vrot.lane.b32.xlu0 %v7636, 64
        %v8576 = vpop.permute.xlu0 %8575
        %8577 = vrot.lane.b32.xlu0 %v7637, 64
        %v8578 = vpop.permute.xlu0 %8577
        %8579 = vrot.lane.b32.xlu0 %v7638, 64
        %v8580 = vpop.permute.xlu0 %8579
        %8581 = vrot.lane.b32.xlu0 %v7639, 64
        %v8582 = vpop.permute.xlu0 %8581
        %8583 = vrot.lane.b32.xlu0 %v7640, 64
        %v8584 = vpop.permute.xlu0 %8583
        %8585 = vrot.lane.b32.xlu0 %v7641, 64
        %v8586 = vpop.permute.xlu0 %8585
        %8587 = vrot.lane.b32.xlu0 %v7642, 64
        %v8588 = vpop.permute.xlu0 %8587
        %8589 = vrot.lane.b32.xlu0 %v7643, 64
        %v8590 = vpop.permute.xlu0 %8589
        %8591 = vrot.lane.b32.xlu0 %v7644, 64
        %v8592 = vpop.permute.xlu0 %8591
        %8593 = vrot.lane.b32.xlu0 %v7645, 64
        %v8594 = vpop.permute.xlu0 %8593
        %8595 = vrot.lane.b32.xlu0 %v7646, 64
        %v8596 = vpop.permute.xlu0 %8595
        %8597 = vrot.lane.b32.xlu0 %v7647, 64
        %v8598 = vpop.permute.xlu0 %8597
        %8599 = vrot.lane.b32.xlu0 %v7648, 64
        %v8600 = vpop.permute.xlu0 %8599
        %8601 = vrot.lane.b32.xlu0 %v7649, 64
        %v8602 = vpop.permute.xlu0 %8601
        %8603 = vrot.lane.b32.xlu0 %v7650, 64
        %v8604 = vpop.permute.xlu0 %8603
        %8605 = vrot.lane.b32.xlu0 %v7651, 64
        %v8606 = vpop.permute.xlu0 %8605
        %8607 = vrot.lane.b32.xlu0 %v7652, 64
        %v8608 = vpop.permute.xlu0 %8607
        %8609 = vrot.lane.b32.xlu0 %v7653, 64
        %v8610 = vpop.permute.xlu0 %8609
        %8611 = vrot.lane.b32.xlu0 %v7654, 64
        %v8612 = vpop.permute.xlu0 %8611
        %8613 = vrot.lane.b32.xlu0 %v7655, 64
        %v8614 = vpop.permute.xlu0 %8613
        %8615 = vrot.lane.b32.xlu0 %v7656, 64
        %v8616 = vpop.permute.xlu0 %8615
        %8617 = vrot.lane.b32.xlu0 %v7657, 64
        %v8618 = vpop.permute.xlu0 %8617
        %8619 = vrot.lane.b32.xlu0 %v7658, 64
        %v8620 = vpop.permute.xlu0 %8619
        %8621 = vrot.lane.b32.xlu0 %v7659, 64
        %v8622 = vpop.permute.xlu0 %8621
        %v8653 = vsel %vm1826, 0.0, %v8468
        %v8654 = vsel %vm1826, 0.0, %v8470
        %v8655 = vsel %vm1826, %v7628, %v8472
        %v8656 = vsel %vm1826, %v7629, %v8474
        %v8657 = vsel %vm1826, %v7630, %v8476
        %v8658 = vsel %vm1826, %v7631, %v8478
        %v8659 = vsel %vm1826, %v7632, %v8480
        %v8660 = vsel %vm1826, %v7633, %v8482
        %v8661 = vsel %vm1826, %v7634, %v8484
        %v8662 = vsel %vm1826, %v7635, %v8486
        %v8663 = vsel %vm1826, %v7636, %v8488
        %v8664 = vsel %vm1826, %v7637, %v8490
        %v8665 = vsel %vm1826, %v7638, %v8492
        %v8666 = vsel %vm1826, %v7639, %v8494
        %v8667 = vsel %vm1826, %v7640, %v8496
        %v8668 = vsel %vm1826, %v7641, %v8498
        %v8669 = vsel %vm1826, %v7642, %v8500
        %v8670 = vsel %vm1826, %v7643, %v8502
        %v8671 = vsel %vm1826, %v7644, %v8504
        %v8672 = vsel %vm1826, %v7645, %v8506
        %v8673 = vsel %vm1826, %v7646, %v8508
        %v8674 = vsel %vm1826, %v7647, %v8510
        %v8675 = vsel %vm1826, %v7648, %v8512
        %v8676 = vsel %vm1826, %v7649, %v8514
        %v8677 = vsel %vm1826, %v7650, %v8516
        %v8678 = vsel %vm1826, %v7651, %v8518
        %v8679 = vsel %vm1826, %v7652, %v8520
        %v8680 = vsel %vm1826, %v7653, %v8522
        %v8681 = vsel %vm1826, %v7654, %v8524
        %v8682 = vsel %vm1826, %v7655, %v8526
        %v8683 = vsel %vm1826, %v7656, %v8528
        %v8684 = vsel %vm1826, %v7657, %v8530
        %v8685 = vsel %vm2507, %v8653, %v8564
        %v8686 = vsel %vm2507, %v8654, %v8566
        %v8687 = vsel %vm2507, %v8655, %v8568
        %v8688 = vsel %vm2507, %v8656, %v8570
        %v8689 = vsel %vm2507, %v8657, %v8572
        %v8690 = vsel %vm2507, %v8658, %v8574
        %v8691 = vsel %vm2507, %v8659, %v8576
        %v8692 = vsel %vm2507, %v8660, %v8578
        %v8693 = vsel %vm2507, %v8661, %v8580
        %v8694 = vsel %vm2507, %v8662, %v8582
        %v8695 = vsel %vm2507, %v8663, %v8584
        %v8696 = vsel %vm2507, %v8664, %v8586
        %v8697 = vsel %vm2507, %v8665, %v8588
        %v8698 = vsel %vm2507, %v8666, %v8590
        %v8699 = vsel %vm2507, %v8667, %v8592
        %v8700 = vsel %vm2507, %v8668, %v8594
        %v8701 = vsel %vm2507, %v8669, %v8596
        %v8702 = vsel %vm2507, %v8670, %v8598
        %v8703 = vsel %vm2507, %v8671, %v8600
        %v8704 = vsel %vm2507, %v8672, %v8602
        %v8705 = vsel %vm2507, %v8673, %v8604
        %v8706 = vsel %vm2507, %v8674, %v8606
        %v8707 = vsel %vm2507, %v8675, %v8608
        %v8708 = vsel %vm2507, %v8676, %v8610
        %v8709 = vsel %vm2507, %v8677, %v8612
        %v8710 = vsel %vm2507, %v8678, %v8614
        %v8711 = vsel %vm2507, %v8679, %v8616
        %v8712 = vsel %vm2507, %v8680, %v8618
        %v8713 = vsel %vm2507, %v8681, %v8620
        %v8714 = vsel %vm2507, %v8682, %v8622
        %v8715 = vsel %vm2507, %v8683, %v2270
        %v8716 = vsel %vm2507, %v8684, %v2270
        %v8718 = vlaneseq
        %v8719 = vshrl.u32 %v8718, 7
        %v8720 = vsub.s32 0, %v8719
        %v8721 = vrot.slane %v1393, %v8720
        %v8723 = vadd.f32 %v8721, 0.0
        %v8725 = vsel %vm2539, %v8685, 0
        %v8728 = vsel %vm2539, %v8686, 0
        %v8731 = vsel %vm2539, %v8687, 0
        %v8734 = vsel %vm2539, %v8688, 0
        %v8737 = vsel %vm2539, %v8689, 0
        %v8740 = vsel %vm2539, %v8690, 0
        %v8743 = vsel %vm2539, %v8691, 0
        %v8746 = vsel %vm2539, %v8692, 0
        %v8749 = vsel %vm2539, %v8693, 0
        %v8752 = vsel %vm2539, %v8694, 0
        %v8755 = vsel %vm2539, %v8695, 0
        %v8758 = vsel %vm2539, %v8696, 0
        %v8761 = vsel %vm2539, %v8697, 0
        %v8764 = vsel %vm2539, %v8698, 0
        %v8767 = vsel %vm2539, %v8699, 0
        %v8770 = vsel %vm2539, %v8700, 0
        %v8773 = vsel %vm2539, %v8701, 0
        %v8776 = vsel %vm2539, %v8702, 0
        %v8779 = vsel %vm2539, %v8703, 0
        %v8782 = vsel %vm2539, %v8704, 0
        %v8785 = vsel %vm2539, %v8705, 0
        %v8788 = vsel %vm2539, %v8706, 0
        %v8791 = vsel %vm2539, %v8707, 0
        %v8794 = vsel %vm2539, %v8708, 0
        %v8797 = vsel %vm2539, %v8709, 0
        %v8800 = vsel %vm2539, %v8710, 0
        %v8803 = vsel %vm2539, %v8711, 0
        %v8806 = vsel %vm2539, %v8712, 0
        %v8809 = vsel %vm2539, %v8713, 0
        %v8812 = vsel %vm2539, %v8714, 0
        %v8815 = vsel %vm2539, %v8715, 0
        %v8818 = vsel %vm2539, %v8716, 0
        %8820 = vmatprep.subr.mxu0 0.0
        %8821 = vmatpush1.msra.mxu0 %v1369
        %8822 = vmatprep.subr.mxu0 0.0
        %8823 = vmatpush1.msra.mxu0 %v1370
        %8824 = vmatprep.subr.mxu0 0.0
        %8825 = vmatpush1.msra.mxu0 %v1371
        %8826 = vmatprep.subr.mxu0 0.0
        %8827 = vmatpush1.msra.mxu0 %v1372
        %8828 = vmatprep.subr.mxu0 0.0
        %8829 = vmatpush1.msra.mxu0 %v1373
        %8830 = vmatprep.subr.mxu0 0.0
        %8831 = vmatpush1.msra.mxu0 %v1374
        %8832 = vmatprep.subr.mxu0 0.0
        %8833 = vmatpush1.msra.mxu0 %v1375
        %8834 = vmatprep.subr.mxu0 0.0
        %8835 = vmatpush1.msra.mxu0 %v1376
        %8836 = vmatprep.subr.mxu0 0.0
        %8837 = vmatpush1.msra.mxu0 %v1377
        %8838 = vmatprep.subr.mxu0 0.0
        %8839 = vmatpush1.msra.mxu0 %v1378
        %8840 = vmatprep.subr.mxu0 0.0
        %8841 = vmatpush1.msra.mxu0 %v1379
        %8842 = vmatprep.subr.mxu0 0.0
        %8843 = vmatpush1.msra.mxu0 %v1380
        %8844 = vmatprep.subr.mxu0 0.0
        %8845 = vmatpush1.msra.mxu0 0.0
        %8846 = vmatprep.subr.mxu0 0.0
        %8847 = vmatpush1.msra.mxu0 0.0
        %8848 = vmatprep.subr.mxu0 0.0
        %8849 = vmatpush1.msra.mxu0 0.0
        %8850 = vmatprep.subr.mxu0 0.0
        %8851 = vmatpush1.msra.mxu0 0.0
        %8852 = vmatprep.subr.mxu0 0.0
        %8853 = vmatpush1.msra.mxu0 0.0
        %8854 = vmatprep.subr.mxu0 0.0
        %8855 = vmatpush1.msra.mxu0 0.0
        %8856 = vmatprep.subr.mxu0 0.0
        %8857 = vmatpush1.msra.mxu0 0.0
        %8858 = vmatprep.subr.mxu0 0.0
        %8859 = vmatpush1.msra.mxu0 0.0
        %8860 = vmatprep.subr.mxu0 0.0
        %8861 = vmatpush1.msra.mxu0 0.0
        %8862 = vmatprep.subr.mxu0 0.0
        %8863 = vmatpush1.msra.mxu0 0.0
        %8864 = vmatprep.subr.mxu0 0.0
        %8865 = vmatpush1.msra.mxu0 0.0
        %8866 = vmatprep.subr.mxu0 0.0
        %8867 = vmatpush1.msra.mxu0 0.0
        %8868 = vmatprep.subr.mxu0 0.0
        %8869 = vmatpush1.msra.mxu0 0.0
        %8870 = vmatprep.subr.mxu0 0.0
        %8871 = vmatpush1.msra.mxu0 0.0
        %8872 = vmatprep.subr.mxu0 0.0
        %8873 = vmatpush1.msra.mxu0 0.0
        %8874 = vmatprep.subr.mxu0 0.0
        %8875 = vmatpush1.msra.mxu0 0.0
        %8876 = vmatprep.subr.mxu0 0.0
        %8877 = vmatpush1.msra.mxu0 0.0
        %8878 = vmatprep.subr.mxu0 0.0
        %8879 = vmatpush1.msra.mxu0 0.0
        %8880 = vmatprep.subr.mxu0 0.0
        %8881 = vmatpush1.msra.mxu0 0.0
        %8882 = vmatprep.subr.mxu0 0.0
        %8883 = vmatpush1.msra.mxu0 0.0
        %8884 = vmatprep.mubr.f32.mxu0 0.0
        %8885 = vmatmul.mubr.f32.gmra.mrb[0].mxu0 %v8725
        %v8886 = vpop.f32.mrb[0].mxu0
        %v8887 = vadd.f32 0.0, %v8886
        %v8888 = vpop.f32.mrb[0].mxu0
        %8889 = vmatprep.mubr.f32.mxu0 0.0
        %8890 = vmatmul.mubr.f32.gmra.mrb[0].mxu0 %v8728
        %v8891 = vpop.f32.mrb[0].mxu0
        %v8892 = vadd.f32 0.0, %v8891
        %v8893 = vpop.f32.mrb[0].mxu0
        %8894 = vmatprep.mubr.f32.mxu0 0.0
        %8895 = vmatmul.mubr.f32.gmra.mrb[0].mxu0 %v8731
        %v8896 = vpop.f32.mrb[0].mxu0
        %v8897 = vadd.f32 0.0, %v8896
        %v8898 = vpop.f32.mrb[0].mxu0
        %8899 = vmatprep.mubr.f32.mxu0 0.0
        %8900 = vmatmul.mubr.f32.gmra.mrb[0].mxu0 %v8734
        %v8901 = vpop.f32.mrb[0].mxu0
        %v8902 = vadd.f32 0.0, %v8901
        %v8903 = vpop.f32.mrb[0].mxu0
        %8904 = vmatprep.mubr.f32.mxu0 0.0
        %8905 = vmatmul.mubr.f32.gmra.mrb[0].mxu0 %v8737
        %v8906 = vpop.f32.mrb[0].mxu0
        %v8907 = vadd.f32 0.0, %v8906
        %v8908 = vpop.f32.mrb[0].mxu0
        %8909 = vmatprep.mubr.f32.mxu0 0.0
        %8910 = vmatmul.mubr.f32.gmra.mrb[0].mxu0 %v8740
        %v8911 = vpop.f32.mrb[0].mxu0
        %v8912 = vadd.f32 0.0, %v8911
        %v8913 = vpop.f32.mrb[0].mxu0
        %8914 = vmatprep.mubr.f32.mxu0 0.0
        %8915 = vmatmul.mubr.f32.gmra.mrb[0].mxu0 %v8743
        %v8916 = vpop.f32.mrb[0].mxu0
        %v8917 = vadd.f32 0.0, %v8916
        %v8918 = vpop.f32.mrb[0].mxu0
        %8919 = vmatprep.mubr.f32.mxu0 0.0
        %8920 = vmatmul.mubr.f32.gmra.mrb[0].mxu0 %v8746
        %v8921 = vpop.f32.mrb[0].mxu0
        %v8922 = vadd.f32 0.0, %v8921
        %v8923 = vpop.f32.mrb[0].mxu0
        %8924 = vmatprep.mubr.f32.mxu0 0.0
        %8925 = vmatmul.mubr.f32.gmra.mrb[0].mxu0 %v8749
        %v8926 = vpop.f32.mrb[0].mxu0
        %v8927 = vadd.f32 0.0, %v8926
        %v8928 = vpop.f32.mrb[0].mxu0
        %8929 = vmatprep.mubr.f32.mxu0 0.0
        %8930 = vmatmul.mubr.f32.gmra.mrb[0].mxu0 %v8752
        %v8931 = vpop.f32.mrb[0].mxu0
        %v8932 = vadd.f32 0.0, %v8931
        %v8933 = vpop.f32.mrb[0].mxu0
        %8934 = vmatprep.mubr.f32.mxu0 0.0
        %8935 = vmatmul.mubr.f32.gmra.mrb[0].mxu0 %v8755
        %v8936 = vpop.f32.mrb[0].mxu0
        %v8937 = vadd.f32 0.0, %v8936
        %v8938 = vpop.f32.mrb[0].mxu0
        %8939 = vmatprep.mubr.f32.mxu0 0.0
        %8940 = vmatmul.mubr.f32.gmra.mrb[0].mxu0 %v8758
        %v8941 = vpop.f32.mrb[0].mxu0
        %v8942 = vadd.f32 0.0, %v8941
        %v8943 = vpop.f32.mrb[0].mxu0
        %8944 = vmatprep.mubr.f32.mxu0 0.0
        %8945 = vmatmul.mubr.f32.gmra.mrb[0].mxu0 %v8761
        %v8946 = vpop.f32.mrb[0].mxu0
        %v8947 = vadd.f32 0.0, %v8946
        %v8948 = vpop.f32.mrb[0].mxu0
        %8949 = vmatprep.mubr.f32.mxu0 0.0
        %8950 = vmatmul.mubr.f32.gmra.mrb[0].mxu0 %v8764
        %v8951 = vpop.f32.mrb[0].mxu0
        %v8952 = vadd.f32 0.0, %v8951
        %v8953 = vpop.f32.mrb[0].mxu0
        %8954 = vmatprep.mubr.f32.mxu0 0.0
        %8955 = vmatmul.mubr.f32.gmra.mrb[0].mxu0 %v8767
        %v8956 = vpop.f32.mrb[0].mxu0
        %v8957 = vadd.f32 0.0, %v8956
        %v8958 = vpop.f32.mrb[0].mxu0
        %8959 = vmatprep.mubr.f32.mxu0 0.0
        %8960 = vmatmul.mubr.f32.gmra.mrb[0].mxu0 %v8770
        %v8961 = vpop.f32.mrb[0].mxu0
        %v8962 = vadd.f32 0.0, %v8961
        %v8963 = vpop.f32.mrb[0].mxu0
        %8964 = vmatprep.mubr.f32.mxu0 0.0
        %8965 = vmatmul.mubr.f32.gmra.mrb[0].mxu0 %v8773
        %v8966 = vpop.f32.mrb[0].mxu0
        %v8967 = vadd.f32 0.0, %v8966
        %v8968 = vpop.f32.mrb[0].mxu0
        %8969 = vmatprep.mubr.f32.mxu0 0.0
        %8970 = vmatmul.mubr.f32.gmra.mrb[0].mxu0 %v8776
        %v8971 = vpop.f32.mrb[0].mxu0
        %v8972 = vadd.f32 0.0, %v8971
        %v8973 = vpop.f32.mrb[0].mxu0
        %8974 = vmatprep.mubr.f32.mxu0 0.0
        %8975 = vmatmul.mubr.f32.gmra.mrb[0].mxu0 %v8779
        %v8976 = vpop.f32.mrb[0].mxu0
        %v8977 = vadd.f32 0.0, %v8976
        %v8978 = vpop.f32.mrb[0].mxu0
        %8979 = vmatprep.mubr.f32.mxu0 0.0
        %8980 = vmatmul.mubr.f32.gmra.mrb[0].mxu0 %v8782
        %v8981 = vpop.f32.mrb[0].mxu0
        %v8982 = vadd.f32 0.0, %v8981
        %v8983 = vpop.f32.mrb[0].mxu0
        %8984 = vmatprep.mubr.f32.mxu0 0.0
        %8985 = vmatmul.mubr.f32.gmra.mrb[0].mxu0 %v8785
        %v8986 = vpop.f32.mrb[0].mxu0
        %v8987 = vadd.f32 0.0, %v8986
        %v8988 = vpop.f32.mrb[0].mxu0
        %8989 = vmatprep.mubr.f32.mxu0 0.0
        %8990 = vmatmul.mubr.f32.gmra.mrb[0].mxu0 %v8788
        %v8991 = vpop.f32.mrb[0].mxu0
        %v8992 = vadd.f32 0.0, %v8991
        %v8993 = vpop.f32.mrb[0].mxu0
        %8994 = vmatprep.mubr.f32.mxu0 0.0
        %8995 = vmatmul.mubr.f32.gmra.mrb[0].mxu0 %v8791
        %v8996 = vpop.f32.mrb[0].mxu0
        %v8997 = vadd.f32 0.0, %v8996
        %v8998 = vpop.f32.mrb[0].mxu0
        %8999 = vmatprep.mubr.f32.mxu0 0.0
        %9000 = vmatmul.mubr.f32.gmra.mrb[0].mxu0 %v8794
        %v9001 = vpop.f32.mrb[0].mxu0
        %v9002 = vadd.f32 0.0, %v9001
        %v9003 = vpop.f32.mrb[0].mxu0
        %9004 = vmatprep.mubr.f32.mxu0 0.0
        %9005 = vmatmul.mubr.f32.gmra.mrb[0].mxu0 %v8797
        %v9006 = vpop.f32.mrb[0].mxu0
        %v9007 = vadd.f32 0.0, %v9006
        %v9008 = vpop.f32.mrb[0].mxu0
        %9009 = vmatprep.mubr.f32.mxu0 0.0
        %9010 = vmatmul.mubr.f32.gmra.mrb[0].mxu0 %v8800
        %v9011 = vpop.f32.mrb[0].mxu0
        %v9012 = vadd.f32 0.0, %v9011
        %v9013 = vpop.f32.mrb[0].mxu0
        %9014 = vmatprep.mubr.f32.mxu0 0.0
        %9015 = vmatmul.mubr.f32.gmra.mrb[0].mxu0 %v8803
        %v9016 = vpop.f32.mrb[0].mxu0
        %v9017 = vadd.f32 0.0, %v9016
        %v9018 = vpop.f32.mrb[0].mxu0
        %9019 = vmatprep.mubr.f32.mxu0 0.0
        %9020 = vmatmul.mubr.f32.gmra.mrb[0].mxu0 %v8806
        %v9021 = vpop.f32.mrb[0].mxu0
        %v9022 = vadd.f32 0.0, %v9021
        %v9023 = vpop.f32.mrb[0].mxu0
        %9024 = vmatprep.mubr.f32.mxu0 0.0
        %9025 = vmatmul.mubr.f32.gmra.mrb[0].mxu0 %v8809
        %v9026 = vpop.f32.mrb[0].mxu0
        %v9027 = vadd.f32 0.0, %v9026
        %v9028 = vpop.f32.mrb[0].mxu0
        %9029 = vmatprep.mubr.f32.mxu0 0.0
        %9030 = vmatmul.mubr.f32.gmra.mrb[0].mxu0 %v8812
        %v9031 = vpop.f32.mrb[0].mxu0
        %v9032 = vadd.f32 0.0, %v9031
        %v9033 = vpop.f32.mrb[0].mxu0
        %9034 = vmatprep.mubr.f32.mxu0 0.0
        %9035 = vmatmul.mubr.f32.gmra.mrb[0].mxu0 %v8815
        %v9036 = vpop.f32.mrb[0].mxu0
        %v9037 = vadd.f32 0.0, %v9036
        %v9038 = vpop.f32.mrb[0].mxu0
        %9039 = vmatprep.mubr.f32.mxu0 0.0
        %9040 = vmatmul.mubr.f32.gmra.mrb[0].mxu0 %v8818
        %v9041 = vpop.f32.mrb[0].mxu0
        %v9042 = vadd.f32 0.0, %v9041
        %v9043 = vpop.f32.mrb[0].mxu0
        %9044 = vdwg.mxu0
        %v9045 = vrot.slane %v8887, 7
        %v9046 = vrot.slane %v8897, 7
        %v9047 = vrot.slane %v8907, 7
        %v9048 = vrot.slane %v8917, 7
        %v9049 = vrot.slane %v8927, 7
        %v9050 = vrot.slane %v8937, 7
        %v9051 = vrot.slane %v8947, 7
        %v9052 = vrot.slane %v8957, 7
        %v9053 = vrot.slane %v8967, 7
        %v9054 = vrot.slane %v8977, 7
        %v9055 = vrot.slane %v8987, 7
        %v9056 = vrot.slane %v8997, 7
        %v9057 = vrot.slane %v9007, 7
        %v9058 = vrot.slane %v9017, 7
        %v9059 = vrot.slane %v9027, 7
        %v9060 = vrot.slane %v9037, 7
        %v9061 = vrot.slane %v8892, 7
        %v9062 = vrot.slane %v8902, 7
        %v9063 = vrot.slane %v8912, 7
        %v9064 = vrot.slane %v8922, 7
        %v9065 = vrot.slane %v8932, 7
        %v9066 = vrot.slane %v8942, 7
        %v9067 = vrot.slane %v8952, 7
        %v9068 = vrot.slane %v8962, 7
        %v9069 = vrot.slane %v8972, 7
        %v9070 = vrot.slane %v8982, 7
        %v9071 = vrot.slane %v8992, 7
        %v9072 = vrot.slane %v9002, 7
        %v9073 = vrot.slane %v9012, 7
        %v9074 = vrot.slane %v9022, 7
        %v9075 = vrot.slane %v9032, 7
        %v9076 = vrot.slane %v9042, 7
        %v9077 = vsel %vm3661, %v9045, %v9061
        %v9078 = vsel %vm3661, %v9046, %v9062
        %v9079 = vsel %vm3661, %v9047, %v9063
        %v9080 = vsel %vm3661, %v9048, %v9064
        %v9081 = vsel %vm3661, %v9049, %v9065
        %v9082 = vsel %vm3661, %v9050, %v9066
        %v9083 = vsel %vm3661, %v9051, %v9067
        %v9084 = vsel %vm3661, %v9052, %v9068
        %v9085 = vsel %vm3661, %v9053, %v9069
        %v9086 = vsel %vm3661, %v9054, %v9070
        %v9087 = vsel %vm3661, %v9055, %v9071
        %v9088 = vsel %vm3661, %v9056, %v9072
        %v9089 = vsel %vm3661, %v9057, %v9073
        %v9090 = vsel %vm3661, %v9058, %v9074
        %v9091 = vsel %vm3661, %v9059, %v9075
        %v9092 = vsel %vm3661, %v9060, %v9076
        %v9093 = vsel %vm3661, %v9061, %v9045
        %v9094 = vsel %vm3661, %v9062, %v9046
        %v9095 = vsel %vm3661, %v9063, %v9047
        %v9096 = vsel %vm3661, %v9064, %v9048
        %v9097 = vsel %vm3661, %v9065, %v9049
        %v9098 = vsel %vm3661, %v9066, %v9050
        %v9099 = vsel %vm3661, %v9067, %v9051
        %v9100 = vsel %vm3661, %v9068, %v9052
        %v9101 = vsel %vm3661, %v9069, %v9053
        %v9102 = vsel %vm3661, %v9070, %v9054
        %v9103 = vsel %vm3661, %v9071, %v9055
        %v9104 = vsel %vm3661, %v9072, %v9056
        %v9105 = vsel %vm3661, %v9073, %v9057
        %v9106 = vsel %vm3661, %v9074, %v9058
        %v9107 = vsel %vm3661, %v9075, %v9059
        %v9108 = vsel %vm3661, %v9076, %v9060
        %v9109 = vsel %vm3698, %v9093, 0.0
        %v9110 = vsel %vm3699, %v9077, 0.0
        %v9111 = vsel %vm3698, %v9094, 0.0
        %v9112 = vsel %vm3699, %v9078, 0.0
        %v9113 = vsel %vm3698, %v9095, 0.0
        %v9114 = vsel %vm3699, %v9079, 0.0
        %v9115 = vsel %vm3698, %v9096, 0.0
        %v9116 = vsel %vm3699, %v9080, 0.0
        %v9117 = vsel %vm3698, %v9097, 0.0
        %v9118 = vsel %vm3699, %v9081, 0.0
        %v9119 = vsel %vm3698, %v9098, 0.0
        %v9120 = vsel %vm3699, %v9082, 0.0
        %v9121 = vsel %vm3698, %v9099, 0.0
        %v9122 = vsel %vm3699, %v9083, 0.0
        %v9123 = vsel %vm3698, %v9100, 0.0
        %v9124 = vsel %vm3699, %v9084, 0.0
        %v9125 = vsel %vm3698, %v9101, 0.0
        %v9126 = vsel %vm3699, %v9085, 0.0
        %v9127 = vsel %vm3698, %v9102, 0.0
        %v9128 = vsel %vm3699, %v9086, 0.0
        %v9129 = vsel %vm3698, %v9103, 0.0
        %v9130 = vsel %vm3699, %v9087, 0.0
        %v9131 = vsel %vm3698, %v9104, 0.0
        %v9132 = vsel %vm3699, %v9088, 0.0
        %v9133 = vsel %vm3698, %v9105, 0.0
        %v9134 = vsel %vm3699, %v9089, 0.0
        %v9135 = vsel %vm3698, %v9106, 0.0
        %v9136 = vsel %vm3699, %v9090, 0.0
        %v9137 = vsel %vm3698, %v9107, 0.0
        %v9138 = vsel %vm3699, %v9091, 0.0
        %v9139 = vsel %vm3698, %v9108, 0.0
        %v9140 = vsel %vm3699, %v9092, 0.0
        %v9141 = vadd.f32 %v8723, %v9109
        %v9142 = vadd.f32 %v8723, %v9110
        %v9143 = vadd.f32 %v8723, %v9111
        %v9144 = vadd.f32 %v8723, %v9112
        %v9145 = vadd.f32 %v8723, %v9113
        %v9146 = vadd.f32 %v8723, %v9114
        %v9147 = vadd.f32 %v8723, %v9115
        %v9148 = vadd.f32 %v8723, %v9116
        %v9149 = vadd.f32 %v8723, %v9117
        %v9150 = vadd.f32 %v8723, %v9118
        %v9151 = vadd.f32 %v8723, %v9119
        %v9152 = vadd.f32 %v8723, %v9120
        %v9153 = vadd.f32 %v8723, %v9121
        %v9154 = vadd.f32 %v8723, %v9122
        %v9155 = vadd.f32 %v8723, %v9123
        %v9156 = vadd.f32 %v8723, %v9124
        %v9157 = vadd.f32 %v8723, %v9125
        %v9158 = vadd.f32 %v8723, %v9126
        %v9159 = vadd.f32 %v8723, %v9127
        %v9160 = vadd.f32 %v8723, %v9128
        %v9161 = vadd.f32 %v8723, %v9129
        %v9162 = vadd.f32 %v8723, %v9130
        %v9163 = vadd.f32 %v8723, %v9131
        %v9164 = vadd.f32 %v8723, %v9132
        %v9165 = vadd.f32 %v8723, %v9133
        %v9166 = vadd.f32 %v8723, %v9134
        %v9167 = vadd.f32 %v8723, %v9135
        %v9168 = vadd.f32 %v8723, %v9136
        %v9169 = vadd.f32 %v8723, %v9137
        %v9170 = vadd.f32 %v8723, %v9138
        %v9171 = vadd.f32 %v8723, %v9139
        %v9172 = vadd.f32 %v8723, %v9140
        %9173 = vmatprep.subr.mxu0 0.0
        %9174 = vmatpush1.msra.mxu0 %v1381
        %9175 = vmatprep.subr.mxu0 0.0
        %9176 = vmatpush1.msra.mxu0 %v1382
        %9177 = vmatprep.subr.mxu0 0.0
        %9178 = vmatpush1.msra.mxu0 %v1383
        %9179 = vmatprep.subr.mxu0 0.0
        %9180 = vmatpush1.msra.mxu0 %v1384
        %9181 = vmatprep.subr.mxu0 0.0
        %9182 = vmatpush1.msra.mxu0 %v1385
        %9183 = vmatprep.subr.mxu0 0.0
        %9184 = vmatpush1.msra.mxu0 %v1386
        %9185 = vmatprep.subr.mxu0 0.0
        %9186 = vmatpush1.msra.mxu0 %v1387
        %9187 = vmatprep.subr.mxu0 0.0
        %9188 = vmatpush1.msra.mxu0 %v1388
        %9189 = vmatprep.subr.mxu0 0.0
        %9190 = vmatpush1.msra.mxu0 %v1389
        %9191 = vmatprep.subr.mxu0 0.0
        %9192 = vmatpush1.msra.mxu0 %v1390
        %9193 = vmatprep.subr.mxu0 0.0
        %9194 = vmatpush1.msra.mxu0 %v1391
        %9195 = vmatprep.subr.mxu0 0.0
        %9196 = vmatpush1.msra.mxu0 %v1392
        %9197 = vmatprep.subr.mxu0 0.0
        %9198 = vmatpush1.msra.mxu0 0.0
        %9199 = vmatprep.subr.mxu0 0.0
        %9200 = vmatpush1.msra.mxu0 0.0
        %9201 = vmatprep.subr.mxu0 0.0
        %9202 = vmatpush1.msra.mxu0 0.0
        %9203 = vmatprep.subr.mxu0 0.0
        %9204 = vmatpush1.msra.mxu0 0.0
        %9205 = vmatprep.subr.mxu0 0.0
        %9206 = vmatpush1.msra.mxu0 0.0
        %9207 = vmatprep.subr.mxu0 0.0
        %9208 = vmatpush1.msra.mxu0 0.0
        %9209 = vmatprep.subr.mxu0 0.0
        %9210 = vmatpush1.msra.mxu0 0.0
        %9211 = vmatprep.subr.mxu0 0.0
        %9212 = vmatpush1.msra.mxu0 0.0
        %9213 = vmatprep.subr.mxu0 0.0
        %9214 = vmatpush1.msra.mxu0 0.0
        %9215 = vmatprep.subr.mxu0 0.0
        %9216 = vmatpush1.msra.mxu0 0.0
        %9217 = vmatprep.subr.mxu0 0.0
        %9218 = vmatpush1.msra.mxu0 0.0
        %9219 = vmatprep.subr.mxu0 0.0
        %9220 = vmatpush1.msra.mxu0 0.0
        %9221 = vmatprep.subr.mxu0 0.0
        %9222 = vmatpush1.msra.mxu0 0.0
        %9223 = vmatprep.subr.mxu0 0.0
        %9224 = vmatpush1.msra.mxu0 0.0
        %9225 = vmatprep.subr.mxu0 0.0
        %9226 = vmatpush1.msra.mxu0 0.0
        %9227 = vmatprep.subr.mxu0 0.0
        %9228 = vmatpush1.msra.mxu0 0.0
        %9229 = vmatprep.subr.mxu0 0.0
        %9230 = vmatpush1.msra.mxu0 0.0
        %9231 = vmatprep.subr.mxu0 0.0
        %9232 = vmatpush1.msra.mxu0 0.0
        %9233 = vmatprep.subr.mxu0 0.0
        %9234 = vmatpush1.msra.mxu0 0.0
        %9235 = vmatprep.subr.mxu0 0.0
        %9236 = vmatpush1.msra.mxu0 0.0
        %9237 = vmatprep.mubr.f32.mxu0 0.0
        %9238 = vmatmul.mubr.f32.gmra.mrb[0].mxu0 %v8725
        %v9239 = vpop.f32.mrb[0].mxu0
        %v9240 = vadd.f32 0.0, %v9239
        %v9241 = vpop.f32.mrb[0].mxu0
        %9242 = vmatprep.mubr.f32.mxu0 0.0
        %9243 = vmatmul.mubr.f32.gmra.mrb[0].mxu0 %v8728
        %v9244 = vpop.f32.mrb[0].mxu0
        %v9245 = vadd.f32 0.0, %v9244
        %v9246 = vpop.f32.mrb[0].mxu0
        %9247 = vmatprep.mubr.f32.mxu0 0.0
        %9248 = vmatmul.mubr.f32.gmra.mrb[0].mxu0 %v8731
        %v9249 = vpop.f32.mrb[0].mxu0
        %v9250 = vadd.f32 0.0, %v9249
        %v9251 = vpop.f32.mrb[0].mxu0
        %9252 = vmatprep.mubr.f32.mxu0 0.0
        %9253 = vmatmul.mubr.f32.gmra.mrb[0].mxu0 %v8734
        %v9254 = vpop.f32.mrb[0].mxu0
        %v9255 = vadd.f32 0.0, %v9254
        %v9256 = vpop.f32.mrb[0].mxu0
        %9257 = vmatprep.mubr.f32.mxu0 0.0
        %9258 = vmatmul.mubr.f32.gmra.mrb[0].mxu0 %v8737
        %v9259 = vpop.f32.mrb[0].mxu0
        %v9260 = vadd.f32 0.0, %v9259
        %v9261 = vpop.f32.mrb[0].mxu0
        %9262 = vmatprep.mubr.f32.mxu0 0.0
        %9263 = vmatmul.mubr.f32.gmra.mrb[0].mxu0 %v8740
        %v9264 = vpop.f32.mrb[0].mxu0
        %v9265 = vadd.f32 0.0, %v9264
        %v9266 = vpop.f32.mrb[0].mxu0
        %9267 = vmatprep.mubr.f32.mxu0 0.0
        %9268 = vmatmul.mubr.f32.gmra.mrb[0].mxu0 %v8743
        %v9269 = vpop.f32.mrb[0].mxu0
        %v9270 = vadd.f32 0.0, %v9269
        %v9271 = vpop.f32.mrb[0].mxu0
        %9272 = vmatprep.mubr.f32.mxu0 0.0
        %9273 = vmatmul.mubr.f32.gmra.mrb[0].mxu0 %v8746
        %v9274 = vpop.f32.mrb[0].mxu0
        %v9275 = vadd.f32 0.0, %v9274
        %v9276 = vpop.f32.mrb[0].mxu0
        %9277 = vmatprep.mubr.f32.mxu0 0.0
        %9278 = vmatmul.mubr.f32.gmra.mrb[0].mxu0 %v8749
        %v9279 = vpop.f32.mrb[0].mxu0
        %v9280 = vadd.f32 0.0, %v9279
        %v9281 = vpop.f32.mrb[0].mxu0
        %9282 = vmatprep.mubr.f32.mxu0 0.0
        %9283 = vmatmul.mubr.f32.gmra.mrb[0].mxu0 %v8752
        %v9284 = vpop.f32.mrb[0].mxu0
        %v9285 = vadd.f32 0.0, %v9284
        %v9286 = vpop.f32.mrb[0].mxu0
        %9287 = vmatprep.mubr.f32.mxu0 0.0
        %9288 = vmatmul.mubr.f32.gmra.mrb[0].mxu0 %v8755
        %v9289 = vpop.f32.mrb[0].mxu0
        %v9290 = vadd.f32 0.0, %v9289
        %v9291 = vpop.f32.mrb[0].mxu0
        %9292 = vmatprep.mubr.f32.mxu0 0.0
        %9293 = vmatmul.mubr.f32.gmra.mrb[0].mxu0 %v8758
        %v9294 = vpop.f32.mrb[0].mxu0
        %v9295 = vadd.f32 0.0, %v9294
        %v9296 = vpop.f32.mrb[0].mxu0
        %9297 = vmatprep.mubr.f32.mxu0 0.0
        %9298 = vmatmul.mubr.f32.gmra.mrb[0].mxu0 %v8761
        %v9299 = vpop.f32.mrb[0].mxu0
        %v9300 = vadd.f32 0.0, %v9299
        %v9301 = vpop.f32.mrb[0].mxu0
        %9302 = vmatprep.mubr.f32.mxu0 0.0
        %9303 = vmatmul.mubr.f32.gmra.mrb[0].mxu0 %v8764
        %v9304 = vpop.f32.mrb[0].mxu0
        %v9305 = vadd.f32 0.0, %v9304
        %v9306 = vpop.f32.mrb[0].mxu0
        %9307 = vmatprep.mubr.f32.mxu0 0.0
        %9308 = vmatmul.mubr.f32.gmra.mrb[0].mxu0 %v8767
        %v9309 = vpop.f32.mrb[0].mxu0
        %v9310 = vadd.f32 0.0, %v9309
        %v9311 = vpop.f32.mrb[0].mxu0
        %9312 = vmatprep.mubr.f32.mxu0 0.0
        %9313 = vmatmul.mubr.f32.gmra.mrb[0].mxu0 %v8770
        %v9314 = vpop.f32.mrb[0].mxu0
        %v9315 = vadd.f32 0.0, %v9314
        %v9316 = vpop.f32.mrb[0].mxu0
        %9317 = vmatprep.mubr.f32.mxu0 0.0
        %9318 = vmatmul.mubr.f32.gmra.mrb[0].mxu0 %v8773
        %v9319 = vpop.f32.mrb[0].mxu0
        %v9320 = vadd.f32 0.0, %v9319
        %v9321 = vpop.f32.mrb[0].mxu0
        %9322 = vmatprep.mubr.f32.mxu0 0.0
        %9323 = vmatmul.mubr.f32.gmra.mrb[0].mxu0 %v8776
        %v9324 = vpop.f32.mrb[0].mxu0
        %v9325 = vadd.f32 0.0, %v9324
        %v9326 = vpop.f32.mrb[0].mxu0
        %9327 = vmatprep.mubr.f32.mxu0 0.0
        %9328 = vmatmul.mubr.f32.gmra.mrb[0].mxu0 %v8779
        %v9329 = vpop.f32.mrb[0].mxu0
        %v9330 = vadd.f32 0.0, %v9329
        %v9331 = vpop.f32.mrb[0].mxu0
        %9332 = vmatprep.mubr.f32.mxu0 0.0
        %9333 = vmatmul.mubr.f32.gmra.mrb[0].mxu0 %v8782
        %v9334 = vpop.f32.mrb[0].mxu0
        %v9335 = vadd.f32 0.0, %v9334
        %v9336 = vpop.f32.mrb[0].mxu0
        %9337 = vmatprep.mubr.f32.mxu0 0.0
        %9338 = vmatmul.mubr.f32.gmra.mrb[0].mxu0 %v8785
        %v9339 = vpop.f32.mrb[0].mxu0
        %v9340 = vadd.f32 0.0, %v9339
        %v9341 = vpop.f32.mrb[0].mxu0
        %9342 = vmatprep.mubr.f32.mxu0 0.0
        %9343 = vmatmul.mubr.f32.gmra.mrb[0].mxu0 %v8788
        %v9344 = vpop.f32.mrb[0].mxu0
        %v9345 = vadd.f32 0.0, %v9344
        %v9346 = vpop.f32.mrb[0].mxu0
        %9347 = vmatprep.mubr.f32.mxu0 0.0
        %9348 = vmatmul.mubr.f32.gmra.mrb[0].mxu0 %v8791
        %v9349 = vpop.f32.mrb[0].mxu0
        %v9350 = vadd.f32 0.0, %v9349
        %v9351 = vpop.f32.mrb[0].mxu0
        %9352 = vmatprep.mubr.f32.mxu0 0.0
        %9353 = vmatmul.mubr.f32.gmra.mrb[0].mxu0 %v8794
        %v9354 = vpop.f32.mrb[0].mxu0
        %v9355 = vadd.f32 0.0, %v9354
        %v9356 = vpop.f32.mrb[0].mxu0
        %9357 = vmatprep.mubr.f32.mxu0 0.0
        %9358 = vmatmul.mubr.f32.gmra.mrb[0].mxu0 %v8797
        %v9359 = vpop.f32.mrb[0].mxu0
        %v9360 = vadd.f32 0.0, %v9359
        %v9361 = vpop.f32.mrb[0].mxu0
        %9362 = vmatprep.mubr.f32.mxu0 0.0
        %9363 = vmatmul.mubr.f32.gmra.mrb[0].mxu0 %v8800
        %v9364 = vpop.f32.mrb[0].mxu0
        %v9365 = vadd.f32 0.0, %v9364
        %v9366 = vpop.f32.mrb[0].mxu0
        %9367 = vmatprep.mubr.f32.mxu0 0.0
        %9368 = vmatmul.mubr.f32.gmra.mrb[0].mxu0 %v8803
        %v9369 = vpop.f32.mrb[0].mxu0
        %v9370 = vadd.f32 0.0, %v9369
        %v9371 = vpop.f32.mrb[0].mxu0
        %9372 = vmatprep.mubr.f32.mxu0 0.0
        %9373 = vmatmul.mubr.f32.gmra.mrb[0].mxu0 %v8806
        %v9374 = vpop.f32.mrb[0].mxu0
        %v9375 = vadd.f32 0.0, %v9374
        %v9376 = vpop.f32.mrb[0].mxu0
        %9377 = vmatprep.mubr.f32.mxu0 0.0
        %9378 = vmatmul.mubr.f32.gmra.mrb[0].mxu0 %v8809
        %v9379 = vpop.f32.mrb[0].mxu0
        %v9380 = vadd.f32 0.0, %v9379
        %v9381 = vpop.f32.mrb[0].mxu0
        %9382 = vmatprep.mubr.f32.mxu0 0.0
        %9383 = vmatmul.mubr.f32.gmra.mrb[0].mxu0 %v8812
        %v9384 = vpop.f32.mrb[0].mxu0
        %v9385 = vadd.f32 0.0, %v9384
        %v9386 = vpop.f32.mrb[0].mxu0
        %9387 = vmatprep.mubr.f32.mxu0 0.0
        %9388 = vmatmul.mubr.f32.gmra.mrb[0].mxu0 %v8815
        %v9389 = vpop.f32.mrb[0].mxu0
        %v9390 = vadd.f32 0.0, %v9389
        %v9391 = vpop.f32.mrb[0].mxu0
        %9392 = vmatprep.mubr.f32.mxu0 0.0
        %9393 = vmatmul.mubr.f32.gmra.mrb[0].mxu0 %v8818
        %v9394 = vpop.f32.mrb[0].mxu0
        %v9395 = vadd.f32 0.0, %v9394
        %v9396 = vpop.f32.mrb[0].mxu0
        %9397 = vdwg.mxu0
        %v9398 = vadd.f32 %v9141, %v9240
        %v9399 = vadd.f32 %v9142, %v9245
        %v9400 = vadd.f32 %v9143, %v9250
        %v9401 = vadd.f32 %v9144, %v9255
        %v9402 = vadd.f32 %v9145, %v9260
        %v9403 = vadd.f32 %v9146, %v9265
        %v9404 = vadd.f32 %v9147, %v9270
        %v9405 = vadd.f32 %v9148, %v9275
        %v9406 = vadd.f32 %v9149, %v9280
        %v9407 = vadd.f32 %v9150, %v9285
        %v9408 = vadd.f32 %v9151, %v9290
        %v9409 = vadd.f32 %v9152, %v9295
        %v9410 = vadd.f32 %v9153, %v9300
        %v9411 = vadd.f32 %v9154, %v9305
        %v9412 = vadd.f32 %v9155, %v9310
        %v9413 = vadd.f32 %v9156, %v9315
        %v9414 = vadd.f32 %v9157, %v9320
        %v9415 = vadd.f32 %v9158, %v9325
        %v9416 = vadd.f32 %v9159, %v9330
        %v9417 = vadd.f32 %v9160, %v9335
        %v9418 = vadd.f32 %v9161, %v9340
        %v9419 = vadd.f32 %v9162, %v9345
        %v9420 = vadd.f32 %v9163, %v9350
        %v9421 = vadd.f32 %v9164, %v9355
        %v9422 = vadd.f32 %v9165, %v9360
        %v9423 = vadd.f32 %v9166, %v9365
        %v9424 = vadd.f32 %v9167, %v9370
        %v9425 = vadd.f32 %v9168, %v9375
        %v9426 = vadd.f32 %v9169, %v9380
        %v9427 = vadd.f32 %v9170, %v9385
        %v9428 = vadd.f32 %v9171, %v9390
        %v9429 = vadd.f32 %v9172, %v9395
        %9462 = vrot.lane.b32.xlu0 %v8403, 32
        %v9463 = vpop.permute.xlu0 %9462
        %9464 = vrot.lane.b32.xlu0 %v8404, 32
        %v9465 = vpop.permute.xlu0 %9464
        %9466 = vrot.lane.b32.xlu0 %v8405, 32
        %v9467 = vpop.permute.xlu0 %9466
        %9468 = vrot.lane.b32.xlu0 %v8406, 32
        %v9469 = vpop.permute.xlu0 %9468
        %9470 = vrot.lane.b32.xlu0 %v8407, 32
        %v9471 = vpop.permute.xlu0 %9470
        %9472 = vrot.lane.b32.xlu0 %v8408, 32
        %v9473 = vpop.permute.xlu0 %9472
        %9474 = vrot.lane.b32.xlu0 %v8409, 32
        %v9475 = vpop.permute.xlu0 %9474
        %9476 = vrot.lane.b32.xlu0 %v8410, 32
        %v9477 = vpop.permute.xlu0 %9476
        %9478 = vrot.lane.b32.xlu0 %v8411, 32
        %v9479 = vpop.permute.xlu0 %9478
        %9480 = vrot.lane.b32.xlu0 %v8412, 32
        %v9481 = vpop.permute.xlu0 %9480
        %9482 = vrot.lane.b32.xlu0 %v8413, 32
        %v9483 = vpop.permute.xlu0 %9482
        %9484 = vrot.lane.b32.xlu0 %v8414, 32
        %v9485 = vpop.permute.xlu0 %9484
        %9486 = vrot.lane.b32.xlu0 %v8415, 32
        %v9487 = vpop.permute.xlu0 %9486
        %9488 = vrot.lane.b32.xlu0 %v8416, 32
        %v9489 = vpop.permute.xlu0 %9488
        %9490 = vrot.lane.b32.xlu0 %v8417, 32
        %v9491 = vpop.permute.xlu0 %9490
        %9492 = vrot.lane.b32.xlu0 %v8418, 32
        %v9493 = vpop.permute.xlu0 %9492
        %9494 = vrot.lane.b32.xlu0 %v8419, 32
        %v9495 = vpop.permute.xlu0 %9494
        %9496 = vrot.lane.b32.xlu0 %v8420, 32
        %v9497 = vpop.permute.xlu0 %9496
        %9498 = vrot.lane.b32.xlu0 %v8421, 32
        %v9499 = vpop.permute.xlu0 %9498
        %9500 = vrot.lane.b32.xlu0 %v8422, 32
        %v9501 = vpop.permute.xlu0 %9500
        %9502 = vrot.lane.b32.xlu0 %v8423, 32
        %v9503 = vpop.permute.xlu0 %9502
        %9504 = vrot.lane.b32.xlu0 %v8424, 32
        %v9505 = vpop.permute.xlu0 %9504
        %9506 = vrot.lane.b32.xlu0 %v8425, 32
        %v9507 = vpop.permute.xlu0 %9506
        %9508 = vrot.lane.b32.xlu0 %v8426, 32
        %v9509 = vpop.permute.xlu0 %9508
        %9510 = vrot.lane.b32.xlu0 %v8427, 32
        %v9511 = vpop.permute.xlu0 %9510
        %9512 = vrot.lane.b32.xlu0 %v8428, 32
        %v9513 = vpop.permute.xlu0 %9512
        %9514 = vrot.lane.b32.xlu0 %v8429, 32
        %v9515 = vpop.permute.xlu0 %9514
        %9516 = vrot.lane.b32.xlu0 %v8430, 32
        %v9517 = vpop.permute.xlu0 %9516
        %9518 = vrot.lane.b32.xlu0 %v8431, 32
        %v9519 = vpop.permute.xlu0 %9518
        %9520 = vrot.lane.b32.xlu0 %v8432, 32
        %v9521 = vpop.permute.xlu0 %9520
        %9522 = vrot.lane.b32.xlu0 %v8433, 32
        %v9523 = vpop.permute.xlu0 %9522
        %9524 = vrot.lane.b32.xlu0 %v8434, 32
        %v9525 = vpop.permute.xlu0 %9524
        %v9558 = vsel %vm1826, 0.0, %v9463
        %v9559 = vsel %vm1826, 0.0, %v9465
        %v9560 = vsel %vm1826, %v8403, %v9467
        %v9561 = vsel %vm1826, %v8404, %v9469
        %v9562 = vsel %vm1826, %v8405, %v9471
        %v9563 = vsel %vm1826, %v8406, %v9473
        %v9564 = vsel %vm1826, %v8407, %v9475
        %v9565 = vsel %vm1826, %v8408, %v9477
        %v9566 = vsel %vm1826, %v8409, %v9479
        %v9567 = vsel %vm1826, %v8410, %v9481
        %v9568 = vsel %vm1826, %v8411, %v9483
        %v9569 = vsel %vm1826, %v8412, %v9485
        %v9570 = vsel %vm1826, %v8413, %v9487
        %v9571 = vsel %vm1826, %v8414, %v9489
        %v9572 = vsel %vm1826, %v8415, %v9491
        %v9573 = vsel %vm1826, %v8416, %v9493
        %v9574 = vsel %vm1826, %v8417, %v9495
        %v9575 = vsel %vm1826, %v8418, %v9497
        %v9576 = vsel %vm1826, %v8419, %v9499
        %v9577 = vsel %vm1826, %v8420, %v9501
        %v9578 = vsel %vm1826, %v8421, %v9503
        %v9579 = vsel %vm1826, %v8422, %v9505
        %v9580 = vsel %vm1826, %v8423, %v9507
        %v9581 = vsel %vm1826, %v8424, %v9509
        %v9582 = vsel %vm1826, %v8425, %v9511
        %v9583 = vsel %vm1826, %v8426, %v9513
        %v9584 = vsel %vm1826, %v8427, %v9515
        %v9585 = vsel %vm1826, %v8428, %v9517
        %v9586 = vsel %vm1826, %v8429, %v9519
        %v9587 = vsel %vm1826, %v8430, %v9521
        %v9588 = vsel %vm1826, %v8431, %v9523
        %v9589 = vsel %vm1826, %v8432, %v9525
        %v9591 = vlaneseq
        %v9592 = vshrl.u32 %v9591, 7
        %v9593 = vsub.s32 0, %v9592
        %v9594 = vrot.slane %v1402, %v9593
        %v9597 = vsel %vm2507, %v9558, 0
        %v9600 = vsel %vm2507, %v9559, 0
        %v9603 = vsel %vm2507, %v9560, 0
        %v9606 = vsel %vm2507, %v9561, 0
        %v9609 = vsel %vm2507, %v9562, 0
        %v9612 = vsel %vm2507, %v9563, 0
        %v9615 = vsel %vm2507, %v9564, 0
        %v9618 = vsel %vm2507, %v9565, 0
        %v9621 = vsel %vm2507, %v9566, 0
        %v9624 = vsel %vm2507, %v9567, 0
        %v9627 = vsel %vm2507, %v9568, 0
        %v9630 = vsel %vm2507, %v9569, 0
        %v9633 = vsel %vm2507, %v9570, 0
        %v9636 = vsel %vm2507, %v9571, 0
        %v9639 = vsel %vm2507, %v9572, 0
        %v9642 = vsel %vm2507, %v9573, 0
        %v9645 = vsel %vm2507, %v9574, 0
        %v9648 = vsel %vm2507, %v9575, 0
        %v9651 = vsel %vm2507, %v9576, 0
        %v9654 = vsel %vm2507, %v9577, 0
        %v9657 = vsel %vm2507, %v9578, 0
        %v9660 = vsel %vm2507, %v9579, 0
        %v9663 = vsel %vm2507, %v9580, 0
        %v9666 = vsel %vm2507, %v9581, 0
        %v9669 = vsel %vm2507, %v9582, 0
        %v9672 = vsel %vm2507, %v9583, 0
        %v9675 = vsel %vm2507, %v9584, 0
        %v9678 = vsel %vm2507, %v9585, 0
        %v9681 = vsel %vm2507, %v9586, 0
        %v9684 = vsel %vm2507, %v9587, 0
        %v9687 = vsel %vm2507, %v9588, 0
        %v9690 = vsel %vm2507, %v9589, 0
        %9692 = vmatprep.subr.mxu0 0.0
        %9693 = vmatpush1.msra.mxu0 %v1394
        %9694 = vmatprep.subr.mxu0 0.0
        %9695 = vmatpush1.msra.mxu0 %v1395
        %9696 = vmatprep.subr.mxu0 0.0
        %9697 = vmatpush1.msra.mxu0 %v1396
        %9698 = vmatprep.subr.mxu0 0.0
        %9699 = vmatpush1.msra.mxu0 %v1397
        %9700 = vmatprep.subr.mxu0 0.0
        %9701 = vmatpush1.msra.mxu0 %v1398
        %9702 = vmatprep.subr.mxu0 0.0
        %9703 = vmatpush1.msra.mxu0 %v1399
        %9704 = vmatprep.subr.mxu0 0.0
        %9705 = vmatpush1.msra.mxu0 %v1400
        %9706 = vmatprep.subr.mxu0 0.0
        %9707 = vmatpush1.msra.mxu0 %v1401
        %9708 = vmatprep.subr.mxu0 0.0
        %9709 = vmatpush1.msra.mxu0 0.0
        %9710 = vmatprep.subr.mxu0 0.0
        %9711 = vmatpush1.msra.mxu0 0.0
        %9712 = vmatprep.subr.mxu0 0.0
        %9713 = vmatpush1.msra.mxu0 0.0
        %9714 = vmatprep.subr.mxu0 0.0
        %9715 = vmatpush1.msra.mxu0 0.0
        %9716 = vmatprep.subr.mxu0 0.0
        %9717 = vmatpush1.msra.mxu0 0.0
        %9718 = vmatprep.subr.mxu0 0.0
        %9719 = vmatpush1.msra.mxu0 0.0
        %9720 = vmatprep.subr.mxu0 0.0
        %9721 = vmatpush1.msra.mxu0 0.0
        %9722 = vmatprep.subr.mxu0 0.0
        %9723 = vmatpush1.msra.mxu0 0.0
        %9724 = vmatprep.subr.mxu0 0.0
        %9725 = vmatpush1.msra.mxu0 0.0
        %9726 = vmatprep.subr.mxu0 0.0
        %9727 = vmatpush1.msra.mxu0 0.0
        %9728 = vmatprep.subr.mxu0 0.0
        %9729 = vmatpush1.msra.mxu0 0.0
        %9730 = vmatprep.subr.mxu0 0.0
        %9731 = vmatpush1.msra.mxu0 0.0
        %9732 = vmatprep.subr.mxu0 0.0
        %9733 = vmatpush1.msra.mxu0 0.0
        %9734 = vmatprep.subr.mxu0 0.0
        %9735 = vmatpush1.msra.mxu0 0.0
        %9736 = vmatprep.subr.mxu0 0.0
        %9737 = vmatpush1.msra.mxu0 0.0
        %9738 = vmatprep.subr.mxu0 0.0
        %9739 = vmatpush1.msra.mxu0 0.0
        %9740 = vmatprep.subr.mxu0 0.0
        %9741 = vmatpush1.msra.mxu0 0.0
        %9742 = vmatprep.subr.mxu0 0.0
        %9743 = vmatpush1.msra.mxu0 0.0
        %9744 = vmatprep.subr.mxu0 0.0
        %9745 = vmatpush1.msra.mxu0 0.0
        %9746 = vmatprep.subr.mxu0 0.0
        %9747 = vmatpush1.msra.mxu0 0.0
        %9748 = vmatprep.subr.mxu0 0.0
        %9749 = vmatpush1.msra.mxu0 0.0
        %9750 = vmatprep.subr.mxu0 0.0
        %9751 = vmatpush1.msra.mxu0 0.0
        %9752 = vmatprep.subr.mxu0 0.0
        %9753 = vmatpush1.msra.mxu0 0.0
        %9754 = vmatprep.subr.mxu0 0.0
        %9755 = vmatpush1.msra.mxu0 0.0
        %9756 = vmatprep.mubr.f32.mxu0 0.0
        %9757 = vmatmul.mubr.f32.gmra.mrb[0].mxu0 %v9597
        %v9758 = vpop.f32.mrb[0].mxu0
        %v9759 = vadd.f32 %v9594, %v9758
        %v9760 = vpop.f32.mrb[0].mxu0
        %9761 = vmatprep.mubr.f32.mxu0 0.0
        %9762 = vmatmul.mubr.f32.gmra.mrb[0].mxu0 %v9600
        %v9763 = vpop.f32.mrb[0].mxu0
        %v9764 = vadd.f32 %v9594, %v9763
        %v9765 = vpop.f32.mrb[0].mxu0
        %9766 = vmatprep.mubr.f32.mxu0 0.0
        %9767 = vmatmul.mubr.f32.gmra.mrb[0].mxu0 %v9603
        %v9768 = vpop.f32.mrb[0].mxu0
        %v9769 = vadd.f32 %v9594, %v9768
        %v9770 = vpop.f32.mrb[0].mxu0
        %9771 = vmatprep.mubr.f32.mxu0 0.0
        %9772 = vmatmul.mubr.f32.gmra.mrb[0].mxu0 %v9606
        %v9773 = vpop.f32.mrb[0].mxu0
        %v9774 = vadd.f32 %v9594, %v9773
        %v9775 = vpop.f32.mrb[0].mxu0
        %9776 = vmatprep.mubr.f32.mxu0 0.0
        %9777 = vmatmul.mubr.f32.gmra.mrb[0].mxu0 %v9609
        %v9778 = vpop.f32.mrb[0].mxu0
        %v9779 = vadd.f32 %v9594, %v9778
        %v9780 = vpop.f32.mrb[0].mxu0
        %9781 = vmatprep.mubr.f32.mxu0 0.0
        %9782 = vmatmul.mubr.f32.gmra.mrb[0].mxu0 %v9612
        %v9783 = vpop.f32.mrb[0].mxu0
        %v9784 = vadd.f32 %v9594, %v9783
        %v9785 = vpop.f32.mrb[0].mxu0
        %9786 = vmatprep.mubr.f32.mxu0 0.0
        %9787 = vmatmul.mubr.f32.gmra.mrb[0].mxu0 %v9615
        %v9788 = vpop.f32.mrb[0].mxu0
        %v9789 = vadd.f32 %v9594, %v9788
        %v9790 = vpop.f32.mrb[0].mxu0
        %9791 = vmatprep.mubr.f32.mxu0 0.0
        %9792 = vmatmul.mubr.f32.gmra.mrb[0].mxu0 %v9618
        %v9793 = vpop.f32.mrb[0].mxu0
        %v9794 = vadd.f32 %v9594, %v9793
        %v9795 = vpop.f32.mrb[0].mxu0
        %9796 = vmatprep.mubr.f32.mxu0 0.0
        %9797 = vmatmul.mubr.f32.gmra.mrb[0].mxu0 %v9621
        %v9798 = vpop.f32.mrb[0].mxu0
        %v9799 = vadd.f32 %v9594, %v9798
        %v9800 = vpop.f32.mrb[0].mxu0
        %9801 = vmatprep.mubr.f32.mxu0 0.0
        %9802 = vmatmul.mubr.f32.gmra.mrb[0].mxu0 %v9624
        %v9803 = vpop.f32.mrb[0].mxu0
        %v9804 = vadd.f32 %v9594, %v9803
        %v9805 = vpop.f32.mrb[0].mxu0
        %9806 = vmatprep.mubr.f32.mxu0 0.0
        %9807 = vmatmul.mubr.f32.gmra.mrb[0].mxu0 %v9627
        %v9808 = vpop.f32.mrb[0].mxu0
        %v9809 = vadd.f32 %v9594, %v9808
        %v9810 = vpop.f32.mrb[0].mxu0
        %9811 = vmatprep.mubr.f32.mxu0 0.0
        %9812 = vmatmul.mubr.f32.gmra.mrb[0].mxu0 %v9630
        %v9813 = vpop.f32.mrb[0].mxu0
        %v9814 = vadd.f32 %v9594, %v9813
        %v9815 = vpop.f32.mrb[0].mxu0
        %9816 = vmatprep.mubr.f32.mxu0 0.0
        %9817 = vmatmul.mubr.f32.gmra.mrb[0].mxu0 %v9633
        %v9818 = vpop.f32.mrb[0].mxu0
        %v9819 = vadd.f32 %v9594, %v9818
        %v9820 = vpop.f32.mrb[0].mxu0
        %9821 = vmatprep.mubr.f32.mxu0 0.0
        %9822 = vmatmul.mubr.f32.gmra.mrb[0].mxu0 %v9636
        %v9823 = vpop.f32.mrb[0].mxu0
        %v9824 = vadd.f32 %v9594, %v9823
        %v9825 = vpop.f32.mrb[0].mxu0
        %9826 = vmatprep.mubr.f32.mxu0 0.0
        %9827 = vmatmul.mubr.f32.gmra.mrb[0].mxu0 %v9639
        %v9828 = vpop.f32.mrb[0].mxu0
        %v9829 = vadd.f32 %v9594, %v9828
        %v9830 = vpop.f32.mrb[0].mxu0
        %9831 = vmatprep.mubr.f32.mxu0 0.0
        %9832 = vmatmul.mubr.f32.gmra.mrb[0].mxu0 %v9642
        %v9833 = vpop.f32.mrb[0].mxu0
        %v9834 = vadd.f32 %v9594, %v9833
        %v9835 = vpop.f32.mrb[0].mxu0
        %9836 = vmatprep.mubr.f32.mxu0 0.0
        %9837 = vmatmul.mubr.f32.gmra.mrb[0].mxu0 %v9645
        %v9838 = vpop.f32.mrb[0].mxu0
        %v9839 = vadd.f32 %v9594, %v9838
        %v9840 = vpop.f32.mrb[0].mxu0
        %9841 = vmatprep.mubr.f32.mxu0 0.0
        %9842 = vmatmul.mubr.f32.gmra.mrb[0].mxu0 %v9648
        %v9843 = vpop.f32.mrb[0].mxu0
        %v9844 = vadd.f32 %v9594, %v9843
        %v9845 = vpop.f32.mrb[0].mxu0
        %9846 = vmatprep.mubr.f32.mxu0 0.0
        %9847 = vmatmul.mubr.f32.gmra.mrb[0].mxu0 %v9651
        %v9848 = vpop.f32.mrb[0].mxu0
        %v9849 = vadd.f32 %v9594, %v9848
        %v9850 = vpop.f32.mrb[0].mxu0
        %9851 = vmatprep.mubr.f32.mxu0 0.0
        %9852 = vmatmul.mubr.f32.gmra.mrb[0].mxu0 %v9654
        %v9853 = vpop.f32.mrb[0].mxu0
        %v9854 = vadd.f32 %v9594, %v9853
        %v9855 = vpop.f32.mrb[0].mxu0
        %9856 = vmatprep.mubr.f32.mxu0 0.0
        %9857 = vmatmul.mubr.f32.gmra.mrb[0].mxu0 %v9657
        %v9858 = vpop.f32.mrb[0].mxu0
        %v9859 = vadd.f32 %v9594, %v9858
        %v9860 = vpop.f32.mrb[0].mxu0
        %9861 = vmatprep.mubr.f32.mxu0 0.0
        %9862 = vmatmul.mubr.f32.gmra.mrb[0].mxu0 %v9660
        %v9863 = vpop.f32.mrb[0].mxu0
        %v9864 = vadd.f32 %v9594, %v9863
        %v9865 = vpop.f32.mrb[0].mxu0
        %9866 = vmatprep.mubr.f32.mxu0 0.0
        %9867 = vmatmul.mubr.f32.gmra.mrb[0].mxu0 %v9663
        %v9868 = vpop.f32.mrb[0].mxu0
        %v9869 = vadd.f32 %v9594, %v9868
        %v9870 = vpop.f32.mrb[0].mxu0
        %9871 = vmatprep.mubr.f32.mxu0 0.0
        %9872 = vmatmul.mubr.f32.gmra.mrb[0].mxu0 %v9666
        %v9873 = vpop.f32.mrb[0].mxu0
        %v9874 = vadd.f32 %v9594, %v9873
        %v9875 = vpop.f32.mrb[0].mxu0
        %9876 = vmatprep.mubr.f32.mxu0 0.0
        %9877 = vmatmul.mubr.f32.gmra.mrb[0].mxu0 %v9669
        %v9878 = vpop.f32.mrb[0].mxu0
        %v9879 = vadd.f32 %v9594, %v9878
        %v9880 = vpop.f32.mrb[0].mxu0
        %9881 = vmatprep.mubr.f32.mxu0 0.0
        %9882 = vmatmul.mubr.f32.gmra.mrb[0].mxu0 %v9672
        %v9883 = vpop.f32.mrb[0].mxu0
        %v9884 = vadd.f32 %v9594, %v9883
        %v9885 = vpop.f32.mrb[0].mxu0
        %9886 = vmatprep.mubr.f32.mxu0 0.0
        %9887 = vmatmul.mubr.f32.gmra.mrb[0].mxu0 %v9675
        %v9888 = vpop.f32.mrb[0].mxu0
        %v9889 = vadd.f32 %v9594, %v9888
        %v9890 = vpop.f32.mrb[0].mxu0
        %9891 = vmatprep.mubr.f32.mxu0 0.0
        %9892 = vmatmul.mubr.f32.gmra.mrb[0].mxu0 %v9678
        %v9893 = vpop.f32.mrb[0].mxu0
        %v9894 = vadd.f32 %v9594, %v9893
        %v9895 = vpop.f32.mrb[0].mxu0
        %9896 = vmatprep.mubr.f32.mxu0 0.0
        %9897 = vmatmul.mubr.f32.gmra.mrb[0].mxu0 %v9681
        %v9898 = vpop.f32.mrb[0].mxu0
        %v9899 = vadd.f32 %v9594, %v9898
        %v9900 = vpop.f32.mrb[0].mxu0
        %9901 = vmatprep.mubr.f32.mxu0 0.0
        %9902 = vmatmul.mubr.f32.gmra.mrb[0].mxu0 %v9684
        %v9903 = vpop.f32.mrb[0].mxu0
        %v9904 = vadd.f32 %v9594, %v9903
        %v9905 = vpop.f32.mrb[0].mxu0
        %9906 = vmatprep.mubr.f32.mxu0 0.0
        %9907 = vmatmul.mubr.f32.gmra.mrb[0].mxu0 %v9687
        %v9908 = vpop.f32.mrb[0].mxu0
        %v9909 = vadd.f32 %v9594, %v9908
        %v9910 = vpop.f32.mrb[0].mxu0
        %9911 = vmatprep.mubr.f32.mxu0 0.0
        %9912 = vmatmul.mubr.f32.gmra.mrb[0].mxu0 %v9690
        %v9913 = vpop.f32.mrb[0].mxu0
        %v9914 = vadd.f32 %v9594, %v9913
        %v9915 = vpop.f32.mrb[0].mxu0
        %9916 = vdwg.mxu0
        %v9918 = vlaneseq
        %v9919 = vshrl.u32 %v9918, 7
        %v9920 = vsub.s32 0, %v9919
        %v9921 = vrot.slane %v1411, %v9920
        %v9924 = vsel %vm2507, %v9398, 0
        %v9927 = vsel %vm2507, %v9399, 0
        %v9930 = vsel %vm2507, %v9400, 0
        %v9933 = vsel %vm2507, %v9401, 0
        %v9936 = vsel %vm2507, %v9402, 0
        %v9939 = vsel %vm2507, %v9403, 0
        %v9942 = vsel %vm2507, %v9404, 0
        %v9945 = vsel %vm2507, %v9405, 0
        %v9948 = vsel %vm2507, %v9406, 0
        %v9951 = vsel %vm2507, %v9407, 0
        %v9954 = vsel %vm2507, %v9408, 0
        %v9957 = vsel %vm2507, %v9409, 0
        %v9960 = vsel %vm2507, %v9410, 0
        %v9963 = vsel %vm2507, %v9411, 0
        %v9966 = vsel %vm2507, %v9412, 0
        %v9969 = vsel %vm2507, %v9413, 0
        %v9972 = vsel %vm2507, %v9414, 0
        %v9975 = vsel %vm2507, %v9415, 0
        %v9978 = vsel %vm2507, %v9416, 0
        %v9981 = vsel %vm2507, %v9417, 0
        %v9984 = vsel %vm2507, %v9418, 0
        %v9987 = vsel %vm2507, %v9419, 0
        %v9990 = vsel %vm2507, %v9420, 0
        %v9993 = vsel %vm2507, %v9421, 0
        %v9996 = vsel %vm2507, %v9422, 0
        %v9999 = vsel %vm2507, %v9423, 0
        %v10002 = vsel %vm2507, %v9424, 0
        %v10005 = vsel %vm2507, %v9425, 0
        %v10008 = vsel %vm2507, %v9426, 0
        %v10011 = vsel %vm2507, %v9427, 0
        %v10014 = vsel %vm2507, %v9428, 0
        %v10017 = vsel %vm2507, %v9429, 0
        %10019 = vmatprep.subr.mxu0 0.0
        %10020 = vmatpush1.msra.mxu0 %v1403
        %10021 = vmatprep.subr.mxu0 0.0
        %10022 = vmatpush1.msra.mxu0 %v1404
        %10023 = vmatprep.subr.mxu0 0.0
        %10024 = vmatpush1.msra.mxu0 %v1405
        %10025 = vmatprep.subr.mxu0 0.0
        %10026 = vmatpush1.msra.mxu0 %v1406
        %10027 = vmatprep.subr.mxu0 0.0
        %10028 = vmatpush1.msra.mxu0 %v1407
        %10029 = vmatprep.subr.mxu0 0.0
        %10030 = vmatpush1.msra.mxu0 %v1408
        %10031 = vmatprep.subr.mxu0 0.0
        %10032 = vmatpush1.msra.mxu0 %v1409
        %10033 = vmatprep.subr.mxu0 0.0
        %10034 = vmatpush1.msra.mxu0 %v1410
        %10035 = vmatprep.subr.mxu0 0.0
        %10036 = vmatpush1.msra.mxu0 0.0
        %10037 = vmatprep.subr.mxu0 0.0
        %10038 = vmatpush1.msra.mxu0 0.0
        %10039 = vmatprep.subr.mxu0 0.0
        %10040 = vmatpush1.msra.mxu0 0.0
        %10041 = vmatprep.subr.mxu0 0.0
        %10042 = vmatpush1.msra.mxu0 0.0
        %10043 = vmatprep.subr.mxu0 0.0
        %10044 = vmatpush1.msra.mxu0 0.0
        %10045 = vmatprep.subr.mxu0 0.0
        %10046 = vmatpush1.msra.mxu0 0.0
        %10047 = vmatprep.subr.mxu0 0.0
        %10048 = vmatpush1.msra.mxu0 0.0
        %10049 = vmatprep.subr.mxu0 0.0
        %10050 = vmatpush1.msra.mxu0 0.0
        %10051 = vmatprep.subr.mxu0 0.0
        %10052 = vmatpush1.msra.mxu0 0.0
        %10053 = vmatprep.subr.mxu0 0.0
        %10054 = vmatpush1.msra.mxu0 0.0
        %10055 = vmatprep.subr.mxu0 0.0
        %10056 = vmatpush1.msra.mxu0 0.0
        %10057 = vmatprep.subr.mxu0 0.0
        %10058 = vmatpush1.msra.mxu0 0.0
        %10059 = vmatprep.subr.mxu0 0.0
        %10060 = vmatpush1.msra.mxu0 0.0
        %10061 = vmatprep.subr.mxu0 0.0
        %10062 = vmatpush1.msra.mxu0 0.0
        %10063 = vmatprep.subr.mxu0 0.0
        %10064 = vmatpush1.msra.mxu0 0.0
        %10065 = vmatprep.subr.mxu0 0.0
        %10066 = vmatpush1.msra.mxu0 0.0
        %10067 = vmatprep.subr.mxu0 0.0
        %10068 = vmatpush1.msra.mxu0 0.0
        %10069 = vmatprep.subr.mxu0 0.0
        %10070 = vmatpush1.msra.mxu0 0.0
        %10071 = vmatprep.subr.mxu0 0.0
        %10072 = vmatpush1.msra.mxu0 0.0
        %10073 = vmatprep.subr.mxu0 0.0
        %10074 = vmatpush1.msra.mxu0 0.0
        %10075 = vmatprep.subr.mxu0 0.0
        %10076 = vmatpush1.msra.mxu0 0.0
        %10077 = vmatprep.subr.mxu0 0.0
        %10078 = vmatpush1.msra.mxu0 0.0
        %10079 = vmatprep.subr.mxu0 0.0
        %10080 = vmatpush1.msra.mxu0 0.0
        %10081 = vmatprep.subr.mxu0 0.0
        %10082 = vmatpush1.msra.mxu0 0.0
        %10083 = vmatprep.mubr.f32.mxu0 0.0
        %10084 = vmatmul.mubr.f32.gmra.mrb[0].mxu0 %v9924
        %v10085 = vpop.f32.mrb[0].mxu0
        %v10086 = vadd.f32 %v9921, %v10085
        %v10087 = vpop.f32.mrb[0].mxu0
        %10088 = vmatprep.mubr.f32.mxu0 0.0
        %10089 = vmatmul.mubr.f32.gmra.mrb[0].mxu0 %v9927
        %v10090 = vpop.f32.mrb[0].mxu0
        %v10091 = vadd.f32 %v9921, %v10090
        %v10092 = vpop.f32.mrb[0].mxu0
        %10093 = vmatprep.mubr.f32.mxu0 0.0
        %10094 = vmatmul.mubr.f32.gmra.mrb[0].mxu0 %v9930
        %v10095 = vpop.f32.mrb[0].mxu0
        %v10096 = vadd.f32 %v9921, %v10095
        %v10097 = vpop.f32.mrb[0].mxu0
        %10098 = vmatprep.mubr.f32.mxu0 0.0
        %10099 = vmatmul.mubr.f32.gmra.mrb[0].mxu0 %v9933
        %v10100 = vpop.f32.mrb[0].mxu0
        %v10101 = vadd.f32 %v9921, %v10100
        %v10102 = vpop.f32.mrb[0].mxu0
        %10103 = vmatprep.mubr.f32.mxu0 0.0
        %10104 = vmatmul.mubr.f32.gmra.mrb[0].mxu0 %v9936
        %v10105 = vpop.f32.mrb[0].mxu0
        %v10106 = vadd.f32 %v9921, %v10105
        %v10107 = vpop.f32.mrb[0].mxu0
        %10108 = vmatprep.mubr.f32.mxu0 0.0
        %10109 = vmatmul.mubr.f32.gmra.mrb[0].mxu0 %v9939
        %v10110 = vpop.f32.mrb[0].mxu0
        %v10111 = vadd.f32 %v9921, %v10110
        %v10112 = vpop.f32.mrb[0].mxu0
        %10113 = vmatprep.mubr.f32.mxu0 0.0
        %10114 = vmatmul.mubr.f32.gmra.mrb[0].mxu0 %v9942
        %v10115 = vpop.f32.mrb[0].mxu0
        %v10116 = vadd.f32 %v9921, %v10115
        %v10117 = vpop.f32.mrb[0].mxu0
        %10118 = vmatprep.mubr.f32.mxu0 0.0
        %10119 = vmatmul.mubr.f32.gmra.mrb[0].mxu0 %v9945
        %v10120 = vpop.f32.mrb[0].mxu0
        %v10121 = vadd.f32 %v9921, %v10120
        %v10122 = vpop.f32.mrb[0].mxu0
        %10123 = vmatprep.mubr.f32.mxu0 0.0
        %10124 = vmatmul.mubr.f32.gmra.mrb[0].mxu0 %v9948
        %v10125 = vpop.f32.mrb[0].mxu0
        %v10126 = vadd.f32 %v9921, %v10125
        %v10127 = vpop.f32.mrb[0].mxu0
        %10128 = vmatprep.mubr.f32.mxu0 0.0
        %10129 = vmatmul.mubr.f32.gmra.mrb[0].mxu0 %v9951
        %v10130 = vpop.f32.mrb[0].mxu0
        %v10131 = vadd.f32 %v9921, %v10130
        %v10132 = vpop.f32.mrb[0].mxu0
        %10133 = vmatprep.mubr.f32.mxu0 0.0
        %10134 = vmatmul.mubr.f32.gmra.mrb[0].mxu0 %v9954
        %v10135 = vpop.f32.mrb[0].mxu0
        %v10136 = vadd.f32 %v9921, %v10135
        %v10137 = vpop.f32.mrb[0].mxu0
        %10138 = vmatprep.mubr.f32.mxu0 0.0
        %10139 = vmatmul.mubr.f32.gmra.mrb[0].mxu0 %v9957
        %v10140 = vpop.f32.mrb[0].mxu0
        %v10141 = vadd.f32 %v9921, %v10140
        %v10142 = vpop.f32.mrb[0].mxu0
        %10143 = vmatprep.mubr.f32.mxu0 0.0
        %10144 = vmatmul.mubr.f32.gmra.mrb[0].mxu0 %v9960
        %v10145 = vpop.f32.mrb[0].mxu0
        %v10146 = vadd.f32 %v9921, %v10145
        %v10147 = vpop.f32.mrb[0].mxu0
        %10148 = vmatprep.mubr.f32.mxu0 0.0
        %10149 = vmatmul.mubr.f32.gmra.mrb[0].mxu0 %v9963
        %v10150 = vpop.f32.mrb[0].mxu0
        %v10151 = vadd.f32 %v9921, %v10150
        %v10152 = vpop.f32.mrb[0].mxu0
        %10153 = vmatprep.mubr.f32.mxu0 0.0
        %10154 = vmatmul.mubr.f32.gmra.mrb[0].mxu0 %v9966
        %v10155 = vpop.f32.mrb[0].mxu0
        %v10156 = vadd.f32 %v9921, %v10155
        %v10157 = vpop.f32.mrb[0].mxu0
        %10158 = vmatprep.mubr.f32.mxu0 0.0
        %10159 = vmatmul.mubr.f32.gmra.mrb[0].mxu0 %v9969
        %v10160 = vpop.f32.mrb[0].mxu0
        %v10161 = vadd.f32 %v9921, %v10160
        %v10162 = vpop.f32.mrb[0].mxu0
        %10163 = vmatprep.mubr.f32.mxu0 0.0
        %10164 = vmatmul.mubr.f32.gmra.mrb[0].mxu0 %v9972
        %v10165 = vpop.f32.mrb[0].mxu0
        %v10166 = vadd.f32 %v9921, %v10165
        %v10167 = vpop.f32.mrb[0].mxu0
        %10168 = vmatprep.mubr.f32.mxu0 0.0
        %10169 = vmatmul.mubr.f32.gmra.mrb[0].mxu0 %v9975
        %v10170 = vpop.f32.mrb[0].mxu0
        %v10171 = vadd.f32 %v9921, %v10170
        %v10172 = vpop.f32.mrb[0].mxu0
        %10173 = vmatprep.mubr.f32.mxu0 0.0
        %10174 = vmatmul.mubr.f32.gmra.mrb[0].mxu0 %v9978
        %v10175 = vpop.f32.mrb[0].mxu0
        %v10176 = vadd.f32 %v9921, %v10175
        %v10177 = vpop.f32.mrb[0].mxu0
        %10178 = vmatprep.mubr.f32.mxu0 0.0
        %10179 = vmatmul.mubr.f32.gmra.mrb[0].mxu0 %v9981
        %v10180 = vpop.f32.mrb[0].mxu0
        %v10181 = vadd.f32 %v9921, %v10180
        %v10182 = vpop.f32.mrb[0].mxu0
        %10183 = vmatprep.mubr.f32.mxu0 0.0
        %10184 = vmatmul.mubr.f32.gmra.mrb[0].mxu0 %v9984
        %v10185 = vpop.f32.mrb[0].mxu0
        %v10186 = vadd.f32 %v9921, %v10185
        %v10187 = vpop.f32.mrb[0].mxu0
        %10188 = vmatprep.mubr.f32.mxu0 0.0
        %10189 = vmatmul.mubr.f32.gmra.mrb[0].mxu0 %v9987
        %v10190 = vpop.f32.mrb[0].mxu0
        %v10191 = vadd.f32 %v9921, %v10190
        %v10192 = vpop.f32.mrb[0].mxu0
        %10193 = vmatprep.mubr.f32.mxu0 0.0
        %10194 = vmatmul.mubr.f32.gmra.mrb[0].mxu0 %v9990
        %v10195 = vpop.f32.mrb[0].mxu0
        %v10196 = vadd.f32 %v9921, %v10195
        %v10197 = vpop.f32.mrb[0].mxu0
        %10198 = vmatprep.mubr.f32.mxu0 0.0
        %10199 = vmatmul.mubr.f32.gmra.mrb[0].mxu0 %v9993
        %v10200 = vpop.f32.mrb[0].mxu0
        %v10201 = vadd.f32 %v9921, %v10200
        %v10202 = vpop.f32.mrb[0].mxu0
        %10203 = vmatprep.mubr.f32.mxu0 0.0
        %10204 = vmatmul.mubr.f32.gmra.mrb[0].mxu0 %v9996
        %v10205 = vpop.f32.mrb[0].mxu0
        %v10206 = vadd.f32 %v9921, %v10205
        %v10207 = vpop.f32.mrb[0].mxu0
        %10208 = vmatprep.mubr.f32.mxu0 0.0
        %10209 = vmatmul.mubr.f32.gmra.mrb[0].mxu0 %v9999
        %v10210 = vpop.f32.mrb[0].mxu0
        %v10211 = vadd.f32 %v9921, %v10210
        %v10212 = vpop.f32.mrb[0].mxu0
        %10213 = vmatprep.mubr.f32.mxu0 0.0
        %10214 = vmatmul.mubr.f32.gmra.mrb[0].mxu0 %v10002
        %v10215 = vpop.f32.mrb[0].mxu0
        %v10216 = vadd.f32 %v9921, %v10215
        %v10217 = vpop.f32.mrb[0].mxu0
        %10218 = vmatprep.mubr.f32.mxu0 0.0
        %10219 = vmatmul.mubr.f32.gmra.mrb[0].mxu0 %v10005
        %v10220 = vpop.f32.mrb[0].mxu0
        %v10221 = vadd.f32 %v9921, %v10220
        %v10222 = vpop.f32.mrb[0].mxu0
        %10223 = vmatprep.mubr.f32.mxu0 0.0
        %10224 = vmatmul.mubr.f32.gmra.mrb[0].mxu0 %v10008
        %v10225 = vpop.f32.mrb[0].mxu0
        %v10226 = vadd.f32 %v9921, %v10225
        %v10227 = vpop.f32.mrb[0].mxu0
        %10228 = vmatprep.mubr.f32.mxu0 0.0
        %10229 = vmatmul.mubr.f32.gmra.mrb[0].mxu0 %v10011
        %v10230 = vpop.f32.mrb[0].mxu0
        %v10231 = vadd.f32 %v9921, %v10230
        %v10232 = vpop.f32.mrb[0].mxu0
        %10233 = vmatprep.mubr.f32.mxu0 0.0
        %10234 = vmatmul.mubr.f32.gmra.mrb[0].mxu0 %v10014
        %v10235 = vpop.f32.mrb[0].mxu0
        %v10236 = vadd.f32 %v9921, %v10235
        %v10237 = vpop.f32.mrb[0].mxu0
        %10238 = vmatprep.mubr.f32.mxu0 0.0
        %10239 = vmatmul.mubr.f32.gmra.mrb[0].mxu0 %v10017
        %v10240 = vpop.f32.mrb[0].mxu0
        %v10241 = vadd.f32 %v9921, %v10240
        %v10242 = vpop.f32.mrb[0].mxu0
        %10243 = vdwg.mxu0
        %v10244 = vadd.f32 %v10086, %v9759
        %v10245 = vadd.f32 %v10091, %v9764
        %v10246 = vadd.f32 %v10096, %v9769
        %v10247 = vadd.f32 %v10101, %v9774
        %v10248 = vadd.f32 %v10106, %v9779
        %v10249 = vadd.f32 %v10111, %v9784
        %v10250 = vadd.f32 %v10116, %v9789
        %v10251 = vadd.f32 %v10121, %v9794
        %v10252 = vadd.f32 %v10126, %v9799
        %v10253 = vadd.f32 %v10131, %v9804
        %v10254 = vadd.f32 %v10136, %v9809
        %v10255 = vadd.f32 %v10141, %v9814
        %v10256 = vadd.f32 %v10146, %v9819
        %v10257 = vadd.f32 %v10151, %v9824
        %v10258 = vadd.f32 %v10156, %v9829
        %v10259 = vadd.f32 %v10161, %v9834
        %v10260 = vadd.f32 %v10166, %v9839
        %v10261 = vadd.f32 %v10171, %v9844
        %v10262 = vadd.f32 %v10176, %v9849
        %v10263 = vadd.f32 %v10181, %v9854
        %v10264 = vadd.f32 %v10186, %v9859
        %v10265 = vadd.f32 %v10191, %v9864
        %v10266 = vadd.f32 %v10196, %v9869
        %v10267 = vadd.f32 %v10201, %v9874
        %v10268 = vadd.f32 %v10206, %v9879
        %v10269 = vadd.f32 %v10211, %v9884
        %v10270 = vadd.f32 %v10216, %v9889
        %v10271 = vadd.f32 %v10221, %v9894
        %v10272 = vadd.f32 %v10226, %v9899
        %v10273 = vadd.f32 %v10231, %v9904
        %v10274 = vadd.f32 %v10236, %v9909
        %v10275 = vadd.f32 %v10241, %v9914
        %v10276 = vtanh.pop %v10244
        %v10277 = vtanh.pop %v10245
        %v10278 = vtanh.pop %v10246
        %v10279 = vtanh.pop %v10247
        %v10280 = vtanh.pop %v10248
        %v10281 = vtanh.pop %v10249
        %v10282 = vtanh.pop %v10250
        %v10283 = vtanh.pop %v10251
        %v10284 = vtanh.pop %v10252
        %v10285 = vtanh.pop %v10253
        %v10286 = vtanh.pop %v10254
        %v10287 = vtanh.pop %v10255
        %v10288 = vtanh.pop %v10256
        %v10289 = vtanh.pop %v10257
        %v10290 = vtanh.pop %v10258
        %v10291 = vtanh.pop %v10259
        %v10292 = vtanh.pop %v10260
        %v10293 = vtanh.pop %v10261
        %v10294 = vtanh.pop %v10262
        %v10295 = vtanh.pop %v10263
        %v10296 = vtanh.pop %v10264
        %v10297 = vtanh.pop %v10265
        %v10298 = vtanh.pop %v10266
        %v10299 = vtanh.pop %v10267
        %v10300 = vtanh.pop %v10268
        %v10301 = vtanh.pop %v10269
        %v10302 = vtanh.pop %v10270
        %v10303 = vtanh.pop %v10271
        %v10304 = vtanh.pop %v10272
        %v10305 = vtanh.pop %v10273
        %v10306 = vtanh.pop %v10274
        %v10307 = vtanh.pop %v10275
        %v10308 = vxor.u32 %v10244, 2147483648
        %v10309 = vxor.u32 %v10245, 2147483648
        %v10310 = vxor.u32 %v10246, 2147483648
        %v10311 = vxor.u32 %v10247, 2147483648
        %v10312 = vxor.u32 %v10248, 2147483648
        %v10313 = vxor.u32 %v10249, 2147483648
        %v10314 = vxor.u32 %v10250, 2147483648
        %v10315 = vxor.u32 %v10251, 2147483648
        %v10316 = vxor.u32 %v10252, 2147483648
        %v10317 = vxor.u32 %v10253, 2147483648
        %v10318 = vxor.u32 %v10254, 2147483648
        %v10319 = vxor.u32 %v10255, 2147483648
        %v10320 = vxor.u32 %v10256, 2147483648
        %v10321 = vxor.u32 %v10257, 2147483648
        %v10322 = vxor.u32 %v10258, 2147483648
        %v10323 = vxor.u32 %v10259, 2147483648
        %v10324 = vxor.u32 %v10260, 2147483648
        %v10325 = vxor.u32 %v10261, 2147483648
        %v10326 = vxor.u32 %v10262, 2147483648
        %v10327 = vxor.u32 %v10263, 2147483648
        %v10328 = vxor.u32 %v10264, 2147483648
        %v10329 = vxor.u32 %v10265, 2147483648
        %v10330 = vxor.u32 %v10266, 2147483648
        %v10331 = vxor.u32 %v10267, 2147483648
        %v10332 = vxor.u32 %v10268, 2147483648
        %v10333 = vxor.u32 %v10269, 2147483648
        %v10334 = vxor.u32 %v10270, 2147483648
        %v10335 = vxor.u32 %v10271, 2147483648
        %v10336 = vxor.u32 %v10272, 2147483648
        %v10337 = vxor.u32 %v10273, 2147483648
        %v10338 = vxor.u32 %v10274, 2147483648
        %v10339 = vxor.u32 %v10275, 2147483648
        %v10340 = vmul.f32 %v10308, 1.442695
        %v10341 = vpow.pop %v10340
        %v10342 = vmul.f32 %v10309, 1.442695
        %v10343 = vpow.pop %v10342
        %v10344 = vmul.f32 %v10310, 1.442695
        %v10345 = vpow.pop %v10344
        %v10346 = vmul.f32 %v10311, 1.442695
        %v10347 = vpow.pop %v10346
        %v10348 = vmul.f32 %v10312, 1.442695
        %v10349 = vpow.pop %v10348
        %v10350 = vmul.f32 %v10313, 1.442695
        %v10351 = vpow.pop %v10350
        %v10352 = vmul.f32 %v10314, 1.442695
        %v10353 = vpow.pop %v10352
        %v10354 = vmul.f32 %v10315, 1.442695
        %v10355 = vpow.pop %v10354
        %v10356 = vmul.f32 %v10316, 1.442695
        %v10357 = vpow.pop %v10356
        %v10358 = vmul.f32 %v10317, 1.442695
        %v10359 = vpow.pop %v10358
        %v10360 = vmul.f32 %v10318, 1.442695
        %v10361 = vpow.pop %v10360
        %v10362 = vmul.f32 %v10319, 1.442695
        %v10363 = vpow.pop %v10362
        %v10364 = vmul.f32 %v10320, 1.442695
        %v10365 = vpow.pop %v10364
        %v10366 = vmul.f32 %v10321, 1.442695
        %v10367 = vpow.pop %v10366
        %v10368 = vmul.f32 %v10322, 1.442695
        %v10369 = vpow.pop %v10368
        %v10370 = vmul.f32 %v10323, 1.442695
        %v10371 = vpow.pop %v10370
        %v10372 = vmul.f32 %v10324, 1.442695
        %v10373 = vpow.pop %v10372
        %v10374 = vmul.f32 %v10325, 1.442695
        %v10375 = vpow.pop %v10374
        %v10376 = vmul.f32 %v10326, 1.442695
        %v10377 = vpow.pop %v10376
        %v10378 = vmul.f32 %v10327, 1.442695
        %v10379 = vpow.pop %v10378
        %v10380 = vmul.f32 %v10328, 1.442695
        %v10381 = vpow.pop %v10380
        %v10382 = vmul.f32 %v10329, 1.442695
        %v10383 = vpow.pop %v10382
        %v10384 = vmul.f32 %v10330, 1.442695
        %v10385 = vpow.pop %v10384
        %v10386 = vmul.f32 %v10331, 1.442695
        %v10387 = vpow.pop %v10386
        %v10388 = vmul.f32 %v10332, 1.442695
        %v10389 = vpow.pop %v10388
        %v10390 = vmul.f32 %v10333, 1.442695
        %v10391 = vpow.pop %v10390
        %v10392 = vmul.f32 %v10334, 1.442695
        %v10393 = vpow.pop %v10392
        %v10394 = vmul.f32 %v10335, 1.442695
        %v10395 = vpow.pop %v10394
        %v10396 = vmul.f32 %v10336, 1.442695
        %v10397 = vpow.pop %v10396
        %v10398 = vmul.f32 %v10337, 1.442695
        %v10399 = vpow.pop %v10398
        %v10400 = vmul.f32 %v10338, 1.442695
        %v10401 = vpow.pop %v10400
        %v10402 = vmul.f32 %v10339, 1.442695
        %v10403 = vpow.pop %v10402
        %v10404 = vadd.f32 %v10341, 1.0
        %v10405 = vadd.f32 %v10343, 1.0
        %v10406 = vadd.f32 %v10345, 1.0
        %v10407 = vadd.f32 %v10347, 1.0
        %v10408 = vadd.f32 %v10349, 1.0
        %v10409 = vadd.f32 %v10351, 1.0
        %v10410 = vadd.f32 %v10353, 1.0
        %v10411 = vadd.f32 %v10355, 1.0
        %v10412 = vadd.f32 %v10357, 1.0
        %v10413 = vadd.f32 %v10359, 1.0
        %v10414 = vadd.f32 %v10361, 1.0
        %v10415 = vadd.f32 %v10363, 1.0
        %v10416 = vadd.f32 %v10365, 1.0
        %v10417 = vadd.f32 %v10367, 1.0
        %v10418 = vadd.f32 %v10369, 1.0
        %v10419 = vadd.f32 %v10371, 1.0
        %v10420 = vadd.f32 %v10373, 1.0
        %v10421 = vadd.f32 %v10375, 1.0
        %v10422 = vadd.f32 %v10377, 1.0
        %v10423 = vadd.f32 %v10379, 1.0
        %v10424 = vadd.f32 %v10381, 1.0
        %v10425 = vadd.f32 %v10383, 1.0
        %v10426 = vadd.f32 %v10385, 1.0
        %v10427 = vadd.f32 %v10387, 1.0
        %v10428 = vadd.f32 %v10389, 1.0
        %v10429 = vadd.f32 %v10391, 1.0
        %v10430 = vadd.f32 %v10393, 1.0
        %v10431 = vadd.f32 %v10395, 1.0
        %v10432 = vadd.f32 %v10397, 1.0
        %v10433 = vadd.f32 %v10399, 1.0
        %v10434 = vadd.f32 %v10401, 1.0
        %v10435 = vadd.f32 %v10403, 1.0
        %v10436 = vrcp.pop %v10404
        %v10437 = vmul.f32 1.0, %v10436
        %v10438 = vrcp.pop %v10405
        %v10439 = vmul.f32 1.0, %v10438
        %v10440 = vrcp.pop %v10406
        %v10441 = vmul.f32 1.0, %v10440
        %v10442 = vrcp.pop %v10407
        %v10443 = vmul.f32 1.0, %v10442
        %v10444 = vrcp.pop %v10408
        %v10445 = vmul.f32 1.0, %v10444
        %v10446 = vrcp.pop %v10409
        %v10447 = vmul.f32 1.0, %v10446
        %v10448 = vrcp.pop %v10410
        %v10449 = vmul.f32 1.0, %v10448
        %v10450 = vrcp.pop %v10411
        %v10451 = vmul.f32 1.0, %v10450
        %v10452 = vrcp.pop %v10412
        %v10453 = vmul.f32 1.0, %v10452
        %v10454 = vrcp.pop %v10413
        %v10455 = vmul.f32 1.0, %v10454
        %v10456 = vrcp.pop %v10414
        %v10457 = vmul.f32 1.0, %v10456
        %v10458 = vrcp.pop %v10415
        %v10459 = vmul.f32 1.0, %v10458
        %v10460 = vrcp.pop %v10416
        %v10461 = vmul.f32 1.0, %v10460
        %v10462 = vrcp.pop %v10417
        %v10463 = vmul.f32 1.0, %v10462
        %v10464 = vrcp.pop %v10418
        %v10465 = vmul.f32 1.0, %v10464
        %v10466 = vrcp.pop %v10419
        %v10467 = vmul.f32 1.0, %v10466
        %v10468 = vrcp.pop %v10420
        %v10469 = vmul.f32 1.0, %v10468
        %v10470 = vrcp.pop %v10421
        %v10471 = vmul.f32 1.0, %v10470
        %v10472 = vrcp.pop %v10422
        %v10473 = vmul.f32 1.0, %v10472
        %v10474 = vrcp.pop %v10423
        %v10475 = vmul.f32 1.0, %v10474
        %v10476 = vrcp.pop %v10424
        %v10477 = vmul.f32 1.0, %v10476
        %v10478 = vrcp.pop %v10425
        %v10479 = vmul.f32 1.0, %v10478
        %v10480 = vrcp.pop %v10426
        %v10481 = vmul.f32 1.0, %v10480
        %v10482 = vrcp.pop %v10427
        %v10483 = vmul.f32 1.0, %v10482
        %v10484 = vrcp.pop %v10428
        %v10485 = vmul.f32 1.0, %v10484
        %v10486 = vrcp.pop %v10429
        %v10487 = vmul.f32 1.0, %v10486
        %v10488 = vrcp.pop %v10430
        %v10489 = vmul.f32 1.0, %v10488
        %v10490 = vrcp.pop %v10431
        %v10491 = vmul.f32 1.0, %v10490
        %v10492 = vrcp.pop %v10432
        %v10493 = vmul.f32 1.0, %v10492
        %v10494 = vrcp.pop %v10433
        %v10495 = vmul.f32 1.0, %v10494
        %v10496 = vrcp.pop %v10434
        %v10497 = vmul.f32 1.0, %v10496
        %v10498 = vrcp.pop %v10435
        %v10499 = vmul.f32 1.0, %v10498
        %10532 = vrot.lane.b32.xlu0 %v10437, 96
        %v10533 = vpop.permute.xlu0 %10532
        %10534 = vrot.lane.b32.xlu0 %v10439, 96
        %v10535 = vpop.permute.xlu0 %10534
        %10536 = vrot.lane.b32.xlu0 %v10441, 96
        %v10537 = vpop.permute.xlu0 %10536
        %10538 = vrot.lane.b32.xlu0 %v10443, 96
        %v10539 = vpop.permute.xlu0 %10538
        %10540 = vrot.lane.b32.xlu0 %v10445, 96
        %v10541 = vpop.permute.xlu0 %10540
        %10542 = vrot.lane.b32.xlu0 %v10447, 96
        %v10543 = vpop.permute.xlu0 %10542
        %10544 = vrot.lane.b32.xlu0 %v10449, 96
        %v10545 = vpop.permute.xlu0 %10544
        %10546 = vrot.lane.b32.xlu0 %v10451, 96
        %v10547 = vpop.permute.xlu0 %10546
        %10548 = vrot.lane.b32.xlu0 %v10453, 96
        %v10549 = vpop.permute.xlu0 %10548
        %10550 = vrot.lane.b32.xlu0 %v10455, 96
        %v10551 = vpop.permute.xlu0 %10550
        %10552 = vrot.lane.b32.xlu0 %v10457, 96
        %v10553 = vpop.permute.xlu0 %10552
        %10554 = vrot.lane.b32.xlu0 %v10459, 96
        %v10555 = vpop.permute.xlu0 %10554
        %10556 = vrot.lane.b32.xlu0 %v10461, 96
        %v10557 = vpop.permute.xlu0 %10556
        %10558 = vrot.lane.b32.xlu0 %v10463, 96
        %v10559 = vpop.permute.xlu0 %10558
        %10560 = vrot.lane.b32.xlu0 %v10465, 96
        %v10561 = vpop.permute.xlu0 %10560
        %10562 = vrot.lane.b32.xlu0 %v10467, 96
        %v10563 = vpop.permute.xlu0 %10562
        %10564 = vrot.lane.b32.xlu0 %v10469, 96
        %v10565 = vpop.permute.xlu0 %10564
        %10566 = vrot.lane.b32.xlu0 %v10471, 96
        %v10567 = vpop.permute.xlu0 %10566
        %10568 = vrot.lane.b32.xlu0 %v10473, 96
        %v10569 = vpop.permute.xlu0 %10568
        %10570 = vrot.lane.b32.xlu0 %v10475, 96
        %v10571 = vpop.permute.xlu0 %10570
        %10572 = vrot.lane.b32.xlu0 %v10477, 96
        %v10573 = vpop.permute.xlu0 %10572
        %10574 = vrot.lane.b32.xlu0 %v10479, 96
        %v10575 = vpop.permute.xlu0 %10574
        %10576 = vrot.lane.b32.xlu0 %v10481, 96
        %v10577 = vpop.permute.xlu0 %10576
        %10578 = vrot.lane.b32.xlu0 %v10483, 96
        %v10579 = vpop.permute.xlu0 %10578
        %10580 = vrot.lane.b32.xlu0 %v10485, 96
        %v10581 = vpop.permute.xlu0 %10580
        %10582 = vrot.lane.b32.xlu0 %v10487, 96
        %v10583 = vpop.permute.xlu0 %10582
        %10584 = vrot.lane.b32.xlu0 %v10489, 96
        %v10585 = vpop.permute.xlu0 %10584
        %10586 = vrot.lane.b32.xlu0 %v10491, 96
        %v10587 = vpop.permute.xlu0 %10586
        %10588 = vrot.lane.b32.xlu0 %v10493, 96
        %v10589 = vpop.permute.xlu0 %10588
        %10590 = vrot.lane.b32.xlu0 %v10495, 96
        %v10591 = vpop.permute.xlu0 %10590
        %10592 = vrot.lane.b32.xlu0 %v10497, 96
        %v10593 = vpop.permute.xlu0 %10592
        %10594 = vrot.lane.b32.xlu0 %v10499, 96
        %v10595 = vpop.permute.xlu0 %10594
        %v10628 = vmul.f32 %v10276, %v10533
        %v10629 = vmul.f32 %v10277, %v10535
        %v10630 = vmul.f32 %v10278, %v10537
        %v10631 = vmul.f32 %v10279, %v10539
        %v10632 = vmul.f32 %v10280, %v10541
        %v10633 = vmul.f32 %v10281, %v10543
        %v10634 = vmul.f32 %v10282, %v10545
        %v10635 = vmul.f32 %v10283, %v10547
        %v10636 = vmul.f32 %v10284, %v10549
        %v10637 = vmul.f32 %v10285, %v10551
        %v10638 = vmul.f32 %v10286, %v10553
        %v10639 = vmul.f32 %v10287, %v10555
        %v10640 = vmul.f32 %v10288, %v10557
        %v10641 = vmul.f32 %v10289, %v10559
        %v10642 = vmul.f32 %v10290, %v10561
        %v10643 = vmul.f32 %v10291, %v10563
        %v10644 = vmul.f32 %v10292, %v10565
        %v10645 = vmul.f32 %v10293, %v10567
        %v10646 = vmul.f32 %v10294, %v10569
        %v10647 = vmul.f32 %v10295, %v10571
        %v10648 = vmul.f32 %v10296, %v10573
        %v10649 = vmul.f32 %v10297, %v10575
        %v10650 = vmul.f32 %v10298, %v10577
        %v10651 = vmul.f32 %v10299, %v10579
        %v10652 = vmul.f32 %v10300, %v10581
        %v10653 = vmul.f32 %v10301, %v10583
        %v10654 = vmul.f32 %v10302, %v10585
        %v10655 = vmul.f32 %v10303, %v10587
        %v10656 = vmul.f32 %v10304, %v10589
        %v10657 = vmul.f32 %v10305, %v10591
        %v10658 = vmul.f32 %v10306, %v10593
        %v10659 = vmul.f32 %v10307, %v10595
        %v10661 = vlaneseq
        %v10662 = vshrl.u32 %v10661, 7
        %v10663 = vsub.s32 0, %v10662
        %v10664 = vrot.slane %v1416, %v10663
        %v10667 = vsel %vm1826, %v10628, 0
        %v10670 = vsel %vm1826, %v10629, 0
        %v10673 = vsel %vm1826, %v10630, 0
        %v10676 = vsel %vm1826, %v10631, 0
        %v10679 = vsel %vm1826, %v10632, 0
        %v10682 = vsel %vm1826, %v10633, 0
        %v10685 = vsel %vm1826, %v10634, 0
        %v10688 = vsel %vm1826, %v10635, 0
        %v10691 = vsel %vm1826, %v10636, 0
        %v10694 = vsel %vm1826, %v10637, 0
        %v10697 = vsel %vm1826, %v10638, 0
        %v10700 = vsel %vm1826, %v10639, 0
        %v10703 = vsel %vm1826, %v10640, 0
        %v10706 = vsel %vm1826, %v10641, 0
        %v10709 = vsel %vm1826, %v10642, 0
        %v10712 = vsel %vm1826, %v10643, 0
        %v10715 = vsel %vm1826, %v10644, 0
        %v10718 = vsel %vm1826, %v10645, 0
        %v10721 = vsel %vm1826, %v10646, 0
        %v10724 = vsel %vm1826, %v10647, 0
        %v10727 = vsel %vm1826, %v10648, 0
        %v10730 = vsel %vm1826, %v10649, 0
        %v10733 = vsel %vm1826, %v10650, 0
        %v10736 = vsel %vm1826, %v10651, 0
        %v10739 = vsel %vm1826, %v10652, 0
        %v10742 = vsel %vm1826, %v10653, 0
        %v10745 = vsel %vm1826, %v10654, 0
        %v10748 = vsel %vm1826, %v10655, 0
        %v10751 = vsel %vm1826, %v10656, 0
        %v10754 = vsel %vm1826, %v10657, 0
        %v10757 = vsel %vm1826, %v10658, 0
        %v10760 = vsel %vm1826, %v10659, 0
        %10762 = vmatprep.subr.mxu0 0.0
        %10763 = vmatpush1.msra.mxu0 %v1412
        %10764 = vmatprep.subr.mxu0 0.0
        %10765 = vmatpush1.msra.mxu0 %v1413
        %10766 = vmatprep.subr.mxu0 0.0
        %10767 = vmatpush1.msra.mxu0 %v1414
        %10768 = vmatprep.subr.mxu0 0.0
        %10769 = vmatpush1.msra.mxu0 %v1415
        %10770 = vmatprep.subr.mxu0 0.0
        %10771 = vmatpush1.msra.mxu0 0.0
        %10772 = vmatprep.subr.mxu0 0.0
        %10773 = vmatpush1.msra.mxu0 0.0
        %10774 = vmatprep.subr.mxu0 0.0
        %10775 = vmatpush1.msra.mxu0 0.0
        %10776 = vmatprep.subr.mxu0 0.0
        %10777 = vmatpush1.msra.mxu0 0.0
        %10778 = vmatprep.subr.mxu0 0.0
        %10779 = vmatpush1.msra.mxu0 0.0
        %10780 = vmatprep.subr.mxu0 0.0
        %10781 = vmatpush1.msra.mxu0 0.0
        %10782 = vmatprep.subr.mxu0 0.0
        %10783 = vmatpush1.msra.mxu0 0.0
        %10784 = vmatprep.subr.mxu0 0.0
        %10785 = vmatpush1.msra.mxu0 0.0
        %10786 = vmatprep.subr.mxu0 0.0
        %10787 = vmatpush1.msra.mxu0 0.0
        %10788 = vmatprep.subr.mxu0 0.0
        %10789 = vmatpush1.msra.mxu0 0.0
        %10790 = vmatprep.subr.mxu0 0.0
        %10791 = vmatpush1.msra.mxu0 0.0
        %10792 = vmatprep.subr.mxu0 0.0
        %10793 = vmatpush1.msra.mxu0 0.0
        %10794 = vmatprep.subr.mxu0 0.0
        %10795 = vmatpush1.msra.mxu0 0.0
        %10796 = vmatprep.subr.mxu0 0.0
        %10797 = vmatpush1.msra.mxu0 0.0
        %10798 = vmatprep.subr.mxu0 0.0
        %10799 = vmatpush1.msra.mxu0 0.0
        %10800 = vmatprep.subr.mxu0 0.0
        %10801 = vmatpush1.msra.mxu0 0.0
        %10802 = vmatprep.subr.mxu0 0.0
        %10803 = vmatpush1.msra.mxu0 0.0
        %10804 = vmatprep.subr.mxu0 0.0
        %10805 = vmatpush1.msra.mxu0 0.0
        %10806 = vmatprep.subr.mxu0 0.0
        %10807 = vmatpush1.msra.mxu0 0.0
        %10808 = vmatprep.subr.mxu0 0.0
        %10809 = vmatpush1.msra.mxu0 0.0
        %10810 = vmatprep.subr.mxu0 0.0
        %10811 = vmatpush1.msra.mxu0 0.0
        %10812 = vmatprep.subr.mxu0 0.0
        %10813 = vmatpush1.msra.mxu0 0.0
        %10814 = vmatprep.subr.mxu0 0.0
        %10815 = vmatpush1.msra.mxu0 0.0
        %10816 = vmatprep.subr.mxu0 0.0
        %10817 = vmatpush1.msra.mxu0 0.0
        %10818 = vmatprep.subr.mxu0 0.0
        %10819 = vmatpush1.msra.mxu0 0.0
        %10820 = vmatprep.subr.mxu0 0.0
        %10821 = vmatpush1.msra.mxu0 0.0
        %10822 = vmatprep.subr.mxu0 0.0
        %10823 = vmatpush1.msra.mxu0 0.0
        %10824 = vmatprep.subr.mxu0 0.0
        %10825 = vmatpush1.msra.mxu0 0.0
        %10826 = vmatprep.mubr.f32.mxu0 0.0
        %10827 = vmatmul.mubr.f32.gmra.mrb[0].mxu0 %v10667
        %v10828 = vpop.f32.mrb[0].mxu0
        %v10829 = vadd.f32 %v10664, %v10828
        %v10830 = vpop.f32.mrb[0].mxu0
        %10831 = vmatprep.mubr.f32.mxu0 0.0
        %10832 = vmatmul.mubr.f32.gmra.mrb[0].mxu0 %v10670
        %v10833 = vpop.f32.mrb[0].mxu0
        %v10834 = vadd.f32 %v10664, %v10833
        %v10835 = vpop.f32.mrb[0].mxu0
        %10836 = vmatprep.mubr.f32.mxu0 0.0
        %10837 = vmatmul.mubr.f32.gmra.mrb[0].mxu0 %v10673
        %v10838 = vpop.f32.mrb[0].mxu0
        %v10839 = vadd.f32 %v10664, %v10838
        %v10840 = vpop.f32.mrb[0].mxu0
        %10841 = vmatprep.mubr.f32.mxu0 0.0
        %10842 = vmatmul.mubr.f32.gmra.mrb[0].mxu0 %v10676
        %v10843 = vpop.f32.mrb[0].mxu0
        %v10844 = vadd.f32 %v10664, %v10843
        %v10845 = vpop.f32.mrb[0].mxu0
        %10846 = vmatprep.mubr.f32.mxu0 0.0
        %10847 = vmatmul.mubr.f32.gmra.mrb[0].mxu0 %v10679
        %v10848 = vpop.f32.mrb[0].mxu0
        %v10849 = vadd.f32 %v10664, %v10848
        %v10850 = vpop.f32.mrb[0].mxu0
        %10851 = vmatprep.mubr.f32.mxu0 0.0
        %10852 = vmatmul.mubr.f32.gmra.mrb[0].mxu0 %v10682
        %v10853 = vpop.f32.mrb[0].mxu0
        %v10854 = vadd.f32 %v10664, %v10853
        %v10855 = vpop.f32.mrb[0].mxu0
        %10856 = vmatprep.mubr.f32.mxu0 0.0
        %10857 = vmatmul.mubr.f32.gmra.mrb[0].mxu0 %v10685
        %v10858 = vpop.f32.mrb[0].mxu0
        %v10859 = vadd.f32 %v10664, %v10858
        %v10860 = vpop.f32.mrb[0].mxu0
        %10861 = vmatprep.mubr.f32.mxu0 0.0
        %10862 = vmatmul.mubr.f32.gmra.mrb[0].mxu0 %v10688
        %v10863 = vpop.f32.mrb[0].mxu0
        %v10864 = vadd.f32 %v10664, %v10863
        %v10865 = vpop.f32.mrb[0].mxu0
        %10866 = vmatprep.mubr.f32.mxu0 0.0
        %10867 = vmatmul.mubr.f32.gmra.mrb[0].mxu0 %v10691
        %v10868 = vpop.f32.mrb[0].mxu0
        %v10869 = vadd.f32 %v10664, %v10868
        %v10870 = vpop.f32.mrb[0].mxu0
        %10871 = vmatprep.mubr.f32.mxu0 0.0
        %10872 = vmatmul.mubr.f32.gmra.mrb[0].mxu0 %v10694
        %v10873 = vpop.f32.mrb[0].mxu0
        %v10874 = vadd.f32 %v10664, %v10873
        %v10875 = vpop.f32.mrb[0].mxu0
        %10876 = vmatprep.mubr.f32.mxu0 0.0
        %10877 = vmatmul.mubr.f32.gmra.mrb[0].mxu0 %v10697
        %v10878 = vpop.f32.mrb[0].mxu0
        %v10879 = vadd.f32 %v10664, %v10878
        %v10880 = vpop.f32.mrb[0].mxu0
        %10881 = vmatprep.mubr.f32.mxu0 0.0
        %10882 = vmatmul.mubr.f32.gmra.mrb[0].mxu0 %v10700
        %v10883 = vpop.f32.mrb[0].mxu0
        %v10884 = vadd.f32 %v10664, %v10883
        %v10885 = vpop.f32.mrb[0].mxu0
        %10886 = vmatprep.mubr.f32.mxu0 0.0
        %10887 = vmatmul.mubr.f32.gmra.mrb[0].mxu0 %v10703
        %v10888 = vpop.f32.mrb[0].mxu0
        %v10889 = vadd.f32 %v10664, %v10888
        %v10890 = vpop.f32.mrb[0].mxu0
        %10891 = vmatprep.mubr.f32.mxu0 0.0
        %10892 = vmatmul.mubr.f32.gmra.mrb[0].mxu0 %v10706
        %v10893 = vpop.f32.mrb[0].mxu0
        %v10894 = vadd.f32 %v10664, %v10893
        %v10895 = vpop.f32.mrb[0].mxu0
        %10896 = vmatprep.mubr.f32.mxu0 0.0
        %10897 = vmatmul.mubr.f32.gmra.mrb[0].mxu0 %v10709
        %v10898 = vpop.f32.mrb[0].mxu0
        %v10899 = vadd.f32 %v10664, %v10898
        %v10900 = vpop.f32.mrb[0].mxu0
        %10901 = vmatprep.mubr.f32.mxu0 0.0
        %10902 = vmatmul.mubr.f32.gmra.mrb[0].mxu0 %v10712
        %v10903 = vpop.f32.mrb[0].mxu0
        %v10904 = vadd.f32 %v10664, %v10903
        %v10905 = vpop.f32.mrb[0].mxu0
        %10906 = vmatprep.mubr.f32.mxu0 0.0
        %10907 = vmatmul.mubr.f32.gmra.mrb[0].mxu0 %v10715
        %v10908 = vpop.f32.mrb[0].mxu0
        %v10909 = vadd.f32 %v10664, %v10908
        %v10910 = vpop.f32.mrb[0].mxu0
        %10911 = vmatprep.mubr.f32.mxu0 0.0
        %10912 = vmatmul.mubr.f32.gmra.mrb[0].mxu0 %v10718
        %v10913 = vpop.f32.mrb[0].mxu0
        %v10914 = vadd.f32 %v10664, %v10913
        %v10915 = vpop.f32.mrb[0].mxu0
        %10916 = vmatprep.mubr.f32.mxu0 0.0
        %10917 = vmatmul.mubr.f32.gmra.mrb[0].mxu0 %v10721
        %v10918 = vpop.f32.mrb[0].mxu0
        %v10919 = vadd.f32 %v10664, %v10918
        %v10920 = vpop.f32.mrb[0].mxu0
        %10921 = vmatprep.mubr.f32.mxu0 0.0
        %10922 = vmatmul.mubr.f32.gmra.mrb[0].mxu0 %v10724
        %v10923 = vpop.f32.mrb[0].mxu0
        %v10924 = vadd.f32 %v10664, %v10923
        %v10925 = vpop.f32.mrb[0].mxu0
        %10926 = vmatprep.mubr.f32.mxu0 0.0
        %10927 = vmatmul.mubr.f32.gmra.mrb[0].mxu0 %v10727
        %v10928 = vpop.f32.mrb[0].mxu0
        %v10929 = vadd.f32 %v10664, %v10928
        %v10930 = vpop.f32.mrb[0].mxu0
        %10931 = vmatprep.mubr.f32.mxu0 0.0
        %10932 = vmatmul.mubr.f32.gmra.mrb[0].mxu0 %v10730
        %v10933 = vpop.f32.mrb[0].mxu0
        %v10934 = vadd.f32 %v10664, %v10933
        %v10935 = vpop.f32.mrb[0].mxu0
        %10936 = vmatprep.mubr.f32.mxu0 0.0
        %10937 = vmatmul.mubr.f32.gmra.mrb[0].mxu0 %v10733
        %v10938 = vpop.f32.mrb[0].mxu0
        %v10939 = vadd.f32 %v10664, %v10938
        %v10940 = vpop.f32.mrb[0].mxu0
        %10941 = vmatprep.mubr.f32.mxu0 0.0
        %10942 = vmatmul.mubr.f32.gmra.mrb[0].mxu0 %v10736
        %v10943 = vpop.f32.mrb[0].mxu0
        %v10944 = vadd.f32 %v10664, %v10943
        %v10945 = vpop.f32.mrb[0].mxu0
        %10946 = vmatprep.mubr.f32.mxu0 0.0
        %10947 = vmatmul.mubr.f32.gmra.mrb[0].mxu0 %v10739
        %v10948 = vpop.f32.mrb[0].mxu0
        %v10949 = vadd.f32 %v10664, %v10948
        %v10950 = vpop.f32.mrb[0].mxu0
        %10951 = vmatprep.mubr.f32.mxu0 0.0
        %10952 = vmatmul.mubr.f32.gmra.mrb[0].mxu0 %v10742
        %v10953 = vpop.f32.mrb[0].mxu0
        %v10954 = vadd.f32 %v10664, %v10953
        %v10955 = vpop.f32.mrb[0].mxu0
        %10956 = vmatprep.mubr.f32.mxu0 0.0
        %10957 = vmatmul.mubr.f32.gmra.mrb[0].mxu0 %v10745
        %v10958 = vpop.f32.mrb[0].mxu0
        %v10959 = vadd.f32 %v10664, %v10958
        %v10960 = vpop.f32.mrb[0].mxu0
        %10961 = vmatprep.mubr.f32.mxu0 0.0
        %10962 = vmatmul.mubr.f32.gmra.mrb[0].mxu0 %v10748
        %v10963 = vpop.f32.mrb[0].mxu0
        %v10964 = vadd.f32 %v10664, %v10963
        %v10965 = vpop.f32.mrb[0].mxu0
        %10966 = vmatprep.mubr.f32.mxu0 0.0
        %10967 = vmatmul.mubr.f32.gmra.mrb[0].mxu0 %v10751
        %v10968 = vpop.f32.mrb[0].mxu0
        %v10969 = vadd.f32 %v10664, %v10968
        %v10970 = vpop.f32.mrb[0].mxu0
        %10971 = vmatprep.mubr.f32.mxu0 0.0
        %10972 = vmatmul.mubr.f32.gmra.mrb[0].mxu0 %v10754
        %v10973 = vpop.f32.mrb[0].mxu0
        %v10974 = vadd.f32 %v10664, %v10973
        %v10975 = vpop.f32.mrb[0].mxu0
        %10976 = vmatprep.mubr.f32.mxu0 0.0
        %10977 = vmatmul.mubr.f32.gmra.mrb[0].mxu0 %v10757
        %v10978 = vpop.f32.mrb[0].mxu0
        %v10979 = vadd.f32 %v10664, %v10978
        %v10980 = vpop.f32.mrb[0].mxu0
        %10981 = vmatprep.mubr.f32.mxu0 0.0
        %10982 = vmatmul.mubr.f32.gmra.mrb[0].mxu0 %v10760
        %v10983 = vpop.f32.mrb[0].mxu0
        %v10984 = vadd.f32 %v10664, %v10983
        %v10985 = vpop.f32.mrb[0].mxu0
        %10986 = vdwg.mxu0
        %v10987 = vadd.f32 %v10829, %v8403
        %v10988 = vadd.f32 %v10834, %v8404
        %v10989 = vadd.f32 %v10839, %v8405
        %v10990 = vadd.f32 %v10844, %v8406
        %v10991 = vadd.f32 %v10849, %v8407
        %v10992 = vadd.f32 %v10854, %v8408
        %v10993 = vadd.f32 %v10859, %v8409
        %v10994 = vadd.f32 %v10864, %v8410
        %v10995 = vadd.f32 %v10869, %v8411
        %v10996 = vadd.f32 %v10874, %v8412
        %v10997 = vadd.f32 %v10879, %v8413
        %v10998 = vadd.f32 %v10884, %v8414
        %v10999 = vadd.f32 %v10889, %v8415
        %v11000 = vadd.f32 %v10894, %v8416
        %v11001 = vadd.f32 %v10899, %v8417
        %v11002 = vadd.f32 %v10904, %v8418
        %v11003 = vadd.f32 %v10909, %v8419
        %v11004 = vadd.f32 %v10914, %v8420
        %v11005 = vadd.f32 %v10919, %v8421
        %v11006 = vadd.f32 %v10924, %v8422
        %v11007 = vadd.f32 %v10929, %v8423
        %v11008 = vadd.f32 %v10934, %v8424
        %v11009 = vadd.f32 %v10939, %v8425
        %v11010 = vadd.f32 %v10944, %v8426
        %v11011 = vadd.f32 %v10949, %v8427
        %v11012 = vadd.f32 %v10954, %v8428
        %v11013 = vadd.f32 %v10959, %v8429
        %v11014 = vadd.f32 %v10964, %v8430
        %v11015 = vadd.f32 %v10969, %v8431
        %v11016 = vadd.f32 %v10974, %v8432
        %v11017 = vadd.f32 %v10979, %v8433
        %v11018 = vadd.f32 %v10984, %v8434
        %v11020 = vlaneseq
        %v11021 = vshrl.u32 %v11020, 7
        %v11022 = vsub.s32 0, %v11021
        %v11023 = vrot.slane %v1421, %v11022
        %v11026 = vsel %vm1826, %v10987, 0
        %v11029 = vsel %vm1826, %v10988, 0
        %v11032 = vsel %vm1826, %v10989, 0
        %v11035 = vsel %vm1826, %v10990, 0
        %v11038 = vsel %vm1826, %v10991, 0
        %v11041 = vsel %vm1826, %v10992, 0
        %v11044 = vsel %vm1826, %v10993, 0
        %v11047 = vsel %vm1826, %v10994, 0
        %v11050 = vsel %vm1826, %v10995, 0
        %v11053 = vsel %vm1826, %v10996, 0
        %v11056 = vsel %vm1826, %v10997, 0
        %v11059 = vsel %vm1826, %v10998, 0
        %v11062 = vsel %vm1826, %v10999, 0
        %v11065 = vsel %vm1826, %v11000, 0
        %v11068 = vsel %vm1826, %v11001, 0
        %v11071 = vsel %vm1826, %v11002, 0
        %v11074 = vsel %vm1826, %v11003, 0
        %v11077 = vsel %vm1826, %v11004, 0
        %v11080 = vsel %vm1826, %v11005, 0
        %v11083 = vsel %vm1826, %v11006, 0
        %v11086 = vsel %vm1826, %v11007, 0
        %v11089 = vsel %vm1826, %v11008, 0
        %v11092 = vsel %vm1826, %v11009, 0
        %v11095 = vsel %vm1826, %v11010, 0
        %v11098 = vsel %vm1826, %v11011, 0
        %v11101 = vsel %vm1826, %v11012, 0
        %v11104 = vsel %vm1826, %v11013, 0
        %v11107 = vsel %vm1826, %v11014, 0
        %v11110 = vsel %vm1826, %v11015, 0
        %v11113 = vsel %vm1826, %v11016, 0
        %v11116 = vsel %vm1826, %v11017, 0
        %v11119 = vsel %vm1826, %v11018, 0
        %11121 = vmatprep.subr.mxu0 0.0
        %11122 = vmatpush1.msra.mxu0 %v1417
        %11123 = vmatprep.subr.mxu0 0.0
        %11124 = vmatpush1.msra.mxu0 %v1418
        %11125 = vmatprep.subr.mxu0 0.0
        %11126 = vmatpush1.msra.mxu0 %v1419
        %11127 = vmatprep.subr.mxu0 0.0
        %11128 = vmatpush1.msra.mxu0 %v1420
        %11129 = vmatprep.subr.mxu0 0.0
        %11130 = vmatpush1.msra.mxu0 0.0
        %11131 = vmatprep.subr.mxu0 0.0
        %11132 = vmatpush1.msra.mxu0 0.0
        %11133 = vmatprep.subr.mxu0 0.0
        %11134 = vmatpush1.msra.mxu0 0.0
        %11135 = vmatprep.subr.mxu0 0.0
        %11136 = vmatpush1.msra.mxu0 0.0
        %11137 = vmatprep.subr.mxu0 0.0
        %11138 = vmatpush1.msra.mxu0 0.0
        %11139 = vmatprep.subr.mxu0 0.0
        %11140 = vmatpush1.msra.mxu0 0.0
        %11141 = vmatprep.subr.mxu0 0.0
        %11142 = vmatpush1.msra.mxu0 0.0
        %11143 = vmatprep.subr.mxu0 0.0
        %11144 = vmatpush1.msra.mxu0 0.0
        %11145 = vmatprep.subr.mxu0 0.0
        %11146 = vmatpush1.msra.mxu0 0.0
        %11147 = vmatprep.subr.mxu0 0.0
        %11148 = vmatpush1.msra.mxu0 0.0
        %11149 = vmatprep.subr.mxu0 0.0
        %11150 = vmatpush1.msra.mxu0 0.0
        %11151 = vmatprep.subr.mxu0 0.0
        %11152 = vmatpush1.msra.mxu0 0.0
        %11153 = vmatprep.subr.mxu0 0.0
        %11154 = vmatpush1.msra.mxu0 0.0
        %11155 = vmatprep.subr.mxu0 0.0
        %11156 = vmatpush1.msra.mxu0 0.0
        %11157 = vmatprep.subr.mxu0 0.0
        %11158 = vmatpush1.msra.mxu0 0.0
        %11159 = vmatprep.subr.mxu0 0.0
        %11160 = vmatpush1.msra.mxu0 0.0
        %11161 = vmatprep.subr.mxu0 0.0
        %11162 = vmatpush1.msra.mxu0 0.0
        %11163 = vmatprep.subr.mxu0 0.0
        %11164 = vmatpush1.msra.mxu0 0.0
        %11165 = vmatprep.subr.mxu0 0.0
        %11166 = vmatpush1.msra.mxu0 0.0
        %11167 = vmatprep.subr.mxu0 0.0
        %11168 = vmatpush1.msra.mxu0 0.0
        %11169 = vmatprep.subr.mxu0 0.0
        %11170 = vmatpush1.msra.mxu0 0.0
        %11171 = vmatprep.subr.mxu0 0.0
        %11172 = vmatpush1.msra.mxu0 0.0
        %11173 = vmatprep.subr.mxu0 0.0
        %11174 = vmatpush1.msra.mxu0 0.0
        %11175 = vmatprep.subr.mxu0 0.0
        %11176 = vmatpush1.msra.mxu0 0.0
        %11177 = vmatprep.subr.mxu0 0.0
        %11178 = vmatpush1.msra.mxu0 0.0
        %11179 = vmatprep.subr.mxu0 0.0
        %11180 = vmatpush1.msra.mxu0 0.0
        %11181 = vmatprep.subr.mxu0 0.0
        %11182 = vmatpush1.msra.mxu0 0.0
        %11183 = vmatprep.subr.mxu0 0.0
        %11184 = vmatpush1.msra.mxu0 0.0
        %11185 = vmatprep.mubr.f32.mxu0 0.0
        %11186 = vmatmul.mubr.f32.gmra.mrb[0].mxu0 %v11026
        %v11187 = vpop.f32.mrb[0].mxu0
        %v11188 = vadd.f32 %v11023, %v11187
        %v11189 = vpop.f32.mrb[0].mxu0
        %11190 = vmatprep.mubr.f32.mxu0 0.0
        %11191 = vmatmul.mubr.f32.gmra.mrb[0].mxu0 %v11029
        %v11192 = vpop.f32.mrb[0].mxu0
        %v11193 = vadd.f32 %v11023, %v11192
        %v11194 = vpop.f32.mrb[0].mxu0
        %11195 = vmatprep.mubr.f32.mxu0 0.0
        %11196 = vmatmul.mubr.f32.gmra.mrb[0].mxu0 %v11032
        %v11197 = vpop.f32.mrb[0].mxu0
        %v11198 = vadd.f32 %v11023, %v11197
        %v11199 = vpop.f32.mrb[0].mxu0
        %11200 = vmatprep.mubr.f32.mxu0 0.0
        %11201 = vmatmul.mubr.f32.gmra.mrb[0].mxu0 %v11035
        %v11202 = vpop.f32.mrb[0].mxu0
        %v11203 = vadd.f32 %v11023, %v11202
        %v11204 = vpop.f32.mrb[0].mxu0
        %11205 = vmatprep.mubr.f32.mxu0 0.0
        %11206 = vmatmul.mubr.f32.gmra.mrb[0].mxu0 %v11038
        %v11207 = vpop.f32.mrb[0].mxu0
        %v11208 = vadd.f32 %v11023, %v11207
        %v11209 = vpop.f32.mrb[0].mxu0
        %11210 = vmatprep.mubr.f32.mxu0 0.0
        %11211 = vmatmul.mubr.f32.gmra.mrb[0].mxu0 %v11041
        %v11212 = vpop.f32.mrb[0].mxu0
        %v11213 = vadd.f32 %v11023, %v11212
        %v11214 = vpop.f32.mrb[0].mxu0
        %11215 = vmatprep.mubr.f32.mxu0 0.0
        %11216 = vmatmul.mubr.f32.gmra.mrb[0].mxu0 %v11044
        %v11217 = vpop.f32.mrb[0].mxu0
        %v11218 = vadd.f32 %v11023, %v11217
        %v11219 = vpop.f32.mrb[0].mxu0
        %11220 = vmatprep.mubr.f32.mxu0 0.0
        %11221 = vmatmul.mubr.f32.gmra.mrb[0].mxu0 %v11047
        %v11222 = vpop.f32.mrb[0].mxu0
        %v11223 = vadd.f32 %v11023, %v11222
        %v11224 = vpop.f32.mrb[0].mxu0
        %11225 = vmatprep.mubr.f32.mxu0 0.0
        %11226 = vmatmul.mubr.f32.gmra.mrb[0].mxu0 %v11050
        %v11227 = vpop.f32.mrb[0].mxu0
        %v11228 = vadd.f32 %v11023, %v11227
        %v11229 = vpop.f32.mrb[0].mxu0
        %11230 = vmatprep.mubr.f32.mxu0 0.0
        %11231 = vmatmul.mubr.f32.gmra.mrb[0].mxu0 %v11053
        %v11232 = vpop.f32.mrb[0].mxu0
        %v11233 = vadd.f32 %v11023, %v11232
        %v11234 = vpop.f32.mrb[0].mxu0
        %11235 = vmatprep.mubr.f32.mxu0 0.0
        %11236 = vmatmul.mubr.f32.gmra.mrb[0].mxu0 %v11056
        %v11237 = vpop.f32.mrb[0].mxu0
        %v11238 = vadd.f32 %v11023, %v11237
        %v11239 = vpop.f32.mrb[0].mxu0
        %11240 = vmatprep.mubr.f32.mxu0 0.0
        %11241 = vmatmul.mubr.f32.gmra.mrb[0].mxu0 %v11059
        %v11242 = vpop.f32.mrb[0].mxu0
        %v11243 = vadd.f32 %v11023, %v11242
        %v11244 = vpop.f32.mrb[0].mxu0
        %11245 = vmatprep.mubr.f32.mxu0 0.0
        %11246 = vmatmul.mubr.f32.gmra.mrb[0].mxu0 %v11062
        %v11247 = vpop.f32.mrb[0].mxu0
        %v11248 = vadd.f32 %v11023, %v11247
        %v11249 = vpop.f32.mrb[0].mxu0
        %11250 = vmatprep.mubr.f32.mxu0 0.0
        %11251 = vmatmul.mubr.f32.gmra.mrb[0].mxu0 %v11065
        %v11252 = vpop.f32.mrb[0].mxu0
        %v11253 = vadd.f32 %v11023, %v11252
        %v11254 = vpop.f32.mrb[0].mxu0
        %11255 = vmatprep.mubr.f32.mxu0 0.0
        %11256 = vmatmul.mubr.f32.gmra.mrb[0].mxu0 %v11068
        %v11257 = vpop.f32.mrb[0].mxu0
        %v11258 = vadd.f32 %v11023, %v11257
        %v11259 = vpop.f32.mrb[0].mxu0
        %11260 = vmatprep.mubr.f32.mxu0 0.0
        %11261 = vmatmul.mubr.f32.gmra.mrb[0].mxu0 %v11071
        %v11262 = vpop.f32.mrb[0].mxu0
        %v11263 = vadd.f32 %v11023, %v11262
        %v11264 = vpop.f32.mrb[0].mxu0
        %11265 = vmatprep.mubr.f32.mxu0 0.0
        %11266 = vmatmul.mubr.f32.gmra.mrb[0].mxu0 %v11074
        %v11267 = vpop.f32.mrb[0].mxu0
        %v11268 = vadd.f32 %v11023, %v11267
        %v11269 = vpop.f32.mrb[0].mxu0
        %11270 = vmatprep.mubr.f32.mxu0 0.0
        %11271 = vmatmul.mubr.f32.gmra.mrb[0].mxu0 %v11077
        %v11272 = vpop.f32.mrb[0].mxu0
        %v11273 = vadd.f32 %v11023, %v11272
        %v11274 = vpop.f32.mrb[0].mxu0
        %11275 = vmatprep.mubr.f32.mxu0 0.0
        %11276 = vmatmul.mubr.f32.gmra.mrb[0].mxu0 %v11080
        %v11277 = vpop.f32.mrb[0].mxu0
        %v11278 = vadd.f32 %v11023, %v11277
        %v11279 = vpop.f32.mrb[0].mxu0
        %11280 = vmatprep.mubr.f32.mxu0 0.0
        %11281 = vmatmul.mubr.f32.gmra.mrb[0].mxu0 %v11083
        %v11282 = vpop.f32.mrb[0].mxu0
        %v11283 = vadd.f32 %v11023, %v11282
        %v11284 = vpop.f32.mrb[0].mxu0
        %11285 = vmatprep.mubr.f32.mxu0 0.0
        %11286 = vmatmul.mubr.f32.gmra.mrb[0].mxu0 %v11086
        %v11287 = vpop.f32.mrb[0].mxu0
        %v11288 = vadd.f32 %v11023, %v11287
        %v11289 = vpop.f32.mrb[0].mxu0
        %11290 = vmatprep.mubr.f32.mxu0 0.0
        %11291 = vmatmul.mubr.f32.gmra.mrb[0].mxu0 %v11089
        %v11292 = vpop.f32.mrb[0].mxu0
        %v11293 = vadd.f32 %v11023, %v11292
        %v11294 = vpop.f32.mrb[0].mxu0
        %11295 = vmatprep.mubr.f32.mxu0 0.0
        %11296 = vmatmul.mubr.f32.gmra.mrb[0].mxu0 %v11092
        %v11297 = vpop.f32.mrb[0].mxu0
        %v11298 = vadd.f32 %v11023, %v11297
        %v11299 = vpop.f32.mrb[0].mxu0
        %11300 = vmatprep.mubr.f32.mxu0 0.0
        %11301 = vmatmul.mubr.f32.gmra.mrb[0].mxu0 %v11095
        %v11302 = vpop.f32.mrb[0].mxu0
        %v11303 = vadd.f32 %v11023, %v11302
        %v11304 = vpop.f32.mrb[0].mxu0
        %11305 = vmatprep.mubr.f32.mxu0 0.0
        %11306 = vmatmul.mubr.f32.gmra.mrb[0].mxu0 %v11098
        %v11307 = vpop.f32.mrb[0].mxu0
        %v11308 = vadd.f32 %v11023, %v11307
        %v11309 = vpop.f32.mrb[0].mxu0
        %11310 = vmatprep.mubr.f32.mxu0 0.0
        %11311 = vmatmul.mubr.f32.gmra.mrb[0].mxu0 %v11101
        %v11312 = vpop.f32.mrb[0].mxu0
        %v11313 = vadd.f32 %v11023, %v11312
        %v11314 = vpop.f32.mrb[0].mxu0
        %11315 = vmatprep.mubr.f32.mxu0 0.0
        %11316 = vmatmul.mubr.f32.gmra.mrb[0].mxu0 %v11104
        %v11317 = vpop.f32.mrb[0].mxu0
        %v11318 = vadd.f32 %v11023, %v11317
        %v11319 = vpop.f32.mrb[0].mxu0
        %11320 = vmatprep.mubr.f32.mxu0 0.0
        %11321 = vmatmul.mubr.f32.gmra.mrb[0].mxu0 %v11107
        %v11322 = vpop.f32.mrb[0].mxu0
        %v11323 = vadd.f32 %v11023, %v11322
        %v11324 = vpop.f32.mrb[0].mxu0
        %11325 = vmatprep.mubr.f32.mxu0 0.0
        %11326 = vmatmul.mubr.f32.gmra.mrb[0].mxu0 %v11110
        %v11327 = vpop.f32.mrb[0].mxu0
        %v11328 = vadd.f32 %v11023, %v11327
        %v11329 = vpop.f32.mrb[0].mxu0
        %11330 = vmatprep.mubr.f32.mxu0 0.0
        %11331 = vmatmul.mubr.f32.gmra.mrb[0].mxu0 %v11113
        %v11332 = vpop.f32.mrb[0].mxu0
        %v11333 = vadd.f32 %v11023, %v11332
        %v11334 = vpop.f32.mrb[0].mxu0
        %11335 = vmatprep.mubr.f32.mxu0 0.0
        %11336 = vmatmul.mubr.f32.gmra.mrb[0].mxu0 %v11116
        %v11337 = vpop.f32.mrb[0].mxu0
        %v11338 = vadd.f32 %v11023, %v11337
        %v11339 = vpop.f32.mrb[0].mxu0
        %11340 = vmatprep.mubr.f32.mxu0 0.0
        %11341 = vmatmul.mubr.f32.gmra.mrb[0].mxu0 %v11119
        %v11342 = vpop.f32.mrb[0].mxu0
        %v11343 = vadd.f32 %v11023, %v11342
        %v11344 = vpop.f32.mrb[0].mxu0
        %11345 = vdwg.mxu0
        %v11346 = vmax.f32 %v11188, 0.0
        %v11347 = vmax.f32 %v11193, 0.0
        %v11348 = vmax.f32 %v11198, 0.0
        %v11349 = vmax.f32 %v11203, 0.0
        %v11350 = vmax.f32 %v11208, 0.0
        %v11351 = vmax.f32 %v11213, 0.0
        %v11352 = vmax.f32 %v11218, 0.0
        %v11353 = vmax.f32 %v11223, 0.0
        %v11354 = vmax.f32 %v11228, 0.0
        %v11355 = vmax.f32 %v11233, 0.0
        %v11356 = vmax.f32 %v11238, 0.0
        %v11357 = vmax.f32 %v11243, 0.0
        %v11358 = vmax.f32 %v11248, 0.0
        %v11359 = vmax.f32 %v11253, 0.0
        %v11360 = vmax.f32 %v11258, 0.0
        %v11361 = vmax.f32 %v11263, 0.0
        %v11362 = vmax.f32 %v11268, 0.0
        %v11363 = vmax.f32 %v11273, 0.0
        %v11364 = vmax.f32 %v11278, 0.0
        %v11365 = vmax.f32 %v11283, 0.0
        %v11366 = vmax.f32 %v11288, 0.0
        %v11367 = vmax.f32 %v11293, 0.0
        %v11368 = vmax.f32 %v11298, 0.0
        %v11369 = vmax.f32 %v11303, 0.0
        %v11370 = vmax.f32 %v11308, 0.0
        %v11371 = vmax.f32 %v11313, 0.0
        %v11372 = vmax.f32 %v11318, 0.0
        %v11373 = vmax.f32 %v11323, 0.0
        %v11374 = vmax.f32 %v11328, 0.0
        %v11375 = vmax.f32 %v11333, 0.0
        %v11376 = vmax.f32 %v11338, 0.0
        %v11377 = vmax.f32 %v11343, 0.0
        %11379 = vset.pattern.permute.xlu0 0
        %11380 = vperm.xlu0 %11379, %v1423
        %v11381 = vpop.permute.xlu0 %11380
        %v11384 = vsel %vm2507, %v1422, 0
        %v11387 = vsel %vm2507, %v11346, 0
        %v11390 = vsel %vm2507, %v11347, 0
        %v11393 = vsel %vm2507, %v11348, 0
        %v11396 = vsel %vm2507, %v11349, 0
        %v11399 = vsel %vm2507, %v11350, 0
        %v11402 = vsel %vm2507, %v11351, 0
        %v11405 = vsel %vm2507, %v11352, 0
        %v11408 = vsel %vm2507, %v11353, 0
        %v11411 = vsel %vm2507, %v11354, 0
        %v11414 = vsel %vm2507, %v11355, 0
        %v11417 = vsel %vm2507, %v11356, 0
        %v11420 = vsel %vm2507, %v11357, 0
        %v11423 = vsel %vm2507, %v11358, 0
        %v11426 = vsel %vm2507, %v11359, 0
        %v11429 = vsel %vm2507, %v11360, 0
        %v11432 = vsel %vm2507, %v11361, 0
        %v11435 = vsel %vm2507, %v11362, 0
        %v11438 = vsel %vm2507, %v11363, 0
        %v11441 = vsel %vm2507, %v11364, 0
        %v11444 = vsel %vm2507, %v11365, 0
        %v11447 = vsel %vm2507, %v11366, 0
        %v11450 = vsel %vm2507, %v11367, 0
        %v11453 = vsel %vm2507, %v11368, 0
        %v11456 = vsel %vm2507, %v11369, 0
        %v11459 = vsel %vm2507, %v11370, 0
        %v11462 = vsel %vm2507, %v11371, 0
        %v11465 = vsel %vm2507, %v11372, 0
        %v11468 = vsel %vm2507, %v11373, 0
        %v11471 = vsel %vm2507, %v11374, 0
        %v11474 = vsel %vm2507, %v11375, 0
        %v11477 = vsel %vm2507, %v11376, 0
        %v11480 = vsel %vm2507, %v11377, 0
        %11482 = vmatprep.subr.mxu0 0.0
        %11483 = vmatpush1.xpose.msra.mxu0 %v11387
        %11484 = vmatprep.subr.mxu0 0.0
        %11485 = vmatpush1.xpose.msra.mxu0 %v11390
        %11486 = vmatprep.subr.mxu0 0.0
        %11487 = vmatpush1.xpose.msra.mxu0 %v11393
        %11488 = vmatprep.subr.mxu0 0.0
        %11489 = vmatpush1.xpose.msra.mxu0 %v11396
        %11490 = vmatprep.subr.mxu0 0.0
        %11491 = vmatpush1.xpose.msra.mxu0 %v11399
        %11492 = vmatprep.subr.mxu0 0.0
        %11493 = vmatpush1.xpose.msra.mxu0 %v11402
        %11494 = vmatprep.subr.mxu0 0.0
        %11495 = vmatpush1.xpose.msra.mxu0 %v11405
        %11496 = vmatprep.subr.mxu0 0.0
        %11497 = vmatpush1.xpose.msra.mxu0 %v11408
        %11498 = vmatprep.subr.mxu0 0.0
        %11499 = vmatpush1.xpose.msra.mxu0 %v11411
        %11500 = vmatprep.subr.mxu0 0.0
        %11501 = vmatpush1.xpose.msra.mxu0 %v11414
        %11502 = vmatprep.subr.mxu0 0.0
        %11503 = vmatpush1.xpose.msra.mxu0 %v11417
        %11504 = vmatprep.subr.mxu0 0.0
        %11505 = vmatpush1.xpose.msra.mxu0 %v11420
        %11506 = vmatprep.subr.mxu0 0.0
        %11507 = vmatpush1.xpose.msra.mxu0 %v11423
        %11508 = vmatprep.subr.mxu0 0.0
        %11509 = vmatpush1.xpose.msra.mxu0 %v11426
        %11510 = vmatprep.subr.mxu0 0.0
        %11511 = vmatpush1.xpose.msra.mxu0 %v11429
        %11512 = vmatprep.subr.mxu0 0.0
        %11513 = vmatpush1.xpose.msra.mxu0 %v11432
        %11514 = vmatprep.subr.mxu0 0.0
        %11515 = vmatpush1.xpose.msra.mxu0 %v11435
        %11516 = vmatprep.subr.mxu0 0.0
        %11517 = vmatpush1.xpose.msra.mxu0 %v11438
        %11518 = vmatprep.subr.mxu0 0.0
        %11519 = vmatpush1.xpose.msra.mxu0 %v11441
        %11520 = vmatprep.subr.mxu0 0.0
        %11521 = vmatpush1.xpose.msra.mxu0 %v11444
        %11522 = vmatprep.subr.mxu0 0.0
        %11523 = vmatpush1.xpose.msra.mxu0 %v11447
        %11524 = vmatprep.subr.mxu0 0.0
        %11525 = vmatpush1.xpose.msra.mxu0 %v11450
        %11526 = vmatprep.subr.mxu0 0.0
        %11527 = vmatpush1.xpose.msra.mxu0 %v11453
        %11528 = vmatprep.subr.mxu0 0.0
        %11529 = vmatpush1.xpose.msra.mxu0 %v11456
        %11530 = vmatprep.subr.mxu0 0.0
        %11531 = vmatpush1.xpose.msra.mxu0 %v11459
        %11532 = vmatprep.subr.mxu0 0.0
        %11533 = vmatpush1.xpose.msra.mxu0 %v11462
        %11534 = vmatprep.subr.mxu0 0.0
        %11535 = vmatpush1.xpose.msra.mxu0 %v11465
        %11536 = vmatprep.subr.mxu0 0.0
        %11537 = vmatpush1.xpose.msra.mxu0 %v11468
        %11538 = vmatprep.subr.mxu0 0.0
        %11539 = vmatpush1.xpose.msra.mxu0 %v11471
        %11540 = vmatprep.subr.mxu0 0.0
        %11541 = vmatpush1.xpose.msra.mxu0 %v11474
        %11542 = vmatprep.subr.mxu0 0.0
        %11543 = vmatpush1.xpose.msra.mxu0 %v11477
        %11544 = vmatprep.subr.mxu0 0.0
        %11545 = vmatpush1.xpose.msra.mxu0 %v11480
        %11546 = vmatprep.mubr.f32.mxu0 0.0
        %11547 = vmatmul.mubr.f32.gmra.mrb[0].mxu0 %v11384
        %v11548 = vpop.f32.mrb[0].mxu0
        %v11549 = vadd.f32 %v11381, %v11548
        %v11550 = vpop.f32.mrb[0].mxu0
        %v11551 = vadd.f32 %v11381, %v11550
        %11552 = vdwg.mxu0
        %v11555 = vcombine.low %v11549, %v11551
        %11557 = vst [vmem:[%s1201] sm:$0xff] %v11555
        %p11558 = scmp.lt.s32.totalorder %s85, 1
        %s11559 = scalar_select %p11558, %s85, 1
        %s11560 = smul.addr %s11559, 2
        %s11561 = smul.addr %s11560, 4
        %s11562 = scalar_lea.vmem %s67, %s11561
        // Predicated region
        $region205: #{gated_pixelcnn_forward.1} parent=151 // pred_check
          %p11563 = pneg %p801
        $region206: #{gated_pixelcnn_forward.1} parent=151 // pred_check_branch
          %11565 = sbr.rel (%p11563) target = $region208
        $region207: #{gated_pixelcnn_forward.1} parent=151 // pred_region
          _
        $region208: #{gated_pixelcnn_forward.1} parent=151 // pred_fallthru
          _
      $region152: #{gated_pixelcnn_forward.1} parent=5 // pred_fallthru
        _
      %p11566 = scmp.le.s32.totalorder 2, %s80
      // Predicated region
      $region209: #{gated_pixelcnn_forward.1} parent=5 // pred_check
        %p11567 = pneg %p11566
      $region210: #{gated_pixelcnn_forward.1} parent=5 // pred_check_branch
        %11569 = sbr.rel (%p11567) target = $region212
      $region211: #{gated_pixelcnn_forward.1} parent=5 // pred_region
        %s11570 = ssub.s32 %s80, 2
        // Predicated region
        $region213: #{gated_pixelcnn_forward.1} parent=211 // pred_check
          %p11571 = pneg %p807
        $region214: #{gated_pixelcnn_forward.1} parent=211 // pred_check_branch
          %11573 = sbr.rel (%p11571) target = $region216
        $region215: #{gated_pixelcnn_forward.1} parent=211 // pred_region
          %p11574 = scmp.lt.s32.totalorder %s86, 1
          %s11575 = scalar_select %p11574, %s86, 1
          %s11576 = smul.addr %s11575, 2
          %s11577 = smul.addr %s11576, 4
          %s11578 = scalar_lea.vmem %s67, %s11577
        $region216: #{gated_pixelcnn_forward.1} parent=211 // pred_fallthru
          _
      $region212: #{gated_pixelcnn_forward.1} parent=5 // pred_fallthru
        _
    $region6: #{gated_pixelcnn_forward.1} parent=1 // loop_footer
      %s84 = sadd.s32 1, %s80
    $region7: #{gated_pixelcnn_forward.1} parent=1 // loop_footer_branch
      %79 = sbr.rel target = $region3
    $region8: #{gated_pixelcnn_forward.1} parent=1 // loop_exit
      _
    %11579 = vsyncpa [#allocation3], 1
    %s11580 = scalar_lea.sflag [#allocation3], 1
    %11581 = vsyncpa %s11580, 1
    %11582 = vsyncpa [#allocation5], 1
    %11583 = vsyncpa [#allocation8], 1
    %11584 = vsyncpa [#allocation11], 1
    %11585 = vsyncpa [#allocation14], 1
    %11586 = vsyncpa [#allocation17], 1
    %11587 = vsyncpa [#allocation20], 1

</llo_original>
